<compile_context>
chip_gen: v7x
topology: tpu7x:2x2x1
jax: 0.10.0
libtpu: 0.0.40
codegen_flags: <defaults>
</compile_context>

<pallas_src>
import functools

import jax
import jax.numpy as jnp
from jax.experimental import pallas as pl
from jax.experimental.pallas import tpu as pltpu

GROUPS = 32          # torch.nn.GroupNorm(num_groups=32, ...)
EPS = 1e-6
PREC_HI = jax.lax.Precision.HIGHEST   # only for the tiny GroupNorm stat dots


def _round_up(x, m):
    return (x + m - 1) // m * m


def _resnet_block_kernel(H, W, Cin, Cout, same, *refs):
    if same:
        (x_ref, tproj_ref,
         g1_ref, b1_ref, w1_ref, cb1_ref,
         g2_ref, b2_ref, w2_ref, cb2_ref,
         m1_ref, m1t_ref, m2_ref, m2t_ref, gm_ref,
         o_ref, pad1_ref, acc_ref) = refs
        sw_ref = sb_ref = None
        pad2_ref = pad1_ref
    else:
        (x_ref, tproj_ref,
         g1_ref, b1_ref, w1_ref, cb1_ref,
         g2_ref, b2_ref, w2_ref, cb2_ref,
         sw_ref, sb_ref,
         m1_ref, m1t_ref, m2_ref, m2t_ref, gm_ref,
         o_ref, pad1_ref, pad2_ref, acc_ref) = refs

    f32 = jnp.float32
    HW = H * W
    P = W + 1                       # row pitch inside the padded scratch
    HPa = acc_ref.shape[0]          # pitched accumulator rows (>= H*P, 8-aligned)
    base = P + 1                    # pad row of image pixel (0, 0)

    # Zero the pitched scratches every step (halo rows, per-row gap slots and
    # the alignment tail must be zero; per-step keeps "parallel" megacore
    # sharding correct because every core owns a private, uninitialized copy).
    pad1_ref[...] = jnp.zeros(pad1_ref.shape, jnp.bfloat16)
    if not same:
        pad2_ref[...] = jnp.zeros(pad2_ref.shape, jnp.bfloat16)

    def gn_stats(sum_fn, sq_fn, m_ref, mt_ref, C):
        # Two-pass GroupNorm statistics: channel sums -> group mean, then
        # channel sums of squared deviations -> group variance.
        cnt = float(HW * (C // GROUPS))
        s1 = sum_fn()                                                  # [1, C]
        gmean = jnp.dot(s1, m_ref[...], precision=PREC_HI,
                        preferred_element_type=f32) / cnt              # [1, G]
        mean_c = jnp.dot(gmean, mt_ref[...], precision=PREC_HI,
                         preferred_element_type=f32)                   # [1, C]
        s2 = sq_fn(mean_c)                                             # [1, C]
        gvar = jnp.dot(s2, m_ref[...], precision=PREC_HI,
                       preferred_element_type=f32) / cnt               # [1, G]
        var_c = jnp.dot(gvar, mt_ref[...], precision=PREC_HI,
                        preferred_element_type=f32)                    # [1, C]
        return mean_c, jax.lax.rsqrt(var_c + EPS)

    def gn_swish_rows_to_pad(read_row, mean_c, inv_c, gamma_ref, beta_ref,
                             pad_ref):
        # Fused GroupNorm epilogue: per image row, normalize+affine+swish,
        # cast to bf16 and write straight into the pitched scratch.  No full
        # [HW, C] f32 temporary stays live across the convolution.
        scale = gamma_ref[...] * inv_c                    # [1, C]
        shift = beta_ref[...] - mean_c * scale            # [1, C]
        for y in range(H):
            hn = read_row(y) * scale + shift              # [W, C] f32
            act = hn * jax.nn.sigmoid(hn)                 # swish
            pad_ref[base + y * P: base + y * P + W, :] = act.astype(jnp.bfloat16)

    def conv3x3(pad_ref, w_ref):
        # 3x3 / stride 1 / pad 1 cross-correlation: the 9 taps are static
        # offset slices of the pitched scratch; every out-of-image tap reads a
        # permanently-zero gap/halo row, so no masks at all.  bf16 operands,
        # f32 MXU accumulation into the (pitched) VMEM accumulator.
        for dy in range(3):
            for dx in range(3):
                start = dy * P + dx
                acc_ref[...] += jnp.dot(pad_ref[start:start + HPa, :],
                                        w_ref[dy * 3 + dx],
                                        preferred_element_type=f32)

    # ---------- norm1 -> swish -> conv1 (+ bias + temb projection) ----------
    mean1, inv1 = gn_stats(
        lambda: jnp.sum(x_ref[...].astype(f32), axis=0, keepdims=True),
        lambda mc: jnp.sum(jnp.square(x_ref[...].astype(f32) - mc),
                           axis=0, keepdims=True),
        m1_ref, m1t_ref, Cin)
    gn_swish_rows_to_pad(lambda y: x_ref[y * W:(y + 1) * W, :].astype(f32),
                         mean1, inv1, g1_ref, b1_ref, pad1_ref)

    acc_ref[...] = jnp.broadcast_to(cb1_ref[...] + tproj_ref[...], (HPa, Cout))
    conv3x3(pad1_ref, w1_ref)

    # ---------- norm2 -> swish -> dropout(eval: identity) -> conv2 ----------
    # acc_ref holds the conv1 output in the pitched layout; gap / halo /
    # alignment rows contain junk, so the statistics mask them out (gm_ref).
    gmask = gm_ref[...]                                    # [HPa, 1] f32 0/1
    mean2, inv2 = gn_stats(
        lambda: jnp.sum(acc_ref[...] * gmask, axis=0, keepdims=True),
        lambda mc: jnp.sum(jnp.square((acc_ref[...] - mc) * gmask),
                           axis=0, keepdims=True),
        m2_ref, m2t_ref, Cout)
    gn_swish_rows_to_pad(lambda y: acc_ref[y * P: y * P + W, :],
                         mean2, inv2, g2_ref, b2_ref, pad2_ref)

    acc_ref[...] = jnp.broadcast_to(cb2_ref[...], (HPa, Cout))
    conv3x3(pad2_ref, w2_ref)

    # ---------- residual add + un-pitch the accumulator into the output -----
    if same:
        read_sc = lambda y: x_ref[y * W:(y + 1) * W, :].astype(f32)
    else:
        # nin_shortcut: 1x1 conv == per-pixel matmul (bf16 operands, f32 acc);
        # x is re-read from its VMEM block instead of being kept live.
        xs = jnp.dot(x_ref[...].astype(jnp.bfloat16), sw_ref[...],
                     preferred_element_type=f32) + sb_ref[...]
        read_sc = lambda y: xs[y * W:(y + 1) * W, :]
    for y in range(H):
        o_ref[y * W:(y + 1) * W, :] = (
            acc_ref[y * P: y * P + W, :] + read_sc(y)).astype(o_ref.dtype)


def _group_matrix(C):
    cs = C // GROUPS
    grp = jnp.arange(C) // cs
    return (grp[:, None] == jnp.arange(GROUPS)[None, :]).astype(jnp.float32)


def _const_spec(a):
    nd = a.ndim
    return pl.BlockSpec(a.shape, lambda n, _nd=nd: (0,) * _nd)


def resnet_block_forward(x_nchw, temb, params, *, H, W):
    """Inference forward of ResnetBlock.  x: [N,Cin,H,W] f32, temb: [N,Ct] f32.

    Conv weights are HWIO; `tw` is the transposed Linear weight [Ct, Cout];
    `sw`/`sb` ([Cin,Cout], [Cout]) only needed when Cin != Cout.
    """
    N, Cin = x_nchw.shape[0], x_nchw.shape[1]
    Cout = params["cb1"].shape[0]
    HW = H * W
    same = (Cin == Cout)

    P = W + 1
    HPa = _round_up(H * P, 8)               # pitched accumulator rows
    NP = _round_up(2 * P + 2 + HPa, 8)      # pitched (zero-halo) scratch rows

    # NCHW -> [N, HW, C] (channels on the lane axis).
    x_flat = jnp.transpose(x_nchw, (0, 2, 3, 1)).reshape(N, HW, Cin)
    x_flat = x_flat.astype(jnp.float32)

    # temb projection hoisted out of the kernel: one batched XLA matmul.
    t = temb.astype(jnp.float32)
    t = t * jax.nn.sigmoid(t)
    tproj = (jnp.dot(t, params["tw"]) + params["tb"]).reshape(N, 1, Cout)
    tproj = tproj.astype(jnp.float32)

    # Channel -> group aggregation matrices for GroupNorm statistics.
    m1 = _group_matrix(Cin)
    m2 = _group_matrix(Cout)

    # 0/1 mask of accumulator rows that hold real image pixels (not gap/halo).
    j = jnp.arange(HPa, dtype=jnp.int32)
    gm = ((j % P < W) & (j < H * P)).astype(jnp.float32).reshape(HPa, 1)

    # Conv weights in bf16 (MXU operand dtype; also halves VMEM footprint).
    w1 = params["w1"].reshape(9, Cin, Cout).astype(jnp.bfloat16)
    w2 = params["w2"].reshape(9, Cout, Cout).astype(jnp.bfloat16)

    args = [
        x_flat, tproj,
        params["g1"].reshape(1, Cin).astype(jnp.float32),
        params["b1"].reshape(1, Cin).astype(jnp.float32),
        w1, params["cb1"].reshape(1, Cout).astype(jnp.float32),
        params["g2"].reshape(1, Cout).astype(jnp.float32),
        params["b2"].reshape(1, Cout).astype(jnp.float32),
        w2, params["cb2"].reshape(1, Cout).astype(jnp.float32),
    ]
    if not same:
        args += [params["sw"].astype(jnp.bfloat16),
                 params["sb"].reshape(1, Cout).astype(jnp.float32)]
    args += [m1, m1.T, m2, m2.T, gm]

    in_specs = [
        pl.BlockSpec((None, HW, Cin), lambda n: (n, 0, 0)),   # x per batch item
        pl.BlockSpec((None, 1, Cout), lambda n: (n, 0, 0)),   # temb proj row
    ] + [_const_spec(a) for a in args[2:]]
    out_specs = pl.BlockSpec((None, HW, Cout), lambda n: (n, 0, 0))

    scratch_shapes = [pltpu.VMEM((NP, Cin), jnp.bfloat16)]        # pad1
    if not same:
        scratch_shapes.append(pltpu.VMEM((NP, Cout), jnp.bfloat16))  # pad2
    scratch_shapes.append(pltpu.VMEM((HPa, Cout), jnp.float32))      # conv acc

    # VMEM budget from actual block footprints, capped generation-aware
    # (7/8 of physical VMEM: ~56 MiB on v7x, ~112 MiB on v5e/v6e).
    est = 2 * 4 * HW * (Cin + Cout)                   # x / out blocks, 2-buffered
    est += 2 * 2 * 9 * (Cin * Cout + Cout * Cout)     # bf16 conv weights, 2-buf
    est += 2 * NP * (Cin + (0 if same else Cout))     # bf16 pitched scratches
    est += 4 * HPa * Cout                             # f32 conv accumulator
    est += 3 * 4 * HW * max(Cin, Cout)                # f32 temporaries headroom
    try:
        phys = int(pltpu.get_tpu_info().vmem_capacity_bytes)
    except Exception:
        phys = 64 * 2**20                             # conservative fallback
    cap = max((phys * 7) // 8, 32 * 2**20)
    vmem_limit = int(min(max(est, 32 * 2**20), cap))

    kernel = functools.partial(_resnet_block_kernel, H, W, Cin, Cout, same)

    out_flat = pl.pallas_call(
        kernel,
        out_shape=jax.ShapeDtypeStruct((N, HW, Cout), jnp.float32),
        grid=(N,),
        in_specs=in_specs,
        out_specs=out_specs,
        scratch_shapes=scratch_shapes,
        compiler_params=pltpu.CompilerParams(
            dimension_semantics=("parallel",),
            vmem_limit_bytes=vmem_limit),
    )(*args)

    return jnp.transpose(out_flat.reshape(N, H, W, Cout), (0, 3, 1, 2))


# --------------------- pure-JAX reference (for checking) ---------------------
# Matches the kernel's numerics: GroupNorm / swish / residual in f32; conv and
# 1x1-shortcut operands rounded through bf16 but contracted in f32 (same
# products + f32 accumulation as the MXU path, and no bf16 dots that the CPU
# DotThunk of interpret mode would reject).
def _bf16_round(a):
    return a.astype(jnp.bfloat16).astype(jnp.float32)


def _ref_forward(x, temb, params, same):
    def gn(h, gamma, beta):
        Nn, C, Hh, Ww = h.shape
        hr = h.reshape(Nn, GROUPS, (C // GROUPS) * Hh * Ww)
        m = hr.mean(-1, keepdims=True)
        v = hr.var(-1, keepdims=True)
        hr = (hr - m) / jnp.sqrt(v + EPS)
        hr = hr.reshape(Nn, C, Hh, Ww)
        return hr * gamma[None, :, None, None] + beta[None, :, None, None]

    def swish(z):
        return z * jax.nn.sigmoid(z)

    def conv(h, w_hwio, b):
        y = jax.lax.conv_general_dilated(
            _bf16_round(h), _bf16_round(w_hwio), (1, 1), "SAME",
            dimension_numbers=("NCHW", "HWIO", "NCHW"))
        return y + b[None, :, None, None]

    h = conv(swish(gn(x, params["g1"], params["b1"])), params["w1"], params["cb1"])
    h = h + (jnp.dot(swish(temb), params["tw"]) + params["tb"])[:, :, None, None]
    h = conv(swish(gn(h, params["g2"], params["b2"])), params["w2"], params["cb2"])
    if same:
        xs = x
    else:
        xs = (jnp.einsum("nchw,cd->ndhw", _bf16_round(x),
                         _bf16_round(params["sw"]))
              + params["sb"][None, :, None, None])
    return xs + h


if __name__ == "__main__":
    def make_params(key, Cin, Cout, Ct):
        keys = jax.random.split(key, 12)
        p = {
            "g1": 1.0 + 0.1 * jax.random.normal(keys[0], (Cin,), jnp.float32),
            "b1": 0.1 * jax.random.normal(keys[1], (Cin,), jnp.float32),
            "w1": 0.1 * jax.random.normal(keys[2], (3, 3, Cin, Cout), jnp.float32),
            "cb1": 0.1 * jax.random.normal(keys[3], (Cout,), jnp.float32),
            "tw": 0.1 * jax.random.normal(keys[4], (Ct, Cout), jnp.float32),
            "tb": 0.1 * jax.random.normal(keys[5], (Cout,), jnp.float32),
            "g2": 1.0 + 0.1 * jax.random.normal(keys[6], (Cout,), jnp.float32),
            "b2": 0.1 * jax.random.normal(keys[7], (Cout,), jnp.float32),
            "w2": 0.1 * jax.random.normal(keys[8], (3, 3, Cout, Cout), jnp.float32),
            "cb2": 0.1 * jax.random.normal(keys[9], (Cout,), jnp.float32),
        }
        if Cin != Cout:
            p["sw"] = 0.1 * jax.random.normal(keys[10], (Cin, Cout), jnp.float32)
            p["sb"] = 0.1 * jax.random.normal(keys[11], (Cout,), jnp.float32)
        return p

    key = jax.random.PRNGKey(0)
    k1, k2, k3, k4, k5, k6 = jax.random.split(key, 6)
    H, W, Ct = 8, 8, 64
    TOL = 2e-2   # kernel and reference share the bf16-operand / f32-acc path

    # case 1: Cin == Cout (identity shortcut)
    N, Cin, Cout = 2, 32, 32          # channels divisible by 32 (GroupNorm)
    params = make_params(k1, Cin, Cout, Ct)
    x = jax.random.normal(k2, (N, Cin, H, W), jnp.float32)
    temb = jax.random.normal(k3, (N, Ct), jnp.float32)
    out = jax.block_until_ready(resnet_block_forward(x, temb, params, H=H, W=W))
    ref = _ref_forward(x, temb, params, same=True)
    assert out.shape == (N, Cout, H, W), out.shape
    err = float(jnp.max(jnp.abs(out - ref)))
    assert err < TOL, f"same-channel path: max abs err {err}"

    # case 2: Cin != Cout (1x1 nin_shortcut)
    N2, Cin2, Cout2 = 1, 32, 64
    params2 = make_params(k4, Cin2, Cout2, Ct)
    x2 = jax.random.normal(k5, (N2, Cin2, H, W), jnp.float32)
    temb2 = jax.random.normal(k6, (N2, Ct), jnp.float32)
    out2 = jax.block_until_ready(resnet_block_forward(x2, temb2, params2, H=H, W=W))
    ref2 = _ref_forward(x2, temb2, params2, same=False)
    assert out2.shape == (N2, Cout2, H, W), out2.shape
    err2 = float(jnp.max(jnp.abs(out2 - ref2)))
    assert err2 < TOL, f"nin-shortcut path: max abs err {err2}"

    print("KERNEL_OK")
</pallas_src>

<mosaic_0001>
module attributes {stable_mosaic.version = 11 : i64} {
  func.func @_resnet_block_kernel(%arg0: i32, %arg1: memref<1x64x32xf32, #tpu.memory_space<vmem>>, %arg2: memref<1x1x32xf32, #tpu.memory_space<vmem>>, %arg3: memref<1x32xf32, #tpu.memory_space<vmem>>, %arg4: memref<1x32xf32, #tpu.memory_space<vmem>>, %arg5: memref<9x32x32xbf16, #tpu.memory_space<vmem>>, %arg6: memref<1x32xf32, #tpu.memory_space<vmem>>, %arg7: memref<1x32xf32, #tpu.memory_space<vmem>>, %arg8: memref<1x32xf32, #tpu.memory_space<vmem>>, %arg9: memref<9x32x32xbf16, #tpu.memory_space<vmem>>, %arg10: memref<1x32xf32, #tpu.memory_space<vmem>>, %arg11: memref<32x32xf32, #tpu.memory_space<vmem>>, %arg12: memref<32x32xf32, #tpu.memory_space<vmem>>, %arg13: memref<32x32xf32, #tpu.memory_space<vmem>>, %arg14: memref<32x32xf32, #tpu.memory_space<vmem>>, %arg15: memref<72x1xf32, #tpu.memory_space<vmem>>, %arg16: memref<1x64x32xf32, #tpu.memory_space<vmem>>, %arg17: memref<96x32xbf16, #tpu.memory_space<vmem>>, %arg18: memref<72x32xf32, #tpu.memory_space<vmem>>) attributes {dimension_semantics = [#tpu.dimension_semantics<parallel>], iteration_bounds = array<i64: 2>, scalar_prefetch = 0 : i64, scratch_operands = 2 : i64, tpu.core_type = #tpu.core_type<tc>, window_params = [{transform_indices = @transform_0, window_bounds = array<i64: 1, 64, 32>}, {transform_indices = @transform_1, window_bounds = array<i64: 1, 1, 32>}, {pipeline_mode = #tpu.pipeline_mode<synchronous>, transform_indices = @transform_2, window_bounds = array<i64: 1, 32>}, {pipeline_mode = #tpu.pipeline_mode<synchronous>, transform_indices = @transform_3, window_bounds = array<i64: 1, 32>}, {pipeline_mode = #tpu.pipeline_mode<synchronous>, transform_indices = @transform_4, window_bounds = array<i64: 9, 32, 32>}, {pipeline_mode = #tpu.pipeline_mode<synchronous>, transform_indices = @transform_5, window_bounds = array<i64: 1, 32>}, {pipeline_mode = #tpu.pipeline_mode<synchronous>, transform_indices = @transform_6, window_bounds = array<i64: 1, 32>}, {pipeline_mode = #tpu.pipeline_mode<synchronous>, transform_indices = @transform_7, window_bounds = array<i64: 1, 32>}, {pipeline_mode = #tpu.pipeline_mode<synchronous>, transform_indices = @transform_8, window_bounds = array<i64: 9, 32, 32>}, {pipeline_mode = #tpu.pipeline_mode<synchronous>, transform_indices = @transform_9, window_bounds = array<i64: 1, 32>}, {pipeline_mode = #tpu.pipeline_mode<synchronous>, transform_indices = @transform_10, window_bounds = array<i64: 32, 32>}, {pipeline_mode = #tpu.pipeline_mode<synchronous>, transform_indices = @transform_11, window_bounds = array<i64: 32, 32>}, {pipeline_mode = #tpu.pipeline_mode<synchronous>, transform_indices = @transform_12, window_bounds = array<i64: 32, 32>}, {pipeline_mode = #tpu.pipeline_mode<synchronous>, transform_indices = @transform_13, window_bounds = array<i64: 32, 32>}, {pipeline_mode = #tpu.pipeline_mode<synchronous>, transform_indices = @transform_14, window_bounds = array<i64: 72, 1>}, {transform_indices = @transform_15, window_bounds = array<i64: 1, 64, 32>}]} {
    %cst = arith.constant 0.000000e+00 : bf16
    %0 = vector.broadcast %cst : bf16 to vector<96x32xbf16>
    %c0 = arith.constant 0 : index
    %c0_0 = arith.constant 0 : index
    %1 = vector.load %arg17[%c0, %c0_0] : memref<96x32xbf16, #tpu.memory_space<vmem>>, vector<96x32xbf16>
    tpu.vector_store %arg17[%c0, %c0_0], %0 {strides = array<i32>} : memref<96x32xbf16, #tpu.memory_space<vmem>>, vector<96x32xbf16>,
    %c0_1 = arith.constant 0 : index
    %c0_2 = arith.constant 0 : index
    %c0_3 = arith.constant 0 : index
    %2 = vector.load %arg1[%c0_1, %c0_2, %c0_3] : memref<1x64x32xf32, #tpu.memory_space<vmem>>, vector<1x64x32xf32>
    %3 = vector.shape_cast %2 : vector<1x64x32xf32> to vector<64x32xf32>
    %cst_4 = arith.constant dense<0.000000e+00> : vector<32xf32>
    %4 = vector.multi_reduction <add>, %3, %cst_4 [0] : vector<64x32xf32> to vector<32xf32>
    %5 = vector.shape_cast %4 : vector<32xf32> to vector<1x32xf32>
    %c0_5 = arith.constant 0 : index
    %c0_6 = arith.constant 0 : index
    %6 = vector.load %arg11[%c0_5, %c0_6] : memref<32x32xf32, #tpu.memory_space<vmem>>, vector<32x32xf32>
    %cst_7 = arith.constant dense<0.000000e+00> : vector<1x32xf32>
    %7 = tpu.matmul %5, %6, %cst_7 {dimension_numbers = #tpu.dot_dimension_numbers<[1], [0], [0], [1], [0, 0, 1, 1], [], []>, precision = #tpu.contract_precision<fp32>} : vector<1x32xf32>, vector<32x32xf32>, vector<1x32xf32> -> vector<1x32xf32>
    %cst_8 = arith.constant 6.400000e+01 : f32
    %8 = vector.broadcast %cst_8 : f32 to vector<1x32xf32>
    %9 = arith.divf %7, %8 : vector<1x32xf32>
    %c0_9 = arith.constant 0 : index
    %c0_10 = arith.constant 0 : index
    %10 = vector.load %arg12[%c0_9, %c0_10] : memref<32x32xf32, #tpu.memory_space<vmem>>, vector<32x32xf32>
    %cst_11 = arith.constant dense<0.000000e+00> : vector<1x32xf32>
    %11 = tpu.matmul %9, %10, %cst_11 {dimension_numbers = #tpu.dot_dimension_numbers<[1], [0], [0], [1], [0, 0, 1, 1], [], []>, precision = #tpu.contract_precision<fp32>} : vector<1x32xf32>, vector<32x32xf32>, vector<1x32xf32> -> vector<1x32xf32>
    %c0_12 = arith.constant 0 : index
    %c0_13 = arith.constant 0 : index
    %c0_14 = arith.constant 0 : index
    %12 = vector.load %arg1[%c0_12, %c0_13, %c0_14] : memref<1x64x32xf32, #tpu.memory_space<vmem>>, vector<1x64x32xf32>
    %13 = vector.shape_cast %12 : vector<1x64x32xf32> to vector<64x32xf32>
    %14 = vector.broadcast %11 : vector<1x32xf32> to vector<64x32xf32>
    %15 = arith.subf %13, %14 : vector<64x32xf32>
    %16 = arith.mulf %15, %15 : vector<64x32xf32>
    %cst_15 = arith.constant dense<0.000000e+00> : vector<32xf32>
    %17 = vector.multi_reduction <add>, %16, %cst_15 [0] : vector<64x32xf32> to vector<32xf32>
    %18 = vector.shape_cast %17 : vector<32xf32> to vector<1x32xf32>
    %c0_16 = arith.constant 0 : index
    %c0_17 = arith.constant 0 : index
    %19 = vector.load %arg11[%c0_16, %c0_17] : memref<32x32xf32, #tpu.memory_space<vmem>>, vector<32x32xf32>
    %cst_18 = arith.constant dense<0.000000e+00> : vector<1x32xf32>
    %20 = tpu.matmul %18, %19, %cst_18 {dimension_numbers = #tpu.dot_dimension_numbers<[1], [0], [0], [1], [0, 0, 1, 1], [], []>, precision = #tpu.contract_precision<fp32>} : vector<1x32xf32>, vector<32x32xf32>, vector<1x32xf32> -> vector<1x32xf32>
    %cst_19 = arith.constant 6.400000e+01 : f32
    %21 = vector.broadcast %cst_19 : f32 to vector<1x32xf32>
    %22 = arith.divf %20, %21 : vector<1x32xf32>
    %c0_20 = arith.constant 0 : index
    %c0_21 = arith.constant 0 : index
    %23 = vector.load %arg12[%c0_20, %c0_21] : memref<32x32xf32, #tpu.memory_space<vmem>>, vector<32x32xf32>
    %cst_22 = arith.constant dense<0.000000e+00> : vector<1x32xf32>
    %24 = tpu.matmul %22, %23, %cst_22 {dimension_numbers = #tpu.dot_dimension_numbers<[1], [0], [0], [1], [0, 0, 1, 1], [], []>, precision = #tpu.contract_precision<fp32>} : vector<1x32xf32>, vector<32x32xf32>, vector<1x32xf32> -> vector<1x32xf32>
    %cst_23 = arith.constant 9.99999997E-7 : f32
    %25 = vector.broadcast %cst_23 : f32 to vector<1x32xf32>
    %26 = arith.addf %24, %25 : vector<1x32xf32>
    %27 = math.rsqrt %26 : vector<1x32xf32>
    %c0_24 = arith.constant 0 : index
    %c0_25 = arith.constant 0 : index
    %28 = vector.load %arg3[%c0_24, %c0_25] : memref<1x32xf32, #tpu.memory_space<vmem>>, vector<1x32xf32>
    %29 = arith.mulf %28, %27 : vector<1x32xf32>
    %c0_26 = arith.constant 0 : index
    %c0_27 = arith.constant 0 : index
    %30 = vector.load %arg4[%c0_26, %c0_27] : memref<1x32xf32, #tpu.memory_space<vmem>>, vector<1x32xf32>
    %31 = arith.mulf %11, %29 : vector<1x32xf32>
    %32 = arith.subf %30, %31 : vector<1x32xf32>
    %c0_28 = arith.constant 0 : index
    %c0_29 = arith.constant 0 : index
    %c0_30 = arith.constant 0 : index
    %33 = vector.load %arg1[%c0_28, %c0_29, %c0_30] : memref<1x64x32xf32, #tpu.memory_space<vmem>>, vector<1x8x32xf32>
    %34 = vector.shape_cast %33 : vector<1x8x32xf32> to vector<8x32xf32>
    %35 = vector.broadcast %29 : vector<1x32xf32> to vector<8x32xf32>
    %36 = arith.mulf %34, %35 : vector<8x32xf32>
    %37 = vector.broadcast %32 : vector<1x32xf32> to vector<8x32xf32>
    %38 = arith.addf %36, %37 : vector<8x32xf32>
    %39 = arith.negf %38 : vector<8x32xf32>
    %40 = math.exp %39 : vector<8x32xf32>
    %cst_31 = arith.constant 1.000000e+00 : f32
    %41 = vector.broadcast %cst_31 : f32 to vector<8x32xf32>
    %42 = arith.addf %41, %40 : vector<8x32xf32>
    %43 = arith.divf %41, %42 : vector<8x32xf32>
    %44 = arith.mulf %38, %43 : vector<8x32xf32>
    %45 = arith.truncf %44 : vector<8x32xf32> to vector<8x32xbf16>
    %c10 = arith.constant 10 : index
    %c0_32 = arith.constant 0 : index
    %46 = vector.load %arg17[%c10, %c0_32] : memref<96x32xbf16, #tpu.memory_space<vmem>>, vector<8x32xbf16>
    tpu.vector_store %arg17[%c10, %c0_32], %45 {strides = array<i32>} : memref<96x32xbf16, #tpu.memory_space<vmem>>, vector<8x32xbf16>,
    %c0_33 = arith.constant 0 : index
    %c8 = arith.constant 8 : index
    %c0_34 = arith.constant 0 : index
    %47 = vector.load %arg1[%c0_33, %c8, %c0_34] : memref<1x64x32xf32, #tpu.memory_space<vmem>>, vector<1x8x32xf32>
    %48 = vector.shape_cast %47 : vector<1x8x32xf32> to vector<8x32xf32>
    %49 = vector.broadcast %29 : vector<1x32xf32> to vector<8x32xf32>
    %50 = arith.mulf %48, %49 : vector<8x32xf32>
    %51 = vector.broadcast %32 : vector<1x32xf32> to vector<8x32xf32>
    %52 = arith.addf %50, %51 : vector<8x32xf32>
    %53 = arith.negf %52 : vector<8x32xf32>
    %54 = math.exp %53 : vector<8x32xf32>
    %cst_35 = arith.constant 1.000000e+00 : f32
    %55 = vector.broadcast %cst_35 : f32 to vector<8x32xf32>
    %56 = arith.addf %55, %54 : vector<8x32xf32>
    %57 = arith.divf %55, %56 : vector<8x32xf32>
    %58 = arith.mulf %52, %57 : vector<8x32xf32>
    %59 = arith.truncf %58 : vector<8x32xf32> to vector<8x32xbf16>
    %c19 = arith.constant 19 : index
    %c0_36 = arith.constant 0 : index
    %60 = vector.load %arg17[%c19, %c0_36] : memref<96x32xbf16, #tpu.memory_space<vmem>>, vector<8x32xbf16>
    tpu.vector_store %arg17[%c19, %c0_36], %59 {strides = array<i32>} : memref<96x32xbf16, #tpu.memory_space<vmem>>, vector<8x32xbf16>,
    %c0_37 = arith.constant 0 : index
    %c16 = arith.constant 16 : index
    %c0_38 = arith.constant 0 : index
    %61 = vector.load %arg1[%c0_37, %c16, %c0_38] : memref<1x64x32xf32, #tpu.memory_space<vmem>>, vector<1x8x32xf32>
    %62 = vector.shape_cast %61 : vector<1x8x32xf32> to vector<8x32xf32>
    %63 = vector.broadcast %29 : vector<1x32xf32> to vector<8x32xf32>
    %64 = arith.mulf %62, %63 : vector<8x32xf32>
    %65 = vector.broadcast %32 : vector<1x32xf32> to vector<8x32xf32>
    %66 = arith.addf %64, %65 : vector<8x32xf32>
    %67 = arith.negf %66 : vector<8x32xf32>
    %68 = math.exp %67 : vector<8x32xf32>
    %cst_39 = arith.constant 1.000000e+00 : f32
    %69 = vector.broadcast %cst_39 : f32 to vector<8x32xf32>
    %70 = arith.addf %69, %68 : vector<8x32xf32>
    %71 = arith.divf %69, %70 : vector<8x32xf32>
    %72 = arith.mulf %66, %71 : vector<8x32xf32>
    %73 = arith.truncf %72 : vector<8x32xf32> to vector<8x32xbf16>
    %c28 = arith.constant 28 : index
    %c0_40 = arith.constant 0 : index
    %74 = vector.load %arg17[%c28, %c0_40] : memref<96x32xbf16, #tpu.memory_space<vmem>>, vector<8x32xbf16>
    tpu.vector_store %arg17[%c28, %c0_40], %73 {strides = array<i32>} : memref<96x32xbf16, #tpu.memory_space<vmem>>, vector<8x32xbf16>,
    %c0_41 = arith.constant 0 : index
    %c24 = arith.constant 24 : index
    %c0_42 = arith.constant 0 : index
    %75 = vector.load %arg1[%c0_41, %c24, %c0_42] : memref<1x64x32xf32, #tpu.memory_space<vmem>>, vector<1x8x32xf32>
    %76 = vector.shape_cast %75 : vector<1x8x32xf32> to vector<8x32xf32>
    %77 = vector.broadcast %29 : vector<1x32xf32> to vector<8x32xf32>
    %78 = arith.mulf %76, %77 : vector<8x32xf32>
    %79 = vector.broadcast %32 : vector<1x32xf32> to vector<8x32xf32>
    %80 = arith.addf %78, %79 : vector<8x32xf32>
    %81 = arith.negf %80 : vector<8x32xf32>
    %82 = math.exp %81 : vector<8x32xf32>
    %cst_43 = arith.constant 1.000000e+00 : f32
    %83 = vector.broadcast %cst_43 : f32 to vector<8x32xf32>
    %84 = arith.addf %83, %82 : vector<8x32xf32>
    %85 = arith.divf %83, %84 : vector<8x32xf32>
    %86 = arith.mulf %80, %85 : vector<8x32xf32>
    %87 = arith.truncf %86 : vector<8x32xf32> to vector<8x32xbf16>
    %c37 = arith.constant 37 : index
    %c0_44 = arith.constant 0 : index
    %88 = vector.load %arg17[%c37, %c0_44] : memref<96x32xbf16, #tpu.memory_space<vmem>>, vector<8x32xbf16>
    tpu.vector_store %arg17[%c37, %c0_44], %87 {strides = array<i32>} : memref<96x32xbf16, #tpu.memory_space<vmem>>, vector<8x32xbf16>,
    %c0_45 = arith.constant 0 : index
    %c32 = arith.constant 32 : index
    %c0_46 = arith.constant 0 : index
    %89 = vector.load %arg1[%c0_45, %c32, %c0_46] : memref<1x64x32xf32, #tpu.memory_space<vmem>>, vector<1x8x32xf32>
    %90 = vector.shape_cast %89 : vector<1x8x32xf32> to vector<8x32xf32>
    %91 = vector.broadcast %29 : vector<1x32xf32> to vector<8x32xf32>
    %92 = arith.mulf %90, %91 : vector<8x32xf32>
    %93 = vector.broadcast %32 : vector<1x32xf32> to vector<8x32xf32>
    %94 = arith.addf %92, %93 : vector<8x32xf32>
    %95 = arith.negf %94 : vector<8x32xf32>
    %96 = math.exp %95 : vector<8x32xf32>
    %cst_47 = arith.constant 1.000000e+00 : f32
    %97 = vector.broadcast %cst_47 : f32 to vector<8x32xf32>
    %98 = arith.addf %97, %96 : vector<8x32xf32>
    %99 = arith.divf %97, %98 : vector<8x32xf32>
    %100 = arith.mulf %94, %99 : vector<8x32xf32>
    %101 = arith.truncf %100 : vector<8x32xf32> to vector<8x32xbf16>
    %c46 = arith.constant 46 : index
    %c0_48 = arith.constant 0 : index
    %102 = vector.load %arg17[%c46, %c0_48] : memref<96x32xbf16, #tpu.memory_space<vmem>>, vector<8x32xbf16>
    tpu.vector_store %arg17[%c46, %c0_48], %101 {strides = array<i32>} : memref<96x32xbf16, #tpu.memory_space<vmem>>, vector<8x32xbf16>,
    %c0_49 = arith.constant 0 : index
    %c40 = arith.constant 40 : index
    %c0_50 = arith.constant 0 : index
    %103 = vector.load %arg1[%c0_49, %c40, %c0_50] : memref<1x64x32xf32, #tpu.memory_space<vmem>>, vector<1x8x32xf32>
    %104 = vector.shape_cast %103 : vector<1x8x32xf32> to vector<8x32xf32>
    %105 = vector.broadcast %29 : vector<1x32xf32> to vector<8x32xf32>
    %106 = arith.mulf %104, %105 : vector<8x32xf32>
    %107 = vector.broadcast %32 : vector<1x32xf32> to vector<8x32xf32>
    %108 = arith.addf %106, %107 : vector<8x32xf32>
    %109 = arith.negf %108 : vector<8x32xf32>
    %110 = math.exp %109 : vector<8x32xf32>
    %cst_51 = arith.constant 1.000000e+00 : f32
    %111 = vector.broadcast %cst_51 : f32 to vector<8x32xf32>
    %112 = arith.addf %111, %110 : vector<8x32xf32>
    %113 = arith.divf %111, %112 : vector<8x32xf32>
    %114 = arith.mulf %108, %113 : vector<8x32xf32>
    %115 = arith.truncf %114 : vector<8x32xf32> to vector<8x32xbf16>
    %c55 = arith.constant 55 : index
    %c0_52 = arith.constant 0 : index
    %116 = vector.load %arg17[%c55, %c0_52] : memref<96x32xbf16, #tpu.memory_space<vmem>>, vector<8x32xbf16>
    tpu.vector_store %arg17[%c55, %c0_52], %115 {strides = array<i32>} : memref<96x32xbf16, #tpu.memory_space<vmem>>, vector<8x32xbf16>,
    %c0_53 = arith.constant 0 : index
    %c48 = arith.constant 48 : index
    %c0_54 = arith.constant 0 : index
    %117 = vector.load %arg1[%c0_53, %c48, %c0_54] : memref<1x64x32xf32, #tpu.memory_space<vmem>>, vector<1x8x32xf32>
    %118 = vector.shape_cast %117 : vector<1x8x32xf32> to vector<8x32xf32>
    %119 = vector.broadcast %29 : vector<1x32xf32> to vector<8x32xf32>
    %120 = arith.mulf %118, %119 : vector<8x32xf32>
    %121 = vector.broadcast %32 : vector<1x32xf32> to vector<8x32xf32>
    %122 = arith.addf %120, %121 : vector<8x32xf32>
    %123 = arith.negf %122 : vector<8x32xf32>
    %124 = math.exp %123 : vector<8x32xf32>
    %cst_55 = arith.constant 1.000000e+00 : f32
    %125 = vector.broadcast %cst_55 : f32 to vector<8x32xf32>
    %126 = arith.addf %125, %124 : vector<8x32xf32>
    %127 = arith.divf %125, %126 : vector<8x32xf32>
    %128 = arith.mulf %122, %127 : vector<8x32xf32>
    %129 = arith.truncf %128 : vector<8x32xf32> to vector<8x32xbf16>
    %c64 = arith.constant 64 : index
    %c0_56 = arith.constant 0 : index
    %130 = vector.load %arg17[%c64, %c0_56] : memref<96x32xbf16, #tpu.memory_space<vmem>>, vector<8x32xbf16>
    tpu.vector_store %arg17[%c64, %c0_56], %129 {strides = array<i32>} : memref<96x32xbf16, #tpu.memory_space<vmem>>, vector<8x32xbf16>,
    %c0_57 = arith.constant 0 : index
    %c56 = arith.constant 56 : index
    %c0_58 = arith.constant 0 : index
    %131 = vector.load %arg1[%c0_57, %c56, %c0_58] : memref<1x64x32xf32, #tpu.memory_space<vmem>>, vector<1x8x32xf32>
    %132 = vector.shape_cast %131 : vector<1x8x32xf32> to vector<8x32xf32>
    %133 = vector.broadcast %29 : vector<1x32xf32> to vector<8x32xf32>
    %134 = arith.mulf %132, %133 : vector<8x32xf32>
    %135 = vector.broadcast %32 : vector<1x32xf32> to vector<8x32xf32>
    %136 = arith.addf %134, %135 : vector<8x32xf32>
    %137 = arith.negf %136 : vector<8x32xf32>
    %138 = math.exp %137 : vector<8x32xf32>
    %cst_59 = arith.constant 1.000000e+00 : f32
    %139 = vector.broadcast %cst_59 : f32 to vector<8x32xf32>
    %140 = arith.addf %139, %138 : vector<8x32xf32>
    %141 = arith.divf %139, %140 : vector<8x32xf32>
    %142 = arith.mulf %136, %141 : vector<8x32xf32>
    %143 = arith.truncf %142 : vector<8x32xf32> to vector<8x32xbf16>
    %c73 = arith.constant 73 : index
    %c0_60 = arith.constant 0 : index
    %144 = vector.load %arg17[%c73, %c0_60] : memref<96x32xbf16, #tpu.memory_space<vmem>>, vector<8x32xbf16>
    tpu.vector_store %arg17[%c73, %c0_60], %143 {strides = array<i32>} : memref<96x32xbf16, #tpu.memory_space<vmem>>, vector<8x32xbf16>,
    %c0_61 = arith.constant 0 : index
    %c0_62 = arith.constant 0 : index
    %145 = vector.load %arg6[%c0_61, %c0_62] : memref<1x32xf32, #tpu.memory_space<vmem>>, vector<1x32xf32>
    %c0_63 = arith.constant 0 : index
    %c0_64 = arith.constant 0 : index
    %c0_65 = arith.constant 0 : index
    %146 = vector.load %arg2[%c0_63, %c0_64, %c0_65] : memref<1x1x32xf32, #tpu.memory_space<vmem>>, vector<1x1x32xf32>
    %147 = vector.shape_cast %146 : vector<1x1x32xf32> to vector<1x32xf32>
    %148 = arith.addf %145, %147 : vector<1x32xf32>
    %149 = vector.shape_cast %148 : vector<1x32xf32> to vector<1x32xf32>
    %150 = vector.broadcast %149 : vector<1x32xf32> to vector<72x32xf32>
    %c0_66 = arith.constant 0 : index
    %c0_67 = arith.constant 0 : index
    %151 = vector.load %arg18[%c0_66, %c0_67] : memref<72x32xf32, #tpu.memory_space<vmem>>, vector<72x32xf32>
    tpu.vector_store %arg18[%c0_66, %c0_67], %150 {strides = array<i32>} : memref<72x32xf32, #tpu.memory_space<vmem>>, vector<72x32xf32>,
    %c0_68 = arith.constant 0 : index
    %c0_69 = arith.constant 0 : index
    %152 = vector.load %arg18[%c0_68, %c0_69] : memref<72x32xf32, #tpu.memory_space<vmem>>, vector<72x32xf32>
    %c0_70 = arith.constant 0 : index
    %c0_71 = arith.constant 0 : index
    %153 = vector.load %arg17[%c0_70, %c0_71] : memref<96x32xbf16, #tpu.memory_space<vmem>>, vector<72x32xbf16>
    %c0_72 = arith.constant 0 : index
    %c0_73 = arith.constant 0 : index
    %c0_74 = arith.constant 0 : index
    %154 = vector.load %arg5[%c0_72, %c0_73, %c0_74] : memref<9x32x32xbf16, #tpu.memory_space<vmem>>, vector<1x32x32xbf16>
    %155 = vector.shape_cast %154 : vector<1x32x32xbf16> to vector<32x32xbf16>
    %cst_75 = arith.constant dense<0.000000e+00> : vector<72x32xf32>
    %156 = tpu.matmul %153, %155, %cst_75 {dimension_numbers = #tpu.dot_dimension_numbers<[1], [0], [0], [1], [0, 0, 1, 1], [], []>} : vector<72x32xbf16>, vector<32x32xbf16>, vector<72x32xf32> -> vector<72x32xf32>
    %157 = arith.addf %152, %156 : vector<72x32xf32>
    %c0_76 = arith.constant 0 : index
    %c0_77 = arith.constant 0 : index
    %158 = vector.load %arg18[%c0_76, %c0_77] : memref<72x32xf32, #tpu.memory_space<vmem>>, vector<72x32xf32>
    tpu.vector_store %arg18[%c0_76, %c0_77], %157 {strides = array<i32>} : memref<72x32xf32, #tpu.memory_space<vmem>>, vector<72x32xf32>,
    %c0_78 = arith.constant 0 : index
    %c0_79 = arith.constant 0 : index
    %159 = vector.load %arg18[%c0_78, %c0_79] : memref<72x32xf32, #tpu.memory_space<vmem>>, vector<72x32xf32>
    %c1 = arith.constant 1 : index
    %c0_80 = arith.constant 0 : index
    %160 = vector.load %arg17[%c1, %c0_80] : memref<96x32xbf16, #tpu.memory_space<vmem>>, vector<72x32xbf16>
    %c1_81 = arith.constant 1 : index
    %c0_82 = arith.constant 0 : index
    %c0_83 = arith.constant 0 : index
    %161 = vector.load %arg5[%c1_81, %c0_82, %c0_83] : memref<9x32x32xbf16, #tpu.memory_space<vmem>>, vector<1x32x32xbf16>
    %162 = vector.shape_cast %161 : vector<1x32x32xbf16> to vector<32x32xbf16>
    %cst_84 = arith.constant dense<0.000000e+00> : vector<72x32xf32>
    %163 = tpu.matmul %160, %162, %cst_84 {dimension_numbers = #tpu.dot_dimension_numbers<[1], [0], [0], [1], [0, 0, 1, 1], [], []>} : vector<72x32xbf16>, vector<32x32xbf16>, vector<72x32xf32> -> vector<72x32xf32>
    %164 = arith.addf %159, %163 : vector<72x32xf32>
    %c0_85 = arith.constant 0 : index
    %c0_86 = arith.constant 0 : index
    %165 = vector.load %arg18[%c0_85, %c0_86] : memref<72x32xf32, #tpu.memory_space<vmem>>, vector<72x32xf32>
    tpu.vector_store %arg18[%c0_85, %c0_86], %164 {strides = array<i32>} : memref<72x32xf32, #tpu.memory_space<vmem>>, vector<72x32xf32>,
    %c0_87 = arith.constant 0 : index
    %c0_88 = arith.constant 0 : index
    %166 = vector.load %arg18[%c0_87, %c0_88] : memref<72x32xf32, #tpu.memory_space<vmem>>, vector<72x32xf32>
    %c2 = arith.constant 2 : index
    %c0_89 = arith.constant 0 : index
    %167 = vector.load %arg17[%c2, %c0_89] : memref<96x32xbf16, #tpu.memory_space<vmem>>, vector<72x32xbf16>
    %c2_90 = arith.constant 2 : index
    %c0_91 = arith.constant 0 : index
    %c0_92 = arith.constant 0 : index
    %168 = vector.load %arg5[%c2_90, %c0_91, %c0_92] : memref<9x32x32xbf16, #tpu.memory_space<vmem>>, vector<1x32x32xbf16>
    %169 = vector.shape_cast %168 : vector<1x32x32xbf16> to vector<32x32xbf16>
    %cst_93 = arith.constant dense<0.000000e+00> : vector<72x32xf32>
    %170 = tpu.matmul %167, %169, %cst_93 {dimension_numbers = #tpu.dot_dimension_numbers<[1], [0], [0], [1], [0, 0, 1, 1], [], []>} : vector<72x32xbf16>, vector<32x32xbf16>, vector<72x32xf32> -> vector<72x32xf32>
    %171 = arith.addf %166, %170 : vector<72x32xf32>
    %c0_94 = arith.constant 0 : index
    %c0_95 = arith.constant 0 : index
    %172 = vector.load %arg18[%c0_94, %c0_95] : memref<72x32xf32, #tpu.memory_space<vmem>>, vector<72x32xf32>
    tpu.vector_store %arg18[%c0_94, %c0_95], %171 {strides = array<i32>} : memref<72x32xf32, #tpu.memory_space<vmem>>, vector<72x32xf32>,
    %c0_96 = arith.constant 0 : index
    %c0_97 = arith.constant 0 : index
    %173 = vector.load %arg18[%c0_96, %c0_97] : memref<72x32xf32, #tpu.memory_space<vmem>>, vector<72x32xf32>
    %c9 = arith.constant 9 : index
    %c0_98 = arith.constant 0 : index
    %174 = vector.load %arg17[%c9, %c0_98] : memref<96x32xbf16, #tpu.memory_space<vmem>>, vector<72x32xbf16>
    %c3 = arith.constant 3 : index
    %c0_99 = arith.constant 0 : index
    %c0_100 = arith.constant 0 : index
    %175 = vector.load %arg5[%c3, %c0_99, %c0_100] : memref<9x32x32xbf16, #tpu.memory_space<vmem>>, vector<1x32x32xbf16>
    %176 = vector.shape_cast %175 : vector<1x32x32xbf16> to vector<32x32xbf16>
    %cst_101 = arith.constant dense<0.000000e+00> : vector<72x32xf32>
    %177 = tpu.matmul %174, %176, %cst_101 {dimension_numbers = #tpu.dot_dimension_numbers<[1], [0], [0], [1], [0, 0, 1, 1], [], []>} : vector<72x32xbf16>, vector<32x32xbf16>, vector<72x32xf32> -> vector<72x32xf32>
    %178 = arith.addf %173, %177 : vector<72x32xf32>
    %c0_102 = arith.constant 0 : index
    %c0_103 = arith.constant 0 : index
    %179 = vector.load %arg18[%c0_102, %c0_103] : memref<72x32xf32, #tpu.memory_space<vmem>>, vector<72x32xf32>
    tpu.vector_store %arg18[%c0_102, %c0_103], %178 {strides = array<i32>} : memref<72x32xf32, #tpu.memory_space<vmem>>, vector<72x32xf32>,
    %c0_104 = arith.constant 0 : index
    %c0_105 = arith.constant 0 : index
    %180 = vector.load %arg18[%c0_104, %c0_105] : memref<72x32xf32, #tpu.memory_space<vmem>>, vector<72x32xf32>
    %c10_106 = arith.constant 10 : index
    %c0_107 = arith.constant 0 : index
    %181 = vector.load %arg17[%c10_106, %c0_107] : memref<96x32xbf16, #tpu.memory_space<vmem>>, vector<72x32xbf16>
    %c4 = arith.constant 4 : index
    %c0_108 = arith.constant 0 : index
    %c0_109 = arith.constant 0 : index
    %182 = vector.load %arg5[%c4, %c0_108, %c0_109] : memref<9x32x32xbf16, #tpu.memory_space<vmem>>, vector<1x32x32xbf16>
    %183 = vector.shape_cast %182 : vector<1x32x32xbf16> to vector<32x32xbf16>
    %cst_110 = arith.constant dense<0.000000e+00> : vector<72x32xf32>
    %184 = tpu.matmul %181, %183, %cst_110 {dimension_numbers = #tpu.dot_dimension_numbers<[1], [0], [0], [1], [0, 0, 1, 1], [], []>} : vector<72x32xbf16>, vector<32x32xbf16>, vector<72x32xf32> -> vector<72x32xf32>
    %185 = arith.addf %180, %184 : vector<72x32xf32>
    %c0_111 = arith.constant 0 : index
    %c0_112 = arith.constant 0 : index
    %186 = vector.load %arg18[%c0_111, %c0_112] : memref<72x32xf32, #tpu.memory_space<vmem>>, vector<72x32xf32>
    tpu.vector_store %arg18[%c0_111, %c0_112], %185 {strides = array<i32>} : memref<72x32xf32, #tpu.memory_space<vmem>>, vector<72x32xf32>,
    %c0_113 = arith.constant 0 : index
    %c0_114 = arith.constant 0 : index
    %187 = vector.load %arg18[%c0_113, %c0_114] : memref<72x32xf32, #tpu.memory_space<vmem>>, vector<72x32xf32>
    %c11 = arith.constant 11 : index
    %c0_115 = arith.constant 0 : index
    %188 = vector.load %arg17[%c11, %c0_115] : memref<96x32xbf16, #tpu.memory_space<vmem>>, vector<72x32xbf16>
    %c5 = arith.constant 5 : index
    %c0_116 = arith.constant 0 : index
    %c0_117 = arith.constant 0 : index
    %189 = vector.load %arg5[%c5, %c0_116, %c0_117] : memref<9x32x32xbf16, #tpu.memory_space<vmem>>, vector<1x32x32xbf16>
    %190 = vector.shape_cast %189 : vector<1x32x32xbf16> to vector<32x32xbf16>
    %cst_118 = arith.constant dense<0.000000e+00> : vector<72x32xf32>
    %191 = tpu.matmul %188, %190, %cst_118 {dimension_numbers = #tpu.dot_dimension_numbers<[1], [0], [0], [1], [0, 0, 1, 1], [], []>} : vector<72x32xbf16>, vector<32x32xbf16>, vector<72x32xf32> -> vector<72x32xf32>
    %192 = arith.addf %187, %191 : vector<72x32xf32>
    %c0_119 = arith.constant 0 : index
    %c0_120 = arith.constant 0 : index
    %193 = vector.load %arg18[%c0_119, %c0_120] : memref<72x32xf32, #tpu.memory_space<vmem>>, vector<72x32xf32>
    tpu.vector_store %arg18[%c0_119, %c0_120], %192 {strides = array<i32>} : memref<72x32xf32, #tpu.memory_space<vmem>>, vector<72x32xf32>,
    %c0_121 = arith.constant 0 : index
    %c0_122 = arith.constant 0 : index
    %194 = vector.load %arg18[%c0_121, %c0_122] : memref<72x32xf32, #tpu.memory_space<vmem>>, vector<72x32xf32>
    %c18 = arith.constant 18 : index
    %c0_123 = arith.constant 0 : index
    %195 = vector.load %arg17[%c18, %c0_123] : memref<96x32xbf16, #tpu.memory_space<vmem>>, vector<72x32xbf16>
    %c6 = arith.constant 6 : index
    %c0_124 = arith.constant 0 : index
    %c0_125 = arith.constant 0 : index
    %196 = vector.load %arg5[%c6, %c0_124, %c0_125] : memref<9x32x32xbf16, #tpu.memory_space<vmem>>, vector<1x32x32xbf16>
    %197 = vector.shape_cast %196 : vector<1x32x32xbf16> to vector<32x32xbf16>
    %cst_126 = arith.constant dense<0.000000e+00> : vector<72x32xf32>
    %198 = tpu.matmul %195, %197, %cst_126 {dimension_numbers = #tpu.dot_dimension_numbers<[1], [0], [0], [1], [0, 0, 1, 1], [], []>} : vector<72x32xbf16>, vector<32x32xbf16>, vector<72x32xf32> -> vector<72x32xf32>
    %199 = arith.addf %194, %198 : vector<72x32xf32>
    %c0_127 = arith.constant 0 : index
    %c0_128 = arith.constant 0 : index
    %200 = vector.load %arg18[%c0_127, %c0_128] : memref<72x32xf32, #tpu.memory_space<vmem>>, vector<72x32xf32>
    tpu.vector_store %arg18[%c0_127, %c0_128], %199 {strides = array<i32>} : memref<72x32xf32, #tpu.memory_space<vmem>>, vector<72x32xf32>,
    %c0_129 = arith.constant 0 : index
    %c0_130 = arith.constant 0 : index
    %201 = vector.load %arg18[%c0_129, %c0_130] : memref<72x32xf32, #tpu.memory_space<vmem>>, vector<72x32xf32>
    %c19_131 = arith.constant 19 : index
    %c0_132 = arith.constant 0 : index
    %202 = vector.load %arg17[%c19_131, %c0_132] : memref<96x32xbf16, #tpu.memory_space<vmem>>, vector<72x32xbf16>
    %c7 = arith.constant 7 : index
    %c0_133 = arith.constant 0 : index
    %c0_134 = arith.constant 0 : index
    %203 = vector.load %arg5[%c7, %c0_133, %c0_134] : memref<9x32x32xbf16, #tpu.memory_space<vmem>>, vector<1x32x32xbf16>
    %204 = vector.shape_cast %203 : vector<1x32x32xbf16> to vector<32x32xbf16>
    %cst_135 = arith.constant dense<0.000000e+00> : vector<72x32xf32>
    %205 = tpu.matmul %202, %204, %cst_135 {dimension_numbers = #tpu.dot_dimension_numbers<[1], [0], [0], [1], [0, 0, 1, 1], [], []>} : vector<72x32xbf16>, vector<32x32xbf16>, vector<72x32xf32> -> vector<72x32xf32>
    %206 = arith.addf %201, %205 : vector<72x32xf32>
    %c0_136 = arith.constant 0 : index
    %c0_137 = arith.constant 0 : index
    %207 = vector.load %arg18[%c0_136, %c0_137] : memref<72x32xf32, #tpu.memory_space<vmem>>, vector<72x32xf32>
    tpu.vector_store %arg18[%c0_136, %c0_137], %206 {strides = array<i32>} : memref<72x32xf32, #tpu.memory_space<vmem>>, vector<72x32xf32>,
    %c0_138 = arith.constant 0 : index
    %c0_139 = arith.constant 0 : index
    %208 = vector.load %arg18[%c0_138, %c0_139] : memref<72x32xf32, #tpu.memory_space<vmem>>, vector<72x32xf32>
    %c20 = arith.constant 20 : index
    %c0_140 = arith.constant 0 : index
    %209 = vector.load %arg17[%c20, %c0_140] : memref<96x32xbf16, #tpu.memory_space<vmem>>, vector<72x32xbf16>
    %c8_141 = arith.constant 8 : index
    %c0_142 = arith.constant 0 : index
    %c0_143 = arith.constant 0 : index
    %210 = vector.load %arg5[%c8_141, %c0_142, %c0_143] : memref<9x32x32xbf16, #tpu.memory_space<vmem>>, vector<1x32x32xbf16>
    %211 = vector.shape_cast %210 : vector<1x32x32xbf16> to vector<32x32xbf16>
    %cst_144 = arith.constant dense<0.000000e+00> : vector<72x32xf32>
    %212 = tpu.matmul %209, %211, %cst_144 {dimension_numbers = #tpu.dot_dimension_numbers<[1], [0], [0], [1], [0, 0, 1, 1], [], []>} : vector<72x32xbf16>, vector<32x32xbf16>, vector<72x32xf32> -> vector<72x32xf32>
    %213 = arith.addf %208, %212 : vector<72x32xf32>
    %c0_145 = arith.constant 0 : index
    %c0_146 = arith.constant 0 : index
    %214 = vector.load %arg18[%c0_145, %c0_146] : memref<72x32xf32, #tpu.memory_space<vmem>>, vector<72x32xf32>
    tpu.vector_store %arg18[%c0_145, %c0_146], %213 {strides = array<i32>} : memref<72x32xf32, #tpu.memory_space<vmem>>, vector<72x32xf32>,
    %c0_147 = arith.constant 0 : index
    %c0_148 = arith.constant 0 : index
    %215 = vector.load %arg15[%c0_147, %c0_148] : memref<72x1xf32, #tpu.memory_space<vmem>>, vector<72x1xf32>
    %c0_149 = arith.constant 0 : index
    %c0_150 = arith.constant 0 : index
    %216 = vector.load %arg18[%c0_149, %c0_150] : memref<72x32xf32, #tpu.memory_space<vmem>>, vector<72x32xf32>
    %217 = vector.broadcast %215 : vector<72x1xf32> to vector<72x32xf32>
    %218 = arith.mulf %216, %217 : vector<72x32xf32>
    %cst_151 = arith.constant dense<0.000000e+00> : vector<32xf32>
    %219 = vector.multi_reduction <add>, %218, %cst_151 [0] : vector<72x32xf32> to vector<32xf32>
    %220 = vector.shape_cast %219 : vector<32xf32> to vector<1x32xf32>
    %c0_152 = arith.constant 0 : index
    %c0_153 = arith.constant 0 : index
    %221 = vector.load %arg13[%c0_152, %c0_153] : memref<32x32xf32, #tpu.memory_space<vmem>>, vector<32x32xf32>
    %cst_154 = arith.constant dense<0.000000e+00> : vector<1x32xf32>
    %222 = tpu.matmul %220, %221, %cst_154 {dimension_numbers = #tpu.dot_dimension_numbers<[1], [0], [0], [1], [0, 0, 1, 1], [], []>, precision = #tpu.contract_precision<fp32>} : vector<1x32xf32>, vector<32x32xf32>, vector<1x32xf32> -> vector<1x32xf32>
    %cst_155 = arith.constant 6.400000e+01 : f32
    %223 = vector.broadcast %cst_155 : f32 to vector<1x32xf32>
    %224 = arith.divf %222, %223 : vector<1x32xf32>
    %c0_156 = arith.constant 0 : index
    %c0_157 = arith.constant 0 : index
    %225 = vector.load %arg14[%c0_156, %c0_157] : memref<32x32xf32, #tpu.memory_space<vmem>>, vector<32x32xf32>
    %cst_158 = arith.constant dense<0.000000e+00> : vector<1x32xf32>
    %226 = tpu.matmul %224, %225, %cst_158 {dimension_numbers = #tpu.dot_dimension_numbers<[1], [0], [0], [1], [0, 0, 1, 1], [], []>, precision = #tpu.contract_precision<fp32>} : vector<1x32xf32>, vector<32x32xf32>, vector<1x32xf32> -> vector<1x32xf32>
    %c0_159 = arith.constant 0 : index
    %c0_160 = arith.constant 0 : index
    %227 = vector.load %arg18[%c0_159, %c0_160] : memref<72x32xf32, #tpu.memory_space<vmem>>, vector<72x32xf32>
    %228 = vector.broadcast %226 : vector<1x32xf32> to vector<72x32xf32>
    %229 = arith.subf %227, %228 : vector<72x32xf32>
    %230 = vector.broadcast %215 : vector<72x1xf32> to vector<72x32xf32>
    %231 = arith.mulf %229, %230 : vector<72x32xf32>
    %232 = arith.mulf %231, %231 : vector<72x32xf32>
    %cst_161 = arith.constant dense<0.000000e+00> : vector<32xf32>
    %233 = vector.multi_reduction <add>, %232, %cst_161 [0] : vector<72x32xf32> to vector<32xf32>
    %234 = vector.shape_cast %233 : vector<32xf32> to vector<1x32xf32>
    %c0_162 = arith.constant 0 : index
    %c0_163 = arith.constant 0 : index
    %235 = vector.load %arg13[%c0_162, %c0_163] : memref<32x32xf32, #tpu.memory_space<vmem>>, vector<32x32xf32>
    %cst_164 = arith.constant dense<0.000000e+00> : vector<1x32xf32>
    %236 = tpu.matmul %234, %235, %cst_164 {dimension_numbers = #tpu.dot_dimension_numbers<[1], [0], [0], [1], [0, 0, 1, 1], [], []>, precision = #tpu.contract_precision<fp32>} : vector<1x32xf32>, vector<32x32xf32>, vector<1x32xf32> -> vector<1x32xf32>
    %cst_165 = arith.constant 6.400000e+01 : f32
    %237 = vector.broadcast %cst_165 : f32 to vector<1x32xf32>
    %238 = arith.divf %236, %237 : vector<1x32xf32>
    %c0_166 = arith.constant 0 : index
    %c0_167 = arith.constant 0 : index
    %239 = vector.load %arg14[%c0_166, %c0_167] : memref<32x32xf32, #tpu.memory_space<vmem>>, vector<32x32xf32>
    %cst_168 = arith.constant dense<0.000000e+00> : vector<1x32xf32>
    %240 = tpu.matmul %238, %239, %cst_168 {dimension_numbers = #tpu.dot_dimension_numbers<[1], [0], [0], [1], [0, 0, 1, 1], [], []>, precision = #tpu.contract_precision<fp32>} : vector<1x32xf32>, vector<32x32xf32>, vector<1x32xf32> -> vector<1x32xf32>
    %cst_169 = arith.constant 9.99999997E-7 : f32
    %241 = vector.broadcast %cst_169 : f32 to vector<1x32xf32>
    %242 = arith.addf %240, %241 : vector<1x32xf32>
    %243 = math.rsqrt %242 : vector<1x32xf32>
    %c0_170 = arith.constant 0 : index
    %c0_171 = arith.constant 0 : index
    %244 = vector.load %arg7[%c0_170, %c0_171] : memref<1x32xf32, #tpu.memory_space<vmem>>, vector<1x32xf32>
    %245 = arith.mulf %244, %243 : vector<1x32xf32>
    %c0_172 = arith.constant 0 : index
    %c0_173 = arith.constant 0 : index
    %246 = vector.load %arg8[%c0_172, %c0_173] : memref<1x32xf32, #tpu.memory_space<vmem>>, vector<1x32xf32>
    %247 = arith.mulf %226, %245 : vector<1x32xf32>
    %248 = arith.subf %246, %247 : vector<1x32xf32>
    %c0_174 = arith.constant 0 : index
    %c0_175 = arith.constant 0 : index
    %249 = vector.load %arg18[%c0_174, %c0_175] : memref<72x32xf32, #tpu.memory_space<vmem>>, vector<8x32xf32>
    %250 = vector.broadcast %245 : vector<1x32xf32> to vector<8x32xf32>
    %251 = arith.mulf %249, %250 : vector<8x32xf32>
    %252 = vector.broadcast %248 : vector<1x32xf32> to vector<8x32xf32>
    %253 = arith.addf %251, %252 : vector<8x32xf32>
    %254 = arith.negf %253 : vector<8x32xf32>
    %255 = math.exp %254 : vector<8x32xf32>
    %cst_176 = arith.constant 1.000000e+00 : f32
    %256 = vector.broadcast %cst_176 : f32 to vector<8x32xf32>
    %257 = arith.addf %256, %255 : vector<8x32xf32>
    %258 = arith.divf %256, %257 : vector<8x32xf32>
    %259 = arith.mulf %253, %258 : vector<8x32xf32>
    %260 = arith.truncf %259 : vector<8x32xf32> to vector<8x32xbf16>
    %c10_177 = arith.constant 10 : index
    %c0_178 = arith.constant 0 : index
    %261 = vector.load %arg17[%c10_177, %c0_178] : memref<96x32xbf16, #tpu.memory_space<vmem>>, vector<8x32xbf16>
    tpu.vector_store %arg17[%c10_177, %c0_178], %260 {strides = array<i32>} : memref<96x32xbf16, #tpu.memory_space<vmem>>, vector<8x32xbf16>,
    %c9_179 = arith.constant 9 : index
    %c0_180 = arith.constant 0 : index
    %262 = vector.load %arg18[%c9_179, %c0_180] : memref<72x32xf32, #tpu.memory_space<vmem>>, vector<8x32xf32>
    %263 = vector.broadcast %245 : vector<1x32xf32> to vector<8x32xf32>
    %264 = arith.mulf %262, %263 : vector<8x32xf32>
    %265 = vector.broadcast %248 : vector<1x32xf32> to vector<8x32xf32>
    %266 = arith.addf %264, %265 : vector<8x32xf32>
    %267 = arith.negf %266 : vector<8x32xf32>
    %268 = math.exp %267 : vector<8x32xf32>
    %cst_181 = arith.constant 1.000000e+00 : f32
    %269 = vector.broadcast %cst_181 : f32 to vector<8x32xf32>
    %270 = arith.addf %269, %268 : vector<8x32xf32>
    %271 = arith.divf %269, %270 : vector<8x32xf32>
    %272 = arith.mulf %266, %271 : vector<8x32xf32>
    %273 = arith.truncf %272 : vector<8x32xf32> to vector<8x32xbf16>
    %c19_182 = arith.constant 19 : index
    %c0_183 = arith.constant 0 : index
    %274 = vector.load %arg17[%c19_182, %c0_183] : memref<96x32xbf16, #tpu.memory_space<vmem>>, vector<8x32xbf16>
    tpu.vector_store %arg17[%c19_182, %c0_183], %273 {strides = array<i32>} : memref<96x32xbf16, #tpu.memory_space<vmem>>, vector<8x32xbf16>,
    %c18_184 = arith.constant 18 : index
    %c0_185 = arith.constant 0 : index
    %275 = vector.load %arg18[%c18_184, %c0_185] : memref<72x32xf32, #tpu.memory_space<vmem>>, vector<8x32xf32>
    %276 = vector.broadcast %245 : vector<1x32xf32> to vector<8x32xf32>
    %277 = arith.mulf %275, %276 : vector<8x32xf32>
    %278 = vector.broadcast %248 : vector<1x32xf32> to vector<8x32xf32>
    %279 = arith.addf %277, %278 : vector<8x32xf32>
    %280 = arith.negf %279 : vector<8x32xf32>
    %281 = math.exp %280 : vector<8x32xf32>
    %cst_186 = arith.constant 1.000000e+00 : f32
    %282 = vector.broadcast %cst_186 : f32 to vector<8x32xf32>
    %283 = arith.addf %282, %281 : vector<8x32xf32>
    %284 = arith.divf %282, %283 : vector<8x32xf32>
    %285 = arith.mulf %279, %284 : vector<8x32xf32>
    %286 = arith.truncf %285 : vector<8x32xf32> to vector<8x32xbf16>
    %c28_187 = arith.constant 28 : index
    %c0_188 = arith.constant 0 : index
    %287 = vector.load %arg17[%c28_187, %c0_188] : memref<96x32xbf16, #tpu.memory_space<vmem>>, vector<8x32xbf16>
    tpu.vector_store %arg17[%c28_187, %c0_188], %286 {strides = array<i32>} : memref<96x32xbf16, #tpu.memory_space<vmem>>, vector<8x32xbf16>,
    %c27 = arith.constant 27 : index
    %c0_189 = arith.constant 0 : index
    %288 = vector.load %arg18[%c27, %c0_189] : memref<72x32xf32, #tpu.memory_space<vmem>>, vector<8x32xf32>
    %289 = vector.broadcast %245 : vector<1x32xf32> to vector<8x32xf32>
    %290 = arith.mulf %288, %289 : vector<8x32xf32>
    %291 = vector.broadcast %248 : vector<1x32xf32> to vector<8x32xf32>
    %292 = arith.addf %290, %291 : vector<8x32xf32>
    %293 = arith.negf %292 : vector<8x32xf32>
    %294 = math.exp %293 : vector<8x32xf32>
    %cst_190 = arith.constant 1.000000e+00 : f32
    %295 = vector.broadcast %cst_190 : f32 to vector<8x32xf32>
    %296 = arith.addf %295, %294 : vector<8x32xf32>
    %297 = arith.divf %295, %296 : vector<8x32xf32>
    %298 = arith.mulf %292, %297 : vector<8x32xf32>
    %299 = arith.truncf %298 : vector<8x32xf32> to vector<8x32xbf16>
    %c37_191 = arith.constant 37 : index
    %c0_192 = arith.constant 0 : index
    %300 = vector.load %arg17[%c37_191, %c0_192] : memref<96x32xbf16, #tpu.memory_space<vmem>>, vector<8x32xbf16>
    tpu.vector_store %arg17[%c37_191, %c0_192], %299 {strides = array<i32>} : memref<96x32xbf16, #tpu.memory_space<vmem>>, vector<8x32xbf16>,
    %c36 = arith.constant 36 : index
    %c0_193 = arith.constant 0 : index
    %301 = vector.load %arg18[%c36, %c0_193] : memref<72x32xf32, #tpu.memory_space<vmem>>, vector<8x32xf32>
    %302 = vector.broadcast %245 : vector<1x32xf32> to vector<8x32xf32>
    %303 = arith.mulf %301, %302 : vector<8x32xf32>
    %304 = vector.broadcast %248 : vector<1x32xf32> to vector<8x32xf32>
    %305 = arith.addf %303, %304 : vector<8x32xf32>
    %306 = arith.negf %305 : vector<8x32xf32>
    %307 = math.exp %306 : vector<8x32xf32>
    %cst_194 = arith.constant 1.000000e+00 : f32
    %308 = vector.broadcast %cst_194 : f32 to vector<8x32xf32>
    %309 = arith.addf %308, %307 : vector<8x32xf32>
    %310 = arith.divf %308, %309 : vector<8x32xf32>
    %311 = arith.mulf %305, %310 : vector<8x32xf32>
    %312 = arith.truncf %311 : vector<8x32xf32> to vector<8x32xbf16>
    %c46_195 = arith.constant 46 : index
    %c0_196 = arith.constant 0 : index
    %313 = vector.load %arg17[%c46_195, %c0_196] : memref<96x32xbf16, #tpu.memory_space<vmem>>, vector<8x32xbf16>
    tpu.vector_store %arg17[%c46_195, %c0_196], %312 {strides = array<i32>} : memref<96x32xbf16, #tpu.memory_space<vmem>>, vector<8x32xbf16>,
    %c45 = arith.constant 45 : index
    %c0_197 = arith.constant 0 : index
    %314 = vector.load %arg18[%c45, %c0_197] : memref<72x32xf32, #tpu.memory_space<vmem>>, vector<8x32xf32>
    %315 = vector.broadcast %245 : vector<1x32xf32> to vector<8x32xf32>
    %316 = arith.mulf %314, %315 : vector<8x32xf32>
    %317 = vector.broadcast %248 : vector<1x32xf32> to vector<8x32xf32>
    %318 = arith.addf %316, %317 : vector<8x32xf32>
    %319 = arith.negf %318 : vector<8x32xf32>
    %320 = math.exp %319 : vector<8x32xf32>
    %cst_198 = arith.constant 1.000000e+00 : f32
    %321 = vector.broadcast %cst_198 : f32 to vector<8x32xf32>
    %322 = arith.addf %321, %320 : vector<8x32xf32>
    %323 = arith.divf %321, %322 : vector<8x32xf32>
    %324 = arith.mulf %318, %323 : vector<8x32xf32>
    %325 = arith.truncf %324 : vector<8x32xf32> to vector<8x32xbf16>
    %c55_199 = arith.constant 55 : index
    %c0_200 = arith.constant 0 : index
    %326 = vector.load %arg17[%c55_199, %c0_200] : memref<96x32xbf16, #tpu.memory_space<vmem>>, vector<8x32xbf16>
    tpu.vector_store %arg17[%c55_199, %c0_200], %325 {strides = array<i32>} : memref<96x32xbf16, #tpu.memory_space<vmem>>, vector<8x32xbf16>,
    %c54 = arith.constant 54 : index
    %c0_201 = arith.constant 0 : index
    %327 = vector.load %arg18[%c54, %c0_201] : memref<72x32xf32, #tpu.memory_space<vmem>>, vector<8x32xf32>
    %328 = vector.broadcast %245 : vector<1x32xf32> to vector<8x32xf32>
    %329 = arith.mulf %327, %328 : vector<8x32xf32>
    %330 = vector.broadcast %248 : vector<1x32xf32> to vector<8x32xf32>
    %331 = arith.addf %329, %330 : vector<8x32xf32>
    %332 = arith.negf %331 : vector<8x32xf32>
    %333 = math.exp %332 : vector<8x32xf32>
    %cst_202 = arith.constant 1.000000e+00 : f32
    %334 = vector.broadcast %cst_202 : f32 to vector<8x32xf32>
    %335 = arith.addf %334, %333 : vector<8x32xf32>
    %336 = arith.divf %334, %335 : vector<8x32xf32>
    %337 = arith.mulf %331, %336 : vector<8x32xf32>
    %338 = arith.truncf %337 : vector<8x32xf32> to vector<8x32xbf16>
    %c64_203 = arith.constant 64 : index
    %c0_204 = arith.constant 0 : index
    %339 = vector.load %arg17[%c64_203, %c0_204] : memref<96x32xbf16, #tpu.memory_space<vmem>>, vector<8x32xbf16>
    tpu.vector_store %arg17[%c64_203, %c0_204], %338 {strides = array<i32>} : memref<96x32xbf16, #tpu.memory_space<vmem>>, vector<8x32xbf16>,
    %c63 = arith.constant 63 : index
    %c0_205 = arith.constant 0 : index
    %340 = vector.load %arg18[%c63, %c0_205] : memref<72x32xf32, #tpu.memory_space<vmem>>, vector<8x32xf32>
    %341 = vector.broadcast %245 : vector<1x32xf32> to vector<8x32xf32>
    %342 = arith.mulf %340, %341 : vector<8x32xf32>
    %343 = vector.broadcast %248 : vector<1x32xf32> to vector<8x32xf32>
    %344 = arith.addf %342, %343 : vector<8x32xf32>
    %345 = arith.negf %344 : vector<8x32xf32>
    %346 = math.exp %345 : vector<8x32xf32>
    %cst_206 = arith.constant 1.000000e+00 : f32
    %347 = vector.broadcast %cst_206 : f32 to vector<8x32xf32>
    %348 = arith.addf %347, %346 : vector<8x32xf32>
    %349 = arith.divf %347, %348 : vector<8x32xf32>
    %350 = arith.mulf %344, %349 : vector<8x32xf32>
    %351 = arith.truncf %350 : vector<8x32xf32> to vector<8x32xbf16>
    %c73_207 = arith.constant 73 : index
    %c0_208 = arith.constant 0 : index
    %352 = vector.load %arg17[%c73_207, %c0_208] : memref<96x32xbf16, #tpu.memory_space<vmem>>, vector<8x32xbf16>
    tpu.vector_store %arg17[%c73_207, %c0_208], %351 {strides = array<i32>} : memref<96x32xbf16, #tpu.memory_space<vmem>>, vector<8x32xbf16>,
    %c0_209 = arith.constant 0 : index
    %c0_210 = arith.constant 0 : index
    %353 = vector.load %arg10[%c0_209, %c0_210] : memref<1x32xf32, #tpu.memory_space<vmem>>, vector<1x32xf32>
    %354 = vector.shape_cast %353 : vector<1x32xf32> to vector<1x32xf32>
    %355 = vector.broadcast %354 : vector<1x32xf32> to vector<72x32xf32>
    %c0_211 = arith.constant 0 : index
    %c0_212 = arith.constant 0 : index
    %356 = vector.load %arg18[%c0_211, %c0_212] : memref<72x32xf32, #tpu.memory_space<vmem>>, vector<72x32xf32>
    tpu.vector_store %arg18[%c0_211, %c0_212], %355 {strides = array<i32>} : memref<72x32xf32, #tpu.memory_space<vmem>>, vector<72x32xf32>,
    %c0_213 = arith.constant 0 : index
    %c0_214 = arith.constant 0 : index
    %357 = vector.load %arg18[%c0_213, %c0_214] : memref<72x32xf32, #tpu.memory_space<vmem>>, vector<72x32xf32>
    %c0_215 = arith.constant 0 : index
    %c0_216 = arith.constant 0 : index
    %358 = vector.load %arg17[%c0_215, %c0_216] : memref<96x32xbf16, #tpu.memory_space<vmem>>, vector<72x32xbf16>
    %c0_217 = arith.constant 0 : index
    %c0_218 = arith.constant 0 : index
    %c0_219 = arith.constant 0 : index
    %359 = vector.load %arg9[%c0_217, %c0_218, %c0_219] : memref<9x32x32xbf16, #tpu.memory_space<vmem>>, vector<1x32x32xbf16>
    %360 = vector.shape_cast %359 : vector<1x32x32xbf16> to vector<32x32xbf16>
    %cst_220 = arith.constant dense<0.000000e+00> : vector<72x32xf32>
    %361 = tpu.matmul %358, %360, %cst_220 {dimension_numbers = #tpu.dot_dimension_numbers<[1], [0], [0], [1], [0, 0, 1, 1], [], []>} : vector<72x32xbf16>, vector<32x32xbf16>, vector<72x32xf32> -> vector<72x32xf32>
    %362 = arith.addf %357, %361 : vector<72x32xf32>
    %c0_221 = arith.constant 0 : index
    %c0_222 = arith.constant 0 : index
    %363 = vector.load %arg18[%c0_221, %c0_222] : memref<72x32xf32, #tpu.memory_space<vmem>>, vector<72x32xf32>
    tpu.vector_store %arg18[%c0_221, %c0_222], %362 {strides = array<i32>} : memref<72x32xf32, #tpu.memory_space<vmem>>, vector<72x32xf32>,
    %c0_223 = arith.constant 0 : index
    %c0_224 = arith.constant 0 : index
    %364 = vector.load %arg18[%c0_223, %c0_224] : memref<72x32xf32, #tpu.memory_space<vmem>>, vector<72x32xf32>
    %c1_225 = arith.constant 1 : index
    %c0_226 = arith.constant 0 : index
    %365 = vector.load %arg17[%c1_225, %c0_226] : memref<96x32xbf16, #tpu.memory_space<vmem>>, vector<72x32xbf16>
    %c1_227 = arith.constant 1 : index
    %c0_228 = arith.constant 0 : index
    %c0_229 = arith.constant 0 : index
    %366 = vector.load %arg9[%c1_227, %c0_228, %c0_229] : memref<9x32x32xbf16, #tpu.memory_space<vmem>>, vector<1x32x32xbf16>
    %367 = vector.shape_cast %366 : vector<1x32x32xbf16> to vector<32x32xbf16>
    %cst_230 = arith.constant dense<0.000000e+00> : vector<72x32xf32>
    %368 = tpu.matmul %365, %367, %cst_230 {dimension_numbers = #tpu.dot_dimension_numbers<[1], [0], [0], [1], [0, 0, 1, 1], [], []>} : vector<72x32xbf16>, vector<32x32xbf16>, vector<72x32xf32> -> vector<72x32xf32>
    %369 = arith.addf %364, %368 : vector<72x32xf32>
    %c0_231 = arith.constant 0 : index
    %c0_232 = arith.constant 0 : index
    %370 = vector.load %arg18[%c0_231, %c0_232] : memref<72x32xf32, #tpu.memory_space<vmem>>, vector<72x32xf32>
    tpu.vector_store %arg18[%c0_231, %c0_232], %369 {strides = array<i32>} : memref<72x32xf32, #tpu.memory_space<vmem>>, vector<72x32xf32>,
    %c0_233 = arith.constant 0 : index
    %c0_234 = arith.constant 0 : index
    %371 = vector.load %arg18[%c0_233, %c0_234] : memref<72x32xf32, #tpu.memory_space<vmem>>, vector<72x32xf32>
    %c2_235 = arith.constant 2 : index
    %c0_236 = arith.constant 0 : index
    %372 = vector.load %arg17[%c2_235, %c0_236] : memref<96x32xbf16, #tpu.memory_space<vmem>>, vector<72x32xbf16>
    %c2_237 = arith.constant 2 : index
    %c0_238 = arith.constant 0 : index
    %c0_239 = arith.constant 0 : index
    %373 = vector.load %arg9[%c2_237, %c0_238, %c0_239] : memref<9x32x32xbf16, #tpu.memory_space<vmem>>, vector<1x32x32xbf16>
    %374 = vector.shape_cast %373 : vector<1x32x32xbf16> to vector<32x32xbf16>
    %cst_240 = arith.constant dense<0.000000e+00> : vector<72x32xf32>
    %375 = tpu.matmul %372, %374, %cst_240 {dimension_numbers = #tpu.dot_dimension_numbers<[1], [0], [0], [1], [0, 0, 1, 1], [], []>} : vector<72x32xbf16>, vector<32x32xbf16>, vector<72x32xf32> -> vector<72x32xf32>
    %376 = arith.addf %371, %375 : vector<72x32xf32>
    %c0_241 = arith.constant 0 : index
    %c0_242 = arith.constant 0 : index
    %377 = vector.load %arg18[%c0_241, %c0_242] : memref<72x32xf32, #tpu.memory_space<vmem>>, vector<72x32xf32>
    tpu.vector_store %arg18[%c0_241, %c0_242], %376 {strides = array<i32>} : memref<72x32xf32, #tpu.memory_space<vmem>>, vector<72x32xf32>,
    %c0_243 = arith.constant 0 : index
    %c0_244 = arith.constant 0 : index
    %378 = vector.load %arg18[%c0_243, %c0_244] : memref<72x32xf32, #tpu.memory_space<vmem>>, vector<72x32xf32>
    %c9_245 = arith.constant 9 : index
    %c0_246 = arith.constant 0 : index
    %379 = vector.load %arg17[%c9_245, %c0_246] : memref<96x32xbf16, #tpu.memory_space<vmem>>, vector<72x32xbf16>
    %c3_247 = arith.constant 3 : index
    %c0_248 = arith.constant 0 : index
    %c0_249 = arith.constant 0 : index
    %380 = vector.load %arg9[%c3_247, %c0_248, %c0_249] : memref<9x32x32xbf16, #tpu.memory_space<vmem>>, vector<1x32x32xbf16>
    %381 = vector.shape_cast %380 : vector<1x32x32xbf16> to vector<32x32xbf16>
    %cst_250 = arith.constant dense<0.000000e+00> : vector<72x32xf32>
    %382 = tpu.matmul %379, %381, %cst_250 {dimension_numbers = #tpu.dot_dimension_numbers<[1], [0], [0], [1], [0, 0, 1, 1], [], []>} : vector<72x32xbf16>, vector<32x32xbf16>, vector<72x32xf32> -> vector<72x32xf32>
    %383 = arith.addf %378, %382 : vector<72x32xf32>
    %c0_251 = arith.constant 0 : index
    %c0_252 = arith.constant 0 : index
    %384 = vector.load %arg18[%c0_251, %c0_252] : memref<72x32xf32, #tpu.memory_space<vmem>>, vector<72x32xf32>
    tpu.vector_store %arg18[%c0_251, %c0_252], %383 {strides = array<i32>} : memref<72x32xf32, #tpu.memory_space<vmem>>, vector<72x32xf32>,
    %c0_253 = arith.constant 0 : index
    %c0_254 = arith.constant 0 : index
    %385 = vector.load %arg18[%c0_253, %c0_254] : memref<72x32xf32, #tpu.memory_space<vmem>>, vector<72x32xf32>
    %c10_255 = arith.constant 10 : index
    %c0_256 = arith.constant 0 : index
    %386 = vector.load %arg17[%c10_255, %c0_256] : memref<96x32xbf16, #tpu.memory_space<vmem>>, vector<72x32xbf16>
    %c4_257 = arith.constant 4 : index
    %c0_258 = arith.constant 0 : index
    %c0_259 = arith.constant 0 : index
    %387 = vector.load %arg9[%c4_257, %c0_258, %c0_259] : memref<9x32x32xbf16, #tpu.memory_space<vmem>>, vector<1x32x32xbf16>
    %388 = vector.shape_cast %387 : vector<1x32x32xbf16> to vector<32x32xbf16>
    %cst_260 = arith.constant dense<0.000000e+00> : vector<72x32xf32>
    %389 = tpu.matmul %386, %388, %cst_260 {dimension_numbers = #tpu.dot_dimension_numbers<[1], [0], [0], [1], [0, 0, 1, 1], [], []>} : vector<72x32xbf16>, vector<32x32xbf16>, vector<72x32xf32> -> vector<72x32xf32>
    %390 = arith.addf %385, %389 : vector<72x32xf32>
    %c0_261 = arith.constant 0 : index
    %c0_262 = arith.constant 0 : index
    %391 = vector.load %arg18[%c0_261, %c0_262] : memref<72x32xf32, #tpu.memory_space<vmem>>, vector<72x32xf32>
    tpu.vector_store %arg18[%c0_261, %c0_262], %390 {strides = array<i32>} : memref<72x32xf32, #tpu.memory_space<vmem>>, vector<72x32xf32>,
    %c0_263 = arith.constant 0 : index
    %c0_264 = arith.constant 0 : index
    %392 = vector.load %arg18[%c0_263, %c0_264] : memref<72x32xf32, #tpu.memory_space<vmem>>, vector<72x32xf32>
    %c11_265 = arith.constant 11 : index
    %c0_266 = arith.constant 0 : index
    %393 = vector.load %arg17[%c11_265, %c0_266] : memref<96x32xbf16, #tpu.memory_space<vmem>>, vector<72x32xbf16>
    %c5_267 = arith.constant 5 : index
    %c0_268 = arith.constant 0 : index
    %c0_269 = arith.constant 0 : index
    %394 = vector.load %arg9[%c5_267, %c0_268, %c0_269] : memref<9x32x32xbf16, #tpu.memory_space<vmem>>, vector<1x32x32xbf16>
    %395 = vector.shape_cast %394 : vector<1x32x32xbf16> to vector<32x32xbf16>
    %cst_270 = arith.constant dense<0.000000e+00> : vector<72x32xf32>
    %396 = tpu.matmul %393, %395, %cst_270 {dimension_numbers = #tpu.dot_dimension_numbers<[1], [0], [0], [1], [0, 0, 1, 1], [], []>} : vector<72x32xbf16>, vector<32x32xbf16>, vector<72x32xf32> -> vector<72x32xf32>
    %397 = arith.addf %392, %396 : vector<72x32xf32>
    %c0_271 = arith.constant 0 : index
    %c0_272 = arith.constant 0 : index
    %398 = vector.load %arg18[%c0_271, %c0_272] : memref<72x32xf32, #tpu.memory_space<vmem>>, vector<72x32xf32>
    tpu.vector_store %arg18[%c0_271, %c0_272], %397 {strides = array<i32>} : memref<72x32xf32, #tpu.memory_space<vmem>>, vector<72x32xf32>,
    %c0_273 = arith.constant 0 : index
    %c0_274 = arith.constant 0 : index
    %399 = vector.load %arg18[%c0_273, %c0_274] : memref<72x32xf32, #tpu.memory_space<vmem>>, vector<72x32xf32>
    %c18_275 = arith.constant 18 : index
    %c0_276 = arith.constant 0 : index
    %400 = vector.load %arg17[%c18_275, %c0_276] : memref<96x32xbf16, #tpu.memory_space<vmem>>, vector<72x32xbf16>
    %c6_277 = arith.constant 6 : index
    %c0_278 = arith.constant 0 : index
    %c0_279 = arith.constant 0 : index
    %401 = vector.load %arg9[%c6_277, %c0_278, %c0_279] : memref<9x32x32xbf16, #tpu.memory_space<vmem>>, vector<1x32x32xbf16>
    %402 = vector.shape_cast %401 : vector<1x32x32xbf16> to vector<32x32xbf16>
    %cst_280 = arith.constant dense<0.000000e+00> : vector<72x32xf32>
    %403 = tpu.matmul %400, %402, %cst_280 {dimension_numbers = #tpu.dot_dimension_numbers<[1], [0], [0], [1], [0, 0, 1, 1], [], []>} : vector<72x32xbf16>, vector<32x32xbf16>, vector<72x32xf32> -> vector<72x32xf32>
    %404 = arith.addf %399, %403 : vector<72x32xf32>
    %c0_281 = arith.constant 0 : index
    %c0_282 = arith.constant 0 : index
    %405 = vector.load %arg18[%c0_281, %c0_282] : memref<72x32xf32, #tpu.memory_space<vmem>>, vector<72x32xf32>
    tpu.vector_store %arg18[%c0_281, %c0_282], %404 {strides = array<i32>} : memref<72x32xf32, #tpu.memory_space<vmem>>, vector<72x32xf32>,
    %c0_283 = arith.constant 0 : index
    %c0_284 = arith.constant 0 : index
    %406 = vector.load %arg18[%c0_283, %c0_284] : memref<72x32xf32, #tpu.memory_space<vmem>>, vector<72x32xf32>
    %c19_285 = arith.constant 19 : index
    %c0_286 = arith.constant 0 : index
    %407 = vector.load %arg17[%c19_285, %c0_286] : memref<96x32xbf16, #tpu.memory_space<vmem>>, vector<72x32xbf16>
    %c7_287 = arith.constant 7 : index
    %c0_288 = arith.constant 0 : index
    %c0_289 = arith.constant 0 : index
    %408 = vector.load %arg9[%c7_287, %c0_288, %c0_289] : memref<9x32x32xbf16, #tpu.memory_space<vmem>>, vector<1x32x32xbf16>
    %409 = vector.shape_cast %408 : vector<1x32x32xbf16> to vector<32x32xbf16>
    %cst_290 = arith.constant dense<0.000000e+00> : vector<72x32xf32>
    %410 = tpu.matmul %407, %409, %cst_290 {dimension_numbers = #tpu.dot_dimension_numbers<[1], [0], [0], [1], [0, 0, 1, 1], [], []>} : vector<72x32xbf16>, vector<32x32xbf16>, vector<72x32xf32> -> vector<72x32xf32>
    %411 = arith.addf %406, %410 : vector<72x32xf32>
    %c0_291 = arith.constant 0 : index
    %c0_292 = arith.constant 0 : index
    %412 = vector.load %arg18[%c0_291, %c0_292] : memref<72x32xf32, #tpu.memory_space<vmem>>, vector<72x32xf32>
    tpu.vector_store %arg18[%c0_291, %c0_292], %411 {strides = array<i32>} : memref<72x32xf32, #tpu.memory_space<vmem>>, vector<72x32xf32>,
    %c0_293 = arith.constant 0 : index
    %c0_294 = arith.constant 0 : index
    %413 = vector.load %arg18[%c0_293, %c0_294] : memref<72x32xf32, #tpu.memory_space<vmem>>, vector<72x32xf32>
    %c20_295 = arith.constant 20 : index
    %c0_296 = arith.constant 0 : index
    %414 = vector.load %arg17[%c20_295, %c0_296] : memref<96x32xbf16, #tpu.memory_space<vmem>>, vector<72x32xbf16>
    %c8_297 = arith.constant 8 : index
    %c0_298 = arith.constant 0 : index
    %c0_299 = arith.constant 0 : index
    %415 = vector.load %arg9[%c8_297, %c0_298, %c0_299] : memref<9x32x32xbf16, #tpu.memory_space<vmem>>, vector<1x32x32xbf16>
    %416 = vector.shape_cast %415 : vector<1x32x32xbf16> to vector<32x32xbf16>
    %cst_300 = arith.constant dense<0.000000e+00> : vector<72x32xf32>
    %417 = tpu.matmul %414, %416, %cst_300 {dimension_numbers = #tpu.dot_dimension_numbers<[1], [0], [0], [1], [0, 0, 1, 1], [], []>} : vector<72x32xbf16>, vector<32x32xbf16>, vector<72x32xf32> -> vector<72x32xf32>
    %418 = arith.addf %413, %417 : vector<72x32xf32>
    %c0_301 = arith.constant 0 : index
    %c0_302 = arith.constant 0 : index
    %419 = vector.load %arg18[%c0_301, %c0_302] : memref<72x32xf32, #tpu.memory_space<vmem>>, vector<72x32xf32>
    tpu.vector_store %arg18[%c0_301, %c0_302], %418 {strides = array<i32>} : memref<72x32xf32, #tpu.memory_space<vmem>>, vector<72x32xf32>,
    %c0_303 = arith.constant 0 : index
    %c0_304 = arith.constant 0 : index
    %420 = vector.load %arg18[%c0_303, %c0_304] : memref<72x32xf32, #tpu.memory_space<vmem>>, vector<8x32xf32>
    %c0_305 = arith.constant 0 : index
    %c0_306 = arith.constant 0 : index
    %c0_307 = arith.constant 0 : index
    %421 = vector.load %arg1[%c0_305, %c0_306, %c0_307] : memref<1x64x32xf32, #tpu.memory_space<vmem>>, vector<1x8x32xf32>
    %422 = vector.shape_cast %421 : vector<1x8x32xf32> to vector<8x32xf32>
    %423 = arith.addf %420, %422 : vector<8x32xf32>
    %c0_308 = arith.constant 0 : index
    %c0_309 = arith.constant 0 : index
    %c0_310 = arith.constant 0 : index
    %424 = vector.load %arg16[%c0_308, %c0_309, %c0_310] : memref<1x64x32xf32, #tpu.memory_space<vmem>>, vector<1x8x32xf32>
    %425 = vector.shape_cast %424 : vector<1x8x32xf32> to vector<8x32xf32>
    %426 = vector.shape_cast %423 : vector<8x32xf32> to vector<1x8x32xf32>
    tpu.vector_store %arg16[%c0_308, %c0_309, %c0_310], %426 {strides = array<i32>} : memref<1x64x32xf32, #tpu.memory_space<vmem>>, vector<1x8x32xf32>,
    %c9_311 = arith.constant 9 : index
    %c0_312 = arith.constant 0 : index
    %427 = vector.load %arg18[%c9_311, %c0_312] : memref<72x32xf32, #tpu.memory_space<vmem>>, vector<8x32xf32>
    %c0_313 = arith.constant 0 : index
    %c8_314 = arith.constant 8 : index
    %c0_315 = arith.constant 0 : index
    %428 = vector.load %arg1[%c0_313, %c8_314, %c0_315] : memref<1x64x32xf32, #tpu.memory_space<vmem>>, vector<1x8x32xf32>
    %429 = vector.shape_cast %428 : vector<1x8x32xf32> to vector<8x32xf32>
    %430 = arith.addf %427, %429 : vector<8x32xf32>
    %c0_316 = arith.constant 0 : index
    %c8_317 = arith.constant 8 : index
    %c0_318 = arith.constant 0 : index
    %431 = vector.load %arg16[%c0_316, %c8_317, %c0_318] : memref<1x64x32xf32, #tpu.memory_space<vmem>>, vector<1x8x32xf32>
    %432 = vector.shape_cast %431 : vector<1x8x32xf32> to vector<8x32xf32>
    %433 = vector.shape_cast %430 : vector<8x32xf32> to vector<1x8x32xf32>
    tpu.vector_store %arg16[%c0_316, %c8_317, %c0_318], %433 {strides = array<i32>} : memref<1x64x32xf32, #tpu.memory_space<vmem>>, vector<1x8x32xf32>,
    %c18_319 = arith.constant 18 : index
    %c0_320 = arith.constant 0 : index
    %434 = vector.load %arg18[%c18_319, %c0_320] : memref<72x32xf32, #tpu.memory_space<vmem>>, vector<8x32xf32>
    %c0_321 = arith.constant 0 : index
    %c16_322 = arith.constant 16 : index
    %c0_323 = arith.constant 0 : index
    %435 = vector.load %arg1[%c0_321, %c16_322, %c0_323] : memref<1x64x32xf32, #tpu.memory_space<vmem>>, vector<1x8x32xf32>
    %436 = vector.shape_cast %435 : vector<1x8x32xf32> to vector<8x32xf32>
    %437 = arith.addf %434, %436 : vector<8x32xf32>
    %c0_324 = arith.constant 0 : index
    %c16_325 = arith.constant 16 : index
    %c0_326 = arith.constant 0 : index
    %438 = vector.load %arg16[%c0_324, %c16_325, %c0_326] : memref<1x64x32xf32, #tpu.memory_space<vmem>>, vector<1x8x32xf32>
    %439 = vector.shape_cast %438 : vector<1x8x32xf32> to vector<8x32xf32>
    %440 = vector.shape_cast %437 : vector<8x32xf32> to vector<1x8x32xf32>
    tpu.vector_store %arg16[%c0_324, %c16_325, %c0_326], %440 {strides = array<i32>} : memref<1x64x32xf32, #tpu.memory_space<vmem>>, vector<1x8x32xf32>,
    %c27_327 = arith.constant 27 : index
    %c0_328 = arith.constant 0 : index
    %441 = vector.load %arg18[%c27_327, %c0_328] : memref<72x32xf32, #tpu.memory_space<vmem>>, vector<8x32xf32>
    %c0_329 = arith.constant 0 : index
    %c24_330 = arith.constant 24 : index
    %c0_331 = arith.constant 0 : index
    %442 = vector.load %arg1[%c0_329, %c24_330, %c0_331] : memref<1x64x32xf32, #tpu.memory_space<vmem>>, vector<1x8x32xf32>
    %443 = vector.shape_cast %442 : vector<1x8x32xf32> to vector<8x32xf32>
    %444 = arith.addf %441, %443 : vector<8x32xf32>
    %c0_332 = arith.constant 0 : index
    %c24_333 = arith.constant 24 : index
    %c0_334 = arith.constant 0 : index
    %445 = vector.load %arg16[%c0_332, %c24_333, %c0_334] : memref<1x64x32xf32, #tpu.memory_space<vmem>>, vector<1x8x32xf32>
    %446 = vector.shape_cast %445 : vector<1x8x32xf32> to vector<8x32xf32>
    %447 = vector.shape_cast %444 : vector<8x32xf32> to vector<1x8x32xf32>
    tpu.vector_store %arg16[%c0_332, %c24_333, %c0_334], %447 {strides = array<i32>} : memref<1x64x32xf32, #tpu.memory_space<vmem>>, vector<1x8x32xf32>,
    %c36_335 = arith.constant 36 : index
    %c0_336 = arith.constant 0 : index
    %448 = vector.load %arg18[%c36_335, %c0_336] : memref<72x32xf32, #tpu.memory_space<vmem>>, vector<8x32xf32>
    %c0_337 = arith.constant 0 : index
    %c32_338 = arith.constant 32 : index
    %c0_339 = arith.constant 0 : index
    %449 = vector.load %arg1[%c0_337, %c32_338, %c0_339] : memref<1x64x32xf32, #tpu.memory_space<vmem>>, vector<1x8x32xf32>
    %450 = vector.shape_cast %449 : vector<1x8x32xf32> to vector<8x32xf32>
    %451 = arith.addf %448, %450 : vector<8x32xf32>
    %c0_340 = arith.constant 0 : index
    %c32_341 = arith.constant 32 : index
    %c0_342 = arith.constant 0 : index
    %452 = vector.load %arg16[%c0_340, %c32_341, %c0_342] : memref<1x64x32xf32, #tpu.memory_space<vmem>>, vector<1x8x32xf32>
    %453 = vector.shape_cast %452 : vector<1x8x32xf32> to vector<8x32xf32>
    %454 = vector.shape_cast %451 : vector<8x32xf32> to vector<1x8x32xf32>
    tpu.vector_store %arg16[%c0_340, %c32_341, %c0_342], %454 {strides = array<i32>} : memref<1x64x32xf32, #tpu.memory_space<vmem>>, vector<1x8x32xf32>,
    %c45_343 = arith.constant 45 : index
    %c0_344 = arith.constant 0 : index
    %455 = vector.load %arg18[%c45_343, %c0_344] : memref<72x32xf32, #tpu.memory_space<vmem>>, vector<8x32xf32>
    %c0_345 = arith.constant 0 : index
    %c40_346 = arith.constant 40 : index
    %c0_347 = arith.constant 0 : index
    %456 = vector.load %arg1[%c0_345, %c40_346, %c0_347] : memref<1x64x32xf32, #tpu.memory_space<vmem>>, vector<1x8x32xf32>
    %457 = vector.shape_cast %456 : vector<1x8x32xf32> to vector<8x32xf32>
    %458 = arith.addf %455, %457 : vector<8x32xf32>
    %c0_348 = arith.constant 0 : index
    %c40_349 = arith.constant 40 : index
    %c0_350 = arith.constant 0 : index
    %459 = vector.load %arg16[%c0_348, %c40_349, %c0_350] : memref<1x64x32xf32, #tpu.memory_space<vmem>>, vector<1x8x32xf32>
    %460 = vector.shape_cast %459 : vector<1x8x32xf32> to vector<8x32xf32>
    %461 = vector.shape_cast %458 : vector<8x32xf32> to vector<1x8x32xf32>
    tpu.vector_store %arg16[%c0_348, %c40_349, %c0_350], %461 {strides = array<i32>} : memref<1x64x32xf32, #tpu.memory_space<vmem>>, vector<1x8x32xf32>,
    %c54_351 = arith.constant 54 : index
    %c0_352 = arith.constant 0 : index
    %462 = vector.load %arg18[%c54_351, %c0_352] : memref<72x32xf32, #tpu.memory_space<vmem>>, vector<8x32xf32>
    %c0_353 = arith.constant 0 : index
    %c48_354 = arith.constant 48 : index
    %c0_355 = arith.constant 0 : index
    %463 = vector.load %arg1[%c0_353, %c48_354, %c0_355] : memref<1x64x32xf32, #tpu.memory_space<vmem>>, vector<1x8x32xf32>
    %464 = vector.shape_cast %463 : vector<1x8x32xf32> to vector<8x32xf32>
    %465 = arith.addf %462, %464 : vector<8x32xf32>
    %c0_356 = arith.constant 0 : index
    %c48_357 = arith.constant 48 : index
    %c0_358 = arith.constant 0 : index
    %466 = vector.load %arg16[%c0_356, %c48_357, %c0_358] : memref<1x64x32xf32, #tpu.memory_space<vmem>>, vector<1x8x32xf32>
    %467 = vector.shape_cast %466 : vector<1x8x32xf32> to vector<8x32xf32>
    %468 = vector.shape_cast %465 : vector<8x32xf32> to vector<1x8x32xf32>
    tpu.vector_store %arg16[%c0_356, %c48_357, %c0_358], %468 {strides = array<i32>} : memref<1x64x32xf32, #tpu.memory_space<vmem>>, vector<1x8x32xf32>,
    %c63_359 = arith.constant 63 : index
    %c0_360 = arith.constant 0 : index
    %469 = vector.load %arg18[%c63_359, %c0_360] : memref<72x32xf32, #tpu.memory_space<vmem>>, vector<8x32xf32>
    %c0_361 = arith.constant 0 : index
    %c56_362 = arith.constant 56 : index
    %c0_363 = arith.constant 0 : index
    %470 = vector.load %arg1[%c0_361, %c56_362, %c0_363] : memref<1x64x32xf32, #tpu.memory_space<vmem>>, vector<1x8x32xf32>
    %471 = vector.shape_cast %470 : vector<1x8x32xf32> to vector<8x32xf32>
    %472 = arith.addf %469, %471 : vector<8x32xf32>
    %c0_364 = arith.constant 0 : index
    %c56_365 = arith.constant 56 : index
    %c0_366 = arith.constant 0 : index
    %473 = vector.load %arg16[%c0_364, %c56_365, %c0_366] : memref<1x64x32xf32, #tpu.memory_space<vmem>>, vector<1x8x32xf32>
    %474 = vector.shape_cast %473 : vector<1x8x32xf32> to vector<8x32xf32>
    %475 = vector.shape_cast %472 : vector<8x32xf32> to vector<1x8x32xf32>
    tpu.vector_store %arg16[%c0_364, %c56_365, %c0_366], %475 {strides = array<i32>} : memref<1x64x32xf32, #tpu.memory_space<vmem>>, vector<1x8x32xf32>,
    return
  }
  func.func @transform_0(%arg0: i32) -> (i32, i32, i32) {
    %c0_i32 = arith.constant 0 : i32
    %c0_i32_0 = arith.constant 0 : i32
    %c0_i32_1 = arith.constant 0 : i32
    return %arg0, %c0_i32, %c0_i32_0 : i32, i32, i32
  }
  func.func @transform_1(%arg0: i32) -> (i32, i32, i32) {
    %c0_i32 = arith.constant 0 : i32
    %c0_i32_0 = arith.constant 0 : i32
    %c0_i32_1 = arith.constant 0 : i32
    return %arg0, %c0_i32, %c0_i32_0 : i32, i32, i32
  }
  func.func @transform_2(%arg0: i32) -> (i32, i32) {
    %c0_i32 = arith.constant 0 : i32
    %c0_i32_0 = arith.constant 0 : i32
    %c0_i32_1 = arith.constant 0 : i32
    return %c0_i32, %c0_i32_0 : i32, i32
  }
  func.func @transform_3(%arg0: i32) -> (i32, i32) {
    %c0_i32 = arith.constant 0 : i32
    %c0_i32_0 = arith.constant 0 : i32
    %c0_i32_1 = arith.constant 0 : i32
    return %c0_i32, %c0_i32_0 : i32, i32
  }
  func.func @transform_4(%arg0: i32) -> (i32, i32, i32) {
    %c0_i32 = arith.constant 0 : i32
    %c0_i32_0 = arith.constant 0 : i32
    %c0_i32_1 = arith.constant 0 : i32
    %c0_i32_2 = arith.constant 0 : i32
    return %c0_i32, %c0_i32_0, %c0_i32_1 : i32, i32, i32
  }
  func.func @transform_5(%arg0: i32) -> (i32, i32) {
    %c0_i32 = arith.constant 0 : i32
    %c0_i32_0 = arith.constant 0 : i32
    %c0_i32_1 = arith.constant 0 : i32
    return %c0_i32, %c0_i32_0 : i32, i32
  }
  func.func @transform_6(%arg0: i32) -> (i32, i32) {
    %c0_i32 = arith.constant 0 : i32
    %c0_i32_0 = arith.constant 0 : i32
    %c0_i32_1 = arith.constant 0 : i32
    return %c0_i32, %c0_i32_0 : i32, i32
  }
  func.func @transform_7(%arg0: i32) -> (i32, i32) {
    %c0_i32 = arith.constant 0 : i32
    %c0_i32_0 = arith.constant 0 : i32
    %c0_i32_1 = arith.constant 0 : i32
    return %c0_i32, %c0_i32_0 : i32, i32
  }
  func.func @transform_8(%arg0: i32) -> (i32, i32, i32) {
    %c0_i32 = arith.constant 0 : i32
    %c0_i32_0 = arith.constant 0 : i32
    %c0_i32_1 = arith.constant 0 : i32
    %c0_i32_2 = arith.constant 0 : i32
    return %c0_i32, %c0_i32_0, %c0_i32_1 : i32, i32, i32
  }
  func.func @transform_9(%arg0: i32) -> (i32, i32) {
    %c0_i32 = arith.constant 0 : i32
    %c0_i32_0 = arith.constant 0 : i32
    %c0_i32_1 = arith.constant 0 : i32
    return %c0_i32, %c0_i32_0 : i32, i32
  }
  func.func @transform_10(%arg0: i32) -> (i32, i32) {
    %c0_i32 = arith.constant 0 : i32
    %c0_i32_0 = arith.constant 0 : i32
    %c0_i32_1 = arith.constant 0 : i32
    return %c0_i32, %c0_i32_0 : i32, i32
  }
  func.func @transform_11(%arg0: i32) -> (i32, i32) {
    %c0_i32 = arith.constant 0 : i32
    %c0_i32_0 = arith.constant 0 : i32
    %c0_i32_1 = arith.constant 0 : i32
    return %c0_i32, %c0_i32_0 : i32, i32
  }
  func.func @transform_12(%arg0: i32) -> (i32, i32) {
    %c0_i32 = arith.constant 0 : i32
    %c0_i32_0 = arith.constant 0 : i32
    %c0_i32_1 = arith.constant 0 : i32
    return %c0_i32, %c0_i32_0 : i32, i32
  }
  func.func @transform_13(%arg0: i32) -> (i32, i32) {
    %c0_i32 = arith.constant 0 : i32
    %c0_i32_0 = arith.constant 0 : i32
    %c0_i32_1 = arith.constant 0 : i32
    return %c0_i32, %c0_i32_0 : i32, i32
  }
  func.func @transform_14(%arg0: i32) -> (i32, i32) {
    %c0_i32 = arith.constant 0 : i32
    %c0_i32_0 = arith.constant 0 : i32
    %c0_i32_1 = arith.constant 0 : i32
    return %c0_i32, %c0_i32_0 : i32, i32
  }
  func.func @transform_15(%arg0: i32) -> (i32, i32, i32) {
    %c0_i32 = arith.constant 0 : i32
    %c0_i32_0 = arith.constant 0 : i32
    %c0_i32_1 = arith.constant 0 : i32
    return %arg0, %c0_i32, %c0_i32_0 : i32, i32, i32
  }
}

</mosaic_0001>

<llo_original>
// kernel: tpu_custom_call.1
$region0: #{tpu_custom_call.1}
  #allocation0 [shape = 'u32[]', space=smem, size = 0x4, offset = 0x4, fixed_abs, tag = 'smem constant byte address 0x4 - core index']
  #allocation1 [shape = 'u32[144,128]{1,0:T(1,128)}', space=vmem, size = 0x12000, scoped, tag = 'internal scratch']
  #allocation2 [shape = 'bf16[96,32]{1,0:T(16,128)(2,1)}', space=vmem, size = 0x6000, scoped, tag = 'scratch operand']
  #allocation3 [shape = 'f32[72,32]{1,0:T(8,128)}', space=vmem, size = 0x9000, scoped, tag = 'scratch operand']
  %s0 = inlined_call_operand.vmem [shape: f32[2,64,32], index: 0, kind: input, shape index: {}]
  %s1 = inlined_call_operand.vmem [shape: f32[2,1,32], index: 1, kind: input, shape index: {}]
  %s2 = inlined_call_operand.vmem [shape: f32[1,32], index: 2, kind: input, shape index: {}]
  %s3 = inlined_call_operand.hbm [shape: f32[1,32], index: 3, kind: input, shape index: {}]
  %s4 = inlined_call_operand.vmem [shape: bf16[9,32,32], index: 4, kind: input, shape index: {}]
  %s5 = inlined_call_operand.hbm [shape: f32[1,32], index: 5, kind: input, shape index: {}]
  %s6 = inlined_call_operand.hbm [shape: f32[1,32], index: 6, kind: input, shape index: {}]
  %s7 = inlined_call_operand.hbm [shape: f32[1,32], index: 7, kind: input, shape index: {}]
  %s8 = inlined_call_operand.vmem [shape: bf16[9,32,32], index: 8, kind: input, shape index: {}]
  %s9 = inlined_call_operand.vmem [shape: f32[1,32], index: 9, kind: input, shape index: {}]
  %s10 = inlined_call_operand.hbm [shape: f32[32,32], index: 10, kind: input, shape index: {}]
  %s11 = inlined_call_operand.hbm [shape: f32[32,32], index: 11, kind: input, shape index: {}]
  %s12 = inlined_call_operand.hbm [shape: f32[32,32], index: 12, kind: input, shape index: {}]
  %s13 = inlined_call_operand.hbm [shape: f32[32,32], index: 13, kind: input, shape index: {}]
  %s14 = inlined_call_operand.vmem [shape: f32[72,1], index: 14, kind: input, shape index: {}]
  %s15 = inlined_call_operand.vmem [shape: f32[2,64,32], index: 15, kind: output, shape index: {}]
  %s16 = sld [smem:[#allocation0]]
  $region125: #{tpu_custom_call.1} parent=0
    _
  %s18 = ssub.s32 1, %s16
  %s19 = scalar_select 0, %s18, %s16
  $region1: #{tpu_custom_call.1} parent=0
    #allocation4 [shape = 'u8[512]{0}', space=vmem, size = 0x400, scoped, tag = 'input window, operand 3, single buffered']
    #allocation5 [shape = 's32[2]{0}', space=sflag, size = 0x8, scoped, tag = 'scoped memory for tpu_custom_call.1']
    #allocation6 [shape = 'u8[512]{0}', space=vmem, size = 0x400, scoped, tag = 'input window, operand 5, single buffered']
    #allocation7 [shape = 's32[1]{0}', space=sflag, size = 0x4, scoped, tag = 'scoped memory for tpu_custom_call.1']
    #allocation8 [shape = 'u8[512]{0}', space=vmem, size = 0x400, scoped, tag = 'input window, operand 6, single buffered']
    #allocation9 [shape = 'u8[512]{0}', space=vmem, size = 0x400, scoped, tag = 'input window, operand 7, single buffered']
    #allocation10 [shape = 's32[1]{0}', space=sflag, size = 0x4, scoped, tag = 'scoped memory for tpu_custom_call.1']
    #allocation11 [shape = 'u8[16384]{0}', space=vmem, size = 0x4000, scoped, tag = 'input window, operand 10, single buffered']
    #allocation12 [shape = 'u8[16384]{0}', space=vmem, size = 0x4000, scoped, tag = 'input window, operand 11, single buffered']
    #allocation13 [shape = 's32[1]{0}', space=sflag, size = 0x4, scoped, tag = 'scoped memory for tpu_custom_call.1']
    #allocation14 [shape = 'u8[16384]{0}', space=vmem, size = 0x4000, scoped, tag = 'input window, operand 12, single buffered']
    #allocation15 [shape = 'u8[16384]{0}', space=vmem, size = 0x4000, scoped, tag = 'input window, operand 13, single buffered']
    #allocation16 [shape = 's32[1]{0}', space=sflag, size = 0x4, scoped, tag = 'scoped memory for tpu_custom_call.1']
    %20 = vsyncpa [#allocation5], 0
    %21 = vsyncpa [#allocation7], 0
    %22 = vsyncpa [#allocation10], 0
    %23 = vsyncpa [#allocation13], 0
    %24 = vsyncpa [#allocation16], 0
    loop: start=0, step=1, limit=4
    $region2: #{tpu_custom_call.1} parent=1 // loop_pre_header
      _
    $region3: #{tpu_custom_call.1} parent=1 // loop_header
      %s26 = sphi 0, %s30
      %p27 = scmp.ge.s32.totalorder %s26, 4
      %s36 = sphi 0, %s38
      %s39 = sphi 0, %s36
      %s40 = sphi 0, %s39
      %s56 = sphi 0, %s40
      %s62 = sphi 0, %s64
      %s65 = sphi 0, %s62
      %s66 = sphi 0, %s65
      %s82 = sphi 0, %s66
      %s86 = sphi 0, %s86
      %s88 = sphi 0, %s86
      %s89 = sphi 0, %s88
      %s103 = sphi 0, %s89
      %s107 = sphi 0, %s107
      %s109 = sphi 0, %s107
      %s110 = sphi 0, %s109
      %s124 = sphi 0, %s110
      %s128 = sphi 0, %s128
      %s130 = sphi 0, %s128
      %s131 = sphi 0, %s130
      %s145 = sphi 0, %s131
      %s149 = sphi 0, %s149
      %s151 = sphi 0, %s149
      %s152 = sphi 0, %s151
      %s166 = sphi 0, %s152
      %s170 = sphi 0, %s170
      %s172 = sphi 0, %s170
      %s173 = sphi 0, %s172
      %s187 = sphi 0, %s173
      %s191 = sphi 0, %s191
      %s193 = sphi 0, %s191
      %s194 = sphi 0, %s193
      %s208 = sphi 0, %s194
      %s212 = sphi 0, %s212
      %s214 = sphi 0, %s212
      %s215 = sphi 0, %s214
      %s229 = sphi 0, %s215
      %s233 = sphi 0, %s233
      %s235 = sphi 0, %s233
      %s236 = sphi 0, %s235
      %s250 = sphi 0, %s236
      %s254 = sphi 0, %s254
      %s256 = sphi 0, %s254
      %s257 = sphi 0, %s256
      %s271 = sphi 0, %s257
      %s275 = sphi 0, %s275
      %s277 = sphi 0, %s275
      %s278 = sphi 0, %s277
      %s292 = sphi 0, %s278
      %s296 = sphi 0, %s296
      %s298 = sphi 0, %s296
      %s299 = sphi 0, %s298
      %s313 = sphi 0, %s299
      %s317 = sphi 0, %s317
      %s319 = sphi 0, %s317
      %s320 = sphi 0, %s319
      %s334 = sphi 0, %s320
      %s338 = sphi 0, %s338
      %s340 = sphi 0, %s338
      %s341 = sphi 0, %s340
      %s355 = sphi 0, %s341
      %s361 = sphi 0, %s363
      %s364 = sphi 0, %s361
      %s365 = sphi 0, %s364
      %s381 = sphi 0, %s365
    $region4: #{tpu_custom_call.1} parent=1 // loop_header_branch
      %29 = sbr.rel (%p27) target = $region8
    $region5: #{tpu_custom_call.1} parent=1 // loop_body
      %s31 = ssub.s32 %s26, 1
      %s32 = ssub.s32 %s26, 2
      %s33 = sadd.s32 %s26, 1
      %s34 = ssub.s32 %s26, %s33
      %p35 = scmp.eq.s32.totalorder %s34, 0
      %s37 = sadd.s32 %s36, 1
      %s38 = scalar_select %p35, %s36, %s37
      %p41 = pneg %p35
      %p42 = scmp.eq.s32.totalorder %s26, 1
      %p43 = por %p41, %p42
      %p44 = scmp.ne.s32.totalorder %s36, %s39
      %p45 = scmp.eq.s32.totalorder %s26, 0
      %p46 = por %p44, %p45
      %p47 = scmp.ne.s32.totalorder %s36, %s39
      %p48 = scmp.eq.s32.totalorder %s31, 1
      %p49 = por %p47, %p48
      %p50 = scmp.ne.s32.totalorder %s39, %s40
      %p51 = scmp.eq.s32.totalorder %s31, 0
      %p52 = por %p50, %p51
      %p53 = scmp.ne.s32.totalorder %s39, %s40
      %p54 = scmp.eq.s32.totalorder %s32, 1
      %p55 = por %p53, %p54
      %p57 = scmp.ne.s32.totalorder %s40, %s56
      %p58 = scmp.eq.s32.totalorder %s32, 0
      %p59 = por %p57, %p58
      %s60 = ssub.s32 %s26, %s33
      %p61 = scmp.eq.s32.totalorder %s60, 0
      %s63 = sadd.s32 %s62, 1
      %s64 = scalar_select %p61, %s62, %s63
      %p67 = pneg %p61
      %p68 = scmp.eq.s32.totalorder %s26, 1
      %p69 = por %p67, %p68
      %p70 = scmp.ne.s32.totalorder %s62, %s65
      %p71 = scmp.eq.s32.totalorder %s26, 0
      %p72 = por %p70, %p71
      %p73 = scmp.ne.s32.totalorder %s62, %s65
      %p74 = scmp.eq.s32.totalorder %s31, 1
      %p75 = por %p73, %p74
      %p76 = scmp.ne.s32.totalorder %s65, %s66
      %p77 = scmp.eq.s32.totalorder %s31, 0
      %p78 = por %p76, %p77
      %p79 = scmp.ne.s32.totalorder %s65, %s66
      %p80 = scmp.eq.s32.totalorder %s32, 1
      %p81 = por %p79, %p80
      %p83 = scmp.ne.s32.totalorder %s66, %s82
      %p84 = scmp.eq.s32.totalorder %s32, 0
      %p85 = por %p83, %p84
      %s87 = sadd.s32 %s86, 1
      %p90 = scmp.eq.s32.totalorder %s26, 1
      %p91 = scmp.ne.s32.totalorder %s86, %s88
      %p92 = scmp.eq.s32.totalorder %s26, 0
      %p93 = por %p91, %p92
      %p94 = scmp.ne.s32.totalorder %s86, %s88
      %p95 = scmp.eq.s32.totalorder %s31, 1
      %p96 = por %p94, %p95
      %p97 = scmp.ne.s32.totalorder %s88, %s89
      %p98 = scmp.eq.s32.totalorder %s31, 0
      %p99 = por %p97, %p98
      %p100 = scmp.ne.s32.totalorder %s88, %s89
      %p101 = scmp.eq.s32.totalorder %s32, 1
      %p102 = por %p100, %p101
      %p104 = scmp.ne.s32.totalorder %s89, %s103
      %p105 = scmp.eq.s32.totalorder %s32, 0
      %p106 = por %p104, %p105
      %s108 = sadd.s32 %s107, 1
      %p111 = scmp.eq.s32.totalorder %s26, 1
      %p112 = scmp.ne.s32.totalorder %s107, %s109
      %p113 = scmp.eq.s32.totalorder %s26, 0
      %p114 = por %p112, %p113
      %p115 = scmp.ne.s32.totalorder %s107, %s109
      %p116 = scmp.eq.s32.totalorder %s31, 1
      %p117 = por %p115, %p116
      %p118 = scmp.ne.s32.totalorder %s109, %s110
      %p119 = scmp.eq.s32.totalorder %s31, 0
      %p120 = por %p118, %p119
      %p121 = scmp.ne.s32.totalorder %s109, %s110
      %p122 = scmp.eq.s32.totalorder %s32, 1
      %p123 = por %p121, %p122
      %p125 = scmp.ne.s32.totalorder %s110, %s124
      %p126 = scmp.eq.s32.totalorder %s32, 0
      %p127 = por %p125, %p126
      %s129 = sadd.s32 %s128, 1
      %p132 = scmp.eq.s32.totalorder %s26, 1
      %p133 = scmp.ne.s32.totalorder %s128, %s130
      %p134 = scmp.eq.s32.totalorder %s26, 0
      %p135 = por %p133, %p134
      %p136 = scmp.ne.s32.totalorder %s128, %s130
      %p137 = scmp.eq.s32.totalorder %s31, 1
      %p138 = por %p136, %p137
      %p139 = scmp.ne.s32.totalorder %s130, %s131
      %p140 = scmp.eq.s32.totalorder %s31, 0
      %p141 = por %p139, %p140
      %p142 = scmp.ne.s32.totalorder %s130, %s131
      %p143 = scmp.eq.s32.totalorder %s32, 1
      %p144 = por %p142, %p143
      %p146 = scmp.ne.s32.totalorder %s131, %s145
      %p147 = scmp.eq.s32.totalorder %s32, 0
      %p148 = por %p146, %p147
      %s150 = sadd.s32 %s149, 1
      %p153 = scmp.eq.s32.totalorder %s26, 1
      %p154 = scmp.ne.s32.totalorder %s149, %s151
      %p155 = scmp.eq.s32.totalorder %s26, 0
      %p156 = por %p154, %p155
      %p157 = scmp.ne.s32.totalorder %s149, %s151
      %p158 = scmp.eq.s32.totalorder %s31, 1
      %p159 = por %p157, %p158
      %p160 = scmp.ne.s32.totalorder %s151, %s152
      %p161 = scmp.eq.s32.totalorder %s31, 0
      %p162 = por %p160, %p161
      %p163 = scmp.ne.s32.totalorder %s151, %s152
      %p164 = scmp.eq.s32.totalorder %s32, 1
      %p165 = por %p163, %p164
      %p167 = scmp.ne.s32.totalorder %s152, %s166
      %p168 = scmp.eq.s32.totalorder %s32, 0
      %p169 = por %p167, %p168
      %s171 = sadd.s32 %s170, 1
      %p174 = scmp.eq.s32.totalorder %s26, 1
      %p175 = scmp.ne.s32.totalorder %s170, %s172
      %p176 = scmp.eq.s32.totalorder %s26, 0
      %p177 = por %p175, %p176
      %p178 = scmp.ne.s32.totalorder %s170, %s172
      %p179 = scmp.eq.s32.totalorder %s31, 1
      %p180 = por %p178, %p179
      %p181 = scmp.ne.s32.totalorder %s172, %s173
      %p182 = scmp.eq.s32.totalorder %s31, 0
      %p183 = por %p181, %p182
      %p184 = scmp.ne.s32.totalorder %s172, %s173
      %p185 = scmp.eq.s32.totalorder %s32, 1
      %p186 = por %p184, %p185
      %p188 = scmp.ne.s32.totalorder %s173, %s187
      %p189 = scmp.eq.s32.totalorder %s32, 0
      %p190 = por %p188, %p189
      %s192 = sadd.s32 %s191, 1
      %p195 = scmp.eq.s32.totalorder %s26, 1
      %p196 = scmp.ne.s32.totalorder %s191, %s193
      %p197 = scmp.eq.s32.totalorder %s26, 0
      %p198 = por %p196, %p197
      %p199 = scmp.ne.s32.totalorder %s191, %s193
      %p200 = scmp.eq.s32.totalorder %s31, 1
      %p201 = por %p199, %p200
      %p202 = scmp.ne.s32.totalorder %s193, %s194
      %p203 = scmp.eq.s32.totalorder %s31, 0
      %p204 = por %p202, %p203
      %p205 = scmp.ne.s32.totalorder %s193, %s194
      %p206 = scmp.eq.s32.totalorder %s32, 1
      %p207 = por %p205, %p206
      %p209 = scmp.ne.s32.totalorder %s194, %s208
      %p210 = scmp.eq.s32.totalorder %s32, 0
      %p211 = por %p209, %p210
      %s213 = sadd.s32 %s212, 1
      %p216 = scmp.eq.s32.totalorder %s26, 1
      %p217 = scmp.ne.s32.totalorder %s212, %s214
      %p218 = scmp.eq.s32.totalorder %s26, 0
      %p219 = por %p217, %p218
      %p220 = scmp.ne.s32.totalorder %s212, %s214
      %p221 = scmp.eq.s32.totalorder %s31, 1
      %p222 = por %p220, %p221
      %p223 = scmp.ne.s32.totalorder %s214, %s215
      %p224 = scmp.eq.s32.totalorder %s31, 0
      %p225 = por %p223, %p224
      %p226 = scmp.ne.s32.totalorder %s214, %s215
      %p227 = scmp.eq.s32.totalorder %s32, 1
      %p228 = por %p226, %p227
      %p230 = scmp.ne.s32.totalorder %s215, %s229
      %p231 = scmp.eq.s32.totalorder %s32, 0
      %p232 = por %p230, %p231
      %s234 = sadd.s32 %s233, 1
      %p237 = scmp.eq.s32.totalorder %s26, 1
      %p238 = scmp.ne.s32.totalorder %s233, %s235
      %p239 = scmp.eq.s32.totalorder %s26, 0
      %p240 = por %p238, %p239
      %p241 = scmp.ne.s32.totalorder %s233, %s235
      %p242 = scmp.eq.s32.totalorder %s31, 1
      %p243 = por %p241, %p242
      %p244 = scmp.ne.s32.totalorder %s235, %s236
      %p245 = scmp.eq.s32.totalorder %s31, 0
      %p246 = por %p244, %p245
      %p247 = scmp.ne.s32.totalorder %s235, %s236
      %p248 = scmp.eq.s32.totalorder %s32, 1
      %p249 = por %p247, %p248
      %p251 = scmp.ne.s32.totalorder %s236, %s250
      %p252 = scmp.eq.s32.totalorder %s32, 0
      %p253 = por %p251, %p252
      %s255 = sadd.s32 %s254, 1
      %p258 = scmp.eq.s32.totalorder %s26, 1
      %p259 = scmp.ne.s32.totalorder %s254, %s256
      %p260 = scmp.eq.s32.totalorder %s26, 0
      %p261 = por %p259, %p260
      %p262 = scmp.ne.s32.totalorder %s254, %s256
      %p263 = scmp.eq.s32.totalorder %s31, 1
      %p264 = por %p262, %p263
      %p265 = scmp.ne.s32.totalorder %s256, %s257
      %p266 = scmp.eq.s32.totalorder %s31, 0
      %p267 = por %p265, %p266
      %p268 = scmp.ne.s32.totalorder %s256, %s257
      %p269 = scmp.eq.s32.totalorder %s32, 1
      %p270 = por %p268, %p269
      %p272 = scmp.ne.s32.totalorder %s257, %s271
      %p273 = scmp.eq.s32.totalorder %s32, 0
      %p274 = por %p272, %p273
      %s276 = sadd.s32 %s275, 1
      %p279 = scmp.eq.s32.totalorder %s26, 1
      %p280 = scmp.ne.s32.totalorder %s275, %s277
      %p281 = scmp.eq.s32.totalorder %s26, 0
      %p282 = por %p280, %p281
      %p283 = scmp.ne.s32.totalorder %s275, %s277
      %p284 = scmp.eq.s32.totalorder %s31, 1
      %p285 = por %p283, %p284
      %p286 = scmp.ne.s32.totalorder %s277, %s278
      %p287 = scmp.eq.s32.totalorder %s31, 0
      %p288 = por %p286, %p287
      %p289 = scmp.ne.s32.totalorder %s277, %s278
      %p290 = scmp.eq.s32.totalorder %s32, 1
      %p291 = por %p289, %p290
      %p293 = scmp.ne.s32.totalorder %s278, %s292
      %p294 = scmp.eq.s32.totalorder %s32, 0
      %p295 = por %p293, %p294
      %s297 = sadd.s32 %s296, 1
      %p300 = scmp.eq.s32.totalorder %s26, 1
      %p301 = scmp.ne.s32.totalorder %s296, %s298
      %p302 = scmp.eq.s32.totalorder %s26, 0
      %p303 = por %p301, %p302
      %p304 = scmp.ne.s32.totalorder %s296, %s298
      %p305 = scmp.eq.s32.totalorder %s31, 1
      %p306 = por %p304, %p305
      %p307 = scmp.ne.s32.totalorder %s298, %s299
      %p308 = scmp.eq.s32.totalorder %s31, 0
      %p309 = por %p307, %p308
      %p310 = scmp.ne.s32.totalorder %s298, %s299
      %p311 = scmp.eq.s32.totalorder %s32, 1
      %p312 = por %p310, %p311
      %p314 = scmp.ne.s32.totalorder %s299, %s313
      %p315 = scmp.eq.s32.totalorder %s32, 0
      %p316 = por %p314, %p315
      %s318 = sadd.s32 %s317, 1
      %p321 = scmp.eq.s32.totalorder %s26, 1
      %p322 = scmp.ne.s32.totalorder %s317, %s319
      %p323 = scmp.eq.s32.totalorder %s26, 0
      %p324 = por %p322, %p323
      %p325 = scmp.ne.s32.totalorder %s317, %s319
      %p326 = scmp.eq.s32.totalorder %s31, 1
      %p327 = por %p325, %p326
      %p328 = scmp.ne.s32.totalorder %s319, %s320
      %p329 = scmp.eq.s32.totalorder %s31, 0
      %p330 = por %p328, %p329
      %p331 = scmp.ne.s32.totalorder %s319, %s320
      %p332 = scmp.eq.s32.totalorder %s32, 1
      %p333 = por %p331, %p332
      %p335 = scmp.ne.s32.totalorder %s320, %s334
      %p336 = scmp.eq.s32.totalorder %s32, 0
      %p337 = por %p335, %p336
      %s339 = sadd.s32 %s338, 1
      %p342 = scmp.eq.s32.totalorder %s26, 1
      %p343 = scmp.ne.s32.totalorder %s338, %s340
      %p344 = scmp.eq.s32.totalorder %s26, 0
      %p345 = por %p343, %p344
      %p346 = scmp.ne.s32.totalorder %s338, %s340
      %p347 = scmp.eq.s32.totalorder %s31, 1
      %p348 = por %p346, %p347
      %p349 = scmp.ne.s32.totalorder %s340, %s341
      %p350 = scmp.eq.s32.totalorder %s31, 0
      %p351 = por %p349, %p350
      %p352 = scmp.ne.s32.totalorder %s340, %s341
      %p353 = scmp.eq.s32.totalorder %s32, 1
      %p354 = por %p352, %p353
      %p356 = scmp.ne.s32.totalorder %s341, %s355
      %p357 = scmp.eq.s32.totalorder %s32, 0
      %p358 = por %p356, %p357
      %s359 = ssub.s32 %s26, %s33
      %p360 = scmp.eq.s32.totalorder %s359, 0
      %s362 = sadd.s32 %s361, 1
      %s363 = scalar_select %p360, %s361, %s362
      %p366 = pneg %p360
      %p367 = scmp.eq.s32.totalorder %s26, 1
      %p368 = por %p366, %p367
      %p369 = scmp.ne.s32.totalorder %s361, %s364
      %p370 = scmp.eq.s32.totalorder %s26, 0
      %p371 = por %p369, %p370
      %p372 = scmp.ne.s32.totalorder %s361, %s364
      %p373 = scmp.eq.s32.totalorder %s31, 1
      %p374 = por %p372, %p373
      %p375 = scmp.ne.s32.totalorder %s364, %s365
      %p376 = scmp.eq.s32.totalorder %s31, 0
      %p377 = por %p375, %p376
      %p378 = scmp.ne.s32.totalorder %s364, %s365
      %p379 = scmp.eq.s32.totalorder %s32, 1
      %p380 = por %p378, %p379
      %p382 = scmp.ne.s32.totalorder %s365, %s381
      %p383 = scmp.eq.s32.totalorder %s32, 0
      %p384 = por %p382, %p383
      %p385 = scmp.le.s32.totalorder 1, %s26
      %p386 = scmp.lt.s32.totalorder %s26, 3
      %p387 = pnand %p385, %p386
      %p388 = pneg %p387
      // Predicated region
      $region9: #{tpu_custom_call.1} parent=5 // pred_check
        _
      $region10: #{tpu_custom_call.1} parent=5 // pred_check_branch
        %390 = sbr.rel (%p387) target = $region12
      $region11: #{tpu_custom_call.1} parent=5 // pred_region
        %s391 = ssub.s32 %s26, 1
        // Predicated region
        $region13: #{tpu_custom_call.1} parent=11 // pred_check
          %p392 = pneg %p99
        $region14: #{tpu_custom_call.1} parent=11 // pred_check_branch
          %394 = sbr.rel (%p392) target = $region16
        $region15: #{tpu_custom_call.1} parent=11 // pred_region
          _
        $region16: #{tpu_custom_call.1} parent=11 // pred_fallthru
          _
        // Predicated region
        $region17: #{tpu_custom_call.1} parent=11 // pred_check
          %p395 = pneg %p120
        $region18: #{tpu_custom_call.1} parent=11 // pred_check_branch
          %397 = sbr.rel (%p395) target = $region20
        $region19: #{tpu_custom_call.1} parent=11 // pred_region
          %s399 = ssub.s32 16, 16
          %400 = vsyncadd [#allocation5], %s399
          %s402 = sshll.u32 [#allocation4], 4
          %s403 = int_to_ptr.vmem [resolvable:$true] %s402
          %405 = dma.hbm_to_vmem [thread:$0]  %s3, 16, %s403, [#allocation5]
        $region20: #{tpu_custom_call.1} parent=11 // pred_fallthru
          _
        // Predicated region
        $region21: #{tpu_custom_call.1} parent=11 // pred_check
          %p406 = pneg %p141
        $region22: #{tpu_custom_call.1} parent=11 // pred_check_branch
          %408 = sbr.rel (%p406) target = $region24
        $region23: #{tpu_custom_call.1} parent=11 // pred_region
          _
        $region24: #{tpu_custom_call.1} parent=11 // pred_fallthru
          _
        // Predicated region
        $region25: #{tpu_custom_call.1} parent=11 // pred_check
          %p409 = pneg %p162
        $region26: #{tpu_custom_call.1} parent=11 // pred_check_branch
          %411 = sbr.rel (%p409) target = $region28
        $region27: #{tpu_custom_call.1} parent=11 // pred_region
          %s413 = ssub.s32 16, 16
          %414 = vsyncadd [#allocation7], %s413
          %s416 = sshll.u32 [#allocation6], 4
          %s417 = int_to_ptr.vmem [resolvable:$true] %s416
          %419 = dma.hbm_to_vmem [thread:$0]  %s5, 16, %s417, [#allocation7]
        $region28: #{tpu_custom_call.1} parent=11 // pred_fallthru
          _
        // Predicated region
        $region29: #{tpu_custom_call.1} parent=11 // pred_check
          %p420 = pneg %p183
        $region30: #{tpu_custom_call.1} parent=11 // pred_check_branch
          %422 = sbr.rel (%p420) target = $region32
        $region31: #{tpu_custom_call.1} parent=11 // pred_region
          %s424 = ssub.s32 16, 16
          %425 = vsyncadd [#allocation7], %s424
          %s427 = sshll.u32 [#allocation8], 4
          %s428 = int_to_ptr.vmem [resolvable:$true] %s427
          %430 = dma.hbm_to_vmem [thread:$0]  %s6, 16, %s428, [#allocation7]
        $region32: #{tpu_custom_call.1} parent=11 // pred_fallthru
          _
        // Predicated region
        $region33: #{tpu_custom_call.1} parent=11 // pred_check
          %p431 = pneg %p204
        $region34: #{tpu_custom_call.1} parent=11 // pred_check_branch
          %433 = sbr.rel (%p431) target = $region36
        $region35: #{tpu_custom_call.1} parent=11 // pred_region
          %s435 = ssub.s32 16, 16
          %436 = vsyncadd [#allocation10], %s435
          %s438 = sshll.u32 [#allocation9], 4
          %s439 = int_to_ptr.vmem [resolvable:$true] %s438
          %441 = dma.hbm_to_vmem [thread:$0]  %s7, 16, %s439, [#allocation10]
        $region36: #{tpu_custom_call.1} parent=11 // pred_fallthru
          _
        // Predicated region
        $region37: #{tpu_custom_call.1} parent=11 // pred_check
          %p442 = pneg %p225
        $region38: #{tpu_custom_call.1} parent=11 // pred_check_branch
          %444 = sbr.rel (%p442) target = $region40
        $region39: #{tpu_custom_call.1} parent=11 // pred_region
          _
        $region40: #{tpu_custom_call.1} parent=11 // pred_fallthru
          _
        // Predicated region
        $region41: #{tpu_custom_call.1} parent=11 // pred_check
          %p445 = pneg %p246
        $region42: #{tpu_custom_call.1} parent=11 // pred_check_branch
          %447 = sbr.rel (%p445) target = $region44
        $region43: #{tpu_custom_call.1} parent=11 // pred_region
          _
        $region44: #{tpu_custom_call.1} parent=11 // pred_fallthru
          _
        // Predicated region
        $region45: #{tpu_custom_call.1} parent=11 // pred_check
          %p448 = pneg %p267
        $region46: #{tpu_custom_call.1} parent=11 // pred_check_branch
          %450 = sbr.rel (%p448) target = $region48
        $region47: #{tpu_custom_call.1} parent=11 // pred_region
          %s452 = ssub.s32 512, 512
          %453 = vsyncadd [#allocation10], %s452
          %s454 = sshll.u32 [#allocation11], 4
          %s455 = int_to_ptr.vmem [resolvable:$true] %s454
          %460 = dma.hbm_to_vmem [thread:$0]  %s10, 512, %s455, [#allocation10], 128, 128, 8
        $region48: #{tpu_custom_call.1} parent=11 // pred_fallthru
          _
        // Predicated region
        $region49: #{tpu_custom_call.1} parent=11 // pred_check
          %p461 = pneg %p288
        $region50: #{tpu_custom_call.1} parent=11 // pred_check_branch
          %463 = sbr.rel (%p461) target = $region52
        $region51: #{tpu_custom_call.1} parent=11 // pred_region
          %s465 = ssub.s32 512, 512
          %466 = vsyncadd [#allocation13], %s465
          %s467 = sshll.u32 [#allocation12], 4
          %s468 = int_to_ptr.vmem [resolvable:$true] %s467
          %473 = dma.hbm_to_vmem [thread:$0]  %s11, 512, %s468, [#allocation13], 128, 128, 8
        $region52: #{tpu_custom_call.1} parent=11 // pred_fallthru
          _
        // Predicated region
        $region53: #{tpu_custom_call.1} parent=11 // pred_check
          %p474 = pneg %p309
        $region54: #{tpu_custom_call.1} parent=11 // pred_check_branch
          %476 = sbr.rel (%p474) target = $region56
        $region55: #{tpu_custom_call.1} parent=11 // pred_region
          %s478 = ssub.s32 512, 512
          %479 = vsyncadd [#allocation13], %s478
          %s480 = sshll.u32 [#allocation14], 4
          %s481 = int_to_ptr.vmem [resolvable:$true] %s480
          %486 = dma.hbm_to_vmem [thread:$0]  %s12, 512, %s481, [#allocation13], 128, 128, 8
        $region56: #{tpu_custom_call.1} parent=11 // pred_fallthru
          _
        // Predicated region
        $region57: #{tpu_custom_call.1} parent=11 // pred_check
          %p487 = pneg %p330
        $region58: #{tpu_custom_call.1} parent=11 // pred_check_branch
          %489 = sbr.rel (%p487) target = $region60
        $region59: #{tpu_custom_call.1} parent=11 // pred_region
          %s491 = ssub.s32 512, 512
          %492 = vsyncadd [#allocation16], %s491
          %s493 = sshll.u32 [#allocation15], 4
          %s494 = int_to_ptr.vmem [resolvable:$true] %s493
          %499 = dma.hbm_to_vmem [thread:$0]  %s13, 512, %s494, [#allocation16], 128, 128, 8
        $region60: #{tpu_custom_call.1} parent=11 // pred_fallthru
          _
        // Predicated region
        $region61: #{tpu_custom_call.1} parent=11 // pred_check
          %p500 = pneg %p351
        $region62: #{tpu_custom_call.1} parent=11 // pred_check_branch
          %502 = sbr.rel (%p500) target = $region64
        $region63: #{tpu_custom_call.1} parent=11 // pred_region
          _
        $region64: #{tpu_custom_call.1} parent=11 // pred_fallthru
          _
      $region12: #{tpu_custom_call.1} parent=5 // pred_fallthru
        _
      %p503 = scmp.lt.s32.totalorder %s26, 2
      // Predicated region
      $region65: #{tpu_custom_call.1} parent=5 // pred_check
        %p504 = pneg %p503
      $region66: #{tpu_custom_call.1} parent=5 // pred_check_branch
        %506 = sbr.rel (%p504) target = $region68
      $region67: #{tpu_custom_call.1} parent=5 // pred_region
        // Predicated region
        $region69: #{tpu_custom_call.1} parent=67 // pred_check
          %p507 = pneg %p46
        $region70: #{tpu_custom_call.1} parent=67 // pred_check_branch
          %509 = sbr.rel (%p507) target = $region72
        $region71: #{tpu_custom_call.1} parent=67 // pred_region
          %p510 = scmp.lt.s32.totalorder %s26, 1
          %s511 = scalar_select %p510, %s26, 1
          %s512 = smul.addr %s511, 8
          %s513 = smul.addr %s512, 8
          %s514 = scalar_lea.vmem %s0, %s513
        $region72: #{tpu_custom_call.1} parent=67 // pred_fallthru
          _
        // Predicated region
        $region73: #{tpu_custom_call.1} parent=67 // pred_check
          %p515 = pneg %p72
        $region74: #{tpu_custom_call.1} parent=67 // pred_check_branch
          %517 = sbr.rel (%p515) target = $region76
        $region75: #{tpu_custom_call.1} parent=67 // pred_region
          %p518 = scmp.lt.s32.totalorder %s26, 1
          %s519 = scalar_select %p518, %s26, 1
          %s520 = scalar_lea.vmem %s1, %s519
        $region76: #{tpu_custom_call.1} parent=67 // pred_fallthru
          _
      $region68: #{tpu_custom_call.1} parent=5 // pred_fallthru
        _
      %p521 = scmp.le.s32.totalorder 1, %s26
      %p522 = scmp.lt.s32.totalorder %s26, 3
      %p523 = pnand %p521, %p522
      %p524 = pneg %p523
      // Predicated region
      $region77: #{tpu_custom_call.1} parent=5 // pred_check
        _
      $region78: #{tpu_custom_call.1} parent=5 // pred_check_branch
        %526 = sbr.rel (%p523) target = $region80
      $region79: #{tpu_custom_call.1} parent=5 // pred_region
        %s527 = ssub.s32 %s26, 1
        // Predicated region
        $region81: #{tpu_custom_call.1} parent=79 // pred_check
          %p528 = pneg %p120
        $region82: #{tpu_custom_call.1} parent=79 // pred_check_branch
          %530 = sbr.rel (%p528) target = $region84
        $region83: #{tpu_custom_call.1} parent=79 // pred_region
          %531 = dma.done [#allocation5], 16
        $region84: #{tpu_custom_call.1} parent=79 // pred_fallthru
          _
        // Predicated region
        $region85: #{tpu_custom_call.1} parent=79 // pred_check
          %p532 = pneg %p162
        $region86: #{tpu_custom_call.1} parent=79 // pred_check_branch
          %534 = sbr.rel (%p532) target = $region88
        $region87: #{tpu_custom_call.1} parent=79 // pred_region
          %535 = dma.done [#allocation7], 16
        $region88: #{tpu_custom_call.1} parent=79 // pred_fallthru
          _
        // Predicated region
        $region89: #{tpu_custom_call.1} parent=79 // pred_check
          %p536 = pneg %p183
        $region90: #{tpu_custom_call.1} parent=79 // pred_check_branch
          %538 = sbr.rel (%p536) target = $region92
        $region91: #{tpu_custom_call.1} parent=79 // pred_region
          %539 = dma.done [#allocation7], 16
        $region92: #{tpu_custom_call.1} parent=79 // pred_fallthru
          _
        // Predicated region
        $region93: #{tpu_custom_call.1} parent=79 // pred_check
          %p540 = pneg %p204
        $region94: #{tpu_custom_call.1} parent=79 // pred_check_branch
          %542 = sbr.rel (%p540) target = $region96
        $region95: #{tpu_custom_call.1} parent=79 // pred_region
          %543 = dma.done [#allocation10], 16
        $region96: #{tpu_custom_call.1} parent=79 // pred_fallthru
          _
        // Predicated region
        $region97: #{tpu_custom_call.1} parent=79 // pred_check
          %p544 = pneg %p267
        $region98: #{tpu_custom_call.1} parent=79 // pred_check_branch
          %546 = sbr.rel (%p544) target = $region100
        $region99: #{tpu_custom_call.1} parent=79 // pred_region
          %547 = dma.done [#allocation10], 512
        $region100: #{tpu_custom_call.1} parent=79 // pred_fallthru
          _
        // Predicated region
        $region101: #{tpu_custom_call.1} parent=79 // pred_check
          %p548 = pneg %p288
        $region102: #{tpu_custom_call.1} parent=79 // pred_check_branch
          %550 = sbr.rel (%p548) target = $region104
        $region103: #{tpu_custom_call.1} parent=79 // pred_region
          %551 = dma.done [#allocation13], 512
        $region104: #{tpu_custom_call.1} parent=79 // pred_fallthru
          _
        // Predicated region
        $region105: #{tpu_custom_call.1} parent=79 // pred_check
          %p552 = pneg %p309
        $region106: #{tpu_custom_call.1} parent=79 // pred_check_branch
          %554 = sbr.rel (%p552) target = $region108
        $region107: #{tpu_custom_call.1} parent=79 // pred_region
          %555 = dma.done [#allocation13], 512
        $region108: #{tpu_custom_call.1} parent=79 // pred_fallthru
          _
        // Predicated region
        $region109: #{tpu_custom_call.1} parent=79 // pred_check
          %p556 = pneg %p330
        $region110: #{tpu_custom_call.1} parent=79 // pred_check_branch
          %558 = sbr.rel (%p556) target = $region112
        $region111: #{tpu_custom_call.1} parent=79 // pred_region
          %559 = dma.done [#allocation16], 512
        $region112: #{tpu_custom_call.1} parent=79 // pred_fallthru
          _
        %p560 = scmp.lt.s32.totalorder %s31, 1
        %s561 = scalar_select %p560, %s31, 1
        %s562 = smul.addr %s561, 8
        %s563 = smul.addr %s562, 8
        %s564 = scalar_lea.vmem %s0, %s563
        %p565 = pneg %p52
        %p566 = pneg %p49
        %p567 = scmp.lt.s32.totalorder %s31, 1
        %s568 = scalar_select %p567, %s31, 1
        %s569 = scalar_lea.vmem %s1, %s568
        %p570 = pneg %p78
        %p571 = pneg %p75
        %p572 = pneg %p99
        %p573 = pneg %p96
        %p574 = pneg %p120
        %p575 = pneg %p117
        %p576 = pneg %p141
        %p577 = pneg %p138
        %p578 = pneg %p162
        %p579 = pneg %p159
        %p580 = pneg %p183
        %p581 = pneg %p180
        %p582 = pneg %p204
        %p583 = pneg %p201
        %p584 = pneg %p225
        %p585 = pneg %p222
        %p586 = pneg %p246
        %p587 = pneg %p243
        %p588 = pneg %p267
        %p589 = pneg %p264
        %p590 = pneg %p288
        %p591 = pneg %p285
        %p592 = pneg %p309
        %p593 = pneg %p306
        %p594 = pneg %p330
        %p595 = pneg %p327
        %p596 = pneg %p351
        %p597 = pneg %p348
        %p598 = pneg %p377
        %p599 = pneg %p374
        %p600 = scmp.lt.s32.totalorder %s31, 1
        %s601 = scalar_select %p600, %s31, 1
        %s602 = smul.addr %s601, 8
        %s603 = smul.addr %s602, 8
        %s604 = scalar_lea.vmem %s15, %s603
        %p605 = scmp.lt.s32.totalorder %s31, 1
        %s606 = scalar_select %p605, %s31, 1
        %s607 = smul.addr %s606, 8
        %s608 = smul.addr %s607, 8
        %s609 = scalar_lea.vmem %s0, %s608
        %p610 = scmp.lt.s32.totalorder %s31, 1
        %s611 = scalar_select %p610, %s31, 1
        %s612 = scalar_lea.vmem %s1, %s611
        %p613 = scmp.lt.s32.totalorder %s31, 1
        %s614 = scalar_select %p613, %s31, 1
        %s615 = smul.addr %s614, 8
        %s616 = smul.addr %s615, 8
        %s617 = scalar_lea.vmem %s15, %s616
        %vm619 = vcmask 261120
        %620 = vst.msk [vmem:[#allocation2] sm:$0xff] %vm619, 0
        %621 = vst.msk [vmem:[#allocation2 + $0x8] sm:$0xff] %vm619, 0
        %622 = vst.msk [vmem:[#allocation2 + $0x10] sm:$0xff] %vm619, 0
        %623 = vst.msk [vmem:[#allocation2 + $0x18] sm:$0xff] %vm619, 0
        %624 = vst.msk [vmem:[#allocation2 + $0x20] sm:$0xff] %vm619, 0
        %625 = vst.msk [vmem:[#allocation2 + $0x28] sm:$0xff] %vm619, 0
        %v626 = vld [vmem:[%s609] sm:$0xff]
        %v627 = vld [vmem:[%s609 + $0x8] sm:$0xff]
        %v628 = vld [vmem:[%s609 + $0x10] sm:$0xff]
        %v629 = vld [vmem:[%s609 + $0x18] sm:$0xff]
        %v630 = vld [vmem:[%s609 + $0x20] sm:$0xff]
        %v631 = vld [vmem:[%s609 + $0x28] sm:$0xff]
        %v632 = vld [vmem:[%s609 + $0x30] sm:$0xff]
        %v633 = vld [vmem:[%s609 + $0x38] sm:$0xff]
        %v634 = vsel %vm619, %v626, 0.0
        %v635 = vsel %vm619, %v627, 0.0
        %v636 = vadd.f32 %v634, %v635
        %v637 = vsel %vm619, %v628, 0.0
        %v638 = vadd.f32 %v636, %v637
        %v639 = vsel %vm619, %v629, 0.0
        %v640 = vadd.f32 %v638, %v639
        %v641 = vsel %vm619, %v630, 0.0
        %v642 = vadd.f32 %v640, %v641
        %v643 = vsel %vm619, %v631, 0.0
        %v644 = vadd.f32 %v642, %v643
        %v645 = vsel %vm619, %v632, 0.0
        %v646 = vadd.f32 %v644, %v645
        %v647 = vsel %vm619, %v633, 0.0
        %v648 = vadd.f32 %v646, %v647
        %v649 = vrot.slane %v648, 4
        %v650 = vadd.f32 %v648, %v649
        %v651 = vrot.slane %v650, 2
        %v652 = vadd.f32 %v650, %v651
        %v653 = vrot.slane %v652, 1
        %v654 = vadd.f32 %v652, %v653
        %v655 = vld [vmem:[#allocation11] sm:$0xff]
        %v656 = vld [vmem:[#allocation11 + $0x8] sm:$0xff]
        %v657 = vld [vmem:[#allocation11 + $0x10] sm:$0xff]
        %v658 = vld [vmem:[#allocation11 + $0x18] sm:$0xff]
        %v660 = vsel %vm619, %v654, 0
        %662 = vmatprep.subr.mxu0 0.0
        %v663 = vand.u32 %v655, 4294901760
        %664 = vmatpush1.msra.mxu0 %v663
        %665 = vmatprep.subr.mxu0 0.0
        %v666 = vand.u32 %v656, 4294901760
        %667 = vmatpush1.msra.mxu0 %v666
        %668 = vmatprep.subr.mxu0 0.0
        %v669 = vand.u32 %v657, 4294901760
        %670 = vmatpush1.msra.mxu0 %v669
        %671 = vmatprep.subr.mxu0 0.0
        %v672 = vand.u32 %v658, 4294901760
        %673 = vmatpush1.msra.mxu0 %v672
        %674 = vmatprep.subr.mxu0 0.0
        %675 = vmatpush1.msra.mxu0 0.0
        %676 = vmatprep.subr.mxu0 0.0
        %677 = vmatpush1.msra.mxu0 0.0
        %678 = vmatprep.subr.mxu0 0.0
        %679 = vmatpush1.msra.mxu0 0.0
        %680 = vmatprep.subr.mxu0 0.0
        %681 = vmatpush1.msra.mxu0 0.0
        %682 = vmatprep.subr.mxu0 0.0
        %683 = vmatpush1.msra.mxu0 0.0
        %684 = vmatprep.subr.mxu0 0.0
        %685 = vmatpush1.msra.mxu0 0.0
        %686 = vmatprep.subr.mxu0 0.0
        %687 = vmatpush1.msra.mxu0 0.0
        %688 = vmatprep.subr.mxu0 0.0
        %689 = vmatpush1.msra.mxu0 0.0
        %690 = vmatprep.subr.mxu0 0.0
        %691 = vmatpush1.msra.mxu0 0.0
        %692 = vmatprep.subr.mxu0 0.0
        %693 = vmatpush1.msra.mxu0 0.0
        %694 = vmatprep.subr.mxu0 0.0
        %695 = vmatpush1.msra.mxu0 0.0
        %696 = vmatprep.subr.mxu0 0.0
        %697 = vmatpush1.msra.mxu0 0.0
        %698 = vmatprep.subr.mxu0 0.0
        %699 = vmatpush1.msra.mxu0 0.0
        %700 = vmatprep.subr.mxu0 0.0
        %701 = vmatpush1.msra.mxu0 0.0
        %702 = vmatprep.subr.mxu0 0.0
        %703 = vmatpush1.msra.mxu0 0.0
        %704 = vmatprep.subr.mxu0 0.0
        %705 = vmatpush1.msra.mxu0 0.0
        %706 = vmatprep.subr.mxu0 0.0
        %707 = vmatpush1.msra.mxu0 0.0
        %708 = vmatprep.subr.mxu0 0.0
        %709 = vmatpush1.msra.mxu0 0.0
        %710 = vmatprep.subr.mxu0 0.0
        %711 = vmatpush1.msra.mxu0 0.0
        %712 = vmatprep.subr.mxu0 0.0
        %713 = vmatpush1.msra.mxu0 0.0
        %714 = vmatprep.subr.mxu0 0.0
        %715 = vmatpush1.msra.mxu0 0.0
        %716 = vmatprep.subr.mxu0 0.0
        %717 = vmatpush1.msra.mxu0 0.0
        %718 = vmatprep.subr.mxu0 0.0
        %719 = vmatpush1.msra.mxu0 0.0
        %720 = vmatprep.subr.mxu0 0.0
        %721 = vmatpush1.msra.mxu0 0.0
        %722 = vmatprep.subr.mxu0 0.0
        %723 = vmatpush1.msra.mxu0 0.0
        %724 = vmatprep.subr.mxu0 0.0
        %725 = vmatpush1.msra.mxu0 0.0
        %726 = vmatprep.subr.mxu0 0.0
        %727 = vmatpush1.msra.mxu0 0.0
        %728 = vmatprep.subr.mxu0 0.0
        %729 = vmatpush1.msra.mxu0 0.0
        %730 = vmatprep.mubr.f32.mxu0 0.0
        %v731 = vand.u32 %v660, 4294901760
        %v732 = vsub.f32 %v660, %v731
        %v733 = vand.u32 %v732, 4294901760
        %v734 = vsub.f32 %v732, %v733
        %v735 = vand.u32 %v734, 4294901760
        %736 = vmatmul.mubr.f32.gmra.mrb[0].mxu0 %v735
        %v737 = vpop.f32.mrb[0].mxu0
        %v738 = vadd.f32 0.0, %v737
        %v739 = vpop.f32.mrb[0].mxu0
        %740 = vdwg.mxu0
        %741 = vmatprep.subr.mxu0 0.0
        %v742 = vand.u32 %v655, 4294901760
        %v743 = vsub.f32 %v655, %v742
        %v744 = vand.u32 %v743, 4294901760
        %v745 = vsub.f32 %v743, %v744
        %v746 = vand.u32 %v745, 4294901760
        %747 = vmatpush1.msra.mxu0 %v746
        %748 = vmatprep.subr.mxu0 0.0
        %v749 = vand.u32 %v656, 4294901760
        %v750 = vsub.f32 %v656, %v749
        %v751 = vand.u32 %v750, 4294901760
        %v752 = vsub.f32 %v750, %v751
        %v753 = vand.u32 %v752, 4294901760
        %754 = vmatpush1.msra.mxu0 %v753
        %755 = vmatprep.subr.mxu0 0.0
        %v756 = vand.u32 %v657, 4294901760
        %v757 = vsub.f32 %v657, %v756
        %v758 = vand.u32 %v757, 4294901760
        %v759 = vsub.f32 %v757, %v758
        %v760 = vand.u32 %v759, 4294901760
        %761 = vmatpush1.msra.mxu0 %v760
        %762 = vmatprep.subr.mxu0 0.0
        %v763 = vand.u32 %v658, 4294901760
        %v764 = vsub.f32 %v658, %v763
        %v765 = vand.u32 %v764, 4294901760
        %v766 = vsub.f32 %v764, %v765
        %v767 = vand.u32 %v766, 4294901760
        %768 = vmatpush1.msra.mxu0 %v767
        %769 = vmatprep.subr.mxu0 0.0
        %770 = vmatpush1.msra.mxu0 0.0
        %771 = vmatprep.subr.mxu0 0.0
        %772 = vmatpush1.msra.mxu0 0.0
        %773 = vmatprep.subr.mxu0 0.0
        %774 = vmatpush1.msra.mxu0 0.0
        %775 = vmatprep.subr.mxu0 0.0
        %776 = vmatpush1.msra.mxu0 0.0
        %777 = vmatprep.subr.mxu0 0.0
        %778 = vmatpush1.msra.mxu0 0.0
        %779 = vmatprep.subr.mxu0 0.0
        %780 = vmatpush1.msra.mxu0 0.0
        %781 = vmatprep.subr.mxu0 0.0
        %782 = vmatpush1.msra.mxu0 0.0
        %783 = vmatprep.subr.mxu0 0.0
        %784 = vmatpush1.msra.mxu0 0.0
        %785 = vmatprep.subr.mxu0 0.0
        %786 = vmatpush1.msra.mxu0 0.0
        %787 = vmatprep.subr.mxu0 0.0
        %788 = vmatpush1.msra.mxu0 0.0
        %789 = vmatprep.subr.mxu0 0.0
        %790 = vmatpush1.msra.mxu0 0.0
        %791 = vmatprep.subr.mxu0 0.0
        %792 = vmatpush1.msra.mxu0 0.0
        %793 = vmatprep.subr.mxu0 0.0
        %794 = vmatpush1.msra.mxu0 0.0
        %795 = vmatprep.subr.mxu0 0.0
        %796 = vmatpush1.msra.mxu0 0.0
        %797 = vmatprep.subr.mxu0 0.0
        %798 = vmatpush1.msra.mxu0 0.0
        %799 = vmatprep.subr.mxu0 0.0
        %800 = vmatpush1.msra.mxu0 0.0
        %801 = vmatprep.subr.mxu0 0.0
        %802 = vmatpush1.msra.mxu0 0.0
        %803 = vmatprep.subr.mxu0 0.0
        %804 = vmatpush1.msra.mxu0 0.0
        %805 = vmatprep.subr.mxu0 0.0
        %806 = vmatpush1.msra.mxu0 0.0
        %807 = vmatprep.subr.mxu0 0.0
        %808 = vmatpush1.msra.mxu0 0.0
        %809 = vmatprep.subr.mxu0 0.0
        %810 = vmatpush1.msra.mxu0 0.0
        %811 = vmatprep.subr.mxu0 0.0
        %812 = vmatpush1.msra.mxu0 0.0
        %813 = vmatprep.subr.mxu0 0.0
        %814 = vmatpush1.msra.mxu0 0.0
        %815 = vmatprep.subr.mxu0 0.0
        %816 = vmatpush1.msra.mxu0 0.0
        %817 = vmatprep.subr.mxu0 0.0
        %818 = vmatpush1.msra.mxu0 0.0
        %819 = vmatprep.subr.mxu0 0.0
        %820 = vmatpush1.msra.mxu0 0.0
        %821 = vmatprep.subr.mxu0 0.0
        %822 = vmatpush1.msra.mxu0 0.0
        %823 = vmatprep.subr.mxu0 0.0
        %824 = vmatpush1.msra.mxu0 0.0
        %825 = vmatprep.mubr.f32.mxu0 0.0
        %v826 = vand.u32 %v660, 4294901760
        %827 = vmatmul.mubr.f32.gmra.mrb[0].mxu0 %v826
        %v828 = vpop.f32.mrb[0].mxu0
        %v829 = vadd.f32 %v738, %v828
        %v830 = vpop.f32.mrb[0].mxu0
        %831 = vdwg.mxu0
        %832 = vmatprep.subr.mxu0 0.0
        %v833 = vand.u32 %v655, 4294901760
        %v834 = vsub.f32 %v655, %v833
        %835 = vmatpush1.msra.mxu0 %v834
        %836 = vmatprep.subr.mxu0 0.0
        %v837 = vand.u32 %v656, 4294901760
        %v838 = vsub.f32 %v656, %v837
        %839 = vmatpush1.msra.mxu0 %v838
        %840 = vmatprep.subr.mxu0 0.0
        %v841 = vand.u32 %v657, 4294901760
        %v842 = vsub.f32 %v657, %v841
        %843 = vmatpush1.msra.mxu0 %v842
        %844 = vmatprep.subr.mxu0 0.0
        %v845 = vand.u32 %v658, 4294901760
        %v846 = vsub.f32 %v658, %v845
        %847 = vmatpush1.msra.mxu0 %v846
        %848 = vmatprep.subr.mxu0 0.0
        %849 = vmatpush1.msra.mxu0 0.0
        %850 = vmatprep.subr.mxu0 0.0
        %851 = vmatpush1.msra.mxu0 0.0
        %852 = vmatprep.subr.mxu0 0.0
        %853 = vmatpush1.msra.mxu0 0.0
        %854 = vmatprep.subr.mxu0 0.0
        %855 = vmatpush1.msra.mxu0 0.0
        %856 = vmatprep.subr.mxu0 0.0
        %857 = vmatpush1.msra.mxu0 0.0
        %858 = vmatprep.subr.mxu0 0.0
        %859 = vmatpush1.msra.mxu0 0.0
        %860 = vmatprep.subr.mxu0 0.0
        %861 = vmatpush1.msra.mxu0 0.0
        %862 = vmatprep.subr.mxu0 0.0
        %863 = vmatpush1.msra.mxu0 0.0
        %864 = vmatprep.subr.mxu0 0.0
        %865 = vmatpush1.msra.mxu0 0.0
        %866 = vmatprep.subr.mxu0 0.0
        %867 = vmatpush1.msra.mxu0 0.0
        %868 = vmatprep.subr.mxu0 0.0
        %869 = vmatpush1.msra.mxu0 0.0
        %870 = vmatprep.subr.mxu0 0.0
        %871 = vmatpush1.msra.mxu0 0.0
        %872 = vmatprep.subr.mxu0 0.0
        %873 = vmatpush1.msra.mxu0 0.0
        %874 = vmatprep.subr.mxu0 0.0
        %875 = vmatpush1.msra.mxu0 0.0
        %876 = vmatprep.subr.mxu0 0.0
        %877 = vmatpush1.msra.mxu0 0.0
        %878 = vmatprep.subr.mxu0 0.0
        %879 = vmatpush1.msra.mxu0 0.0
        %880 = vmatprep.subr.mxu0 0.0
        %881 = vmatpush1.msra.mxu0 0.0
        %882 = vmatprep.subr.mxu0 0.0
        %883 = vmatpush1.msra.mxu0 0.0
        %884 = vmatprep.subr.mxu0 0.0
        %885 = vmatpush1.msra.mxu0 0.0
        %886 = vmatprep.subr.mxu0 0.0
        %887 = vmatpush1.msra.mxu0 0.0
        %888 = vmatprep.subr.mxu0 0.0
        %889 = vmatpush1.msra.mxu0 0.0
        %890 = vmatprep.subr.mxu0 0.0
        %891 = vmatpush1.msra.mxu0 0.0
        %892 = vmatprep.subr.mxu0 0.0
        %893 = vmatpush1.msra.mxu0 0.0
        %894 = vmatprep.subr.mxu0 0.0
        %895 = vmatpush1.msra.mxu0 0.0
        %896 = vmatprep.subr.mxu0 0.0
        %897 = vmatpush1.msra.mxu0 0.0
        %898 = vmatprep.subr.mxu0 0.0
        %899 = vmatpush1.msra.mxu0 0.0
        %900 = vmatprep.subr.mxu0 0.0
        %901 = vmatpush1.msra.mxu0 0.0
        %902 = vmatprep.subr.mxu0 0.0
        %903 = vmatpush1.msra.mxu0 0.0
        %904 = vmatprep.mubr.f32.mxu0 0.0
        %v905 = vand.u32 %v660, 4294901760
        %v906 = vsub.f32 %v660, %v905
        %907 = vmatmul.mubr.f32.gmra.mrb[0].mxu0 %v906
        %v908 = vpop.f32.mrb[0].mxu0
        %v909 = vadd.f32 %v829, %v908
        %v910 = vpop.f32.mrb[0].mxu0
        %911 = vdwg.mxu0
        %912 = vmatprep.subr.mxu0 0.0
        %v913 = vand.u32 %v655, 4294901760
        %914 = vmatpush1.msra.mxu0 %v913
        %915 = vmatprep.subr.mxu0 0.0
        %v916 = vand.u32 %v656, 4294901760
        %917 = vmatpush1.msra.mxu0 %v916
        %918 = vmatprep.subr.mxu0 0.0
        %v919 = vand.u32 %v657, 4294901760
        %920 = vmatpush1.msra.mxu0 %v919
        %921 = vmatprep.subr.mxu0 0.0
        %v922 = vand.u32 %v658, 4294901760
        %923 = vmatpush1.msra.mxu0 %v922
        %924 = vmatprep.subr.mxu0 0.0
        %925 = vmatpush1.msra.mxu0 0.0
        %926 = vmatprep.subr.mxu0 0.0
        %927 = vmatpush1.msra.mxu0 0.0
        %928 = vmatprep.subr.mxu0 0.0
        %929 = vmatpush1.msra.mxu0 0.0
        %930 = vmatprep.subr.mxu0 0.0
        %931 = vmatpush1.msra.mxu0 0.0
        %932 = vmatprep.subr.mxu0 0.0
        %933 = vmatpush1.msra.mxu0 0.0
        %934 = vmatprep.subr.mxu0 0.0
        %935 = vmatpush1.msra.mxu0 0.0
        %936 = vmatprep.subr.mxu0 0.0
        %937 = vmatpush1.msra.mxu0 0.0
        %938 = vmatprep.subr.mxu0 0.0
        %939 = vmatpush1.msra.mxu0 0.0
        %940 = vmatprep.subr.mxu0 0.0
        %941 = vmatpush1.msra.mxu0 0.0
        %942 = vmatprep.subr.mxu0 0.0
        %943 = vmatpush1.msra.mxu0 0.0
        %944 = vmatprep.subr.mxu0 0.0
        %945 = vmatpush1.msra.mxu0 0.0
        %946 = vmatprep.subr.mxu0 0.0
        %947 = vmatpush1.msra.mxu0 0.0
        %948 = vmatprep.subr.mxu0 0.0
        %949 = vmatpush1.msra.mxu0 0.0
        %950 = vmatprep.subr.mxu0 0.0
        %951 = vmatpush1.msra.mxu0 0.0
        %952 = vmatprep.subr.mxu0 0.0
        %953 = vmatpush1.msra.mxu0 0.0
        %954 = vmatprep.subr.mxu0 0.0
        %955 = vmatpush1.msra.mxu0 0.0
        %956 = vmatprep.subr.mxu0 0.0
        %957 = vmatpush1.msra.mxu0 0.0
        %958 = vmatprep.subr.mxu0 0.0
        %959 = vmatpush1.msra.mxu0 0.0
        %960 = vmatprep.subr.mxu0 0.0
        %961 = vmatpush1.msra.mxu0 0.0
        %962 = vmatprep.subr.mxu0 0.0
        %963 = vmatpush1.msra.mxu0 0.0
        %964 = vmatprep.subr.mxu0 0.0
        %965 = vmatpush1.msra.mxu0 0.0
        %966 = vmatprep.subr.mxu0 0.0
        %967 = vmatpush1.msra.mxu0 0.0
        %968 = vmatprep.subr.mxu0 0.0
        %969 = vmatpush1.msra.mxu0 0.0
        %970 = vmatprep.subr.mxu0 0.0
        %971 = vmatpush1.msra.mxu0 0.0
        %972 = vmatprep.subr.mxu0 0.0
        %973 = vmatpush1.msra.mxu0 0.0
        %974 = vmatprep.subr.mxu0 0.0
        %975 = vmatpush1.msra.mxu0 0.0
        %976 = vmatprep.subr.mxu0 0.0
        %977 = vmatpush1.msra.mxu0 0.0
        %978 = vmatprep.subr.mxu0 0.0
        %979 = vmatpush1.msra.mxu0 0.0
        %980 = vmatprep.mubr.f32.mxu0 0.0
        %v981 = vand.u32 %v660, 4294901760
        %v982 = vsub.f32 %v660, %v981
        %v983 = vand.u32 %v982, 4294901760
        %984 = vmatmul.mubr.f32.gmra.mrb[0].mxu0 %v983
        %v985 = vpop.f32.mrb[0].mxu0
        %v986 = vadd.f32 %v909, %v985
        %v987 = vpop.f32.mrb[0].mxu0
        %988 = vdwg.mxu0
        %989 = vmatprep.subr.mxu0 0.0
        %v990 = vand.u32 %v655, 4294901760
        %v991 = vsub.f32 %v655, %v990
        %v992 = vand.u32 %v991, 4294901760
        %993 = vmatpush1.msra.mxu0 %v992
        %994 = vmatprep.subr.mxu0 0.0
        %v995 = vand.u32 %v656, 4294901760
        %v996 = vsub.f32 %v656, %v995
        %v997 = vand.u32 %v996, 4294901760
        %998 = vmatpush1.msra.mxu0 %v997
        %999 = vmatprep.subr.mxu0 0.0
        %v1000 = vand.u32 %v657, 4294901760
        %v1001 = vsub.f32 %v657, %v1000
        %v1002 = vand.u32 %v1001, 4294901760
        %1003 = vmatpush1.msra.mxu0 %v1002
        %1004 = vmatprep.subr.mxu0 0.0
        %v1005 = vand.u32 %v658, 4294901760
        %v1006 = vsub.f32 %v658, %v1005
        %v1007 = vand.u32 %v1006, 4294901760
        %1008 = vmatpush1.msra.mxu0 %v1007
        %1009 = vmatprep.subr.mxu0 0.0
        %1010 = vmatpush1.msra.mxu0 0.0
        %1011 = vmatprep.subr.mxu0 0.0
        %1012 = vmatpush1.msra.mxu0 0.0
        %1013 = vmatprep.subr.mxu0 0.0
        %1014 = vmatpush1.msra.mxu0 0.0
        %1015 = vmatprep.subr.mxu0 0.0
        %1016 = vmatpush1.msra.mxu0 0.0
        %1017 = vmatprep.subr.mxu0 0.0
        %1018 = vmatpush1.msra.mxu0 0.0
        %1019 = vmatprep.subr.mxu0 0.0
        %1020 = vmatpush1.msra.mxu0 0.0
        %1021 = vmatprep.subr.mxu0 0.0
        %1022 = vmatpush1.msra.mxu0 0.0
        %1023 = vmatprep.subr.mxu0 0.0
        %1024 = vmatpush1.msra.mxu0 0.0
        %1025 = vmatprep.subr.mxu0 0.0
        %1026 = vmatpush1.msra.mxu0 0.0
        %1027 = vmatprep.subr.mxu0 0.0
        %1028 = vmatpush1.msra.mxu0 0.0
        %1029 = vmatprep.subr.mxu0 0.0
        %1030 = vmatpush1.msra.mxu0 0.0
        %1031 = vmatprep.subr.mxu0 0.0
        %1032 = vmatpush1.msra.mxu0 0.0
        %1033 = vmatprep.subr.mxu0 0.0
        %1034 = vmatpush1.msra.mxu0 0.0
        %1035 = vmatprep.subr.mxu0 0.0
        %1036 = vmatpush1.msra.mxu0 0.0
        %1037 = vmatprep.subr.mxu0 0.0
        %1038 = vmatpush1.msra.mxu0 0.0
        %1039 = vmatprep.subr.mxu0 0.0
        %1040 = vmatpush1.msra.mxu0 0.0
        %1041 = vmatprep.subr.mxu0 0.0
        %1042 = vmatpush1.msra.mxu0 0.0
        %1043 = vmatprep.subr.mxu0 0.0
        %1044 = vmatpush1.msra.mxu0 0.0
        %1045 = vmatprep.subr.mxu0 0.0
        %1046 = vmatpush1.msra.mxu0 0.0
        %1047 = vmatprep.subr.mxu0 0.0
        %1048 = vmatpush1.msra.mxu0 0.0
        %1049 = vmatprep.subr.mxu0 0.0
        %1050 = vmatpush1.msra.mxu0 0.0
        %1051 = vmatprep.subr.mxu0 0.0
        %1052 = vmatpush1.msra.mxu0 0.0
        %1053 = vmatprep.subr.mxu0 0.0
        %1054 = vmatpush1.msra.mxu0 0.0
        %1055 = vmatprep.subr.mxu0 0.0
        %1056 = vmatpush1.msra.mxu0 0.0
        %1057 = vmatprep.subr.mxu0 0.0
        %1058 = vmatpush1.msra.mxu0 0.0
        %1059 = vmatprep.subr.mxu0 0.0
        %1060 = vmatpush1.msra.mxu0 0.0
        %1061 = vmatprep.subr.mxu0 0.0
        %1062 = vmatpush1.msra.mxu0 0.0
        %1063 = vmatprep.subr.mxu0 0.0
        %1064 = vmatpush1.msra.mxu0 0.0
        %1065 = vmatprep.mubr.f32.mxu0 0.0
        %v1066 = vand.u32 %v660, 4294901760
        %1067 = vmatmul.mubr.f32.gmra.mrb[0].mxu0 %v1066
        %v1068 = vpop.f32.mrb[0].mxu0
        %v1069 = vadd.f32 %v986, %v1068
        %v1070 = vpop.f32.mrb[0].mxu0
        %1071 = vdwg.mxu0
        %1072 = vmatprep.subr.mxu0 0.0
        %v1073 = vand.u32 %v655, 4294901760
        %1074 = vmatpush1.msra.mxu0 %v1073
        %1075 = vmatprep.subr.mxu0 0.0
        %v1076 = vand.u32 %v656, 4294901760
        %1077 = vmatpush1.msra.mxu0 %v1076
        %1078 = vmatprep.subr.mxu0 0.0
        %v1079 = vand.u32 %v657, 4294901760
        %1080 = vmatpush1.msra.mxu0 %v1079
        %1081 = vmatprep.subr.mxu0 0.0
        %v1082 = vand.u32 %v658, 4294901760
        %1083 = vmatpush1.msra.mxu0 %v1082
        %1084 = vmatprep.subr.mxu0 0.0
        %1085 = vmatpush1.msra.mxu0 0.0
        %1086 = vmatprep.subr.mxu0 0.0
        %1087 = vmatpush1.msra.mxu0 0.0
        %1088 = vmatprep.subr.mxu0 0.0
        %1089 = vmatpush1.msra.mxu0 0.0
        %1090 = vmatprep.subr.mxu0 0.0
        %1091 = vmatpush1.msra.mxu0 0.0
        %1092 = vmatprep.subr.mxu0 0.0
        %1093 = vmatpush1.msra.mxu0 0.0
        %1094 = vmatprep.subr.mxu0 0.0
        %1095 = vmatpush1.msra.mxu0 0.0
        %1096 = vmatprep.subr.mxu0 0.0
        %1097 = vmatpush1.msra.mxu0 0.0
        %1098 = vmatprep.subr.mxu0 0.0
        %1099 = vmatpush1.msra.mxu0 0.0
        %1100 = vmatprep.subr.mxu0 0.0
        %1101 = vmatpush1.msra.mxu0 0.0
        %1102 = vmatprep.subr.mxu0 0.0
        %1103 = vmatpush1.msra.mxu0 0.0
        %1104 = vmatprep.subr.mxu0 0.0
        %1105 = vmatpush1.msra.mxu0 0.0
        %1106 = vmatprep.subr.mxu0 0.0
        %1107 = vmatpush1.msra.mxu0 0.0
        %1108 = vmatprep.subr.mxu0 0.0
        %1109 = vmatpush1.msra.mxu0 0.0
        %1110 = vmatprep.subr.mxu0 0.0
        %1111 = vmatpush1.msra.mxu0 0.0
        %1112 = vmatprep.subr.mxu0 0.0
        %1113 = vmatpush1.msra.mxu0 0.0
        %1114 = vmatprep.subr.mxu0 0.0
        %1115 = vmatpush1.msra.mxu0 0.0
        %1116 = vmatprep.subr.mxu0 0.0
        %1117 = vmatpush1.msra.mxu0 0.0
        %1118 = vmatprep.subr.mxu0 0.0
        %1119 = vmatpush1.msra.mxu0 0.0
        %1120 = vmatprep.subr.mxu0 0.0
        %1121 = vmatpush1.msra.mxu0 0.0
        %1122 = vmatprep.subr.mxu0 0.0
        %1123 = vmatpush1.msra.mxu0 0.0
        %1124 = vmatprep.subr.mxu0 0.0
        %1125 = vmatpush1.msra.mxu0 0.0
        %1126 = vmatprep.subr.mxu0 0.0
        %1127 = vmatpush1.msra.mxu0 0.0
        %1128 = vmatprep.subr.mxu0 0.0
        %1129 = vmatpush1.msra.mxu0 0.0
        %1130 = vmatprep.subr.mxu0 0.0
        %1131 = vmatpush1.msra.mxu0 0.0
        %1132 = vmatprep.subr.mxu0 0.0
        %1133 = vmatpush1.msra.mxu0 0.0
        %1134 = vmatprep.subr.mxu0 0.0
        %1135 = vmatpush1.msra.mxu0 0.0
        %1136 = vmatprep.subr.mxu0 0.0
        %1137 = vmatpush1.msra.mxu0 0.0
        %1138 = vmatprep.subr.mxu0 0.0
        %1139 = vmatpush1.msra.mxu0 0.0
        %1140 = vmatprep.mubr.f32.mxu0 0.0
        %v1141 = vand.u32 %v660, 4294901760
        %1142 = vmatmul.mubr.f32.gmra.mrb[0].mxu0 %v1141
        %v1143 = vpop.f32.mrb[0].mxu0
        %v1144 = vadd.f32 %v1069, %v1143
        %v1145 = vpop.f32.mrb[0].mxu0
        %1146 = vdwg.mxu0
        %v1147 = vrcp.pop 64.0
        %v1148 = vmul.f32 %v1144, %v1147
        %v1149 = vld [vmem:[#allocation12] sm:$0xff]
        %v1150 = vld [vmem:[#allocation12 + $0x8] sm:$0xff]
        %v1151 = vld [vmem:[#allocation12 + $0x10] sm:$0xff]
        %v1152 = vld [vmem:[#allocation12 + $0x18] sm:$0xff]
        %v1154 = vsel %vm619, %v1148, 0
        %1156 = vmatprep.subr.mxu0 0.0
        %v1157 = vand.u32 %v1149, 4294901760
        %1158 = vmatpush1.msra.mxu0 %v1157
        %1159 = vmatprep.subr.mxu0 0.0
        %v1160 = vand.u32 %v1150, 4294901760
        %1161 = vmatpush1.msra.mxu0 %v1160
        %1162 = vmatprep.subr.mxu0 0.0
        %v1163 = vand.u32 %v1151, 4294901760
        %1164 = vmatpush1.msra.mxu0 %v1163
        %1165 = vmatprep.subr.mxu0 0.0
        %v1166 = vand.u32 %v1152, 4294901760
        %1167 = vmatpush1.msra.mxu0 %v1166
        %1168 = vmatprep.subr.mxu0 0.0
        %1169 = vmatpush1.msra.mxu0 0.0
        %1170 = vmatprep.subr.mxu0 0.0
        %1171 = vmatpush1.msra.mxu0 0.0
        %1172 = vmatprep.subr.mxu0 0.0
        %1173 = vmatpush1.msra.mxu0 0.0
        %1174 = vmatprep.subr.mxu0 0.0
        %1175 = vmatpush1.msra.mxu0 0.0
        %1176 = vmatprep.subr.mxu0 0.0
        %1177 = vmatpush1.msra.mxu0 0.0
        %1178 = vmatprep.subr.mxu0 0.0
        %1179 = vmatpush1.msra.mxu0 0.0
        %1180 = vmatprep.subr.mxu0 0.0
        %1181 = vmatpush1.msra.mxu0 0.0
        %1182 = vmatprep.subr.mxu0 0.0
        %1183 = vmatpush1.msra.mxu0 0.0
        %1184 = vmatprep.subr.mxu0 0.0
        %1185 = vmatpush1.msra.mxu0 0.0
        %1186 = vmatprep.subr.mxu0 0.0
        %1187 = vmatpush1.msra.mxu0 0.0
        %1188 = vmatprep.subr.mxu0 0.0
        %1189 = vmatpush1.msra.mxu0 0.0
        %1190 = vmatprep.subr.mxu0 0.0
        %1191 = vmatpush1.msra.mxu0 0.0
        %1192 = vmatprep.subr.mxu0 0.0
        %1193 = vmatpush1.msra.mxu0 0.0
        %1194 = vmatprep.subr.mxu0 0.0
        %1195 = vmatpush1.msra.mxu0 0.0
        %1196 = vmatprep.subr.mxu0 0.0
        %1197 = vmatpush1.msra.mxu0 0.0
        %1198 = vmatprep.subr.mxu0 0.0
        %1199 = vmatpush1.msra.mxu0 0.0
        %1200 = vmatprep.subr.mxu0 0.0
        %1201 = vmatpush1.msra.mxu0 0.0
        %1202 = vmatprep.subr.mxu0 0.0
        %1203 = vmatpush1.msra.mxu0 0.0
        %1204 = vmatprep.subr.mxu0 0.0
        %1205 = vmatpush1.msra.mxu0 0.0
        %1206 = vmatprep.subr.mxu0 0.0
        %1207 = vmatpush1.msra.mxu0 0.0
        %1208 = vmatprep.subr.mxu0 0.0
        %1209 = vmatpush1.msra.mxu0 0.0
        %1210 = vmatprep.subr.mxu0 0.0
        %1211 = vmatpush1.msra.mxu0 0.0
        %1212 = vmatprep.subr.mxu0 0.0
        %1213 = vmatpush1.msra.mxu0 0.0
        %1214 = vmatprep.subr.mxu0 0.0
        %1215 = vmatpush1.msra.mxu0 0.0
        %1216 = vmatprep.subr.mxu0 0.0
        %1217 = vmatpush1.msra.mxu0 0.0
        %1218 = vmatprep.subr.mxu0 0.0
        %1219 = vmatpush1.msra.mxu0 0.0
        %1220 = vmatprep.subr.mxu0 0.0
        %1221 = vmatpush1.msra.mxu0 0.0
        %1222 = vmatprep.subr.mxu0 0.0
        %1223 = vmatpush1.msra.mxu0 0.0
        %1224 = vmatprep.mubr.f32.mxu0 0.0
        %v1225 = vand.u32 %v1154, 4294901760
        %v1226 = vsub.f32 %v1154, %v1225
        %v1227 = vand.u32 %v1226, 4294901760
        %v1228 = vsub.f32 %v1226, %v1227
        %v1229 = vand.u32 %v1228, 4294901760
        %1230 = vmatmul.mubr.f32.gmra.mrb[0].mxu0 %v1229
        %v1231 = vpop.f32.mrb[0].mxu0
        %v1232 = vadd.f32 0.0, %v1231
        %v1233 = vpop.f32.mrb[0].mxu0
        %1234 = vdwg.mxu0
        %1235 = vmatprep.subr.mxu0 0.0
        %v1236 = vand.u32 %v1149, 4294901760
        %v1237 = vsub.f32 %v1149, %v1236
        %v1238 = vand.u32 %v1237, 4294901760
        %v1239 = vsub.f32 %v1237, %v1238
        %v1240 = vand.u32 %v1239, 4294901760
        %1241 = vmatpush1.msra.mxu0 %v1240
        %1242 = vmatprep.subr.mxu0 0.0
        %v1243 = vand.u32 %v1150, 4294901760
        %v1244 = vsub.f32 %v1150, %v1243
        %v1245 = vand.u32 %v1244, 4294901760
        %v1246 = vsub.f32 %v1244, %v1245
        %v1247 = vand.u32 %v1246, 4294901760
        %1248 = vmatpush1.msra.mxu0 %v1247
        %1249 = vmatprep.subr.mxu0 0.0
        %v1250 = vand.u32 %v1151, 4294901760
        %v1251 = vsub.f32 %v1151, %v1250
        %v1252 = vand.u32 %v1251, 4294901760
        %v1253 = vsub.f32 %v1251, %v1252
        %v1254 = vand.u32 %v1253, 4294901760
        %1255 = vmatpush1.msra.mxu0 %v1254
        %1256 = vmatprep.subr.mxu0 0.0
        %v1257 = vand.u32 %v1152, 4294901760
        %v1258 = vsub.f32 %v1152, %v1257
        %v1259 = vand.u32 %v1258, 4294901760
        %v1260 = vsub.f32 %v1258, %v1259
        %v1261 = vand.u32 %v1260, 4294901760
        %1262 = vmatpush1.msra.mxu0 %v1261
        %1263 = vmatprep.subr.mxu0 0.0
        %1264 = vmatpush1.msra.mxu0 0.0
        %1265 = vmatprep.subr.mxu0 0.0
        %1266 = vmatpush1.msra.mxu0 0.0
        %1267 = vmatprep.subr.mxu0 0.0
        %1268 = vmatpush1.msra.mxu0 0.0
        %1269 = vmatprep.subr.mxu0 0.0
        %1270 = vmatpush1.msra.mxu0 0.0
        %1271 = vmatprep.subr.mxu0 0.0
        %1272 = vmatpush1.msra.mxu0 0.0
        %1273 = vmatprep.subr.mxu0 0.0
        %1274 = vmatpush1.msra.mxu0 0.0
        %1275 = vmatprep.subr.mxu0 0.0
        %1276 = vmatpush1.msra.mxu0 0.0
        %1277 = vmatprep.subr.mxu0 0.0
        %1278 = vmatpush1.msra.mxu0 0.0
        %1279 = vmatprep.subr.mxu0 0.0
        %1280 = vmatpush1.msra.mxu0 0.0
        %1281 = vmatprep.subr.mxu0 0.0
        %1282 = vmatpush1.msra.mxu0 0.0
        %1283 = vmatprep.subr.mxu0 0.0
        %1284 = vmatpush1.msra.mxu0 0.0
        %1285 = vmatprep.subr.mxu0 0.0
        %1286 = vmatpush1.msra.mxu0 0.0
        %1287 = vmatprep.subr.mxu0 0.0
        %1288 = vmatpush1.msra.mxu0 0.0
        %1289 = vmatprep.subr.mxu0 0.0
        %1290 = vmatpush1.msra.mxu0 0.0
        %1291 = vmatprep.subr.mxu0 0.0
        %1292 = vmatpush1.msra.mxu0 0.0
        %1293 = vmatprep.subr.mxu0 0.0
        %1294 = vmatpush1.msra.mxu0 0.0
        %1295 = vmatprep.subr.mxu0 0.0
        %1296 = vmatpush1.msra.mxu0 0.0
        %1297 = vmatprep.subr.mxu0 0.0
        %1298 = vmatpush1.msra.mxu0 0.0
        %1299 = vmatprep.subr.mxu0 0.0
        %1300 = vmatpush1.msra.mxu0 0.0
        %1301 = vmatprep.subr.mxu0 0.0
        %1302 = vmatpush1.msra.mxu0 0.0
        %1303 = vmatprep.subr.mxu0 0.0
        %1304 = vmatpush1.msra.mxu0 0.0
        %1305 = vmatprep.subr.mxu0 0.0
        %1306 = vmatpush1.msra.mxu0 0.0
        %1307 = vmatprep.subr.mxu0 0.0
        %1308 = vmatpush1.msra.mxu0 0.0
        %1309 = vmatprep.subr.mxu0 0.0
        %1310 = vmatpush1.msra.mxu0 0.0
        %1311 = vmatprep.subr.mxu0 0.0
        %1312 = vmatpush1.msra.mxu0 0.0
        %1313 = vmatprep.subr.mxu0 0.0
        %1314 = vmatpush1.msra.mxu0 0.0
        %1315 = vmatprep.subr.mxu0 0.0
        %1316 = vmatpush1.msra.mxu0 0.0
        %1317 = vmatprep.subr.mxu0 0.0
        %1318 = vmatpush1.msra.mxu0 0.0
        %1319 = vmatprep.mubr.f32.mxu0 0.0
        %v1320 = vand.u32 %v1154, 4294901760
        %1321 = vmatmul.mubr.f32.gmra.mrb[0].mxu0 %v1320
        %v1322 = vpop.f32.mrb[0].mxu0
        %v1323 = vadd.f32 %v1232, %v1322
        %v1324 = vpop.f32.mrb[0].mxu0
        %1325 = vdwg.mxu0
        %1326 = vmatprep.subr.mxu0 0.0
        %v1327 = vand.u32 %v1149, 4294901760
        %v1328 = vsub.f32 %v1149, %v1327
        %1329 = vmatpush1.msra.mxu0 %v1328
        %1330 = vmatprep.subr.mxu0 0.0
        %v1331 = vand.u32 %v1150, 4294901760
        %v1332 = vsub.f32 %v1150, %v1331
        %1333 = vmatpush1.msra.mxu0 %v1332
        %1334 = vmatprep.subr.mxu0 0.0
        %v1335 = vand.u32 %v1151, 4294901760
        %v1336 = vsub.f32 %v1151, %v1335
        %1337 = vmatpush1.msra.mxu0 %v1336
        %1338 = vmatprep.subr.mxu0 0.0
        %v1339 = vand.u32 %v1152, 4294901760
        %v1340 = vsub.f32 %v1152, %v1339
        %1341 = vmatpush1.msra.mxu0 %v1340
        %1342 = vmatprep.subr.mxu0 0.0
        %1343 = vmatpush1.msra.mxu0 0.0
        %1344 = vmatprep.subr.mxu0 0.0
        %1345 = vmatpush1.msra.mxu0 0.0
        %1346 = vmatprep.subr.mxu0 0.0
        %1347 = vmatpush1.msra.mxu0 0.0
        %1348 = vmatprep.subr.mxu0 0.0
        %1349 = vmatpush1.msra.mxu0 0.0
        %1350 = vmatprep.subr.mxu0 0.0
        %1351 = vmatpush1.msra.mxu0 0.0
        %1352 = vmatprep.subr.mxu0 0.0
        %1353 = vmatpush1.msra.mxu0 0.0
        %1354 = vmatprep.subr.mxu0 0.0
        %1355 = vmatpush1.msra.mxu0 0.0
        %1356 = vmatprep.subr.mxu0 0.0
        %1357 = vmatpush1.msra.mxu0 0.0
        %1358 = vmatprep.subr.mxu0 0.0
        %1359 = vmatpush1.msra.mxu0 0.0
        %1360 = vmatprep.subr.mxu0 0.0
        %1361 = vmatpush1.msra.mxu0 0.0
        %1362 = vmatprep.subr.mxu0 0.0
        %1363 = vmatpush1.msra.mxu0 0.0
        %1364 = vmatprep.subr.mxu0 0.0
        %1365 = vmatpush1.msra.mxu0 0.0
        %1366 = vmatprep.subr.mxu0 0.0
        %1367 = vmatpush1.msra.mxu0 0.0
        %1368 = vmatprep.subr.mxu0 0.0
        %1369 = vmatpush1.msra.mxu0 0.0
        %1370 = vmatprep.subr.mxu0 0.0
        %1371 = vmatpush1.msra.mxu0 0.0
        %1372 = vmatprep.subr.mxu0 0.0
        %1373 = vmatpush1.msra.mxu0 0.0
        %1374 = vmatprep.subr.mxu0 0.0
        %1375 = vmatpush1.msra.mxu0 0.0
        %1376 = vmatprep.subr.mxu0 0.0
        %1377 = vmatpush1.msra.mxu0 0.0
        %1378 = vmatprep.subr.mxu0 0.0
        %1379 = vmatpush1.msra.mxu0 0.0
        %1380 = vmatprep.subr.mxu0 0.0
        %1381 = vmatpush1.msra.mxu0 0.0
        %1382 = vmatprep.subr.mxu0 0.0
        %1383 = vmatpush1.msra.mxu0 0.0
        %1384 = vmatprep.subr.mxu0 0.0
        %1385 = vmatpush1.msra.mxu0 0.0
        %1386 = vmatprep.subr.mxu0 0.0
        %1387 = vmatpush1.msra.mxu0 0.0
        %1388 = vmatprep.subr.mxu0 0.0
        %1389 = vmatpush1.msra.mxu0 0.0
        %1390 = vmatprep.subr.mxu0 0.0
        %1391 = vmatpush1.msra.mxu0 0.0
        %1392 = vmatprep.subr.mxu0 0.0
        %1393 = vmatpush1.msra.mxu0 0.0
        %1394 = vmatprep.subr.mxu0 0.0
        %1395 = vmatpush1.msra.mxu0 0.0
        %1396 = vmatprep.subr.mxu0 0.0
        %1397 = vmatpush1.msra.mxu0 0.0
        %1398 = vmatprep.mubr.f32.mxu0 0.0
        %v1399 = vand.u32 %v1154, 4294901760
        %v1400 = vsub.f32 %v1154, %v1399
        %1401 = vmatmul.mubr.f32.gmra.mrb[0].mxu0 %v1400
        %v1402 = vpop.f32.mrb[0].mxu0
        %v1403 = vadd.f32 %v1323, %v1402
        %v1404 = vpop.f32.mrb[0].mxu0
        %1405 = vdwg.mxu0
        %1406 = vmatprep.subr.mxu0 0.0
        %v1407 = vand.u32 %v1149, 4294901760
        %1408 = vmatpush1.msra.mxu0 %v1407
        %1409 = vmatprep.subr.mxu0 0.0
        %v1410 = vand.u32 %v1150, 4294901760
        %1411 = vmatpush1.msra.mxu0 %v1410
        %1412 = vmatprep.subr.mxu0 0.0
        %v1413 = vand.u32 %v1151, 4294901760
        %1414 = vmatpush1.msra.mxu0 %v1413
        %1415 = vmatprep.subr.mxu0 0.0
        %v1416 = vand.u32 %v1152, 4294901760
        %1417 = vmatpush1.msra.mxu0 %v1416
        %1418 = vmatprep.subr.mxu0 0.0
        %1419 = vmatpush1.msra.mxu0 0.0
        %1420 = vmatprep.subr.mxu0 0.0
        %1421 = vmatpush1.msra.mxu0 0.0
        %1422 = vmatprep.subr.mxu0 0.0
        %1423 = vmatpush1.msra.mxu0 0.0
        %1424 = vmatprep.subr.mxu0 0.0
        %1425 = vmatpush1.msra.mxu0 0.0
        %1426 = vmatprep.subr.mxu0 0.0
        %1427 = vmatpush1.msra.mxu0 0.0
        %1428 = vmatprep.subr.mxu0 0.0
        %1429 = vmatpush1.msra.mxu0 0.0
        %1430 = vmatprep.subr.mxu0 0.0
        %1431 = vmatpush1.msra.mxu0 0.0
        %1432 = vmatprep.subr.mxu0 0.0
        %1433 = vmatpush1.msra.mxu0 0.0
        %1434 = vmatprep.subr.mxu0 0.0
        %1435 = vmatpush1.msra.mxu0 0.0
        %1436 = vmatprep.subr.mxu0 0.0
        %1437 = vmatpush1.msra.mxu0 0.0
        %1438 = vmatprep.subr.mxu0 0.0
        %1439 = vmatpush1.msra.mxu0 0.0
        %1440 = vmatprep.subr.mxu0 0.0
        %1441 = vmatpush1.msra.mxu0 0.0
        %1442 = vmatprep.subr.mxu0 0.0
        %1443 = vmatpush1.msra.mxu0 0.0
        %1444 = vmatprep.subr.mxu0 0.0
        %1445 = vmatpush1.msra.mxu0 0.0
        %1446 = vmatprep.subr.mxu0 0.0
        %1447 = vmatpush1.msra.mxu0 0.0
        %1448 = vmatprep.subr.mxu0 0.0
        %1449 = vmatpush1.msra.mxu0 0.0
        %1450 = vmatprep.subr.mxu0 0.0
        %1451 = vmatpush1.msra.mxu0 0.0
        %1452 = vmatprep.subr.mxu0 0.0
        %1453 = vmatpush1.msra.mxu0 0.0
        %1454 = vmatprep.subr.mxu0 0.0
        %1455 = vmatpush1.msra.mxu0 0.0
        %1456 = vmatprep.subr.mxu0 0.0
        %1457 = vmatpush1.msra.mxu0 0.0
        %1458 = vmatprep.subr.mxu0 0.0
        %1459 = vmatpush1.msra.mxu0 0.0
        %1460 = vmatprep.subr.mxu0 0.0
        %1461 = vmatpush1.msra.mxu0 0.0
        %1462 = vmatprep.subr.mxu0 0.0
        %1463 = vmatpush1.msra.mxu0 0.0
        %1464 = vmatprep.subr.mxu0 0.0
        %1465 = vmatpush1.msra.mxu0 0.0
        %1466 = vmatprep.subr.mxu0 0.0
        %1467 = vmatpush1.msra.mxu0 0.0
        %1468 = vmatprep.subr.mxu0 0.0
        %1469 = vmatpush1.msra.mxu0 0.0
        %1470 = vmatprep.subr.mxu0 0.0
        %1471 = vmatpush1.msra.mxu0 0.0
        %1472 = vmatprep.subr.mxu0 0.0
        %1473 = vmatpush1.msra.mxu0 0.0
        %1474 = vmatprep.mubr.f32.mxu0 0.0
        %v1475 = vand.u32 %v1154, 4294901760
        %v1476 = vsub.f32 %v1154, %v1475
        %v1477 = vand.u32 %v1476, 4294901760
        %1478 = vmatmul.mubr.f32.gmra.mrb[0].mxu0 %v1477
        %v1479 = vpop.f32.mrb[0].mxu0
        %v1480 = vadd.f32 %v1403, %v1479
        %v1481 = vpop.f32.mrb[0].mxu0
        %1482 = vdwg.mxu0
        %1483 = vmatprep.subr.mxu0 0.0
        %v1484 = vand.u32 %v1149, 4294901760
        %v1485 = vsub.f32 %v1149, %v1484
        %v1486 = vand.u32 %v1485, 4294901760
        %1487 = vmatpush1.msra.mxu0 %v1486
        %1488 = vmatprep.subr.mxu0 0.0
        %v1489 = vand.u32 %v1150, 4294901760
        %v1490 = vsub.f32 %v1150, %v1489
        %v1491 = vand.u32 %v1490, 4294901760
        %1492 = vmatpush1.msra.mxu0 %v1491
        %1493 = vmatprep.subr.mxu0 0.0
        %v1494 = vand.u32 %v1151, 4294901760
        %v1495 = vsub.f32 %v1151, %v1494
        %v1496 = vand.u32 %v1495, 4294901760
        %1497 = vmatpush1.msra.mxu0 %v1496
        %1498 = vmatprep.subr.mxu0 0.0
        %v1499 = vand.u32 %v1152, 4294901760
        %v1500 = vsub.f32 %v1152, %v1499
        %v1501 = vand.u32 %v1500, 4294901760
        %1502 = vmatpush1.msra.mxu0 %v1501
        %1503 = vmatprep.subr.mxu0 0.0
        %1504 = vmatpush1.msra.mxu0 0.0
        %1505 = vmatprep.subr.mxu0 0.0
        %1506 = vmatpush1.msra.mxu0 0.0
        %1507 = vmatprep.subr.mxu0 0.0
        %1508 = vmatpush1.msra.mxu0 0.0
        %1509 = vmatprep.subr.mxu0 0.0
        %1510 = vmatpush1.msra.mxu0 0.0
        %1511 = vmatprep.subr.mxu0 0.0
        %1512 = vmatpush1.msra.mxu0 0.0
        %1513 = vmatprep.subr.mxu0 0.0
        %1514 = vmatpush1.msra.mxu0 0.0
        %1515 = vmatprep.subr.mxu0 0.0
        %1516 = vmatpush1.msra.mxu0 0.0
        %1517 = vmatprep.subr.mxu0 0.0
        %1518 = vmatpush1.msra.mxu0 0.0
        %1519 = vmatprep.subr.mxu0 0.0
        %1520 = vmatpush1.msra.mxu0 0.0
        %1521 = vmatprep.subr.mxu0 0.0
        %1522 = vmatpush1.msra.mxu0 0.0
        %1523 = vmatprep.subr.mxu0 0.0
        %1524 = vmatpush1.msra.mxu0 0.0
        %1525 = vmatprep.subr.mxu0 0.0
        %1526 = vmatpush1.msra.mxu0 0.0
        %1527 = vmatprep.subr.mxu0 0.0
        %1528 = vmatpush1.msra.mxu0 0.0
        %1529 = vmatprep.subr.mxu0 0.0
        %1530 = vmatpush1.msra.mxu0 0.0
        %1531 = vmatprep.subr.mxu0 0.0
        %1532 = vmatpush1.msra.mxu0 0.0
        %1533 = vmatprep.subr.mxu0 0.0
        %1534 = vmatpush1.msra.mxu0 0.0
        %1535 = vmatprep.subr.mxu0 0.0
        %1536 = vmatpush1.msra.mxu0 0.0
        %1537 = vmatprep.subr.mxu0 0.0
        %1538 = vmatpush1.msra.mxu0 0.0
        %1539 = vmatprep.subr.mxu0 0.0
        %1540 = vmatpush1.msra.mxu0 0.0
        %1541 = vmatprep.subr.mxu0 0.0
        %1542 = vmatpush1.msra.mxu0 0.0
        %1543 = vmatprep.subr.mxu0 0.0
        %1544 = vmatpush1.msra.mxu0 0.0
        %1545 = vmatprep.subr.mxu0 0.0
        %1546 = vmatpush1.msra.mxu0 0.0
        %1547 = vmatprep.subr.mxu0 0.0
        %1548 = vmatpush1.msra.mxu0 0.0
        %1549 = vmatprep.subr.mxu0 0.0
        %1550 = vmatpush1.msra.mxu0 0.0
        %1551 = vmatprep.subr.mxu0 0.0
        %1552 = vmatpush1.msra.mxu0 0.0
        %1553 = vmatprep.subr.mxu0 0.0
        %1554 = vmatpush1.msra.mxu0 0.0
        %1555 = vmatprep.subr.mxu0 0.0
        %1556 = vmatpush1.msra.mxu0 0.0
        %1557 = vmatprep.subr.mxu0 0.0
        %1558 = vmatpush1.msra.mxu0 0.0
        %1559 = vmatprep.mubr.f32.mxu0 0.0
        %v1560 = vand.u32 %v1154, 4294901760
        %1561 = vmatmul.mubr.f32.gmra.mrb[0].mxu0 %v1560
        %v1562 = vpop.f32.mrb[0].mxu0
        %v1563 = vadd.f32 %v1480, %v1562
        %v1564 = vpop.f32.mrb[0].mxu0
        %1565 = vdwg.mxu0
        %1566 = vmatprep.subr.mxu0 0.0
        %v1567 = vand.u32 %v1149, 4294901760
        %1568 = vmatpush1.msra.mxu0 %v1567
        %1569 = vmatprep.subr.mxu0 0.0
        %v1570 = vand.u32 %v1150, 4294901760
        %1571 = vmatpush1.msra.mxu0 %v1570
        %1572 = vmatprep.subr.mxu0 0.0
        %v1573 = vand.u32 %v1151, 4294901760
        %1574 = vmatpush1.msra.mxu0 %v1573
        %1575 = vmatprep.subr.mxu0 0.0
        %v1576 = vand.u32 %v1152, 4294901760
        %1577 = vmatpush1.msra.mxu0 %v1576
        %1578 = vmatprep.subr.mxu0 0.0
        %1579 = vmatpush1.msra.mxu0 0.0
        %1580 = vmatprep.subr.mxu0 0.0
        %1581 = vmatpush1.msra.mxu0 0.0
        %1582 = vmatprep.subr.mxu0 0.0
        %1583 = vmatpush1.msra.mxu0 0.0
        %1584 = vmatprep.subr.mxu0 0.0
        %1585 = vmatpush1.msra.mxu0 0.0
        %1586 = vmatprep.subr.mxu0 0.0
        %1587 = vmatpush1.msra.mxu0 0.0
        %1588 = vmatprep.subr.mxu0 0.0
        %1589 = vmatpush1.msra.mxu0 0.0
        %1590 = vmatprep.subr.mxu0 0.0
        %1591 = vmatpush1.msra.mxu0 0.0
        %1592 = vmatprep.subr.mxu0 0.0
        %1593 = vmatpush1.msra.mxu0 0.0
        %1594 = vmatprep.subr.mxu0 0.0
        %1595 = vmatpush1.msra.mxu0 0.0
        %1596 = vmatprep.subr.mxu0 0.0
        %1597 = vmatpush1.msra.mxu0 0.0
        %1598 = vmatprep.subr.mxu0 0.0
        %1599 = vmatpush1.msra.mxu0 0.0
        %1600 = vmatprep.subr.mxu0 0.0
        %1601 = vmatpush1.msra.mxu0 0.0
        %1602 = vmatprep.subr.mxu0 0.0
        %1603 = vmatpush1.msra.mxu0 0.0
        %1604 = vmatprep.subr.mxu0 0.0
        %1605 = vmatpush1.msra.mxu0 0.0
        %1606 = vmatprep.subr.mxu0 0.0
        %1607 = vmatpush1.msra.mxu0 0.0
        %1608 = vmatprep.subr.mxu0 0.0
        %1609 = vmatpush1.msra.mxu0 0.0
        %1610 = vmatprep.subr.mxu0 0.0
        %1611 = vmatpush1.msra.mxu0 0.0
        %1612 = vmatprep.subr.mxu0 0.0
        %1613 = vmatpush1.msra.mxu0 0.0
        %1614 = vmatprep.subr.mxu0 0.0
        %1615 = vmatpush1.msra.mxu0 0.0
        %1616 = vmatprep.subr.mxu0 0.0
        %1617 = vmatpush1.msra.mxu0 0.0
        %1618 = vmatprep.subr.mxu0 0.0
        %1619 = vmatpush1.msra.mxu0 0.0
        %1620 = vmatprep.subr.mxu0 0.0
        %1621 = vmatpush1.msra.mxu0 0.0
        %1622 = vmatprep.subr.mxu0 0.0
        %1623 = vmatpush1.msra.mxu0 0.0
        %1624 = vmatprep.subr.mxu0 0.0
        %1625 = vmatpush1.msra.mxu0 0.0
        %1626 = vmatprep.subr.mxu0 0.0
        %1627 = vmatpush1.msra.mxu0 0.0
        %1628 = vmatprep.subr.mxu0 0.0
        %1629 = vmatpush1.msra.mxu0 0.0
        %1630 = vmatprep.subr.mxu0 0.0
        %1631 = vmatpush1.msra.mxu0 0.0
        %1632 = vmatprep.subr.mxu0 0.0
        %1633 = vmatpush1.msra.mxu0 0.0
        %1634 = vmatprep.mubr.f32.mxu0 0.0
        %v1635 = vand.u32 %v1154, 4294901760
        %1636 = vmatmul.mubr.f32.gmra.mrb[0].mxu0 %v1635
        %v1637 = vpop.f32.mrb[0].mxu0
        %v1638 = vadd.f32 %v1563, %v1637
        %v1639 = vpop.f32.mrb[0].mxu0
        %1640 = vdwg.mxu0
        %v1641 = vlaneseq
        %v1642 = vshrl.u32 %v1641, 7
        %v1643 = vsub.s32 0, %v1642
        %v1644 = vrot.slane %v1638, %v1643
        %v1645 = vsub.f32 %v626, %v1644
        %v1646 = vsub.f32 %v627, %v1644
        %v1647 = vsub.f32 %v628, %v1644
        %v1648 = vsub.f32 %v629, %v1644
        %v1649 = vsub.f32 %v630, %v1644
        %v1650 = vsub.f32 %v631, %v1644
        %v1651 = vsub.f32 %v632, %v1644
        %v1652 = vsub.f32 %v633, %v1644
        %v1653 = vmul.f32 %v1645, %v1645
        %v1654 = vmul.f32 %v1646, %v1646
        %v1655 = vmul.f32 %v1647, %v1647
        %v1656 = vmul.f32 %v1648, %v1648
        %v1657 = vmul.f32 %v1649, %v1649
        %v1658 = vmul.f32 %v1650, %v1650
        %v1659 = vmul.f32 %v1651, %v1651
        %v1660 = vmul.f32 %v1652, %v1652
        %v1661 = vsel %vm619, %v1653, 0.0
        %v1662 = vsel %vm619, %v1654, 0.0
        %v1663 = vadd.f32 %v1661, %v1662
        %v1664 = vsel %vm619, %v1655, 0.0
        %v1665 = vadd.f32 %v1663, %v1664
        %v1666 = vsel %vm619, %v1656, 0.0
        %v1667 = vadd.f32 %v1665, %v1666
        %v1668 = vsel %vm619, %v1657, 0.0
        %v1669 = vadd.f32 %v1667, %v1668
        %v1670 = vsel %vm619, %v1658, 0.0
        %v1671 = vadd.f32 %v1669, %v1670
        %v1672 = vsel %vm619, %v1659, 0.0
        %v1673 = vadd.f32 %v1671, %v1672
        %v1674 = vsel %vm619, %v1660, 0.0
        %v1675 = vadd.f32 %v1673, %v1674
        %v1676 = vrot.slane %v1675, 4
        %v1677 = vadd.f32 %v1675, %v1676
        %v1678 = vrot.slane %v1677, 2
        %v1679 = vadd.f32 %v1677, %v1678
        %v1680 = vrot.slane %v1679, 1
        %v1681 = vadd.f32 %v1679, %v1680
        %v1683 = vsel %vm619, %v1681, 0
        %1685 = vmatprep.subr.mxu0 0.0
        %v1686 = vand.u32 %v655, 4294901760
        %1687 = vmatpush1.msra.mxu0 %v1686
        %1688 = vmatprep.subr.mxu0 0.0
        %v1689 = vand.u32 %v656, 4294901760
        %1690 = vmatpush1.msra.mxu0 %v1689
        %1691 = vmatprep.subr.mxu0 0.0
        %v1692 = vand.u32 %v657, 4294901760
        %1693 = vmatpush1.msra.mxu0 %v1692
        %1694 = vmatprep.subr.mxu0 0.0
        %v1695 = vand.u32 %v658, 4294901760
        %1696 = vmatpush1.msra.mxu0 %v1695
        %1697 = vmatprep.subr.mxu0 0.0
        %1698 = vmatpush1.msra.mxu0 0.0
        %1699 = vmatprep.subr.mxu0 0.0
        %1700 = vmatpush1.msra.mxu0 0.0
        %1701 = vmatprep.subr.mxu0 0.0
        %1702 = vmatpush1.msra.mxu0 0.0
        %1703 = vmatprep.subr.mxu0 0.0
        %1704 = vmatpush1.msra.mxu0 0.0
        %1705 = vmatprep.subr.mxu0 0.0
        %1706 = vmatpush1.msra.mxu0 0.0
        %1707 = vmatprep.subr.mxu0 0.0
        %1708 = vmatpush1.msra.mxu0 0.0
        %1709 = vmatprep.subr.mxu0 0.0
        %1710 = vmatpush1.msra.mxu0 0.0
        %1711 = vmatprep.subr.mxu0 0.0
        %1712 = vmatpush1.msra.mxu0 0.0
        %1713 = vmatprep.subr.mxu0 0.0
        %1714 = vmatpush1.msra.mxu0 0.0
        %1715 = vmatprep.subr.mxu0 0.0
        %1716 = vmatpush1.msra.mxu0 0.0
        %1717 = vmatprep.subr.mxu0 0.0
        %1718 = vmatpush1.msra.mxu0 0.0
        %1719 = vmatprep.subr.mxu0 0.0
        %1720 = vmatpush1.msra.mxu0 0.0
        %1721 = vmatprep.subr.mxu0 0.0
        %1722 = vmatpush1.msra.mxu0 0.0
        %1723 = vmatprep.subr.mxu0 0.0
        %1724 = vmatpush1.msra.mxu0 0.0
        %1725 = vmatprep.subr.mxu0 0.0
        %1726 = vmatpush1.msra.mxu0 0.0
        %1727 = vmatprep.subr.mxu0 0.0
        %1728 = vmatpush1.msra.mxu0 0.0
        %1729 = vmatprep.subr.mxu0 0.0
        %1730 = vmatpush1.msra.mxu0 0.0
        %1731 = vmatprep.subr.mxu0 0.0
        %1732 = vmatpush1.msra.mxu0 0.0
        %1733 = vmatprep.subr.mxu0 0.0
        %1734 = vmatpush1.msra.mxu0 0.0
        %1735 = vmatprep.subr.mxu0 0.0
        %1736 = vmatpush1.msra.mxu0 0.0
        %1737 = vmatprep.subr.mxu0 0.0
        %1738 = vmatpush1.msra.mxu0 0.0
        %1739 = vmatprep.subr.mxu0 0.0
        %1740 = vmatpush1.msra.mxu0 0.0
        %1741 = vmatprep.subr.mxu0 0.0
        %1742 = vmatpush1.msra.mxu0 0.0
        %1743 = vmatprep.subr.mxu0 0.0
        %1744 = vmatpush1.msra.mxu0 0.0
        %1745 = vmatprep.subr.mxu0 0.0
        %1746 = vmatpush1.msra.mxu0 0.0
        %1747 = vmatprep.subr.mxu0 0.0
        %1748 = vmatpush1.msra.mxu0 0.0
        %1749 = vmatprep.subr.mxu0 0.0
        %1750 = vmatpush1.msra.mxu0 0.0
        %1751 = vmatprep.subr.mxu0 0.0
        %1752 = vmatpush1.msra.mxu0 0.0
        %1753 = vmatprep.mubr.f32.mxu0 0.0
        %v1754 = vand.u32 %v1683, 4294901760
        %v1755 = vsub.f32 %v1683, %v1754
        %v1756 = vand.u32 %v1755, 4294901760
        %v1757 = vsub.f32 %v1755, %v1756
        %v1758 = vand.u32 %v1757, 4294901760
        %1759 = vmatmul.mubr.f32.gmra.mrb[0].mxu0 %v1758
        %v1760 = vpop.f32.mrb[0].mxu0
        %v1761 = vadd.f32 0.0, %v1760
        %v1762 = vpop.f32.mrb[0].mxu0
        %1763 = vdwg.mxu0
        %1764 = vmatprep.subr.mxu0 0.0
        %v1765 = vand.u32 %v655, 4294901760
        %v1766 = vsub.f32 %v655, %v1765
        %v1767 = vand.u32 %v1766, 4294901760
        %v1768 = vsub.f32 %v1766, %v1767
        %v1769 = vand.u32 %v1768, 4294901760
        %1770 = vmatpush1.msra.mxu0 %v1769
        %1771 = vmatprep.subr.mxu0 0.0
        %v1772 = vand.u32 %v656, 4294901760
        %v1773 = vsub.f32 %v656, %v1772
        %v1774 = vand.u32 %v1773, 4294901760
        %v1775 = vsub.f32 %v1773, %v1774
        %v1776 = vand.u32 %v1775, 4294901760
        %1777 = vmatpush1.msra.mxu0 %v1776
        %1778 = vmatprep.subr.mxu0 0.0
        %v1779 = vand.u32 %v657, 4294901760
        %v1780 = vsub.f32 %v657, %v1779
        %v1781 = vand.u32 %v1780, 4294901760
        %v1782 = vsub.f32 %v1780, %v1781
        %v1783 = vand.u32 %v1782, 4294901760
        %1784 = vmatpush1.msra.mxu0 %v1783
        %1785 = vmatprep.subr.mxu0 0.0
        %v1786 = vand.u32 %v658, 4294901760
        %v1787 = vsub.f32 %v658, %v1786
        %v1788 = vand.u32 %v1787, 4294901760
        %v1789 = vsub.f32 %v1787, %v1788
        %v1790 = vand.u32 %v1789, 4294901760
        %1791 = vmatpush1.msra.mxu0 %v1790
        %1792 = vmatprep.subr.mxu0 0.0
        %1793 = vmatpush1.msra.mxu0 0.0
        %1794 = vmatprep.subr.mxu0 0.0
        %1795 = vmatpush1.msra.mxu0 0.0
        %1796 = vmatprep.subr.mxu0 0.0
        %1797 = vmatpush1.msra.mxu0 0.0
        %1798 = vmatprep.subr.mxu0 0.0
        %1799 = vmatpush1.msra.mxu0 0.0
        %1800 = vmatprep.subr.mxu0 0.0
        %1801 = vmatpush1.msra.mxu0 0.0
        %1802 = vmatprep.subr.mxu0 0.0
        %1803 = vmatpush1.msra.mxu0 0.0
        %1804 = vmatprep.subr.mxu0 0.0
        %1805 = vmatpush1.msra.mxu0 0.0
        %1806 = vmatprep.subr.mxu0 0.0
        %1807 = vmatpush1.msra.mxu0 0.0
        %1808 = vmatprep.subr.mxu0 0.0
        %1809 = vmatpush1.msra.mxu0 0.0
        %1810 = vmatprep.subr.mxu0 0.0
        %1811 = vmatpush1.msra.mxu0 0.0
        %1812 = vmatprep.subr.mxu0 0.0
        %1813 = vmatpush1.msra.mxu0 0.0
        %1814 = vmatprep.subr.mxu0 0.0
        %1815 = vmatpush1.msra.mxu0 0.0
        %1816 = vmatprep.subr.mxu0 0.0
        %1817 = vmatpush1.msra.mxu0 0.0
        %1818 = vmatprep.subr.mxu0 0.0
        %1819 = vmatpush1.msra.mxu0 0.0
        %1820 = vmatprep.subr.mxu0 0.0
        %1821 = vmatpush1.msra.mxu0 0.0
        %1822 = vmatprep.subr.mxu0 0.0
        %1823 = vmatpush1.msra.mxu0 0.0
        %1824 = vmatprep.subr.mxu0 0.0
        %1825 = vmatpush1.msra.mxu0 0.0
        %1826 = vmatprep.subr.mxu0 0.0
        %1827 = vmatpush1.msra.mxu0 0.0
        %1828 = vmatprep.subr.mxu0 0.0
        %1829 = vmatpush1.msra.mxu0 0.0
        %1830 = vmatprep.subr.mxu0 0.0
        %1831 = vmatpush1.msra.mxu0 0.0
        %1832 = vmatprep.subr.mxu0 0.0
        %1833 = vmatpush1.msra.mxu0 0.0
        %1834 = vmatprep.subr.mxu0 0.0
        %1835 = vmatpush1.msra.mxu0 0.0
        %1836 = vmatprep.subr.mxu0 0.0
        %1837 = vmatpush1.msra.mxu0 0.0
        %1838 = vmatprep.subr.mxu0 0.0
        %1839 = vmatpush1.msra.mxu0 0.0
        %1840 = vmatprep.subr.mxu0 0.0
        %1841 = vmatpush1.msra.mxu0 0.0
        %1842 = vmatprep.subr.mxu0 0.0
        %1843 = vmatpush1.msra.mxu0 0.0
        %1844 = vmatprep.subr.mxu0 0.0
        %1845 = vmatpush1.msra.mxu0 0.0
        %1846 = vmatprep.subr.mxu0 0.0
        %1847 = vmatpush1.msra.mxu0 0.0
        %1848 = vmatprep.mubr.f32.mxu0 0.0
        %v1849 = vand.u32 %v1683, 4294901760
        %1850 = vmatmul.mubr.f32.gmra.mrb[0].mxu0 %v1849
        %v1851 = vpop.f32.mrb[0].mxu0
        %v1852 = vadd.f32 %v1761, %v1851
        %v1853 = vpop.f32.mrb[0].mxu0
        %1854 = vdwg.mxu0
        %1855 = vmatprep.subr.mxu0 0.0
        %v1856 = vand.u32 %v655, 4294901760
        %v1857 = vsub.f32 %v655, %v1856
        %1858 = vmatpush1.msra.mxu0 %v1857
        %1859 = vmatprep.subr.mxu0 0.0
        %v1860 = vand.u32 %v656, 4294901760
        %v1861 = vsub.f32 %v656, %v1860
        %1862 = vmatpush1.msra.mxu0 %v1861
        %1863 = vmatprep.subr.mxu0 0.0
        %v1864 = vand.u32 %v657, 4294901760
        %v1865 = vsub.f32 %v657, %v1864
        %1866 = vmatpush1.msra.mxu0 %v1865
        %1867 = vmatprep.subr.mxu0 0.0
        %v1868 = vand.u32 %v658, 4294901760
        %v1869 = vsub.f32 %v658, %v1868
        %1870 = vmatpush1.msra.mxu0 %v1869
        %1871 = vmatprep.subr.mxu0 0.0
        %1872 = vmatpush1.msra.mxu0 0.0
        %1873 = vmatprep.subr.mxu0 0.0
        %1874 = vmatpush1.msra.mxu0 0.0
        %1875 = vmatprep.subr.mxu0 0.0
        %1876 = vmatpush1.msra.mxu0 0.0
        %1877 = vmatprep.subr.mxu0 0.0
        %1878 = vmatpush1.msra.mxu0 0.0
        %1879 = vmatprep.subr.mxu0 0.0
        %1880 = vmatpush1.msra.mxu0 0.0
        %1881 = vmatprep.subr.mxu0 0.0
        %1882 = vmatpush1.msra.mxu0 0.0
        %1883 = vmatprep.subr.mxu0 0.0
        %1884 = vmatpush1.msra.mxu0 0.0
        %1885 = vmatprep.subr.mxu0 0.0
        %1886 = vmatpush1.msra.mxu0 0.0
        %1887 = vmatprep.subr.mxu0 0.0
        %1888 = vmatpush1.msra.mxu0 0.0
        %1889 = vmatprep.subr.mxu0 0.0
        %1890 = vmatpush1.msra.mxu0 0.0
        %1891 = vmatprep.subr.mxu0 0.0
        %1892 = vmatpush1.msra.mxu0 0.0
        %1893 = vmatprep.subr.mxu0 0.0
        %1894 = vmatpush1.msra.mxu0 0.0
        %1895 = vmatprep.subr.mxu0 0.0
        %1896 = vmatpush1.msra.mxu0 0.0
        %1897 = vmatprep.subr.mxu0 0.0
        %1898 = vmatpush1.msra.mxu0 0.0
        %1899 = vmatprep.subr.mxu0 0.0
        %1900 = vmatpush1.msra.mxu0 0.0
        %1901 = vmatprep.subr.mxu0 0.0
        %1902 = vmatpush1.msra.mxu0 0.0
        %1903 = vmatprep.subr.mxu0 0.0
        %1904 = vmatpush1.msra.mxu0 0.0
        %1905 = vmatprep.subr.mxu0 0.0
        %1906 = vmatpush1.msra.mxu0 0.0
        %1907 = vmatprep.subr.mxu0 0.0
        %1908 = vmatpush1.msra.mxu0 0.0
        %1909 = vmatprep.subr.mxu0 0.0
        %1910 = vmatpush1.msra.mxu0 0.0
        %1911 = vmatprep.subr.mxu0 0.0
        %1912 = vmatpush1.msra.mxu0 0.0
        %1913 = vmatprep.subr.mxu0 0.0
        %1914 = vmatpush1.msra.mxu0 0.0
        %1915 = vmatprep.subr.mxu0 0.0
        %1916 = vmatpush1.msra.mxu0 0.0
        %1917 = vmatprep.subr.mxu0 0.0
        %1918 = vmatpush1.msra.mxu0 0.0
        %1919 = vmatprep.subr.mxu0 0.0
        %1920 = vmatpush1.msra.mxu0 0.0
        %1921 = vmatprep.subr.mxu0 0.0
        %1922 = vmatpush1.msra.mxu0 0.0
        %1923 = vmatprep.subr.mxu0 0.0
        %1924 = vmatpush1.msra.mxu0 0.0
        %1925 = vmatprep.subr.mxu0 0.0
        %1926 = vmatpush1.msra.mxu0 0.0
        %1927 = vmatprep.mubr.f32.mxu0 0.0
        %v1928 = vand.u32 %v1683, 4294901760
        %v1929 = vsub.f32 %v1683, %v1928
        %1930 = vmatmul.mubr.f32.gmra.mrb[0].mxu0 %v1929
        %v1931 = vpop.f32.mrb[0].mxu0
        %v1932 = vadd.f32 %v1852, %v1931
        %v1933 = vpop.f32.mrb[0].mxu0
        %1934 = vdwg.mxu0
        %1935 = vmatprep.subr.mxu0 0.0
        %v1936 = vand.u32 %v655, 4294901760
        %1937 = vmatpush1.msra.mxu0 %v1936
        %1938 = vmatprep.subr.mxu0 0.0
        %v1939 = vand.u32 %v656, 4294901760
        %1940 = vmatpush1.msra.mxu0 %v1939
        %1941 = vmatprep.subr.mxu0 0.0
        %v1942 = vand.u32 %v657, 4294901760
        %1943 = vmatpush1.msra.mxu0 %v1942
        %1944 = vmatprep.subr.mxu0 0.0
        %v1945 = vand.u32 %v658, 4294901760
        %1946 = vmatpush1.msra.mxu0 %v1945
        %1947 = vmatprep.subr.mxu0 0.0
        %1948 = vmatpush1.msra.mxu0 0.0
        %1949 = vmatprep.subr.mxu0 0.0
        %1950 = vmatpush1.msra.mxu0 0.0
        %1951 = vmatprep.subr.mxu0 0.0
        %1952 = vmatpush1.msra.mxu0 0.0
        %1953 = vmatprep.subr.mxu0 0.0
        %1954 = vmatpush1.msra.mxu0 0.0
        %1955 = vmatprep.subr.mxu0 0.0
        %1956 = vmatpush1.msra.mxu0 0.0
        %1957 = vmatprep.subr.mxu0 0.0
        %1958 = vmatpush1.msra.mxu0 0.0
        %1959 = vmatprep.subr.mxu0 0.0
        %1960 = vmatpush1.msra.mxu0 0.0
        %1961 = vmatprep.subr.mxu0 0.0
        %1962 = vmatpush1.msra.mxu0 0.0
        %1963 = vmatprep.subr.mxu0 0.0
        %1964 = vmatpush1.msra.mxu0 0.0
        %1965 = vmatprep.subr.mxu0 0.0
        %1966 = vmatpush1.msra.mxu0 0.0
        %1967 = vmatprep.subr.mxu0 0.0
        %1968 = vmatpush1.msra.mxu0 0.0
        %1969 = vmatprep.subr.mxu0 0.0
        %1970 = vmatpush1.msra.mxu0 0.0
        %1971 = vmatprep.subr.mxu0 0.0
        %1972 = vmatpush1.msra.mxu0 0.0
        %1973 = vmatprep.subr.mxu0 0.0
        %1974 = vmatpush1.msra.mxu0 0.0
        %1975 = vmatprep.subr.mxu0 0.0
        %1976 = vmatpush1.msra.mxu0 0.0
        %1977 = vmatprep.subr.mxu0 0.0
        %1978 = vmatpush1.msra.mxu0 0.0
        %1979 = vmatprep.subr.mxu0 0.0
        %1980 = vmatpush1.msra.mxu0 0.0
        %1981 = vmatprep.subr.mxu0 0.0
        %1982 = vmatpush1.msra.mxu0 0.0
        %1983 = vmatprep.subr.mxu0 0.0
        %1984 = vmatpush1.msra.mxu0 0.0
        %1985 = vmatprep.subr.mxu0 0.0
        %1986 = vmatpush1.msra.mxu0 0.0
        %1987 = vmatprep.subr.mxu0 0.0
        %1988 = vmatpush1.msra.mxu0 0.0
        %1989 = vmatprep.subr.mxu0 0.0
        %1990 = vmatpush1.msra.mxu0 0.0
        %1991 = vmatprep.subr.mxu0 0.0
        %1992 = vmatpush1.msra.mxu0 0.0
        %1993 = vmatprep.subr.mxu0 0.0
        %1994 = vmatpush1.msra.mxu0 0.0
        %1995 = vmatprep.subr.mxu0 0.0
        %1996 = vmatpush1.msra.mxu0 0.0
        %1997 = vmatprep.subr.mxu0 0.0
        %1998 = vmatpush1.msra.mxu0 0.0
        %1999 = vmatprep.subr.mxu0 0.0
        %2000 = vmatpush1.msra.mxu0 0.0
        %2001 = vmatprep.subr.mxu0 0.0
        %2002 = vmatpush1.msra.mxu0 0.0
        %2003 = vmatprep.mubr.f32.mxu0 0.0
        %v2004 = vand.u32 %v1683, 4294901760
        %v2005 = vsub.f32 %v1683, %v2004
        %v2006 = vand.u32 %v2005, 4294901760
        %2007 = vmatmul.mubr.f32.gmra.mrb[0].mxu0 %v2006
        %v2008 = vpop.f32.mrb[0].mxu0
        %v2009 = vadd.f32 %v1932, %v2008
        %v2010 = vpop.f32.mrb[0].mxu0
        %2011 = vdwg.mxu0
        %2012 = vmatprep.subr.mxu0 0.0
        %v2013 = vand.u32 %v655, 4294901760
        %v2014 = vsub.f32 %v655, %v2013
        %v2015 = vand.u32 %v2014, 4294901760
        %2016 = vmatpush1.msra.mxu0 %v2015
        %2017 = vmatprep.subr.mxu0 0.0
        %v2018 = vand.u32 %v656, 4294901760
        %v2019 = vsub.f32 %v656, %v2018
        %v2020 = vand.u32 %v2019, 4294901760
        %2021 = vmatpush1.msra.mxu0 %v2020
        %2022 = vmatprep.subr.mxu0 0.0
        %v2023 = vand.u32 %v657, 4294901760
        %v2024 = vsub.f32 %v657, %v2023
        %v2025 = vand.u32 %v2024, 4294901760
        %2026 = vmatpush1.msra.mxu0 %v2025
        %2027 = vmatprep.subr.mxu0 0.0
        %v2028 = vand.u32 %v658, 4294901760
        %v2029 = vsub.f32 %v658, %v2028
        %v2030 = vand.u32 %v2029, 4294901760
        %2031 = vmatpush1.msra.mxu0 %v2030
        %2032 = vmatprep.subr.mxu0 0.0
        %2033 = vmatpush1.msra.mxu0 0.0
        %2034 = vmatprep.subr.mxu0 0.0
        %2035 = vmatpush1.msra.mxu0 0.0
        %2036 = vmatprep.subr.mxu0 0.0
        %2037 = vmatpush1.msra.mxu0 0.0
        %2038 = vmatprep.subr.mxu0 0.0
        %2039 = vmatpush1.msra.mxu0 0.0
        %2040 = vmatprep.subr.mxu0 0.0
        %2041 = vmatpush1.msra.mxu0 0.0
        %2042 = vmatprep.subr.mxu0 0.0
        %2043 = vmatpush1.msra.mxu0 0.0
        %2044 = vmatprep.subr.mxu0 0.0
        %2045 = vmatpush1.msra.mxu0 0.0
        %2046 = vmatprep.subr.mxu0 0.0
        %2047 = vmatpush1.msra.mxu0 0.0
        %2048 = vmatprep.subr.mxu0 0.0
        %2049 = vmatpush1.msra.mxu0 0.0
        %2050 = vmatprep.subr.mxu0 0.0
        %2051 = vmatpush1.msra.mxu0 0.0
        %2052 = vmatprep.subr.mxu0 0.0
        %2053 = vmatpush1.msra.mxu0 0.0
        %2054 = vmatprep.subr.mxu0 0.0
        %2055 = vmatpush1.msra.mxu0 0.0
        %2056 = vmatprep.subr.mxu0 0.0
        %2057 = vmatpush1.msra.mxu0 0.0
        %2058 = vmatprep.subr.mxu0 0.0
        %2059 = vmatpush1.msra.mxu0 0.0
        %2060 = vmatprep.subr.mxu0 0.0
        %2061 = vmatpush1.msra.mxu0 0.0
        %2062 = vmatprep.subr.mxu0 0.0
        %2063 = vmatpush1.msra.mxu0 0.0
        %2064 = vmatprep.subr.mxu0 0.0
        %2065 = vmatpush1.msra.mxu0 0.0
        %2066 = vmatprep.subr.mxu0 0.0
        %2067 = vmatpush1.msra.mxu0 0.0
        %2068 = vmatprep.subr.mxu0 0.0
        %2069 = vmatpush1.msra.mxu0 0.0
        %2070 = vmatprep.subr.mxu0 0.0
        %2071 = vmatpush1.msra.mxu0 0.0
        %2072 = vmatprep.subr.mxu0 0.0
        %2073 = vmatpush1.msra.mxu0 0.0
        %2074 = vmatprep.subr.mxu0 0.0
        %2075 = vmatpush1.msra.mxu0 0.0
        %2076 = vmatprep.subr.mxu0 0.0
        %2077 = vmatpush1.msra.mxu0 0.0
        %2078 = vmatprep.subr.mxu0 0.0
        %2079 = vmatpush1.msra.mxu0 0.0
        %2080 = vmatprep.subr.mxu0 0.0
        %2081 = vmatpush1.msra.mxu0 0.0
        %2082 = vmatprep.subr.mxu0 0.0
        %2083 = vmatpush1.msra.mxu0 0.0
        %2084 = vmatprep.subr.mxu0 0.0
        %2085 = vmatpush1.msra.mxu0 0.0
        %2086 = vmatprep.subr.mxu0 0.0
        %2087 = vmatpush1.msra.mxu0 0.0
        %2088 = vmatprep.mubr.f32.mxu0 0.0
        %v2089 = vand.u32 %v1683, 4294901760
        %2090 = vmatmul.mubr.f32.gmra.mrb[0].mxu0 %v2089
        %v2091 = vpop.f32.mrb[0].mxu0
        %v2092 = vadd.f32 %v2009, %v2091
        %v2093 = vpop.f32.mrb[0].mxu0
        %2094 = vdwg.mxu0
        %2095 = vmatprep.subr.mxu0 0.0
        %v2096 = vand.u32 %v655, 4294901760
        %2097 = vmatpush1.msra.mxu0 %v2096
        %2098 = vmatprep.subr.mxu0 0.0
        %v2099 = vand.u32 %v656, 4294901760
        %2100 = vmatpush1.msra.mxu0 %v2099
        %2101 = vmatprep.subr.mxu0 0.0
        %v2102 = vand.u32 %v657, 4294901760
        %2103 = vmatpush1.msra.mxu0 %v2102
        %2104 = vmatprep.subr.mxu0 0.0
        %v2105 = vand.u32 %v658, 4294901760
        %2106 = vmatpush1.msra.mxu0 %v2105
        %2107 = vmatprep.subr.mxu0 0.0
        %2108 = vmatpush1.msra.mxu0 0.0
        %2109 = vmatprep.subr.mxu0 0.0
        %2110 = vmatpush1.msra.mxu0 0.0
        %2111 = vmatprep.subr.mxu0 0.0
        %2112 = vmatpush1.msra.mxu0 0.0
        %2113 = vmatprep.subr.mxu0 0.0
        %2114 = vmatpush1.msra.mxu0 0.0
        %2115 = vmatprep.subr.mxu0 0.0
        %2116 = vmatpush1.msra.mxu0 0.0
        %2117 = vmatprep.subr.mxu0 0.0
        %2118 = vmatpush1.msra.mxu0 0.0
        %2119 = vmatprep.subr.mxu0 0.0
        %2120 = vmatpush1.msra.mxu0 0.0
        %2121 = vmatprep.subr.mxu0 0.0
        %2122 = vmatpush1.msra.mxu0 0.0
        %2123 = vmatprep.subr.mxu0 0.0
        %2124 = vmatpush1.msra.mxu0 0.0
        %2125 = vmatprep.subr.mxu0 0.0
        %2126 = vmatpush1.msra.mxu0 0.0
        %2127 = vmatprep.subr.mxu0 0.0
        %2128 = vmatpush1.msra.mxu0 0.0
        %2129 = vmatprep.subr.mxu0 0.0
        %2130 = vmatpush1.msra.mxu0 0.0
        %2131 = vmatprep.subr.mxu0 0.0
        %2132 = vmatpush1.msra.mxu0 0.0
        %2133 = vmatprep.subr.mxu0 0.0
        %2134 = vmatpush1.msra.mxu0 0.0
        %2135 = vmatprep.subr.mxu0 0.0
        %2136 = vmatpush1.msra.mxu0 0.0
        %2137 = vmatprep.subr.mxu0 0.0
        %2138 = vmatpush1.msra.mxu0 0.0
        %2139 = vmatprep.subr.mxu0 0.0
        %2140 = vmatpush1.msra.mxu0 0.0
        %2141 = vmatprep.subr.mxu0 0.0
        %2142 = vmatpush1.msra.mxu0 0.0
        %2143 = vmatprep.subr.mxu0 0.0
        %2144 = vmatpush1.msra.mxu0 0.0
        %2145 = vmatprep.subr.mxu0 0.0
        %2146 = vmatpush1.msra.mxu0 0.0
        %2147 = vmatprep.subr.mxu0 0.0
        %2148 = vmatpush1.msra.mxu0 0.0
        %2149 = vmatprep.subr.mxu0 0.0
        %2150 = vmatpush1.msra.mxu0 0.0
        %2151 = vmatprep.subr.mxu0 0.0
        %2152 = vmatpush1.msra.mxu0 0.0
        %2153 = vmatprep.subr.mxu0 0.0
        %2154 = vmatpush1.msra.mxu0 0.0
        %2155 = vmatprep.subr.mxu0 0.0
        %2156 = vmatpush1.msra.mxu0 0.0
        %2157 = vmatprep.subr.mxu0 0.0
        %2158 = vmatpush1.msra.mxu0 0.0
        %2159 = vmatprep.subr.mxu0 0.0
        %2160 = vmatpush1.msra.mxu0 0.0
        %2161 = vmatprep.subr.mxu0 0.0
        %2162 = vmatpush1.msra.mxu0 0.0
        %2163 = vmatprep.mubr.f32.mxu0 0.0
        %v2164 = vand.u32 %v1683, 4294901760
        %2165 = vmatmul.mubr.f32.gmra.mrb[0].mxu0 %v2164
        %v2166 = vpop.f32.mrb[0].mxu0
        %v2167 = vadd.f32 %v2092, %v2166
        %v2168 = vpop.f32.mrb[0].mxu0
        %2169 = vdwg.mxu0
        %v2170 = vmul.f32 %v2167, %v1147
        %v2172 = vsel %vm619, %v2170, 0
        %2174 = vmatprep.subr.mxu0 0.0
        %v2175 = vand.u32 %v1149, 4294901760
        %2176 = vmatpush1.msra.mxu0 %v2175
        %2177 = vmatprep.subr.mxu0 0.0
        %v2178 = vand.u32 %v1150, 4294901760
        %2179 = vmatpush1.msra.mxu0 %v2178
        %2180 = vmatprep.subr.mxu0 0.0
        %v2181 = vand.u32 %v1151, 4294901760
        %2182 = vmatpush1.msra.mxu0 %v2181
        %2183 = vmatprep.subr.mxu0 0.0
        %v2184 = vand.u32 %v1152, 4294901760
        %2185 = vmatpush1.msra.mxu0 %v2184
        %2186 = vmatprep.subr.mxu0 0.0
        %2187 = vmatpush1.msra.mxu0 0.0
        %2188 = vmatprep.subr.mxu0 0.0
        %2189 = vmatpush1.msra.mxu0 0.0
        %2190 = vmatprep.subr.mxu0 0.0
        %2191 = vmatpush1.msra.mxu0 0.0
        %2192 = vmatprep.subr.mxu0 0.0
        %2193 = vmatpush1.msra.mxu0 0.0
        %2194 = vmatprep.subr.mxu0 0.0
        %2195 = vmatpush1.msra.mxu0 0.0
        %2196 = vmatprep.subr.mxu0 0.0
        %2197 = vmatpush1.msra.mxu0 0.0
        %2198 = vmatprep.subr.mxu0 0.0
        %2199 = vmatpush1.msra.mxu0 0.0
        %2200 = vmatprep.subr.mxu0 0.0
        %2201 = vmatpush1.msra.mxu0 0.0
        %2202 = vmatprep.subr.mxu0 0.0
        %2203 = vmatpush1.msra.mxu0 0.0
        %2204 = vmatprep.subr.mxu0 0.0
        %2205 = vmatpush1.msra.mxu0 0.0
        %2206 = vmatprep.subr.mxu0 0.0
        %2207 = vmatpush1.msra.mxu0 0.0
        %2208 = vmatprep.subr.mxu0 0.0
        %2209 = vmatpush1.msra.mxu0 0.0
        %2210 = vmatprep.subr.mxu0 0.0
        %2211 = vmatpush1.msra.mxu0 0.0
        %2212 = vmatprep.subr.mxu0 0.0
        %2213 = vmatpush1.msra.mxu0 0.0
        %2214 = vmatprep.subr.mxu0 0.0
        %2215 = vmatpush1.msra.mxu0 0.0
        %2216 = vmatprep.subr.mxu0 0.0
        %2217 = vmatpush1.msra.mxu0 0.0
        %2218 = vmatprep.subr.mxu0 0.0
        %2219 = vmatpush1.msra.mxu0 0.0
        %2220 = vmatprep.subr.mxu0 0.0
        %2221 = vmatpush1.msra.mxu0 0.0
        %2222 = vmatprep.subr.mxu0 0.0
        %2223 = vmatpush1.msra.mxu0 0.0
        %2224 = vmatprep.subr.mxu0 0.0
        %2225 = vmatpush1.msra.mxu0 0.0
        %2226 = vmatprep.subr.mxu0 0.0
        %2227 = vmatpush1.msra.mxu0 0.0
        %2228 = vmatprep.subr.mxu0 0.0
        %2229 = vmatpush1.msra.mxu0 0.0
        %2230 = vmatprep.subr.mxu0 0.0
        %2231 = vmatpush1.msra.mxu0 0.0
        %2232 = vmatprep.subr.mxu0 0.0
        %2233 = vmatpush1.msra.mxu0 0.0
        %2234 = vmatprep.subr.mxu0 0.0
        %2235 = vmatpush1.msra.mxu0 0.0
        %2236 = vmatprep.subr.mxu0 0.0
        %2237 = vmatpush1.msra.mxu0 0.0
        %2238 = vmatprep.subr.mxu0 0.0
        %2239 = vmatpush1.msra.mxu0 0.0
        %2240 = vmatprep.subr.mxu0 0.0
        %2241 = vmatpush1.msra.mxu0 0.0
        %2242 = vmatprep.mubr.f32.mxu0 0.0
        %v2243 = vand.u32 %v2172, 4294901760
        %v2244 = vsub.f32 %v2172, %v2243
        %v2245 = vand.u32 %v2244, 4294901760
        %v2246 = vsub.f32 %v2244, %v2245
        %v2247 = vand.u32 %v2246, 4294901760
        %2248 = vmatmul.mubr.f32.gmra.mrb[0].mxu0 %v2247
        %v2249 = vpop.f32.mrb[0].mxu0
        %v2250 = vadd.f32 1e-06, %v2249
        %v2251 = vpop.f32.mrb[0].mxu0
        %2252 = vdwg.mxu0
        %2253 = vmatprep.subr.mxu0 0.0
        %v2254 = vand.u32 %v1149, 4294901760
        %v2255 = vsub.f32 %v1149, %v2254
        %v2256 = vand.u32 %v2255, 4294901760
        %v2257 = vsub.f32 %v2255, %v2256
        %v2258 = vand.u32 %v2257, 4294901760
        %2259 = vmatpush1.msra.mxu0 %v2258
        %2260 = vmatprep.subr.mxu0 0.0
        %v2261 = vand.u32 %v1150, 4294901760
        %v2262 = vsub.f32 %v1150, %v2261
        %v2263 = vand.u32 %v2262, 4294901760
        %v2264 = vsub.f32 %v2262, %v2263
        %v2265 = vand.u32 %v2264, 4294901760
        %2266 = vmatpush1.msra.mxu0 %v2265
        %2267 = vmatprep.subr.mxu0 0.0
        %v2268 = vand.u32 %v1151, 4294901760
        %v2269 = vsub.f32 %v1151, %v2268
        %v2270 = vand.u32 %v2269, 4294901760
        %v2271 = vsub.f32 %v2269, %v2270
        %v2272 = vand.u32 %v2271, 4294901760
        %2273 = vmatpush1.msra.mxu0 %v2272
        %2274 = vmatprep.subr.mxu0 0.0
        %v2275 = vand.u32 %v1152, 4294901760
        %v2276 = vsub.f32 %v1152, %v2275
        %v2277 = vand.u32 %v2276, 4294901760
        %v2278 = vsub.f32 %v2276, %v2277
        %v2279 = vand.u32 %v2278, 4294901760
        %2280 = vmatpush1.msra.mxu0 %v2279
        %2281 = vmatprep.subr.mxu0 0.0
        %2282 = vmatpush1.msra.mxu0 0.0
        %2283 = vmatprep.subr.mxu0 0.0
        %2284 = vmatpush1.msra.mxu0 0.0
        %2285 = vmatprep.subr.mxu0 0.0
        %2286 = vmatpush1.msra.mxu0 0.0
        %2287 = vmatprep.subr.mxu0 0.0
        %2288 = vmatpush1.msra.mxu0 0.0
        %2289 = vmatprep.subr.mxu0 0.0
        %2290 = vmatpush1.msra.mxu0 0.0
        %2291 = vmatprep.subr.mxu0 0.0
        %2292 = vmatpush1.msra.mxu0 0.0
        %2293 = vmatprep.subr.mxu0 0.0
        %2294 = vmatpush1.msra.mxu0 0.0
        %2295 = vmatprep.subr.mxu0 0.0
        %2296 = vmatpush1.msra.mxu0 0.0
        %2297 = vmatprep.subr.mxu0 0.0
        %2298 = vmatpush1.msra.mxu0 0.0
        %2299 = vmatprep.subr.mxu0 0.0
        %2300 = vmatpush1.msra.mxu0 0.0
        %2301 = vmatprep.subr.mxu0 0.0
        %2302 = vmatpush1.msra.mxu0 0.0
        %2303 = vmatprep.subr.mxu0 0.0
        %2304 = vmatpush1.msra.mxu0 0.0
        %2305 = vmatprep.subr.mxu0 0.0
        %2306 = vmatpush1.msra.mxu0 0.0
        %2307 = vmatprep.subr.mxu0 0.0
        %2308 = vmatpush1.msra.mxu0 0.0
        %2309 = vmatprep.subr.mxu0 0.0
        %2310 = vmatpush1.msra.mxu0 0.0
        %2311 = vmatprep.subr.mxu0 0.0
        %2312 = vmatpush1.msra.mxu0 0.0
        %2313 = vmatprep.subr.mxu0 0.0
        %2314 = vmatpush1.msra.mxu0 0.0
        %2315 = vmatprep.subr.mxu0 0.0
        %2316 = vmatpush1.msra.mxu0 0.0
        %2317 = vmatprep.subr.mxu0 0.0
        %2318 = vmatpush1.msra.mxu0 0.0
        %2319 = vmatprep.subr.mxu0 0.0
        %2320 = vmatpush1.msra.mxu0 0.0
        %2321 = vmatprep.subr.mxu0 0.0
        %2322 = vmatpush1.msra.mxu0 0.0
        %2323 = vmatprep.subr.mxu0 0.0
        %2324 = vmatpush1.msra.mxu0 0.0
        %2325 = vmatprep.subr.mxu0 0.0
        %2326 = vmatpush1.msra.mxu0 0.0
        %2327 = vmatprep.subr.mxu0 0.0
        %2328 = vmatpush1.msra.mxu0 0.0
        %2329 = vmatprep.subr.mxu0 0.0
        %2330 = vmatpush1.msra.mxu0 0.0
        %2331 = vmatprep.subr.mxu0 0.0
        %2332 = vmatpush1.msra.mxu0 0.0
        %2333 = vmatprep.subr.mxu0 0.0
        %2334 = vmatpush1.msra.mxu0 0.0
        %2335 = vmatprep.subr.mxu0 0.0
        %2336 = vmatpush1.msra.mxu0 0.0
        %2337 = vmatprep.mubr.f32.mxu0 0.0
        %v2338 = vand.u32 %v2172, 4294901760
        %2339 = vmatmul.mubr.f32.gmra.mrb[0].mxu0 %v2338
        %v2340 = vpop.f32.mrb[0].mxu0
        %v2341 = vadd.f32 %v2250, %v2340
        %v2342 = vpop.f32.mrb[0].mxu0
        %2343 = vdwg.mxu0
        %2344 = vmatprep.subr.mxu0 0.0
        %v2345 = vand.u32 %v1149, 4294901760
        %v2346 = vsub.f32 %v1149, %v2345
        %2347 = vmatpush1.msra.mxu0 %v2346
        %2348 = vmatprep.subr.mxu0 0.0
        %v2349 = vand.u32 %v1150, 4294901760
        %v2350 = vsub.f32 %v1150, %v2349
        %2351 = vmatpush1.msra.mxu0 %v2350
        %2352 = vmatprep.subr.mxu0 0.0
        %v2353 = vand.u32 %v1151, 4294901760
        %v2354 = vsub.f32 %v1151, %v2353
        %2355 = vmatpush1.msra.mxu0 %v2354
        %2356 = vmatprep.subr.mxu0 0.0
        %v2357 = vand.u32 %v1152, 4294901760
        %v2358 = vsub.f32 %v1152, %v2357
        %2359 = vmatpush1.msra.mxu0 %v2358
        %2360 = vmatprep.subr.mxu0 0.0
        %2361 = vmatpush1.msra.mxu0 0.0
        %2362 = vmatprep.subr.mxu0 0.0
        %2363 = vmatpush1.msra.mxu0 0.0
        %2364 = vmatprep.subr.mxu0 0.0
        %2365 = vmatpush1.msra.mxu0 0.0
        %2366 = vmatprep.subr.mxu0 0.0
        %2367 = vmatpush1.msra.mxu0 0.0
        %2368 = vmatprep.subr.mxu0 0.0
        %2369 = vmatpush1.msra.mxu0 0.0
        %2370 = vmatprep.subr.mxu0 0.0
        %2371 = vmatpush1.msra.mxu0 0.0
        %2372 = vmatprep.subr.mxu0 0.0
        %2373 = vmatpush1.msra.mxu0 0.0
        %2374 = vmatprep.subr.mxu0 0.0
        %2375 = vmatpush1.msra.mxu0 0.0
        %2376 = vmatprep.subr.mxu0 0.0
        %2377 = vmatpush1.msra.mxu0 0.0
        %2378 = vmatprep.subr.mxu0 0.0
        %2379 = vmatpush1.msra.mxu0 0.0
        %2380 = vmatprep.subr.mxu0 0.0
        %2381 = vmatpush1.msra.mxu0 0.0
        %2382 = vmatprep.subr.mxu0 0.0
        %2383 = vmatpush1.msra.mxu0 0.0
        %2384 = vmatprep.subr.mxu0 0.0
        %2385 = vmatpush1.msra.mxu0 0.0
        %2386 = vmatprep.subr.mxu0 0.0
        %2387 = vmatpush1.msra.mxu0 0.0
        %2388 = vmatprep.subr.mxu0 0.0
        %2389 = vmatpush1.msra.mxu0 0.0
        %2390 = vmatprep.subr.mxu0 0.0
        %2391 = vmatpush1.msra.mxu0 0.0
        %2392 = vmatprep.subr.mxu0 0.0
        %2393 = vmatpush1.msra.mxu0 0.0
        %2394 = vmatprep.subr.mxu0 0.0
        %2395 = vmatpush1.msra.mxu0 0.0
        %2396 = vmatprep.subr.mxu0 0.0
        %2397 = vmatpush1.msra.mxu0 0.0
        %2398 = vmatprep.subr.mxu0 0.0
        %2399 = vmatpush1.msra.mxu0 0.0
        %2400 = vmatprep.subr.mxu0 0.0
        %2401 = vmatpush1.msra.mxu0 0.0
        %2402 = vmatprep.subr.mxu0 0.0
        %2403 = vmatpush1.msra.mxu0 0.0
        %2404 = vmatprep.subr.mxu0 0.0
        %2405 = vmatpush1.msra.mxu0 0.0
        %2406 = vmatprep.subr.mxu0 0.0
        %2407 = vmatpush1.msra.mxu0 0.0
        %2408 = vmatprep.subr.mxu0 0.0
        %2409 = vmatpush1.msra.mxu0 0.0
        %2410 = vmatprep.subr.mxu0 0.0
        %2411 = vmatpush1.msra.mxu0 0.0
        %2412 = vmatprep.subr.mxu0 0.0
        %2413 = vmatpush1.msra.mxu0 0.0
        %2414 = vmatprep.subr.mxu0 0.0
        %2415 = vmatpush1.msra.mxu0 0.0
        %2416 = vmatprep.mubr.f32.mxu0 0.0
        %v2417 = vand.u32 %v2172, 4294901760
        %v2418 = vsub.f32 %v2172, %v2417
        %2419 = vmatmul.mubr.f32.gmra.mrb[0].mxu0 %v2418
        %v2420 = vpop.f32.mrb[0].mxu0
        %v2421 = vadd.f32 %v2341, %v2420
        %v2422 = vpop.f32.mrb[0].mxu0
        %2423 = vdwg.mxu0
        %2424 = vmatprep.subr.mxu0 0.0
        %v2425 = vand.u32 %v1149, 4294901760
        %2426 = vmatpush1.msra.mxu0 %v2425
        %2427 = vmatprep.subr.mxu0 0.0
        %v2428 = vand.u32 %v1150, 4294901760
        %2429 = vmatpush1.msra.mxu0 %v2428
        %2430 = vmatprep.subr.mxu0 0.0
        %v2431 = vand.u32 %v1151, 4294901760
        %2432 = vmatpush1.msra.mxu0 %v2431
        %2433 = vmatprep.subr.mxu0 0.0
        %v2434 = vand.u32 %v1152, 4294901760
        %2435 = vmatpush1.msra.mxu0 %v2434
        %2436 = vmatprep.subr.mxu0 0.0
        %2437 = vmatpush1.msra.mxu0 0.0
        %2438 = vmatprep.subr.mxu0 0.0
        %2439 = vmatpush1.msra.mxu0 0.0
        %2440 = vmatprep.subr.mxu0 0.0
        %2441 = vmatpush1.msra.mxu0 0.0
        %2442 = vmatprep.subr.mxu0 0.0
        %2443 = vmatpush1.msra.mxu0 0.0
        %2444 = vmatprep.subr.mxu0 0.0
        %2445 = vmatpush1.msra.mxu0 0.0
        %2446 = vmatprep.subr.mxu0 0.0
        %2447 = vmatpush1.msra.mxu0 0.0
        %2448 = vmatprep.subr.mxu0 0.0
        %2449 = vmatpush1.msra.mxu0 0.0
        %2450 = vmatprep.subr.mxu0 0.0
        %2451 = vmatpush1.msra.mxu0 0.0
        %2452 = vmatprep.subr.mxu0 0.0
        %2453 = vmatpush1.msra.mxu0 0.0
        %2454 = vmatprep.subr.mxu0 0.0
        %2455 = vmatpush1.msra.mxu0 0.0
        %2456 = vmatprep.subr.mxu0 0.0
        %2457 = vmatpush1.msra.mxu0 0.0
        %2458 = vmatprep.subr.mxu0 0.0
        %2459 = vmatpush1.msra.mxu0 0.0
        %2460 = vmatprep.subr.mxu0 0.0
        %2461 = vmatpush1.msra.mxu0 0.0
        %2462 = vmatprep.subr.mxu0 0.0
        %2463 = vmatpush1.msra.mxu0 0.0
        %2464 = vmatprep.subr.mxu0 0.0
        %2465 = vmatpush1.msra.mxu0 0.0
        %2466 = vmatprep.subr.mxu0 0.0
        %2467 = vmatpush1.msra.mxu0 0.0
        %2468 = vmatprep.subr.mxu0 0.0
        %2469 = vmatpush1.msra.mxu0 0.0
        %2470 = vmatprep.subr.mxu0 0.0
        %2471 = vmatpush1.msra.mxu0 0.0
        %2472 = vmatprep.subr.mxu0 0.0
        %2473 = vmatpush1.msra.mxu0 0.0
        %2474 = vmatprep.subr.mxu0 0.0
        %2475 = vmatpush1.msra.mxu0 0.0
        %2476 = vmatprep.subr.mxu0 0.0
        %2477 = vmatpush1.msra.mxu0 0.0
        %2478 = vmatprep.subr.mxu0 0.0
        %2479 = vmatpush1.msra.mxu0 0.0
        %2480 = vmatprep.subr.mxu0 0.0
        %2481 = vmatpush1.msra.mxu0 0.0
        %2482 = vmatprep.subr.mxu0 0.0
        %2483 = vmatpush1.msra.mxu0 0.0
        %2484 = vmatprep.subr.mxu0 0.0
        %2485 = vmatpush1.msra.mxu0 0.0
        %2486 = vmatprep.subr.mxu0 0.0
        %2487 = vmatpush1.msra.mxu0 0.0
        %2488 = vmatprep.subr.mxu0 0.0
        %2489 = vmatpush1.msra.mxu0 0.0
        %2490 = vmatprep.subr.mxu0 0.0
        %2491 = vmatpush1.msra.mxu0 0.0
        %2492 = vmatprep.mubr.f32.mxu0 0.0
        %v2493 = vand.u32 %v2172, 4294901760
        %v2494 = vsub.f32 %v2172, %v2493
        %v2495 = vand.u32 %v2494, 4294901760
        %2496 = vmatmul.mubr.f32.gmra.mrb[0].mxu0 %v2495
        %v2497 = vpop.f32.mrb[0].mxu0
        %v2498 = vadd.f32 %v2421, %v2497
        %v2499 = vpop.f32.mrb[0].mxu0
        %2500 = vdwg.mxu0
        %2501 = vmatprep.subr.mxu0 0.0
        %v2502 = vand.u32 %v1149, 4294901760
        %v2503 = vsub.f32 %v1149, %v2502
        %v2504 = vand.u32 %v2503, 4294901760
        %2505 = vmatpush1.msra.mxu0 %v2504
        %2506 = vmatprep.subr.mxu0 0.0
        %v2507 = vand.u32 %v1150, 4294901760
        %v2508 = vsub.f32 %v1150, %v2507
        %v2509 = vand.u32 %v2508, 4294901760
        %2510 = vmatpush1.msra.mxu0 %v2509
        %2511 = vmatprep.subr.mxu0 0.0
        %v2512 = vand.u32 %v1151, 4294901760
        %v2513 = vsub.f32 %v1151, %v2512
        %v2514 = vand.u32 %v2513, 4294901760
        %2515 = vmatpush1.msra.mxu0 %v2514
        %2516 = vmatprep.subr.mxu0 0.0
        %v2517 = vand.u32 %v1152, 4294901760
        %v2518 = vsub.f32 %v1152, %v2517
        %v2519 = vand.u32 %v2518, 4294901760
        %2520 = vmatpush1.msra.mxu0 %v2519
        %2521 = vmatprep.subr.mxu0 0.0
        %2522 = vmatpush1.msra.mxu0 0.0
        %2523 = vmatprep.subr.mxu0 0.0
        %2524 = vmatpush1.msra.mxu0 0.0
        %2525 = vmatprep.subr.mxu0 0.0
        %2526 = vmatpush1.msra.mxu0 0.0
        %2527 = vmatprep.subr.mxu0 0.0
        %2528 = vmatpush1.msra.mxu0 0.0
        %2529 = vmatprep.subr.mxu0 0.0
        %2530 = vmatpush1.msra.mxu0 0.0
        %2531 = vmatprep.subr.mxu0 0.0
        %2532 = vmatpush1.msra.mxu0 0.0
        %2533 = vmatprep.subr.mxu0 0.0
        %2534 = vmatpush1.msra.mxu0 0.0
        %2535 = vmatprep.subr.mxu0 0.0
        %2536 = vmatpush1.msra.mxu0 0.0
        %2537 = vmatprep.subr.mxu0 0.0
        %2538 = vmatpush1.msra.mxu0 0.0
        %2539 = vmatprep.subr.mxu0 0.0
        %2540 = vmatpush1.msra.mxu0 0.0
        %2541 = vmatprep.subr.mxu0 0.0
        %2542 = vmatpush1.msra.mxu0 0.0
        %2543 = vmatprep.subr.mxu0 0.0
        %2544 = vmatpush1.msra.mxu0 0.0
        %2545 = vmatprep.subr.mxu0 0.0
        %2546 = vmatpush1.msra.mxu0 0.0
        %2547 = vmatprep.subr.mxu0 0.0
        %2548 = vmatpush1.msra.mxu0 0.0
        %2549 = vmatprep.subr.mxu0 0.0
        %2550 = vmatpush1.msra.mxu0 0.0
        %2551 = vmatprep.subr.mxu0 0.0
        %2552 = vmatpush1.msra.mxu0 0.0
        %2553 = vmatprep.subr.mxu0 0.0
        %2554 = vmatpush1.msra.mxu0 0.0
        %2555 = vmatprep.subr.mxu0 0.0
        %2556 = vmatpush1.msra.mxu0 0.0
        %2557 = vmatprep.subr.mxu0 0.0
        %2558 = vmatpush1.msra.mxu0 0.0
        %2559 = vmatprep.subr.mxu0 0.0
        %2560 = vmatpush1.msra.mxu0 0.0
        %2561 = vmatprep.subr.mxu0 0.0
        %2562 = vmatpush1.msra.mxu0 0.0
        %2563 = vmatprep.subr.mxu0 0.0
        %2564 = vmatpush1.msra.mxu0 0.0
        %2565 = vmatprep.subr.mxu0 0.0
        %2566 = vmatpush1.msra.mxu0 0.0
        %2567 = vmatprep.subr.mxu0 0.0
        %2568 = vmatpush1.msra.mxu0 0.0
        %2569 = vmatprep.subr.mxu0 0.0
        %2570 = vmatpush1.msra.mxu0 0.0
        %2571 = vmatprep.subr.mxu0 0.0
        %2572 = vmatpush1.msra.mxu0 0.0
        %2573 = vmatprep.subr.mxu0 0.0
        %2574 = vmatpush1.msra.mxu0 0.0
        %2575 = vmatprep.subr.mxu0 0.0
        %2576 = vmatpush1.msra.mxu0 0.0
        %2577 = vmatprep.mubr.f32.mxu0 0.0
        %v2578 = vand.u32 %v2172, 4294901760
        %2579 = vmatmul.mubr.f32.gmra.mrb[0].mxu0 %v2578
        %v2580 = vpop.f32.mrb[0].mxu0
        %v2581 = vadd.f32 %v2498, %v2580
        %v2582 = vpop.f32.mrb[0].mxu0
        %2583 = vdwg.mxu0
        %2584 = vmatprep.subr.mxu0 0.0
        %v2585 = vand.u32 %v1149, 4294901760
        %2586 = vmatpush1.msra.mxu0 %v2585
        %2587 = vmatprep.subr.mxu0 0.0
        %v2588 = vand.u32 %v1150, 4294901760
        %2589 = vmatpush1.msra.mxu0 %v2588
        %2590 = vmatprep.subr.mxu0 0.0
        %v2591 = vand.u32 %v1151, 4294901760
        %2592 = vmatpush1.msra.mxu0 %v2591
        %2593 = vmatprep.subr.mxu0 0.0
        %v2594 = vand.u32 %v1152, 4294901760
        %2595 = vmatpush1.msra.mxu0 %v2594
        %2596 = vmatprep.subr.mxu0 0.0
        %2597 = vmatpush1.msra.mxu0 0.0
        %2598 = vmatprep.subr.mxu0 0.0
        %2599 = vmatpush1.msra.mxu0 0.0
        %2600 = vmatprep.subr.mxu0 0.0
        %2601 = vmatpush1.msra.mxu0 0.0
        %2602 = vmatprep.subr.mxu0 0.0
        %2603 = vmatpush1.msra.mxu0 0.0
        %2604 = vmatprep.subr.mxu0 0.0
        %2605 = vmatpush1.msra.mxu0 0.0
        %2606 = vmatprep.subr.mxu0 0.0
        %2607 = vmatpush1.msra.mxu0 0.0
        %2608 = vmatprep.subr.mxu0 0.0
        %2609 = vmatpush1.msra.mxu0 0.0
        %2610 = vmatprep.subr.mxu0 0.0
        %2611 = vmatpush1.msra.mxu0 0.0
        %2612 = vmatprep.subr.mxu0 0.0
        %2613 = vmatpush1.msra.mxu0 0.0
        %2614 = vmatprep.subr.mxu0 0.0
        %2615 = vmatpush1.msra.mxu0 0.0
        %2616 = vmatprep.subr.mxu0 0.0
        %2617 = vmatpush1.msra.mxu0 0.0
        %2618 = vmatprep.subr.mxu0 0.0
        %2619 = vmatpush1.msra.mxu0 0.0
        %2620 = vmatprep.subr.mxu0 0.0
        %2621 = vmatpush1.msra.mxu0 0.0
        %2622 = vmatprep.subr.mxu0 0.0
        %2623 = vmatpush1.msra.mxu0 0.0
        %2624 = vmatprep.subr.mxu0 0.0
        %2625 = vmatpush1.msra.mxu0 0.0
        %2626 = vmatprep.subr.mxu0 0.0
        %2627 = vmatpush1.msra.mxu0 0.0
        %2628 = vmatprep.subr.mxu0 0.0
        %2629 = vmatpush1.msra.mxu0 0.0
        %2630 = vmatprep.subr.mxu0 0.0
        %2631 = vmatpush1.msra.mxu0 0.0
        %2632 = vmatprep.subr.mxu0 0.0
        %2633 = vmatpush1.msra.mxu0 0.0
        %2634 = vmatprep.subr.mxu0 0.0
        %2635 = vmatpush1.msra.mxu0 0.0
        %2636 = vmatprep.subr.mxu0 0.0
        %2637 = vmatpush1.msra.mxu0 0.0
        %2638 = vmatprep.subr.mxu0 0.0
        %2639 = vmatpush1.msra.mxu0 0.0
        %2640 = vmatprep.subr.mxu0 0.0
        %2641 = vmatpush1.msra.mxu0 0.0
        %2642 = vmatprep.subr.mxu0 0.0
        %2643 = vmatpush1.msra.mxu0 0.0
        %2644 = vmatprep.subr.mxu0 0.0
        %2645 = vmatpush1.msra.mxu0 0.0
        %2646 = vmatprep.subr.mxu0 0.0
        %2647 = vmatpush1.msra.mxu0 0.0
        %2648 = vmatprep.subr.mxu0 0.0
        %2649 = vmatpush1.msra.mxu0 0.0
        %2650 = vmatprep.subr.mxu0 0.0
        %2651 = vmatpush1.msra.mxu0 0.0
        %2652 = vmatprep.mubr.f32.mxu0 0.0
        %v2653 = vand.u32 %v2172, 4294901760
        %2654 = vmatmul.mubr.f32.gmra.mrb[0].mxu0 %v2653
        %v2655 = vpop.f32.mrb[0].mxu0
        %v2656 = vadd.f32 %v2581, %v2655
        %v2657 = vpop.f32.mrb[0].mxu0
        %2658 = vdwg.mxu0
        %v2659 = vrsqrt.pop %v2656
        %v2660 = vld [vmem:[%s2] sm:$0x1]
        %v2661 = vmul.f32 %v2660, %v2659
        %v2662 = vld [vmem:[#allocation4] sm:$0x1]
        %v2663 = vmul.f32 %v1638, %v2661
        %v2664 = vsub.f32 %v2662, %v2663
        %v2665 = vld [vmem:[%s609] sm:$0xff]
        %v2667 = vlaneseq
        %v2668 = vshrl.u32 %v2667, 7
        %v2669 = vsub.s32 0, %v2668
        %v2670 = vrot.slane %v2661, %v2669
        %v2672 = vmul.f32 %v2665, %v2670
        %v2674 = vlaneseq
        %v2675 = vshrl.u32 %v2674, 7
        %v2676 = vsub.s32 0, %v2675
        %v2677 = vrot.slane %v2664, %v2676
        %v2679 = vadd.f32 %v2672, %v2677
        %v2680 = vxor.u32 %v2679, 2147483648
        %v2681 = vmul.f32 %v2680, 1.442695
        %v2682 = vpow.pop %v2681
        %v2683 = vadd.f32 %v2682, 1.0
        %v2684 = vrcp.pop %v2683
        %v2685 = vmul.f32 1.0, %v2684
        %v2686 = vmul.f32 %v2679, %v2685
        %v2687 = vpack.c.bf16 %v2686, %v2686
        %v2689 = vrot.slane %v2687, 3
        %vm2691 = vcmask 261125
        %2692 = vst.msk [vmem:[#allocation2] sm:$0xe0] %vm2691, %v2689
        %vm2693 = vcmask 253952
        %2694 = vst.msk [vmem:[#allocation2 + $0x8] sm:$0x1] %vm2693, %v2689
        %v2695 = vld [vmem:[%s609 + $0x8] sm:$0xff]
        %v2696 = vmul.f32 %v2695, %v2670
        %v2697 = vadd.f32 %v2696, %v2677
        %v2698 = vxor.u32 %v2697, 2147483648
        %v2699 = vmul.f32 %v2698, 1.442695
        %v2700 = vpow.pop %v2699
        %v2701 = vadd.f32 %v2700, 1.0
        %v2702 = vrcp.pop %v2701
        %v2703 = vmul.f32 1.0, %v2702
        %v2704 = vmul.f32 %v2697, %v2703
        %v2705 = vpack.c.bf16 %v2704, %v2704
        %v2707 = vshrl.u32 %v2705, 16
        %v2709 = vrot.slane %v2707, 6
        %v2710 = vshll.u32 %v2705, 16
        %v2712 = vrot.slane %v2710, 7
        %v2713 = vor.u32 %v2709, %v2712
        %vm2715 = vcmask 259073
        %vm2716 = vsmask.f32 5382
        %vm2717 = vmand %vm2715, %vm2716
        %v2718 = vld [vmem:[#allocation2 + $0x8] sm:$0x3e]
        %v2719 = vsel %vm2717, %v2713, %v2718
        %2720 = vst [vmem:[#allocation2 + $0x8] sm:$0x3e] %v2719
        %v2721 = vld [vmem:[%s609 + $0x10] sm:$0xff]
        %v2722 = vmul.f32 %v2721, %v2670
        %v2723 = vadd.f32 %v2722, %v2677
        %v2724 = vxor.u32 %v2723, 2147483648
        %v2725 = vmul.f32 %v2724, 1.442695
        %v2726 = vpow.pop %v2725
        %v2727 = vadd.f32 %v2726, 1.0
        %v2728 = vrcp.pop %v2727
        %v2729 = vmul.f32 1.0, %v2728
        %v2730 = vmul.f32 %v2723, %v2729
        %v2731 = vpack.c.bf16 %v2730, %v2730
        %v2733 = vrot.slane %v2731, 2
        %vm2735 = vcmask 261126
        %2736 = vst.msk [vmem:[#allocation2 + $0x8] sm:$0xc0] %vm2735, %v2733
        %vm2737 = vcmask 254976
        %2738 = vst.msk [vmem:[#allocation2 + $0x10] sm:$0x3] %vm2737, %v2733
        %v2739 = vld [vmem:[%s609 + $0x18] sm:$0xff]
        %v2740 = vmul.f32 %v2739, %v2670
        %v2741 = vadd.f32 %v2740, %v2677
        %v2742 = vxor.u32 %v2741, 2147483648
        %v2743 = vmul.f32 %v2742, 1.442695
        %v2744 = vpow.pop %v2743
        %v2745 = vadd.f32 %v2744, 1.0
        %v2746 = vrcp.pop %v2745
        %v2747 = vmul.f32 1.0, %v2746
        %v2748 = vmul.f32 %v2741, %v2747
        %v2749 = vpack.c.bf16 %v2748, %v2748
        %v2751 = vshrl.u32 %v2749, 16
        %v2753 = vrot.slane %v2751, 5
        %v2754 = vshll.u32 %v2749, 16
        %v2756 = vrot.slane %v2754, 6
        %v2757 = vor.u32 %v2753, %v2756
        %vm2759 = vcmask 260098
        %vm2760 = vsmask.f32 6410
        %vm2761 = vmand %vm2759, %vm2760
        %v2762 = vld [vmem:[#allocation2 + $0x10] sm:$0x7c]
        %v2763 = vsel %vm2761, %v2757, %v2762
        %2764 = vst [vmem:[#allocation2 + $0x10] sm:$0x7c] %v2763
        %v2765 = vld [vmem:[%s609 + $0x20] sm:$0xff]
        %v2766 = vmul.f32 %v2765, %v2670
        %v2767 = vadd.f32 %v2766, %v2677
        %v2768 = vxor.u32 %v2767, 2147483648
        %v2769 = vmul.f32 %v2768, 1.442695
        %v2770 = vpow.pop %v2769
        %v2771 = vadd.f32 %v2770, 1.0
        %v2772 = vrcp.pop %v2771
        %v2773 = vmul.f32 1.0, %v2772
        %v2774 = vmul.f32 %v2767, %v2773
        %v2775 = vpack.c.bf16 %v2774, %v2774
        %v2777 = vrot.slane %v2775, 1
        %vm2779 = vcmask 261127
        %2780 = vst.msk [vmem:[#allocation2 + $0x10] sm:$0x80] %vm2779, %v2777
        %vm2781 = vcmask 256000
        %2782 = vst.msk [vmem:[#allocation2 + $0x18] sm:$0x7] %vm2781, %v2777
        %v2783 = vld [vmem:[%s609 + $0x28] sm:$0xff]
        %v2784 = vmul.f32 %v2783, %v2670
        %v2785 = vadd.f32 %v2784, %v2677
        %v2786 = vxor.u32 %v2785, 2147483648
        %v2787 = vmul.f32 %v2786, 1.442695
        %v2788 = vpow.pop %v2787
        %v2789 = vadd.f32 %v2788, 1.0
        %v2790 = vrcp.pop %v2789
        %v2791 = vmul.f32 1.0, %v2790
        %v2792 = vmul.f32 %v2785, %v2791
        %v2793 = vpack.c.bf16 %v2792, %v2792
        %v2795 = vshrl.u32 %v2793, 16
        %v2797 = vrot.slane %v2795, 4
        %v2798 = vshll.u32 %v2793, 16
        %v2800 = vrot.slane %v2798, 5
        %v2801 = vor.u32 %v2797, %v2800
        %vm2803 = vcmask 261123
        %vm2804 = vsmask.f32 7438
        %vm2805 = vmand %vm2803, %vm2804
        %v2806 = vld [vmem:[#allocation2 + $0x18] sm:$0xf8]
        %v2807 = vsel %vm2805, %v2801, %v2806
        %2808 = vst [vmem:[#allocation2 + $0x18] sm:$0xf8] %v2807
        %v2809 = vld [vmem:[%s609 + $0x30] sm:$0xff]
        %v2810 = vmul.f32 %v2809, %v2670
        %v2811 = vadd.f32 %v2810, %v2677
        %v2812 = vxor.u32 %v2811, 2147483648
        %v2813 = vmul.f32 %v2812, 1.442695
        %v2814 = vpow.pop %v2813
        %v2815 = vadd.f32 %v2814, 1.0
        %v2816 = vrcp.pop %v2815
        %v2817 = vmul.f32 1.0, %v2816
        %v2818 = vmul.f32 %v2811, %v2817
        %v2819 = vpack.c.bf16 %v2818, %v2818
        %vm2820 = vcmask 257024
        %2821 = vst.msk [vmem:[#allocation2 + $0x20] sm:$0xf] %vm2820, %v2819
        %v2822 = vld [vmem:[%s609 + $0x38] sm:$0xff]
        %v2823 = vmul.f32 %v2822, %v2670
        %v2824 = vadd.f32 %v2823, %v2677
        %v2825 = vxor.u32 %v2824, 2147483648
        %v2826 = vmul.f32 %v2825, 1.442695
        %v2827 = vpow.pop %v2826
        %v2828 = vadd.f32 %v2827, 1.0
        %v2829 = vrcp.pop %v2828
        %v2830 = vmul.f32 1.0, %v2829
        %v2831 = vmul.f32 %v2824, %v2830
        %v2832 = vpack.c.bf16 %v2831, %v2831
        %v2834 = vshrl.u32 %v2832, 16
        %v2836 = vrot.slane %v2834, 3
        %v2837 = vshll.u32 %v2832, 16
        %v2839 = vrot.slane %v2837, 4
        %v2840 = vor.u32 %v2836, %v2839
        %vm2843 = vcmask 261124
        %vm2844 = vsmask.f32 7954
        %vm2845 = vmand %vm2843, %vm2844
        %v2846 = vld [vmem:[#allocation2 + $0x20] sm:$0xf0]
        %v2847 = vsel %vm2845, %v2840, %v2846
        %2848 = vst [vmem:[#allocation2 + $0x20] sm:$0xf0] %v2847
        %vm2849 = vcmask 253952
        %vm2850 = vsmask.f32 256
        %vm2851 = vmand %vm2849, %vm2850
        %v2852 = vld [vmem:[#allocation2 + $0x28] sm:$0x1]
        %v2853 = vsel %vm2851, %v2836, %v2852
        %2854 = vst [vmem:[#allocation2 + $0x28] sm:$0x1] %v2853
        %v2855 = vld [vmem:[#allocation6] sm:$0x1]
        %v2856 = vld [vmem:[%s612] sm:$0x1]
        %v2857 = vadd.f32 %v2855, %v2856
        %v2859 = vlaneseq
        %v2860 = vshrl.u32 %v2859, 7
        %v2861 = vsub.s32 0, %v2860
        %v2862 = vrot.slane %v2857, %v2861
        %2864 = vst.msk [vmem:[#allocation3] sm:$0xff] %vm619, %v2862
        %2865 = vst.msk [vmem:[#allocation3 + $0x8] sm:$0xff] %vm619, %v2862
        %2866 = vst.msk [vmem:[#allocation3 + $0x10] sm:$0xff] %vm619, %v2862
        %2867 = vst.msk [vmem:[#allocation3 + $0x18] sm:$0xff] %vm619, %v2862
        %2868 = vst.msk [vmem:[#allocation3 + $0x20] sm:$0xff] %vm619, %v2862
        %2869 = vst.msk [vmem:[#allocation3 + $0x28] sm:$0xff] %vm619, %v2862
        %2870 = vst.msk [vmem:[#allocation3 + $0x30] sm:$0xff] %vm619, %v2862
        %2871 = vst.msk [vmem:[#allocation3 + $0x38] sm:$0xff] %vm619, %v2862
        %2872 = vst.msk [vmem:[#allocation3 + $0x40] sm:$0xff] %vm619, %v2862
        %v2873 = vld [vmem:[#allocation3] sm:$0xff]
        %v2874 = vld [vmem:[#allocation3 + $0x8] sm:$0xff]
        %v2875 = vld [vmem:[#allocation3 + $0x10] sm:$0xff]
        %v2876 = vld [vmem:[#allocation3 + $0x18] sm:$0xff]
        %v2877 = vld [vmem:[#allocation3 + $0x20] sm:$0xff]
        %v2878 = vld [vmem:[#allocation3 + $0x28] sm:$0xff]
        %v2879 = vld [vmem:[#allocation3 + $0x30] sm:$0xff]
        %v2880 = vld [vmem:[#allocation3 + $0x38] sm:$0xff]
        %v2881 = vld [vmem:[#allocation3 + $0x40] sm:$0xff]
        %v2882 = vld [vmem:[#allocation2] sm:$0xff]
        %v2883 = vld [vmem:[#allocation2 + $0x8] sm:$0xff]
        %v2884 = vld [vmem:[#allocation2 + $0x10] sm:$0xff]
        %v2885 = vld [vmem:[#allocation2 + $0x18] sm:$0xff]
        %v2886 = vld [vmem:[#allocation2 + $0x20] sm:$0xf]
        %v2887 = vld [vmem:[%s4] sm:$0xf]
        %v2888 = vld [vmem:[%s4 + $0x4] sm:$0xf]
        %v2889 = vld [vmem:[%s4 + $0x8] sm:$0xf]
        %v2890 = vld [vmem:[%s4 + $0xc] sm:$0xf]
        %v2895 = vunpack.c.l.b16 %v2887
        %v2896 = vunpack.c.l.b16 %v2888
        %v2897 = vunpack.c.l.b16 %v2889
        %v2898 = vunpack.c.l.b16 %v2890
        %v2899 = vpack.c.b16 %v2896, %v2895
        %v2900 = vpack.c.b16 %v2898, %v2897
        %v2904 = vsel %vm619, %v2882, 0
        %v2907 = vsel %vm619, %v2883, 0
        %v2910 = vsel %vm619, %v2884, 0
        %v2913 = vsel %vm619, %v2885, 0
        %v2916 = vsel %vm619, %v2886, 0
        %2918 = vmatprep.subr.bf16.mxu0 0
        %2919 = vmatpush1.bf16.msra.mxu0 %v2899
        %2920 = vmatprep.subr.bf16.mxu0 0
        %2921 = vmatpush1.bf16.msra.mxu0 %v2900
        %2922 = vmatprep.subr.bf16.mxu0 0
        %2923 = vmatpush1.bf16.msra.mxu0 0
        %2924 = vmatprep.subr.bf16.mxu0 0
        %2925 = vmatpush1.bf16.msra.mxu0 0
        %2926 = vmatprep.subr.bf16.mxu0 0
        %2927 = vmatpush1.bf16.msra.mxu0 0
        %2928 = vmatprep.subr.bf16.mxu0 0
        %2929 = vmatpush1.bf16.msra.mxu0 0
        %2930 = vmatprep.subr.bf16.mxu0 0
        %2931 = vmatpush1.bf16.msra.mxu0 0
        %2932 = vmatprep.subr.bf16.mxu0 0
        %2933 = vmatpush1.bf16.msra.mxu0 0
        %2934 = vmatprep.subr.bf16.mxu0 0
        %2935 = vmatpush1.bf16.msra.mxu0 0
        %2936 = vmatprep.subr.bf16.mxu0 0
        %2937 = vmatpush1.bf16.msra.mxu0 0
        %2938 = vmatprep.subr.bf16.mxu0 0
        %2939 = vmatpush1.bf16.msra.mxu0 0
        %2940 = vmatprep.subr.bf16.mxu0 0
        %2941 = vmatpush1.bf16.msra.mxu0 0
        %2942 = vmatprep.subr.bf16.mxu0 0
        %2943 = vmatpush1.bf16.msra.mxu0 0
        %2944 = vmatprep.subr.bf16.mxu0 0
        %2945 = vmatpush1.bf16.msra.mxu0 0
        %2946 = vmatprep.subr.bf16.mxu0 0
        %2947 = vmatpush1.bf16.msra.mxu0 0
        %2948 = vmatprep.subr.bf16.mxu0 0
        %2949 = vmatpush1.bf16.msra.mxu0 0
        %2950 = vmatprep.mubr.bf16.mxu0 0
        %2951 = vmatmul.mubr.bf16.gmra.mrb[0].mxu0 %v2904
        %v2952 = vpop.f32.mrb[0].mxu0
        %v2953 = vadd.f32 0.0, %v2952
        %v2954 = vpop.f32.mrb[0].mxu0
        %v2955 = vpop.f32.mrb[0].mxu0
        %v2956 = vadd.f32 0.0, %v2955
        %v2957 = vpop.f32.mrb[0].mxu0
        %2958 = vmatprep.mubr.bf16.mxu0 0
        %2959 = vmatmul.mubr.bf16.gmra.mrb[0].mxu0 %v2907
        %v2960 = vpop.f32.mrb[0].mxu0
        %v2961 = vadd.f32 0.0, %v2960
        %v2962 = vpop.f32.mrb[0].mxu0
        %v2963 = vpop.f32.mrb[0].mxu0
        %v2964 = vadd.f32 0.0, %v2963
        %v2965 = vpop.f32.mrb[0].mxu0
        %2966 = vmatprep.mubr.bf16.mxu0 0
        %2967 = vmatmul.mubr.bf16.gmra.mrb[0].mxu0 %v2910
        %v2968 = vpop.f32.mrb[0].mxu0
        %v2969 = vadd.f32 0.0, %v2968
        %v2970 = vpop.f32.mrb[0].mxu0
        %v2971 = vpop.f32.mrb[0].mxu0
        %v2972 = vadd.f32 0.0, %v2971
        %v2973 = vpop.f32.mrb[0].mxu0
        %2974 = vmatprep.mubr.bf16.mxu0 0
        %2975 = vmatmul.mubr.bf16.gmra.mrb[0].mxu0 %v2913
        %v2976 = vpop.f32.mrb[0].mxu0
        %v2977 = vadd.f32 0.0, %v2976
        %v2978 = vpop.f32.mrb[0].mxu0
        %v2979 = vpop.f32.mrb[0].mxu0
        %v2980 = vadd.f32 0.0, %v2979
        %v2981 = vpop.f32.mrb[0].mxu0
        %2982 = vmatprep.mubr.bf16.mxu0 0
        %2983 = vmatmul.mubr.bf16.gmra.mrb[0].mxu0 %v2916
        %v2984 = vpop.f32.mrb[0].mxu0
        %v2985 = vadd.f32 0.0, %v2984
        %v2986 = vpop.f32.mrb[0].mxu0
        %v2987 = vpop.f32.mrb[0].mxu0
        %v2988 = vpop.f32.mrb[0].mxu0
        %2989 = vdwg.mxu0
        %v2990 = vadd.f32 %v2873, %v2953
        %v2991 = vadd.f32 %v2874, %v2956
        %v2992 = vadd.f32 %v2875, %v2961
        %v2993 = vadd.f32 %v2876, %v2964
        %v2994 = vadd.f32 %v2877, %v2969
        %v2995 = vadd.f32 %v2878, %v2972
        %v2996 = vadd.f32 %v2879, %v2977
        %v2997 = vadd.f32 %v2880, %v2980
        %v2998 = vadd.f32 %v2881, %v2985
        %2999 = vst.msk [vmem:[#allocation3] sm:$0xff] %vm619, %v2990
        %3000 = vst.msk [vmem:[#allocation3 + $0x8] sm:$0xff] %vm619, %v2991
        %3001 = vst.msk [vmem:[#allocation3 + $0x10] sm:$0xff] %vm619, %v2992
        %3002 = vst.msk [vmem:[#allocation3 + $0x18] sm:$0xff] %vm619, %v2993
        %3003 = vst.msk [vmem:[#allocation3 + $0x20] sm:$0xff] %vm619, %v2994
        %3004 = vst.msk [vmem:[#allocation3 + $0x28] sm:$0xff] %vm619, %v2995
        %3005 = vst.msk [vmem:[#allocation3 + $0x30] sm:$0xff] %vm619, %v2996
        %3006 = vst.msk [vmem:[#allocation3 + $0x38] sm:$0xff] %vm619, %v2997
        %3007 = vst.msk [vmem:[#allocation3 + $0x40] sm:$0xff] %vm619, %v2998
        %v3008 = vld [vmem:[#allocation3] sm:$0xff]
        %v3009 = vld [vmem:[#allocation3 + $0x8] sm:$0xff]
        %v3010 = vld [vmem:[#allocation3 + $0x10] sm:$0xff]
        %v3011 = vld [vmem:[#allocation3 + $0x18] sm:$0xff]
        %v3012 = vld [vmem:[#allocation3 + $0x20] sm:$0xff]
        %v3013 = vld [vmem:[#allocation3 + $0x28] sm:$0xff]
        %v3014 = vld [vmem:[#allocation3 + $0x30] sm:$0xff]
        %v3015 = vld [vmem:[#allocation3 + $0x38] sm:$0xff]
        %v3016 = vld [vmem:[#allocation3 + $0x40] sm:$0xff]
        %v3017 = vld [vmem:[#allocation2] sm:$0xff]
        %v3018 = vld [vmem:[#allocation2 + $0x8] sm:$0xff]
        %v3019 = vld [vmem:[#allocation2 + $0x10] sm:$0xff]
        %v3020 = vld [vmem:[#allocation2 + $0x18] sm:$0xff]
        %v3021 = vld [vmem:[#allocation2 + $0x20] sm:$0x1f]
        %s3022 = scalar_lea.vmem %s4, 16
        %v3023 = vld [vmem:[%s3022] sm:$0xf]
        %v3024 = vld [vmem:[%s3022 + $0x4] sm:$0xf]
        %v3025 = vld [vmem:[%s3022 + $0x8] sm:$0xf]
        %v3026 = vld [vmem:[%s3022 + $0xc] sm:$0xf]
        %vm3027 = vsmask.f32 7424
        %v3029 = vshrl.u32 %v3017, 16
        %v3031 = vshll.u32 %v3017, 16
        %v3033 = vrot.slane %v3031, 1
        %v3034 = vor.u32 %v3029, %v3033
        %v3036 = vshll.u32 %v3018, 16
        %v3038 = vrot.slane %v3036, 1
        %v3039 = vsel %vm3027, %v3034, %v3038
        %v3040 = vshrl.u32 %v3018, 16
        %v3042 = vor.u32 %v3040, %v3038
        %v3044 = vshll.u32 %v3019, 16
        %v3046 = vrot.slane %v3044, 1
        %v3047 = vsel %vm3027, %v3042, %v3046
        %v3048 = vshrl.u32 %v3019, 16
        %v3050 = vor.u32 %v3048, %v3046
        %v3052 = vshll.u32 %v3020, 16
        %v3054 = vrot.slane %v3052, 1
        %v3055 = vsel %vm3027, %v3050, %v3054
        %v3056 = vshrl.u32 %v3020, 16
        %v3058 = vor.u32 %v3056, %v3054
        %v3060 = vshll.u32 %v3021, 16
        %v3062 = vrot.slane %v3060, 1
        %v3063 = vsel %vm3027, %v3058, %v3062
        %v3064 = vshrl.u32 %v3021, 16
        %v3066 = vor.u32 %v3064, %v3062
        %v3071 = vunpack.c.l.b16 %v3023
        %v3072 = vunpack.c.l.b16 %v3024
        %v3073 = vunpack.c.l.b16 %v3025
        %v3074 = vunpack.c.l.b16 %v3026
        %v3075 = vpack.c.b16 %v3072, %v3071
        %v3076 = vpack.c.b16 %v3074, %v3073
        %v3080 = vsel %vm619, %v3039, 0
        %v3083 = vsel %vm619, %v3047, 0
        %v3086 = vsel %vm619, %v3055, 0
        %v3089 = vsel %vm619, %v3063, 0
        %v3092 = vsel %vm619, %v3066, 0
        %3094 = vmatprep.subr.bf16.mxu0 0
        %3095 = vmatpush1.bf16.msra.mxu0 %v3075
        %3096 = vmatprep.subr.bf16.mxu0 0
        %3097 = vmatpush1.bf16.msra.mxu0 %v3076
        %3098 = vmatprep.subr.bf16.mxu0 0
        %3099 = vmatpush1.bf16.msra.mxu0 0
        %3100 = vmatprep.subr.bf16.mxu0 0
        %3101 = vmatpush1.bf16.msra.mxu0 0
        %3102 = vmatprep.subr.bf16.mxu0 0
        %3103 = vmatpush1.bf16.msra.mxu0 0
        %3104 = vmatprep.subr.bf16.mxu0 0
        %3105 = vmatpush1.bf16.msra.mxu0 0
        %3106 = vmatprep.subr.bf16.mxu0 0
        %3107 = vmatpush1.bf16.msra.mxu0 0
        %3108 = vmatprep.subr.bf16.mxu0 0
        %3109 = vmatpush1.bf16.msra.mxu0 0
        %3110 = vmatprep.subr.bf16.mxu0 0
        %3111 = vmatpush1.bf16.msra.mxu0 0
        %3112 = vmatprep.subr.bf16.mxu0 0
        %3113 = vmatpush1.bf16.msra.mxu0 0
        %3114 = vmatprep.subr.bf16.mxu0 0
        %3115 = vmatpush1.bf16.msra.mxu0 0
        %3116 = vmatprep.subr.bf16.mxu0 0
        %3117 = vmatpush1.bf16.msra.mxu0 0
        %3118 = vmatprep.subr.bf16.mxu0 0
        %3119 = vmatpush1.bf16.msra.mxu0 0
        %3120 = vmatprep.subr.bf16.mxu0 0
        %3121 = vmatpush1.bf16.msra.mxu0 0
        %3122 = vmatprep.subr.bf16.mxu0 0
        %3123 = vmatpush1.bf16.msra.mxu0 0
        %3124 = vmatprep.subr.bf16.mxu0 0
        %3125 = vmatpush1.bf16.msra.mxu0 0
        %3126 = vmatprep.mubr.bf16.mxu0 0
        %3127 = vmatmul.mubr.bf16.gmra.mrb[0].mxu0 %v3080
        %v3128 = vpop.f32.mrb[0].mxu0
        %v3129 = vadd.f32 0.0, %v3128
        %v3130 = vpop.f32.mrb[0].mxu0
        %v3131 = vpop.f32.mrb[0].mxu0
        %v3132 = vadd.f32 0.0, %v3131
        %v3133 = vpop.f32.mrb[0].mxu0
        %3134 = vmatprep.mubr.bf16.mxu0 0
        %3135 = vmatmul.mubr.bf16.gmra.mrb[0].mxu0 %v3083
        %v3136 = vpop.f32.mrb[0].mxu0
        %v3137 = vadd.f32 0.0, %v3136
        %v3138 = vpop.f32.mrb[0].mxu0
        %v3139 = vpop.f32.mrb[0].mxu0
        %v3140 = vadd.f32 0.0, %v3139
        %v3141 = vpop.f32.mrb[0].mxu0
        %3142 = vmatprep.mubr.bf16.mxu0 0
        %3143 = vmatmul.mubr.bf16.gmra.mrb[0].mxu0 %v3086
        %v3144 = vpop.f32.mrb[0].mxu0
        %v3145 = vadd.f32 0.0, %v3144
        %v3146 = vpop.f32.mrb[0].mxu0
        %v3147 = vpop.f32.mrb[0].mxu0
        %v3148 = vadd.f32 0.0, %v3147
        %v3149 = vpop.f32.mrb[0].mxu0
        %3150 = vmatprep.mubr.bf16.mxu0 0
        %3151 = vmatmul.mubr.bf16.gmra.mrb[0].mxu0 %v3089
        %v3152 = vpop.f32.mrb[0].mxu0
        %v3153 = vadd.f32 0.0, %v3152
        %v3154 = vpop.f32.mrb[0].mxu0
        %v3155 = vpop.f32.mrb[0].mxu0
        %v3156 = vadd.f32 0.0, %v3155
        %v3157 = vpop.f32.mrb[0].mxu0
        %3158 = vmatprep.mubr.bf16.mxu0 0
        %3159 = vmatmul.mubr.bf16.gmra.mrb[0].mxu0 %v3092
        %v3160 = vpop.f32.mrb[0].mxu0
        %v3161 = vadd.f32 0.0, %v3160
        %v3162 = vpop.f32.mrb[0].mxu0
        %v3163 = vpop.f32.mrb[0].mxu0
        %v3164 = vpop.f32.mrb[0].mxu0
        %3165 = vdwg.mxu0
        %v3166 = vadd.f32 %v3008, %v3129
        %v3167 = vadd.f32 %v3009, %v3132
        %v3168 = vadd.f32 %v3010, %v3137
        %v3169 = vadd.f32 %v3011, %v3140
        %v3170 = vadd.f32 %v3012, %v3145
        %v3171 = vadd.f32 %v3013, %v3148
        %v3172 = vadd.f32 %v3014, %v3153
        %v3173 = vadd.f32 %v3015, %v3156
        %v3174 = vadd.f32 %v3016, %v3161
        %3175 = vst.msk [vmem:[#allocation3] sm:$0xff] %vm619, %v3166
        %3176 = vst.msk [vmem:[#allocation3 + $0x8] sm:$0xff] %vm619, %v3167
        %3177 = vst.msk [vmem:[#allocation3 + $0x10] sm:$0xff] %vm619, %v3168
        %3178 = vst.msk [vmem:[#allocation3 + $0x18] sm:$0xff] %vm619, %v3169
        %3179 = vst.msk [vmem:[#allocation3 + $0x20] sm:$0xff] %vm619, %v3170
        %3180 = vst.msk [vmem:[#allocation3 + $0x28] sm:$0xff] %vm619, %v3171
        %3181 = vst.msk [vmem:[#allocation3 + $0x30] sm:$0xff] %vm619, %v3172
        %3182 = vst.msk [vmem:[#allocation3 + $0x38] sm:$0xff] %vm619, %v3173
        %3183 = vst.msk [vmem:[#allocation3 + $0x40] sm:$0xff] %vm619, %v3174
        %v3184 = vld [vmem:[#allocation3] sm:$0xff]
        %v3185 = vld [vmem:[#allocation3 + $0x8] sm:$0xff]
        %v3186 = vld [vmem:[#allocation3 + $0x10] sm:$0xff]
        %v3187 = vld [vmem:[#allocation3 + $0x18] sm:$0xff]
        %v3188 = vld [vmem:[#allocation3 + $0x20] sm:$0xff]
        %v3189 = vld [vmem:[#allocation3 + $0x28] sm:$0xff]
        %v3190 = vld [vmem:[#allocation3 + $0x30] sm:$0xff]
        %v3191 = vld [vmem:[#allocation3 + $0x38] sm:$0xff]
        %v3192 = vld [vmem:[#allocation3 + $0x40] sm:$0xff]
        %v3193 = vld [vmem:[#allocation2] sm:$0xfe]
        %v3194 = vld [vmem:[#allocation2 + $0x8] sm:$0xff]
        %v3195 = vld [vmem:[#allocation2 + $0x10] sm:$0xff]
        %v3196 = vld [vmem:[#allocation2 + $0x18] sm:$0xff]
        %v3197 = vld [vmem:[#allocation2 + $0x20] sm:$0x1f]
        %s3198 = scalar_lea.vmem %s4, 32
        %v3199 = vld [vmem:[%s3198] sm:$0xf]
        %v3200 = vld [vmem:[%s3198 + $0x4] sm:$0xf]
        %v3201 = vld [vmem:[%s3198 + $0x8] sm:$0xf]
        %v3202 = vld [vmem:[%s3198 + $0xc] sm:$0xf]
        %vm3208 = vcmask 1046528
        %v3209 = vrot.slane %v3193, 1
        %v3210 = vrot.slane %v3194, 1
        %v3211 = vsel %vm3208, %v3209, %v3210
        %v3212 = vrot.slane %v3195, 1
        %v3213 = vsel %vm3208, %v3210, %v3212
        %v3214 = vrot.slane %v3196, 1
        %v3215 = vsel %vm3208, %v3212, %v3214
        %v3216 = vrot.slane %v3197, 1
        %v3217 = vsel %vm3208, %v3214, %v3216
        %v3222 = vunpack.c.l.b16 %v3199
        %v3223 = vunpack.c.l.b16 %v3200
        %v3224 = vunpack.c.l.b16 %v3201
        %v3225 = vunpack.c.l.b16 %v3202
        %v3226 = vpack.c.b16 %v3223, %v3222
        %v3227 = vpack.c.b16 %v3225, %v3224
        %v3231 = vsel %vm619, %v3211, 0
        %v3234 = vsel %vm619, %v3213, 0
        %v3237 = vsel %vm619, %v3215, 0
        %v3240 = vsel %vm619, %v3217, 0
        %v3243 = vsel %vm619, %v3216, 0
        %3245 = vmatprep.subr.bf16.mxu0 0
        %3246 = vmatpush1.bf16.msra.mxu0 %v3226
        %3247 = vmatprep.subr.bf16.mxu0 0
        %3248 = vmatpush1.bf16.msra.mxu0 %v3227
        %3249 = vmatprep.subr.bf16.mxu0 0
        %3250 = vmatpush1.bf16.msra.mxu0 0
        %3251 = vmatprep.subr.bf16.mxu0 0
        %3252 = vmatpush1.bf16.msra.mxu0 0
        %3253 = vmatprep.subr.bf16.mxu0 0
        %3254 = vmatpush1.bf16.msra.mxu0 0
        %3255 = vmatprep.subr.bf16.mxu0 0
        %3256 = vmatpush1.bf16.msra.mxu0 0
        %3257 = vmatprep.subr.bf16.mxu0 0
        %3258 = vmatpush1.bf16.msra.mxu0 0
        %3259 = vmatprep.subr.bf16.mxu0 0
        %3260 = vmatpush1.bf16.msra.mxu0 0
        %3261 = vmatprep.subr.bf16.mxu0 0
        %3262 = vmatpush1.bf16.msra.mxu0 0
        %3263 = vmatprep.subr.bf16.mxu0 0
        %3264 = vmatpush1.bf16.msra.mxu0 0
        %3265 = vmatprep.subr.bf16.mxu0 0
        %3266 = vmatpush1.bf16.msra.mxu0 0
        %3267 = vmatprep.subr.bf16.mxu0 0
        %3268 = vmatpush1.bf16.msra.mxu0 0
        %3269 = vmatprep.subr.bf16.mxu0 0
        %3270 = vmatpush1.bf16.msra.mxu0 0
        %3271 = vmatprep.subr.bf16.mxu0 0
        %3272 = vmatpush1.bf16.msra.mxu0 0
        %3273 = vmatprep.subr.bf16.mxu0 0
        %3274 = vmatpush1.bf16.msra.mxu0 0
        %3275 = vmatprep.subr.bf16.mxu0 0
        %3276 = vmatpush1.bf16.msra.mxu0 0
        %3277 = vmatprep.mubr.bf16.mxu0 0
        %3278 = vmatmul.mubr.bf16.gmra.mrb[0].mxu0 %v3231
        %v3279 = vpop.f32.mrb[0].mxu0
        %v3280 = vadd.f32 0.0, %v3279
        %v3281 = vpop.f32.mrb[0].mxu0
        %v3282 = vpop.f32.mrb[0].mxu0
        %v3283 = vadd.f32 0.0, %v3282
        %v3284 = vpop.f32.mrb[0].mxu0
        %3285 = vmatprep.mubr.bf16.mxu0 0
        %3286 = vmatmul.mubr.bf16.gmra.mrb[0].mxu0 %v3234
        %v3287 = vpop.f32.mrb[0].mxu0
        %v3288 = vadd.f32 0.0, %v3287
        %v3289 = vpop.f32.mrb[0].mxu0
        %v3290 = vpop.f32.mrb[0].mxu0
        %v3291 = vadd.f32 0.0, %v3290
        %v3292 = vpop.f32.mrb[0].mxu0
        %3293 = vmatprep.mubr.bf16.mxu0 0
        %3294 = vmatmul.mubr.bf16.gmra.mrb[0].mxu0 %v3237
        %v3295 = vpop.f32.mrb[0].mxu0
        %v3296 = vadd.f32 0.0, %v3295
        %v3297 = vpop.f32.mrb[0].mxu0
        %v3298 = vpop.f32.mrb[0].mxu0
        %v3299 = vadd.f32 0.0, %v3298
        %v3300 = vpop.f32.mrb[0].mxu0
        %3301 = vmatprep.mubr.bf16.mxu0 0
        %3302 = vmatmul.mubr.bf16.gmra.mrb[0].mxu0 %v3240
        %v3303 = vpop.f32.mrb[0].mxu0
        %v3304 = vadd.f32 0.0, %v3303
        %v3305 = vpop.f32.mrb[0].mxu0
        %v3306 = vpop.f32.mrb[0].mxu0
        %v3307 = vadd.f32 0.0, %v3306
        %v3308 = vpop.f32.mrb[0].mxu0
        %3309 = vmatprep.mubr.bf16.mxu0 0
        %3310 = vmatmul.mubr.bf16.gmra.mrb[0].mxu0 %v3243
        %v3311 = vpop.f32.mrb[0].mxu0
        %v3312 = vadd.f32 0.0, %v3311
        %v3313 = vpop.f32.mrb[0].mxu0
        %v3314 = vpop.f32.mrb[0].mxu0
        %v3315 = vpop.f32.mrb[0].mxu0
        %3316 = vdwg.mxu0
        %v3317 = vadd.f32 %v3184, %v3280
        %v3318 = vadd.f32 %v3185, %v3283
        %v3319 = vadd.f32 %v3186, %v3288
        %v3320 = vadd.f32 %v3187, %v3291
        %v3321 = vadd.f32 %v3188, %v3296
        %v3322 = vadd.f32 %v3189, %v3299
        %v3323 = vadd.f32 %v3190, %v3304
        %v3324 = vadd.f32 %v3191, %v3307
        %v3325 = vadd.f32 %v3192, %v3312
        %3326 = vst.msk [vmem:[#allocation3] sm:$0xff] %vm619, %v3317
        %3327 = vst.msk [vmem:[#allocation3 + $0x8] sm:$0xff] %vm619, %v3318
        %3328 = vst.msk [vmem:[#allocation3 + $0x10] sm:$0xff] %vm619, %v3319
        %3329 = vst.msk [vmem:[#allocation3 + $0x18] sm:$0xff] %vm619, %v3320
        %3330 = vst.msk [vmem:[#allocation3 + $0x20] sm:$0xff] %vm619, %v3321
        %3331 = vst.msk [vmem:[#allocation3 + $0x28] sm:$0xff] %vm619, %v3322
        %3332 = vst.msk [vmem:[#allocation3 + $0x30] sm:$0xff] %vm619, %v3323
        %3333 = vst.msk [vmem:[#allocation3 + $0x38] sm:$0xff] %vm619, %v3324
        %3334 = vst.msk [vmem:[#allocation3 + $0x40] sm:$0xff] %vm619, %v3325
        %v3335 = vld [vmem:[#allocation3] sm:$0xff]
        %v3336 = vld [vmem:[#allocation3 + $0x8] sm:$0xff]
        %v3337 = vld [vmem:[#allocation3 + $0x10] sm:$0xff]
        %v3338 = vld [vmem:[#allocation3 + $0x18] sm:$0xff]
        %v3339 = vld [vmem:[#allocation3 + $0x20] sm:$0xff]
        %v3340 = vld [vmem:[#allocation3 + $0x28] sm:$0xff]
        %v3341 = vld [vmem:[#allocation3 + $0x30] sm:$0xff]
        %v3342 = vld [vmem:[#allocation3 + $0x38] sm:$0xff]
        %v3343 = vld [vmem:[#allocation3 + $0x40] sm:$0xff]
        %v3344 = vld [vmem:[#allocation2] sm:$0xf0]
        %v3345 = vld [vmem:[#allocation2 + $0x8] sm:$0xff]
        %v3346 = vld [vmem:[#allocation2 + $0x10] sm:$0xff]
        %v3347 = vld [vmem:[#allocation2 + $0x18] sm:$0xff]
        %v3348 = vld [vmem:[#allocation2 + $0x20] sm:$0xff]
        %v3349 = vld [vmem:[#allocation2 + $0x28] sm:$0x1]
        %s3350 = scalar_lea.vmem %s4, 48
        %v3351 = vld [vmem:[%s3350] sm:$0xf]
        %v3352 = vld [vmem:[%s3350 + $0x4] sm:$0xf]
        %v3353 = vld [vmem:[%s3350 + $0x8] sm:$0xf]
        %v3354 = vld [vmem:[%s3350 + $0xc] sm:$0xf]
        %vm3355 = vsmask.f32 3328
        %v3357 = vshrl.u32 %v3344, 16
        %v3359 = vrot.slane %v3357, 4
        %v3360 = vshll.u32 %v3344, 16
        %v3362 = vrot.slane %v3360, 5
        %v3363 = vor.u32 %v3359, %v3362
        %v3365 = vshrl.u32 %v3345, 16
        %v3367 = vrot.slane %v3365, 4
        %v3368 = vshll.u32 %v3345, 16
        %v3370 = vrot.slane %v3368, 5
        %v3371 = vor.u32 %v3367, %v3370
        %v3372 = vsel %vm3355, %v3363, %v3371
        %v3374 = vshrl.u32 %v3346, 16
        %v3376 = vrot.slane %v3374, 4
        %v3377 = vshll.u32 %v3346, 16
        %v3379 = vrot.slane %v3377, 5
        %v3380 = vor.u32 %v3376, %v3379
        %v3381 = vsel %vm3355, %v3371, %v3380
        %v3383 = vshrl.u32 %v3347, 16
        %v3385 = vrot.slane %v3383, 4
        %v3386 = vshll.u32 %v3347, 16
        %v3388 = vrot.slane %v3386, 5
        %v3389 = vor.u32 %v3385, %v3388
        %v3390 = vsel %vm3355, %v3380, %v3389
        %v3392 = vshrl.u32 %v3348, 16
        %v3394 = vrot.slane %v3392, 4
        %v3395 = vshll.u32 %v3348, 16
        %v3397 = vrot.slane %v3395, 5
        %v3398 = vor.u32 %v3394, %v3397
        %v3399 = vsel %vm3355, %v3389, %v3398
        %v3401 = vshll.u32 %v3349, 16
        %v3403 = vrot.slane %v3401, 5
        %v3404 = vsel %vm3355, %v3398, %v3403
        %v3409 = vunpack.c.l.b16 %v3351
        %v3410 = vunpack.c.l.b16 %v3352
        %v3411 = vunpack.c.l.b16 %v3353
        %v3412 = vunpack.c.l.b16 %v3354
        %v3413 = vpack.c.b16 %v3410, %v3409
        %v3414 = vpack.c.b16 %v3412, %v3411
        %v3418 = vsel %vm619, %v3372, 0
        %v3421 = vsel %vm619, %v3381, 0
        %v3424 = vsel %vm619, %v3390, 0
        %v3427 = vsel %vm619, %v3399, 0
        %v3430 = vsel %vm619, %v3404, 0
        %3432 = vmatprep.subr.bf16.mxu0 0
        %3433 = vmatpush1.bf16.msra.mxu0 %v3413
        %3434 = vmatprep.subr.bf16.mxu0 0
        %3435 = vmatpush1.bf16.msra.mxu0 %v3414
        %3436 = vmatprep.subr.bf16.mxu0 0
        %3437 = vmatpush1.bf16.msra.mxu0 0
        %3438 = vmatprep.subr.bf16.mxu0 0
        %3439 = vmatpush1.bf16.msra.mxu0 0
        %3440 = vmatprep.subr.bf16.mxu0 0
        %3441 = vmatpush1.bf16.msra.mxu0 0
        %3442 = vmatprep.subr.bf16.mxu0 0
        %3443 = vmatpush1.bf16.msra.mxu0 0
        %3444 = vmatprep.subr.bf16.mxu0 0
        %3445 = vmatpush1.bf16.msra.mxu0 0
        %3446 = vmatprep.subr.bf16.mxu0 0
        %3447 = vmatpush1.bf16.msra.mxu0 0
        %3448 = vmatprep.subr.bf16.mxu0 0
        %3449 = vmatpush1.bf16.msra.mxu0 0
        %3450 = vmatprep.subr.bf16.mxu0 0
        %3451 = vmatpush1.bf16.msra.mxu0 0
        %3452 = vmatprep.subr.bf16.mxu0 0
        %3453 = vmatpush1.bf16.msra.mxu0 0
        %3454 = vmatprep.subr.bf16.mxu0 0
        %3455 = vmatpush1.bf16.msra.mxu0 0
        %3456 = vmatprep.subr.bf16.mxu0 0
        %3457 = vmatpush1.bf16.msra.mxu0 0
        %3458 = vmatprep.subr.bf16.mxu0 0
        %3459 = vmatpush1.bf16.msra.mxu0 0
        %3460 = vmatprep.subr.bf16.mxu0 0
        %3461 = vmatpush1.bf16.msra.mxu0 0
        %3462 = vmatprep.subr.bf16.mxu0 0
        %3463 = vmatpush1.bf16.msra.mxu0 0
        %3464 = vmatprep.mubr.bf16.mxu0 0
        %3465 = vmatmul.mubr.bf16.gmra.mrb[0].mxu0 %v3418
        %v3466 = vpop.f32.mrb[0].mxu0
        %v3467 = vadd.f32 0.0, %v3466
        %v3468 = vpop.f32.mrb[0].mxu0
        %v3469 = vpop.f32.mrb[0].mxu0
        %v3470 = vadd.f32 0.0, %v3469
        %v3471 = vpop.f32.mrb[0].mxu0
        %3472 = vmatprep.mubr.bf16.mxu0 0
        %3473 = vmatmul.mubr.bf16.gmra.mrb[0].mxu0 %v3421
        %v3474 = vpop.f32.mrb[0].mxu0
        %v3475 = vadd.f32 0.0, %v3474
        %v3476 = vpop.f32.mrb[0].mxu0
        %v3477 = vpop.f32.mrb[0].mxu0
        %v3478 = vadd.f32 0.0, %v3477
        %v3479 = vpop.f32.mrb[0].mxu0
        %3480 = vmatprep.mubr.bf16.mxu0 0
        %3481 = vmatmul.mubr.bf16.gmra.mrb[0].mxu0 %v3424
        %v3482 = vpop.f32.mrb[0].mxu0
        %v3483 = vadd.f32 0.0, %v3482
        %v3484 = vpop.f32.mrb[0].mxu0
        %v3485 = vpop.f32.mrb[0].mxu0
        %v3486 = vadd.f32 0.0, %v3485
        %v3487 = vpop.f32.mrb[0].mxu0
        %3488 = vmatprep.mubr.bf16.mxu0 0
        %3489 = vmatmul.mubr.bf16.gmra.mrb[0].mxu0 %v3427
        %v3490 = vpop.f32.mrb[0].mxu0
        %v3491 = vadd.f32 0.0, %v3490
        %v3492 = vpop.f32.mrb[0].mxu0
        %v3493 = vpop.f32.mrb[0].mxu0
        %v3494 = vadd.f32 0.0, %v3493
        %v3495 = vpop.f32.mrb[0].mxu0
        %3496 = vmatprep.mubr.bf16.mxu0 0
        %3497 = vmatmul.mubr.bf16.gmra.mrb[0].mxu0 %v3430
        %v3498 = vpop.f32.mrb[0].mxu0
        %v3499 = vadd.f32 0.0, %v3498
        %v3500 = vpop.f32.mrb[0].mxu0
        %v3501 = vpop.f32.mrb[0].mxu0
        %v3502 = vpop.f32.mrb[0].mxu0
        %3503 = vdwg.mxu0
        %v3504 = vadd.f32 %v3335, %v3467
        %v3505 = vadd.f32 %v3336, %v3470
        %v3506 = vadd.f32 %v3337, %v3475
        %v3507 = vadd.f32 %v3338, %v3478
        %v3508 = vadd.f32 %v3339, %v3483
        %v3509 = vadd.f32 %v3340, %v3486
        %v3510 = vadd.f32 %v3341, %v3491
        %v3511 = vadd.f32 %v3342, %v3494
        %v3512 = vadd.f32 %v3343, %v3499
        %3513 = vst.msk [vmem:[#allocation3] sm:$0xff] %vm619, %v3504
        %3514 = vst.msk [vmem:[#allocation3 + $0x8] sm:$0xff] %vm619, %v3505
        %3515 = vst.msk [vmem:[#allocation3 + $0x10] sm:$0xff] %vm619, %v3506
        %3516 = vst.msk [vmem:[#allocation3 + $0x18] sm:$0xff] %vm619, %v3507
        %3517 = vst.msk [vmem:[#allocation3 + $0x20] sm:$0xff] %vm619, %v3508
        %3518 = vst.msk [vmem:[#allocation3 + $0x28] sm:$0xff] %vm619, %v3509
        %3519 = vst.msk [vmem:[#allocation3 + $0x30] sm:$0xff] %vm619, %v3510
        %3520 = vst.msk [vmem:[#allocation3 + $0x38] sm:$0xff] %vm619, %v3511
        %3521 = vst.msk [vmem:[#allocation3 + $0x40] sm:$0xff] %vm619, %v3512
        %v3522 = vld [vmem:[#allocation3] sm:$0xff]
        %v3523 = vld [vmem:[#allocation3 + $0x8] sm:$0xff]
        %v3524 = vld [vmem:[#allocation3 + $0x10] sm:$0xff]
        %v3525 = vld [vmem:[#allocation3 + $0x18] sm:$0xff]
        %v3526 = vld [vmem:[#allocation3 + $0x20] sm:$0xff]
        %v3527 = vld [vmem:[#allocation3 + $0x28] sm:$0xff]
        %v3528 = vld [vmem:[#allocation3 + $0x30] sm:$0xff]
        %v3529 = vld [vmem:[#allocation3 + $0x38] sm:$0xff]
        %v3530 = vld [vmem:[#allocation3 + $0x40] sm:$0xff]
        %v3531 = vld [vmem:[#allocation2] sm:$0xe0]
        %v3532 = vld [vmem:[#allocation2 + $0x8] sm:$0xff]
        %v3533 = vld [vmem:[#allocation2 + $0x10] sm:$0xff]
        %v3534 = vld [vmem:[#allocation2 + $0x18] sm:$0xff]
        %v3535 = vld [vmem:[#allocation2 + $0x20] sm:$0xff]
        %v3536 = vld [vmem:[#allocation2 + $0x28] sm:$0x1]
        %s3537 = scalar_lea.vmem %s4, 64
        %v3538 = vld [vmem:[%s3537] sm:$0xf]
        %v3539 = vld [vmem:[%s3537 + $0x4] sm:$0xf]
        %v3540 = vld [vmem:[%s3537 + $0x8] sm:$0xf]
        %v3541 = vld [vmem:[%s3537 + $0xc] sm:$0xf]
        %vm3548 = vcmask 1042432
        %v3549 = vrot.slane %v3531, 5
        %v3550 = vrot.slane %v3532, 5
        %v3551 = vsel %vm3548, %v3549, %v3550
        %v3552 = vrot.slane %v3533, 5
        %v3553 = vsel %vm3548, %v3550, %v3552
        %v3554 = vrot.slane %v3534, 5
        %v3555 = vsel %vm3548, %v3552, %v3554
        %v3556 = vrot.slane %v3535, 5
        %v3557 = vsel %vm3548, %v3554, %v3556
        %v3558 = vrot.slane %v3536, 5
        %v3559 = vsel %vm3548, %v3556, %v3558
        %v3564 = vunpack.c.l.b16 %v3538
        %v3565 = vunpack.c.l.b16 %v3539
        %v3566 = vunpack.c.l.b16 %v3540
        %v3567 = vunpack.c.l.b16 %v3541
        %v3568 = vpack.c.b16 %v3565, %v3564
        %v3569 = vpack.c.b16 %v3567, %v3566
        %v3573 = vsel %vm619, %v3551, 0
        %v3576 = vsel %vm619, %v3553, 0
        %v3579 = vsel %vm619, %v3555, 0
        %v3582 = vsel %vm619, %v3557, 0
        %v3585 = vsel %vm619, %v3559, 0
        %3587 = vmatprep.subr.bf16.mxu0 0
        %3588 = vmatpush1.bf16.msra.mxu0 %v3568
        %3589 = vmatprep.subr.bf16.mxu0 0
        %3590 = vmatpush1.bf16.msra.mxu0 %v3569
        %3591 = vmatprep.subr.bf16.mxu0 0
        %3592 = vmatpush1.bf16.msra.mxu0 0
        %3593 = vmatprep.subr.bf16.mxu0 0
        %3594 = vmatpush1.bf16.msra.mxu0 0
        %3595 = vmatprep.subr.bf16.mxu0 0
        %3596 = vmatpush1.bf16.msra.mxu0 0
        %3597 = vmatprep.subr.bf16.mxu0 0
        %3598 = vmatpush1.bf16.msra.mxu0 0
        %3599 = vmatprep.subr.bf16.mxu0 0
        %3600 = vmatpush1.bf16.msra.mxu0 0
        %3601 = vmatprep.subr.bf16.mxu0 0
        %3602 = vmatpush1.bf16.msra.mxu0 0
        %3603 = vmatprep.subr.bf16.mxu0 0
        %3604 = vmatpush1.bf16.msra.mxu0 0
        %3605 = vmatprep.subr.bf16.mxu0 0
        %3606 = vmatpush1.bf16.msra.mxu0 0
        %3607 = vmatprep.subr.bf16.mxu0 0
        %3608 = vmatpush1.bf16.msra.mxu0 0
        %3609 = vmatprep.subr.bf16.mxu0 0
        %3610 = vmatpush1.bf16.msra.mxu0 0
        %3611 = vmatprep.subr.bf16.mxu0 0
        %3612 = vmatpush1.bf16.msra.mxu0 0
        %3613 = vmatprep.subr.bf16.mxu0 0
        %3614 = vmatpush1.bf16.msra.mxu0 0
        %3615 = vmatprep.subr.bf16.mxu0 0
        %3616 = vmatpush1.bf16.msra.mxu0 0
        %3617 = vmatprep.subr.bf16.mxu0 0
        %3618 = vmatpush1.bf16.msra.mxu0 0
        %3619 = vmatprep.mubr.bf16.mxu0 0
        %3620 = vmatmul.mubr.bf16.gmra.mrb[0].mxu0 %v3573
        %v3621 = vpop.f32.mrb[0].mxu0
        %v3622 = vadd.f32 0.0, %v3621
        %v3623 = vpop.f32.mrb[0].mxu0
        %v3624 = vpop.f32.mrb[0].mxu0
        %v3625 = vadd.f32 0.0, %v3624
        %v3626 = vpop.f32.mrb[0].mxu0
        %3627 = vmatprep.mubr.bf16.mxu0 0
        %3628 = vmatmul.mubr.bf16.gmra.mrb[0].mxu0 %v3576
        %v3629 = vpop.f32.mrb[0].mxu0
        %v3630 = vadd.f32 0.0, %v3629
        %v3631 = vpop.f32.mrb[0].mxu0
        %v3632 = vpop.f32.mrb[0].mxu0
        %v3633 = vadd.f32 0.0, %v3632
        %v3634 = vpop.f32.mrb[0].mxu0
        %3635 = vmatprep.mubr.bf16.mxu0 0
        %3636 = vmatmul.mubr.bf16.gmra.mrb[0].mxu0 %v3579
        %v3637 = vpop.f32.mrb[0].mxu0
        %v3638 = vadd.f32 0.0, %v3637
        %v3639 = vpop.f32.mrb[0].mxu0
        %v3640 = vpop.f32.mrb[0].mxu0
        %v3641 = vadd.f32 0.0, %v3640
        %v3642 = vpop.f32.mrb[0].mxu0
        %3643 = vmatprep.mubr.bf16.mxu0 0
        %3644 = vmatmul.mubr.bf16.gmra.mrb[0].mxu0 %v3582
        %v3645 = vpop.f32.mrb[0].mxu0
        %v3646 = vadd.f32 0.0, %v3645
        %v3647 = vpop.f32.mrb[0].mxu0
        %v3648 = vpop.f32.mrb[0].mxu0
        %v3649 = vadd.f32 0.0, %v3648
        %v3650 = vpop.f32.mrb[0].mxu0
        %3651 = vmatprep.mubr.bf16.mxu0 0
        %3652 = vmatmul.mubr.bf16.gmra.mrb[0].mxu0 %v3585
        %v3653 = vpop.f32.mrb[0].mxu0
        %v3654 = vadd.f32 0.0, %v3653
        %v3655 = vpop.f32.mrb[0].mxu0
        %v3656 = vpop.f32.mrb[0].mxu0
        %v3657 = vpop.f32.mrb[0].mxu0
        %3658 = vdwg.mxu0
        %v3659 = vadd.f32 %v3522, %v3622
        %v3660 = vadd.f32 %v3523, %v3625
        %v3661 = vadd.f32 %v3524, %v3630
        %v3662 = vadd.f32 %v3525, %v3633
        %v3663 = vadd.f32 %v3526, %v3638
        %v3664 = vadd.f32 %v3527, %v3641
        %v3665 = vadd.f32 %v3528, %v3646
        %v3666 = vadd.f32 %v3529, %v3649
        %v3667 = vadd.f32 %v3530, %v3654
        %3668 = vst.msk [vmem:[#allocation3] sm:$0xff] %vm619, %v3659
        %3669 = vst.msk [vmem:[#allocation3 + $0x8] sm:$0xff] %vm619, %v3660
        %3670 = vst.msk [vmem:[#allocation3 + $0x10] sm:$0xff] %vm619, %v3661
        %3671 = vst.msk [vmem:[#allocation3 + $0x18] sm:$0xff] %vm619, %v3662
        %3672 = vst.msk [vmem:[#allocation3 + $0x20] sm:$0xff] %vm619, %v3663
        %3673 = vst.msk [vmem:[#allocation3 + $0x28] sm:$0xff] %vm619, %v3664
        %3674 = vst.msk [vmem:[#allocation3 + $0x30] sm:$0xff] %vm619, %v3665
        %3675 = vst.msk [vmem:[#allocation3 + $0x38] sm:$0xff] %vm619, %v3666
        %3676 = vst.msk [vmem:[#allocation3 + $0x40] sm:$0xff] %vm619, %v3667
        %v3677 = vld [vmem:[#allocation3] sm:$0xff]
        %v3678 = vld [vmem:[#allocation3 + $0x8] sm:$0xff]
        %v3679 = vld [vmem:[#allocation3 + $0x10] sm:$0xff]
        %v3680 = vld [vmem:[#allocation3 + $0x18] sm:$0xff]
        %v3681 = vld [vmem:[#allocation3 + $0x20] sm:$0xff]
        %v3682 = vld [vmem:[#allocation3 + $0x28] sm:$0xff]
        %v3683 = vld [vmem:[#allocation3 + $0x30] sm:$0xff]
        %v3684 = vld [vmem:[#allocation3 + $0x38] sm:$0xff]
        %v3685 = vld [vmem:[#allocation3 + $0x40] sm:$0xff]
        %v3686 = vld [vmem:[#allocation2] sm:$0xe0]
        %v3687 = vld [vmem:[#allocation2 + $0x8] sm:$0xff]
        %v3688 = vld [vmem:[#allocation2 + $0x10] sm:$0xff]
        %v3689 = vld [vmem:[#allocation2 + $0x18] sm:$0xff]
        %v3690 = vld [vmem:[#allocation2 + $0x20] sm:$0xff]
        %v3691 = vld [vmem:[#allocation2 + $0x28] sm:$0x3]
        %s3692 = scalar_lea.vmem %s4, 80
        %v3693 = vld [vmem:[%s3692] sm:$0xf]
        %v3694 = vld [vmem:[%s3692 + $0x4] sm:$0xf]
        %v3695 = vld [vmem:[%s3692 + $0x8] sm:$0xf]
        %v3696 = vld [vmem:[%s3692 + $0xc] sm:$0xf]
        %vm3697 = vsmask.f32 2304
        %v3699 = vshrl.u32 %v3686, 16
        %v3701 = vrot.slane %v3699, 5
        %v3702 = vshll.u32 %v3686, 16
        %v3704 = vrot.slane %v3702, 6
        %v3705 = vor.u32 %v3701, %v3704
        %v3707 = vshrl.u32 %v3687, 16
        %v3709 = vrot.slane %v3707, 5
        %v3710 = vshll.u32 %v3687, 16
        %v3712 = vrot.slane %v3710, 6
        %v3713 = vor.u32 %v3709, %v3712
        %v3714 = vsel %vm3697, %v3705, %v3713
        %v3716 = vshrl.u32 %v3688, 16
        %v3718 = vrot.slane %v3716, 5
        %v3719 = vshll.u32 %v3688, 16
        %v3721 = vrot.slane %v3719, 6
        %v3722 = vor.u32 %v3718, %v3721
        %v3723 = vsel %vm3697, %v3713, %v3722
        %v3725 = vshrl.u32 %v3689, 16
        %v3727 = vrot.slane %v3725, 5
        %v3728 = vshll.u32 %v3689, 16
        %v3730 = vrot.slane %v3728, 6
        %v3731 = vor.u32 %v3727, %v3730
        %v3732 = vsel %vm3697, %v3722, %v3731
        %v3734 = vshrl.u32 %v3690, 16
        %v3736 = vrot.slane %v3734, 5
        %v3737 = vshll.u32 %v3690, 16
        %v3739 = vrot.slane %v3737, 6
        %v3740 = vor.u32 %v3736, %v3739
        %v3741 = vsel %vm3697, %v3731, %v3740
        %v3743 = vshrl.u32 %v3691, 16
        %v3745 = vrot.slane %v3743, 5
        %v3746 = vshll.u32 %v3691, 16
        %v3748 = vrot.slane %v3746, 6
        %v3749 = vor.u32 %v3745, %v3748
        %v3750 = vsel %vm3697, %v3740, %v3749
        %v3755 = vunpack.c.l.b16 %v3693
        %v3756 = vunpack.c.l.b16 %v3694
        %v3757 = vunpack.c.l.b16 %v3695
        %v3758 = vunpack.c.l.b16 %v3696
        %v3759 = vpack.c.b16 %v3756, %v3755
        %v3760 = vpack.c.b16 %v3758, %v3757
        %v3764 = vsel %vm619, %v3714, 0
        %v3767 = vsel %vm619, %v3723, 0
        %v3770 = vsel %vm619, %v3732, 0
        %v3773 = vsel %vm619, %v3741, 0
        %v3776 = vsel %vm619, %v3750, 0
        %3778 = vmatprep.subr.bf16.mxu0 0
        %3779 = vmatpush1.bf16.msra.mxu0 %v3759
        %3780 = vmatprep.subr.bf16.mxu0 0
        %3781 = vmatpush1.bf16.msra.mxu0 %v3760
        %3782 = vmatprep.subr.bf16.mxu0 0
        %3783 = vmatpush1.bf16.msra.mxu0 0
        %3784 = vmatprep.subr.bf16.mxu0 0
        %3785 = vmatpush1.bf16.msra.mxu0 0
        %3786 = vmatprep.subr.bf16.mxu0 0
        %3787 = vmatpush1.bf16.msra.mxu0 0
        %3788 = vmatprep.subr.bf16.mxu0 0
        %3789 = vmatpush1.bf16.msra.mxu0 0
        %3790 = vmatprep.subr.bf16.mxu0 0
        %3791 = vmatpush1.bf16.msra.mxu0 0
        %3792 = vmatprep.subr.bf16.mxu0 0
        %3793 = vmatpush1.bf16.msra.mxu0 0
        %3794 = vmatprep.subr.bf16.mxu0 0
        %3795 = vmatpush1.bf16.msra.mxu0 0
        %3796 = vmatprep.subr.bf16.mxu0 0
        %3797 = vmatpush1.bf16.msra.mxu0 0
        %3798 = vmatprep.subr.bf16.mxu0 0
        %3799 = vmatpush1.bf16.msra.mxu0 0
        %3800 = vmatprep.subr.bf16.mxu0 0
        %3801 = vmatpush1.bf16.msra.mxu0 0
        %3802 = vmatprep.subr.bf16.mxu0 0
        %3803 = vmatpush1.bf16.msra.mxu0 0
        %3804 = vmatprep.subr.bf16.mxu0 0
        %3805 = vmatpush1.bf16.msra.mxu0 0
        %3806 = vmatprep.subr.bf16.mxu0 0
        %3807 = vmatpush1.bf16.msra.mxu0 0
        %3808 = vmatprep.subr.bf16.mxu0 0
        %3809 = vmatpush1.bf16.msra.mxu0 0
        %3810 = vmatprep.mubr.bf16.mxu0 0
        %3811 = vmatmul.mubr.bf16.gmra.mrb[0].mxu0 %v3764
        %v3812 = vpop.f32.mrb[0].mxu0
        %v3813 = vadd.f32 0.0, %v3812
        %v3814 = vpop.f32.mrb[0].mxu0
        %v3815 = vpop.f32.mrb[0].mxu0
        %v3816 = vadd.f32 0.0, %v3815
        %v3817 = vpop.f32.mrb[0].mxu0
        %3818 = vmatprep.mubr.bf16.mxu0 0
        %3819 = vmatmul.mubr.bf16.gmra.mrb[0].mxu0 %v3767
        %v3820 = vpop.f32.mrb[0].mxu0
        %v3821 = vadd.f32 0.0, %v3820
        %v3822 = vpop.f32.mrb[0].mxu0
        %v3823 = vpop.f32.mrb[0].mxu0
        %v3824 = vadd.f32 0.0, %v3823
        %v3825 = vpop.f32.mrb[0].mxu0
        %3826 = vmatprep.mubr.bf16.mxu0 0
        %3827 = vmatmul.mubr.bf16.gmra.mrb[0].mxu0 %v3770
        %v3828 = vpop.f32.mrb[0].mxu0
        %v3829 = vadd.f32 0.0, %v3828
        %v3830 = vpop.f32.mrb[0].mxu0
        %v3831 = vpop.f32.mrb[0].mxu0
        %v3832 = vadd.f32 0.0, %v3831
        %v3833 = vpop.f32.mrb[0].mxu0
        %3834 = vmatprep.mubr.bf16.mxu0 0
        %3835 = vmatmul.mubr.bf16.gmra.mrb[0].mxu0 %v3773
        %v3836 = vpop.f32.mrb[0].mxu0
        %v3837 = vadd.f32 0.0, %v3836
        %v3838 = vpop.f32.mrb[0].mxu0
        %v3839 = vpop.f32.mrb[0].mxu0
        %v3840 = vadd.f32 0.0, %v3839
        %v3841 = vpop.f32.mrb[0].mxu0
        %3842 = vmatprep.mubr.bf16.mxu0 0
        %3843 = vmatmul.mubr.bf16.gmra.mrb[0].mxu0 %v3776
        %v3844 = vpop.f32.mrb[0].mxu0
        %v3845 = vadd.f32 0.0, %v3844
        %v3846 = vpop.f32.mrb[0].mxu0
        %v3847 = vpop.f32.mrb[0].mxu0
        %v3848 = vpop.f32.mrb[0].mxu0
        %3849 = vdwg.mxu0
        %v3850 = vadd.f32 %v3677, %v3813
        %v3851 = vadd.f32 %v3678, %v3816
        %v3852 = vadd.f32 %v3679, %v3821
        %v3853 = vadd.f32 %v3680, %v3824
        %v3854 = vadd.f32 %v3681, %v3829
        %v3855 = vadd.f32 %v3682, %v3832
        %v3856 = vadd.f32 %v3683, %v3837
        %v3857 = vadd.f32 %v3684, %v3840
        %v3858 = vadd.f32 %v3685, %v3845
        %3859 = vst.msk [vmem:[#allocation3] sm:$0xff] %vm619, %v3850
        %3860 = vst.msk [vmem:[#allocation3 + $0x8] sm:$0xff] %vm619, %v3851
        %3861 = vst.msk [vmem:[#allocation3 + $0x10] sm:$0xff] %vm619, %v3852
        %3862 = vst.msk [vmem:[#allocation3 + $0x18] sm:$0xff] %vm619, %v3853
        %3863 = vst.msk [vmem:[#allocation3 + $0x20] sm:$0xff] %vm619, %v3854
        %3864 = vst.msk [vmem:[#allocation3 + $0x28] sm:$0xff] %vm619, %v3855
        %3865 = vst.msk [vmem:[#allocation3 + $0x30] sm:$0xff] %vm619, %v3856
        %3866 = vst.msk [vmem:[#allocation3 + $0x38] sm:$0xff] %vm619, %v3857
        %3867 = vst.msk [vmem:[#allocation3 + $0x40] sm:$0xff] %vm619, %v3858
        %v3868 = vld [vmem:[#allocation3] sm:$0xff]
        %v3869 = vld [vmem:[#allocation3 + $0x8] sm:$0xff]
        %v3870 = vld [vmem:[#allocation3 + $0x10] sm:$0xff]
        %v3871 = vld [vmem:[#allocation3 + $0x18] sm:$0xff]
        %v3872 = vld [vmem:[#allocation3 + $0x20] sm:$0xff]
        %v3873 = vld [vmem:[#allocation3 + $0x28] sm:$0xff]
        %v3874 = vld [vmem:[#allocation3 + $0x30] sm:$0xff]
        %v3875 = vld [vmem:[#allocation3 + $0x38] sm:$0xff]
        %v3876 = vld [vmem:[#allocation3 + $0x40] sm:$0xff]
        %v3877 = vld [vmem:[#allocation2 + $0x8] sm:$0xfe]
        %v3878 = vld [vmem:[#allocation2 + $0x10] sm:$0xff]
        %v3879 = vld [vmem:[#allocation2 + $0x18] sm:$0xff]
        %v3880 = vld [vmem:[#allocation2 + $0x20] sm:$0xff]
        %v3881 = vld [vmem:[#allocation2 + $0x28] sm:$0x1f]
        %s3882 = scalar_lea.vmem %s4, 96
        %v3883 = vld [vmem:[%s3882] sm:$0xf]
        %v3884 = vld [vmem:[%s3882 + $0x4] sm:$0xf]
        %v3885 = vld [vmem:[%s3882 + $0x8] sm:$0xf]
        %v3886 = vld [vmem:[%s3882 + $0xc] sm:$0xf]
        %v3892 = vrot.slane %v3877, 1
        %v3893 = vrot.slane %v3878, 1
        %v3894 = vsel %vm3208, %v3892, %v3893
        %v3895 = vrot.slane %v3879, 1
        %v3896 = vsel %vm3208, %v3893, %v3895
        %v3897 = vrot.slane %v3880, 1
        %v3898 = vsel %vm3208, %v3895, %v3897
        %v3899 = vrot.slane %v3881, 1
        %v3900 = vsel %vm3208, %v3897, %v3899
        %v3905 = vunpack.c.l.b16 %v3883
        %v3906 = vunpack.c.l.b16 %v3884
        %v3907 = vunpack.c.l.b16 %v3885
        %v3908 = vunpack.c.l.b16 %v3886
        %v3909 = vpack.c.b16 %v3906, %v3905
        %v3910 = vpack.c.b16 %v3908, %v3907
        %v3914 = vsel %vm619, %v3894, 0
        %v3917 = vsel %vm619, %v3896, 0
        %v3920 = vsel %vm619, %v3898, 0
        %v3923 = vsel %vm619, %v3900, 0
        %v3926 = vsel %vm619, %v3899, 0
        %3928 = vmatprep.subr.bf16.mxu0 0
        %3929 = vmatpush1.bf16.msra.mxu0 %v3909
        %3930 = vmatprep.subr.bf16.mxu0 0
        %3931 = vmatpush1.bf16.msra.mxu0 %v3910
        %3932 = vmatprep.subr.bf16.mxu0 0
        %3933 = vmatpush1.bf16.msra.mxu0 0
        %3934 = vmatprep.subr.bf16.mxu0 0
        %3935 = vmatpush1.bf16.msra.mxu0 0
        %3936 = vmatprep.subr.bf16.mxu0 0
        %3937 = vmatpush1.bf16.msra.mxu0 0
        %3938 = vmatprep.subr.bf16.mxu0 0
        %3939 = vmatpush1.bf16.msra.mxu0 0
        %3940 = vmatprep.subr.bf16.mxu0 0
        %3941 = vmatpush1.bf16.msra.mxu0 0
        %3942 = vmatprep.subr.bf16.mxu0 0
        %3943 = vmatpush1.bf16.msra.mxu0 0
        %3944 = vmatprep.subr.bf16.mxu0 0
        %3945 = vmatpush1.bf16.msra.mxu0 0
        %3946 = vmatprep.subr.bf16.mxu0 0
        %3947 = vmatpush1.bf16.msra.mxu0 0
        %3948 = vmatprep.subr.bf16.mxu0 0
        %3949 = vmatpush1.bf16.msra.mxu0 0
        %3950 = vmatprep.subr.bf16.mxu0 0
        %3951 = vmatpush1.bf16.msra.mxu0 0
        %3952 = vmatprep.subr.bf16.mxu0 0
        %3953 = vmatpush1.bf16.msra.mxu0 0
        %3954 = vmatprep.subr.bf16.mxu0 0
        %3955 = vmatpush1.bf16.msra.mxu0 0
        %3956 = vmatprep.subr.bf16.mxu0 0
        %3957 = vmatpush1.bf16.msra.mxu0 0
        %3958 = vmatprep.subr.bf16.mxu0 0
        %3959 = vmatpush1.bf16.msra.mxu0 0
        %3960 = vmatprep.mubr.bf16.mxu0 0
        %3961 = vmatmul.mubr.bf16.gmra.mrb[0].mxu0 %v3914
        %v3962 = vpop.f32.mrb[0].mxu0
        %v3963 = vadd.f32 0.0, %v3962
        %v3964 = vpop.f32.mrb[0].mxu0
        %v3965 = vpop.f32.mrb[0].mxu0
        %v3966 = vadd.f32 0.0, %v3965
        %v3967 = vpop.f32.mrb[0].mxu0
        %3968 = vmatprep.mubr.bf16.mxu0 0
        %3969 = vmatmul.mubr.bf16.gmra.mrb[0].mxu0 %v3917
        %v3970 = vpop.f32.mrb[0].mxu0
        %v3971 = vadd.f32 0.0, %v3970
        %v3972 = vpop.f32.mrb[0].mxu0
        %v3973 = vpop.f32.mrb[0].mxu0
        %v3974 = vadd.f32 0.0, %v3973
        %v3975 = vpop.f32.mrb[0].mxu0
        %3976 = vmatprep.mubr.bf16.mxu0 0
        %3977 = vmatmul.mubr.bf16.gmra.mrb[0].mxu0 %v3920
        %v3978 = vpop.f32.mrb[0].mxu0
        %v3979 = vadd.f32 0.0, %v3978
        %v3980 = vpop.f32.mrb[0].mxu0
        %v3981 = vpop.f32.mrb[0].mxu0
        %v3982 = vadd.f32 0.0, %v3981
        %v3983 = vpop.f32.mrb[0].mxu0
        %3984 = vmatprep.mubr.bf16.mxu0 0
        %3985 = vmatmul.mubr.bf16.gmra.mrb[0].mxu0 %v3923
        %v3986 = vpop.f32.mrb[0].mxu0
        %v3987 = vadd.f32 0.0, %v3986
        %v3988 = vpop.f32.mrb[0].mxu0
        %v3989 = vpop.f32.mrb[0].mxu0
        %v3990 = vadd.f32 0.0, %v3989
        %v3991 = vpop.f32.mrb[0].mxu0
        %3992 = vmatprep.mubr.bf16.mxu0 0
        %3993 = vmatmul.mubr.bf16.gmra.mrb[0].mxu0 %v3926
        %v3994 = vpop.f32.mrb[0].mxu0
        %v3995 = vadd.f32 0.0, %v3994
        %v3996 = vpop.f32.mrb[0].mxu0
        %v3997 = vpop.f32.mrb[0].mxu0
        %v3998 = vpop.f32.mrb[0].mxu0
        %3999 = vdwg.mxu0
        %v4000 = vadd.f32 %v3868, %v3963
        %v4001 = vadd.f32 %v3869, %v3966
        %v4002 = vadd.f32 %v3870, %v3971
        %v4003 = vadd.f32 %v3871, %v3974
        %v4004 = vadd.f32 %v3872, %v3979
        %v4005 = vadd.f32 %v3873, %v3982
        %v4006 = vadd.f32 %v3874, %v3987
        %v4007 = vadd.f32 %v3875, %v3990
        %v4008 = vadd.f32 %v3876, %v3995
        %4009 = vst.msk [vmem:[#allocation3] sm:$0xff] %vm619, %v4000
        %4010 = vst.msk [vmem:[#allocation3 + $0x8] sm:$0xff] %vm619, %v4001
        %4011 = vst.msk [vmem:[#allocation3 + $0x10] sm:$0xff] %vm619, %v4002
        %4012 = vst.msk [vmem:[#allocation3 + $0x18] sm:$0xff] %vm619, %v4003
        %4013 = vst.msk [vmem:[#allocation3 + $0x20] sm:$0xff] %vm619, %v4004
        %4014 = vst.msk [vmem:[#allocation3 + $0x28] sm:$0xff] %vm619, %v4005
        %4015 = vst.msk [vmem:[#allocation3 + $0x30] sm:$0xff] %vm619, %v4006
        %4016 = vst.msk [vmem:[#allocation3 + $0x38] sm:$0xff] %vm619, %v4007
        %4017 = vst.msk [vmem:[#allocation3 + $0x40] sm:$0xff] %vm619, %v4008
        %v4018 = vld [vmem:[#allocation3] sm:$0xff]
        %v4019 = vld [vmem:[#allocation3 + $0x8] sm:$0xff]
        %v4020 = vld [vmem:[#allocation3 + $0x10] sm:$0xff]
        %v4021 = vld [vmem:[#allocation3 + $0x18] sm:$0xff]
        %v4022 = vld [vmem:[#allocation3 + $0x20] sm:$0xff]
        %v4023 = vld [vmem:[#allocation3 + $0x28] sm:$0xff]
        %v4024 = vld [vmem:[#allocation3 + $0x30] sm:$0xff]
        %v4025 = vld [vmem:[#allocation3 + $0x38] sm:$0xff]
        %v4026 = vld [vmem:[#allocation3 + $0x40] sm:$0xff]
        %v4027 = vld [vmem:[#allocation2 + $0x8] sm:$0xfe]
        %v4028 = vld [vmem:[#allocation2 + $0x10] sm:$0xff]
        %v4029 = vld [vmem:[#allocation2 + $0x18] sm:$0xff]
        %v4030 = vld [vmem:[#allocation2 + $0x20] sm:$0xff]
        %v4031 = vld [vmem:[#allocation2 + $0x28] sm:$0x3f]
        %s4032 = scalar_lea.vmem %s4, 112
        %v4033 = vld [vmem:[%s4032] sm:$0xf]
        %v4034 = vld [vmem:[%s4032 + $0x4] sm:$0xf]
        %v4035 = vld [vmem:[%s4032 + $0x8] sm:$0xf]
        %v4036 = vld [vmem:[%s4032 + $0xc] sm:$0xf]
        %vm4037 = vsmask.f32 6400
        %v4039 = vshrl.u32 %v4027, 16
        %v4041 = vrot.slane %v4039, 1
        %v4042 = vshll.u32 %v4027, 16
        %v4044 = vrot.slane %v4042, 2
        %v4045 = vor.u32 %v4041, %v4044
        %v4047 = vshrl.u32 %v4028, 16
        %v4049 = vrot.slane %v4047, 1
        %v4050 = vshll.u32 %v4028, 16
        %v4052 = vrot.slane %v4050, 2
        %v4053 = vor.u32 %v4049, %v4052
        %v4054 = vsel %vm4037, %v4045, %v4053
        %v4056 = vshrl.u32 %v4029, 16
        %v4058 = vrot.slane %v4056, 1
        %v4059 = vshll.u32 %v4029, 16
        %v4061 = vrot.slane %v4059, 2
        %v4062 = vor.u32 %v4058, %v4061
        %v4063 = vsel %vm4037, %v4053, %v4062
        %v4065 = vshrl.u32 %v4030, 16
        %v4067 = vrot.slane %v4065, 1
        %v4068 = vshll.u32 %v4030, 16
        %v4070 = vrot.slane %v4068, 2
        %v4071 = vor.u32 %v4067, %v4070
        %v4072 = vsel %vm4037, %v4062, %v4071
        %v4074 = vshrl.u32 %v4031, 16
        %v4076 = vrot.slane %v4074, 1
        %v4077 = vshll.u32 %v4031, 16
        %v4079 = vrot.slane %v4077, 2
        %v4080 = vor.u32 %v4076, %v4079
        %v4081 = vsel %vm4037, %v4071, %v4080
        %v4086 = vunpack.c.l.b16 %v4033
        %v4087 = vunpack.c.l.b16 %v4034
        %v4088 = vunpack.c.l.b16 %v4035
        %v4089 = vunpack.c.l.b16 %v4036
        %v4090 = vpack.c.b16 %v4087, %v4086
        %v4091 = vpack.c.b16 %v4089, %v4088
        %v4095 = vsel %vm619, %v4054, 0
        %v4098 = vsel %vm619, %v4063, 0
        %v4101 = vsel %vm619, %v4072, 0
        %v4104 = vsel %vm619, %v4081, 0
        %v4107 = vsel %vm619, %v4080, 0
        %4109 = vmatprep.subr.bf16.mxu0 0
        %4110 = vmatpush1.bf16.msra.mxu0 %v4090
        %4111 = vmatprep.subr.bf16.mxu0 0
        %4112 = vmatpush1.bf16.msra.mxu0 %v4091
        %4113 = vmatprep.subr.bf16.mxu0 0
        %4114 = vmatpush1.bf16.msra.mxu0 0
        %4115 = vmatprep.subr.bf16.mxu0 0
        %4116 = vmatpush1.bf16.msra.mxu0 0
        %4117 = vmatprep.subr.bf16.mxu0 0
        %4118 = vmatpush1.bf16.msra.mxu0 0
        %4119 = vmatprep.subr.bf16.mxu0 0
        %4120 = vmatpush1.bf16.msra.mxu0 0
        %4121 = vmatprep.subr.bf16.mxu0 0
        %4122 = vmatpush1.bf16.msra.mxu0 0
        %4123 = vmatprep.subr.bf16.mxu0 0
        %4124 = vmatpush1.bf16.msra.mxu0 0
        %4125 = vmatprep.subr.bf16.mxu0 0
        %4126 = vmatpush1.bf16.msra.mxu0 0
        %4127 = vmatprep.subr.bf16.mxu0 0
        %4128 = vmatpush1.bf16.msra.mxu0 0
        %4129 = vmatprep.subr.bf16.mxu0 0
        %4130 = vmatpush1.bf16.msra.mxu0 0
        %4131 = vmatprep.subr.bf16.mxu0 0
        %4132 = vmatpush1.bf16.msra.mxu0 0
        %4133 = vmatprep.subr.bf16.mxu0 0
        %4134 = vmatpush1.bf16.msra.mxu0 0
        %4135 = vmatprep.subr.bf16.mxu0 0
        %4136 = vmatpush1.bf16.msra.mxu0 0
        %4137 = vmatprep.subr.bf16.mxu0 0
        %4138 = vmatpush1.bf16.msra.mxu0 0
        %4139 = vmatprep.subr.bf16.mxu0 0
        %4140 = vmatpush1.bf16.msra.mxu0 0
        %4141 = vmatprep.mubr.bf16.mxu0 0
        %4142 = vmatmul.mubr.bf16.gmra.mrb[0].mxu0 %v4095
        %v4143 = vpop.f32.mrb[0].mxu0
        %v4144 = vadd.f32 0.0, %v4143
        %v4145 = vpop.f32.mrb[0].mxu0
        %v4146 = vpop.f32.mrb[0].mxu0
        %v4147 = vadd.f32 0.0, %v4146
        %v4148 = vpop.f32.mrb[0].mxu0
        %4149 = vmatprep.mubr.bf16.mxu0 0
        %4150 = vmatmul.mubr.bf16.gmra.mrb[0].mxu0 %v4098
        %v4151 = vpop.f32.mrb[0].mxu0
        %v4152 = vadd.f32 0.0, %v4151
        %v4153 = vpop.f32.mrb[0].mxu0
        %v4154 = vpop.f32.mrb[0].mxu0
        %v4155 = vadd.f32 0.0, %v4154
        %v4156 = vpop.f32.mrb[0].mxu0
        %4157 = vmatprep.mubr.bf16.mxu0 0
        %4158 = vmatmul.mubr.bf16.gmra.mrb[0].mxu0 %v4101
        %v4159 = vpop.f32.mrb[0].mxu0
        %v4160 = vadd.f32 0.0, %v4159
        %v4161 = vpop.f32.mrb[0].mxu0
        %v4162 = vpop.f32.mrb[0].mxu0
        %v4163 = vadd.f32 0.0, %v4162
        %v4164 = vpop.f32.mrb[0].mxu0
        %4165 = vmatprep.mubr.bf16.mxu0 0
        %4166 = vmatmul.mubr.bf16.gmra.mrb[0].mxu0 %v4104
        %v4167 = vpop.f32.mrb[0].mxu0
        %v4168 = vadd.f32 0.0, %v4167
        %v4169 = vpop.f32.mrb[0].mxu0
        %v4170 = vpop.f32.mrb[0].mxu0
        %v4171 = vadd.f32 0.0, %v4170
        %v4172 = vpop.f32.mrb[0].mxu0
        %4173 = vmatprep.mubr.bf16.mxu0 0
        %4174 = vmatmul.mubr.bf16.gmra.mrb[0].mxu0 %v4107
        %v4175 = vpop.f32.mrb[0].mxu0
        %v4176 = vadd.f32 0.0, %v4175
        %v4177 = vpop.f32.mrb[0].mxu0
        %v4178 = vpop.f32.mrb[0].mxu0
        %v4179 = vpop.f32.mrb[0].mxu0
        %4180 = vdwg.mxu0
        %v4181 = vadd.f32 %v4018, %v4144
        %v4182 = vadd.f32 %v4019, %v4147
        %v4183 = vadd.f32 %v4020, %v4152
        %v4184 = vadd.f32 %v4021, %v4155
        %v4185 = vadd.f32 %v4022, %v4160
        %v4186 = vadd.f32 %v4023, %v4163
        %v4187 = vadd.f32 %v4024, %v4168
        %v4188 = vadd.f32 %v4025, %v4171
        %v4189 = vadd.f32 %v4026, %v4176
        %4190 = vst.msk [vmem:[#allocation3] sm:$0xff] %vm619, %v4181
        %4191 = vst.msk [vmem:[#allocation3 + $0x8] sm:$0xff] %vm619, %v4182
        %4192 = vst.msk [vmem:[#allocation3 + $0x10] sm:$0xff] %vm619, %v4183
        %4193 = vst.msk [vmem:[#allocation3 + $0x18] sm:$0xff] %vm619, %v4184
        %4194 = vst.msk [vmem:[#allocation3 + $0x20] sm:$0xff] %vm619, %v4185
        %4195 = vst.msk [vmem:[#allocation3 + $0x28] sm:$0xff] %vm619, %v4186
        %4196 = vst.msk [vmem:[#allocation3 + $0x30] sm:$0xff] %vm619, %v4187
        %4197 = vst.msk [vmem:[#allocation3 + $0x38] sm:$0xff] %vm619, %v4188
        %4198 = vst.msk [vmem:[#allocation3 + $0x40] sm:$0xff] %vm619, %v4189
        %v4199 = vld [vmem:[#allocation3] sm:$0xff]
        %v4200 = vld [vmem:[#allocation3 + $0x8] sm:$0xff]
        %v4201 = vld [vmem:[#allocation3 + $0x10] sm:$0xff]
        %v4202 = vld [vmem:[#allocation3 + $0x18] sm:$0xff]
        %v4203 = vld [vmem:[#allocation3 + $0x20] sm:$0xff]
        %v4204 = vld [vmem:[#allocation3 + $0x28] sm:$0xff]
        %v4205 = vld [vmem:[#allocation3 + $0x30] sm:$0xff]
        %v4206 = vld [vmem:[#allocation3 + $0x38] sm:$0xff]
        %v4207 = vld [vmem:[#allocation3 + $0x40] sm:$0xff]
        %v4208 = vld [vmem:[#allocation2 + $0x8] sm:$0xfc]
        %v4209 = vld [vmem:[#allocation2 + $0x10] sm:$0xff]
        %v4210 = vld [vmem:[#allocation2 + $0x18] sm:$0xff]
        %v4211 = vld [vmem:[#allocation2 + $0x20] sm:$0xff]
        %v4212 = vld [vmem:[#allocation2 + $0x28] sm:$0x3f]
        %s4213 = scalar_lea.vmem %s4, 128
        %v4214 = vld [vmem:[%s4213] sm:$0xf]
        %v4215 = vld [vmem:[%s4213 + $0x4] sm:$0xf]
        %v4216 = vld [vmem:[%s4213 + $0x8] sm:$0xf]
        %v4217 = vld [vmem:[%s4213 + $0xc] sm:$0xf]
        %vm4223 = vcmask 1045504
        %v4224 = vrot.slane %v4208, 2
        %v4225 = vrot.slane %v4209, 2
        %v4226 = vsel %vm4223, %v4224, %v4225
        %v4227 = vrot.slane %v4210, 2
        %v4228 = vsel %vm4223, %v4225, %v4227
        %v4229 = vrot.slane %v4211, 2
        %v4230 = vsel %vm4223, %v4227, %v4229
        %v4231 = vrot.slane %v4212, 2
        %v4232 = vsel %vm4223, %v4229, %v4231
        %v4237 = vunpack.c.l.b16 %v4214
        %v4238 = vunpack.c.l.b16 %v4215
        %v4239 = vunpack.c.l.b16 %v4216
        %v4240 = vunpack.c.l.b16 %v4217
        %v4241 = vpack.c.b16 %v4238, %v4237
        %v4242 = vpack.c.b16 %v4240, %v4239
        %v4246 = vsel %vm619, %v4226, 0
        %v4249 = vsel %vm619, %v4228, 0
        %v4252 = vsel %vm619, %v4230, 0
        %v4255 = vsel %vm619, %v4232, 0
        %v4258 = vsel %vm619, %v4231, 0
        %4260 = vmatprep.subr.bf16.mxu0 0
        %4261 = vmatpush1.bf16.msra.mxu0 %v4241
        %4262 = vmatprep.subr.bf16.mxu0 0
        %4263 = vmatpush1.bf16.msra.mxu0 %v4242
        %4264 = vmatprep.subr.bf16.mxu0 0
        %4265 = vmatpush1.bf16.msra.mxu0 0
        %4266 = vmatprep.subr.bf16.mxu0 0
        %4267 = vmatpush1.bf16.msra.mxu0 0
        %4268 = vmatprep.subr.bf16.mxu0 0
        %4269 = vmatpush1.bf16.msra.mxu0 0
        %4270 = vmatprep.subr.bf16.mxu0 0
        %4271 = vmatpush1.bf16.msra.mxu0 0
        %4272 = vmatprep.subr.bf16.mxu0 0
        %4273 = vmatpush1.bf16.msra.mxu0 0
        %4274 = vmatprep.subr.bf16.mxu0 0
        %4275 = vmatpush1.bf16.msra.mxu0 0
        %4276 = vmatprep.subr.bf16.mxu0 0
        %4277 = vmatpush1.bf16.msra.mxu0 0
        %4278 = vmatprep.subr.bf16.mxu0 0
        %4279 = vmatpush1.bf16.msra.mxu0 0
        %4280 = vmatprep.subr.bf16.mxu0 0
        %4281 = vmatpush1.bf16.msra.mxu0 0
        %4282 = vmatprep.subr.bf16.mxu0 0
        %4283 = vmatpush1.bf16.msra.mxu0 0
        %4284 = vmatprep.subr.bf16.mxu0 0
        %4285 = vmatpush1.bf16.msra.mxu0 0
        %4286 = vmatprep.subr.bf16.mxu0 0
        %4287 = vmatpush1.bf16.msra.mxu0 0
        %4288 = vmatprep.subr.bf16.mxu0 0
        %4289 = vmatpush1.bf16.msra.mxu0 0
        %4290 = vmatprep.subr.bf16.mxu0 0
        %4291 = vmatpush1.bf16.msra.mxu0 0
        %4292 = vmatprep.mubr.bf16.mxu0 0
        %4293 = vmatmul.mubr.bf16.gmra.mrb[0].mxu0 %v4246
        %v4294 = vpop.f32.mrb[0].mxu0
        %v4295 = vadd.f32 0.0, %v4294
        %v4296 = vpop.f32.mrb[0].mxu0
        %v4297 = vpop.f32.mrb[0].mxu0
        %v4298 = vadd.f32 0.0, %v4297
        %v4299 = vpop.f32.mrb[0].mxu0
        %4300 = vmatprep.mubr.bf16.mxu0 0
        %4301 = vmatmul.mubr.bf16.gmra.mrb[0].mxu0 %v4249
        %v4302 = vpop.f32.mrb[0].mxu0
        %v4303 = vadd.f32 0.0, %v4302
        %v4304 = vpop.f32.mrb[0].mxu0
        %v4305 = vpop.f32.mrb[0].mxu0
        %v4306 = vadd.f32 0.0, %v4305
        %v4307 = vpop.f32.mrb[0].mxu0
        %4308 = vmatprep.mubr.bf16.mxu0 0
        %4309 = vmatmul.mubr.bf16.gmra.mrb[0].mxu0 %v4252
        %v4310 = vpop.f32.mrb[0].mxu0
        %v4311 = vadd.f32 0.0, %v4310
        %v4312 = vpop.f32.mrb[0].mxu0
        %v4313 = vpop.f32.mrb[0].mxu0
        %v4314 = vadd.f32 0.0, %v4313
        %v4315 = vpop.f32.mrb[0].mxu0
        %4316 = vmatprep.mubr.bf16.mxu0 0
        %4317 = vmatmul.mubr.bf16.gmra.mrb[0].mxu0 %v4255
        %v4318 = vpop.f32.mrb[0].mxu0
        %v4319 = vadd.f32 0.0, %v4318
        %v4320 = vpop.f32.mrb[0].mxu0
        %v4321 = vpop.f32.mrb[0].mxu0
        %v4322 = vadd.f32 0.0, %v4321
        %v4323 = vpop.f32.mrb[0].mxu0
        %4324 = vmatprep.mubr.bf16.mxu0 0
        %4325 = vmatmul.mubr.bf16.gmra.mrb[0].mxu0 %v4258
        %v4326 = vpop.f32.mrb[0].mxu0
        %v4327 = vadd.f32 0.0, %v4326
        %v4328 = vpop.f32.mrb[0].mxu0
        %v4329 = vpop.f32.mrb[0].mxu0
        %v4330 = vpop.f32.mrb[0].mxu0
        %4331 = vdwg.mxu0
        %v4332 = vadd.f32 %v4199, %v4295
        %v4333 = vadd.f32 %v4200, %v4298
        %v4334 = vadd.f32 %v4201, %v4303
        %v4335 = vadd.f32 %v4202, %v4306
        %v4336 = vadd.f32 %v4203, %v4311
        %v4337 = vadd.f32 %v4204, %v4314
        %v4338 = vadd.f32 %v4205, %v4319
        %v4339 = vadd.f32 %v4206, %v4322
        %v4340 = vadd.f32 %v4207, %v4327
        %4341 = vst.msk [vmem:[#allocation3] sm:$0xff] %vm619, %v4332
        %4342 = vst.msk [vmem:[#allocation3 + $0x8] sm:$0xff] %vm619, %v4333
        %4343 = vst.msk [vmem:[#allocation3 + $0x10] sm:$0xff] %vm619, %v4334
        %4344 = vst.msk [vmem:[#allocation3 + $0x18] sm:$0xff] %vm619, %v4335
        %4345 = vst.msk [vmem:[#allocation3 + $0x20] sm:$0xff] %vm619, %v4336
        %4346 = vst.msk [vmem:[#allocation3 + $0x28] sm:$0xff] %vm619, %v4337
        %4347 = vst.msk [vmem:[#allocation3 + $0x30] sm:$0xff] %vm619, %v4338
        %4348 = vst.msk [vmem:[#allocation3 + $0x38] sm:$0xff] %vm619, %v4339
        %4349 = vst.msk [vmem:[#allocation3 + $0x40] sm:$0xff] %vm619, %v4340
        %v4350 = vld [vmem:[%s14] sm:$0xff]
        %v4351 = vld [vmem:[%s14 + $0x8] sm:$0xff]
        %v4352 = vld [vmem:[%s14 + $0x10] sm:$0xff]
        %v4353 = vld [vmem:[%s14 + $0x18] sm:$0xff]
        %v4354 = vld [vmem:[%s14 + $0x20] sm:$0xff]
        %v4355 = vld [vmem:[%s14 + $0x28] sm:$0xff]
        %v4356 = vld [vmem:[%s14 + $0x30] sm:$0xff]
        %v4357 = vld [vmem:[%s14 + $0x38] sm:$0xff]
        %v4358 = vld [vmem:[%s14 + $0x40] sm:$0xff]
        %v4359 = vld [vmem:[#allocation3] sm:$0xff]
        %v4360 = vld [vmem:[#allocation3 + $0x8] sm:$0xff]
        %v4361 = vld [vmem:[#allocation3 + $0x10] sm:$0xff]
        %v4362 = vld [vmem:[#allocation3 + $0x18] sm:$0xff]
        %v4363 = vld [vmem:[#allocation3 + $0x20] sm:$0xff]
        %v4364 = vld [vmem:[#allocation3 + $0x28] sm:$0xff]
        %v4365 = vld [vmem:[#allocation3 + $0x30] sm:$0xff]
        %v4366 = vld [vmem:[#allocation3 + $0x38] sm:$0xff]
        %v4367 = vld [vmem:[#allocation3 + $0x40] sm:$0xff]
        %4369 = vset.pattern.permute.xlu0 0
        %4370 = vperm.xlu0 %4369, %v4350
        %v4371 = vpop.permute.xlu0 %4370
        %4374 = vset.pattern.permute.xlu0 0
        %4375 = vperm.xlu0 %4374, %v4351
        %v4376 = vpop.permute.xlu0 %4375
        %4379 = vset.pattern.permute.xlu0 0
        %4380 = vperm.xlu0 %4379, %v4352
        %v4381 = vpop.permute.xlu0 %4380
        %4384 = vset.pattern.permute.xlu0 0
        %4385 = vperm.xlu0 %4384, %v4353
        %v4386 = vpop.permute.xlu0 %4385
        %4389 = vset.pattern.permute.xlu0 0
        %4390 = vperm.xlu0 %4389, %v4354
        %v4391 = vpop.permute.xlu0 %4390
        %4394 = vset.pattern.permute.xlu0 0
        %4395 = vperm.xlu0 %4394, %v4355
        %v4396 = vpop.permute.xlu0 %4395
        %4399 = vset.pattern.permute.xlu0 0
        %4400 = vperm.xlu0 %4399, %v4356
        %v4401 = vpop.permute.xlu0 %4400
        %4404 = vset.pattern.permute.xlu0 0
        %4405 = vperm.xlu0 %4404, %v4357
        %v4406 = vpop.permute.xlu0 %4405
        %4409 = vset.pattern.permute.xlu0 0
        %4410 = vperm.xlu0 %4409, %v4358
        %v4411 = vpop.permute.xlu0 %4410
        %v4413 = vmul.f32 %v4359, %v4371
        %v4414 = vmul.f32 %v4360, %v4376
        %v4415 = vmul.f32 %v4361, %v4381
        %v4416 = vmul.f32 %v4362, %v4386
        %v4417 = vmul.f32 %v4363, %v4391
        %v4418 = vmul.f32 %v4364, %v4396
        %v4419 = vmul.f32 %v4365, %v4401
        %v4420 = vmul.f32 %v4366, %v4406
        %v4421 = vmul.f32 %v4367, %v4411
        %v4422 = vsel %vm619, %v4413, 0.0
        %v4423 = vsel %vm619, %v4414, 0.0
        %v4424 = vadd.f32 %v4422, %v4423
        %v4425 = vsel %vm619, %v4415, 0.0
        %v4426 = vadd.f32 %v4424, %v4425
        %v4427 = vsel %vm619, %v4416, 0.0
        %v4428 = vadd.f32 %v4426, %v4427
        %v4429 = vsel %vm619, %v4417, 0.0
        %v4430 = vadd.f32 %v4428, %v4429
        %v4431 = vsel %vm619, %v4418, 0.0
        %v4432 = vadd.f32 %v4430, %v4431
        %v4433 = vsel %vm619, %v4419, 0.0
        %v4434 = vadd.f32 %v4432, %v4433
        %v4435 = vsel %vm619, %v4420, 0.0
        %v4436 = vadd.f32 %v4434, %v4435
        %v4437 = vsel %vm619, %v4421, 0.0
        %v4438 = vadd.f32 %v4436, %v4437
        %v4439 = vrot.slane %v4438, 4
        %v4440 = vadd.f32 %v4438, %v4439
        %v4441 = vrot.slane %v4440, 2
        %v4442 = vadd.f32 %v4440, %v4441
        %v4443 = vrot.slane %v4442, 1
        %v4444 = vadd.f32 %v4442, %v4443
        %v4445 = vld [vmem:[#allocation14] sm:$0xff]
        %v4446 = vld [vmem:[#allocation14 + $0x8] sm:$0xff]
        %v4447 = vld [vmem:[#allocation14 + $0x10] sm:$0xff]
        %v4448 = vld [vmem:[#allocation14 + $0x18] sm:$0xff]
        %v4450 = vsel %vm619, %v4444, 0
        %4452 = vmatprep.subr.mxu0 0.0
        %v4453 = vand.u32 %v4445, 4294901760
        %4454 = vmatpush1.msra.mxu0 %v4453
        %4455 = vmatprep.subr.mxu0 0.0
        %v4456 = vand.u32 %v4446, 4294901760
        %4457 = vmatpush1.msra.mxu0 %v4456
        %4458 = vmatprep.subr.mxu0 0.0
        %v4459 = vand.u32 %v4447, 4294901760
        %4460 = vmatpush1.msra.mxu0 %v4459
        %4461 = vmatprep.subr.mxu0 0.0
        %v4462 = vand.u32 %v4448, 4294901760
        %4463 = vmatpush1.msra.mxu0 %v4462
        %4464 = vmatprep.subr.mxu0 0.0
        %4465 = vmatpush1.msra.mxu0 0.0
        %4466 = vmatprep.subr.mxu0 0.0
        %4467 = vmatpush1.msra.mxu0 0.0
        %4468 = vmatprep.subr.mxu0 0.0
        %4469 = vmatpush1.msra.mxu0 0.0
        %4470 = vmatprep.subr.mxu0 0.0
        %4471 = vmatpush1.msra.mxu0 0.0
        %4472 = vmatprep.subr.mxu0 0.0
        %4473 = vmatpush1.msra.mxu0 0.0
        %4474 = vmatprep.subr.mxu0 0.0
        %4475 = vmatpush1.msra.mxu0 0.0
        %4476 = vmatprep.subr.mxu0 0.0
        %4477 = vmatpush1.msra.mxu0 0.0
        %4478 = vmatprep.subr.mxu0 0.0
        %4479 = vmatpush1.msra.mxu0 0.0
        %4480 = vmatprep.subr.mxu0 0.0
        %4481 = vmatpush1.msra.mxu0 0.0
        %4482 = vmatprep.subr.mxu0 0.0
        %4483 = vmatpush1.msra.mxu0 0.0
        %4484 = vmatprep.subr.mxu0 0.0
        %4485 = vmatpush1.msra.mxu0 0.0
        %4486 = vmatprep.subr.mxu0 0.0
        %4487 = vmatpush1.msra.mxu0 0.0
        %4488 = vmatprep.subr.mxu0 0.0
        %4489 = vmatpush1.msra.mxu0 0.0
        %4490 = vmatprep.subr.mxu0 0.0
        %4491 = vmatpush1.msra.mxu0 0.0
        %4492 = vmatprep.subr.mxu0 0.0
        %4493 = vmatpush1.msra.mxu0 0.0
        %4494 = vmatprep.subr.mxu0 0.0
        %4495 = vmatpush1.msra.mxu0 0.0
        %4496 = vmatprep.subr.mxu0 0.0
        %4497 = vmatpush1.msra.mxu0 0.0
        %4498 = vmatprep.subr.mxu0 0.0
        %4499 = vmatpush1.msra.mxu0 0.0
        %4500 = vmatprep.subr.mxu0 0.0
        %4501 = vmatpush1.msra.mxu0 0.0
        %4502 = vmatprep.subr.mxu0 0.0
        %4503 = vmatpush1.msra.mxu0 0.0
        %4504 = vmatprep.subr.mxu0 0.0
        %4505 = vmatpush1.msra.mxu0 0.0
        %4506 = vmatprep.subr.mxu0 0.0
        %4507 = vmatpush1.msra.mxu0 0.0
        %4508 = vmatprep.subr.mxu0 0.0
        %4509 = vmatpush1.msra.mxu0 0.0
        %4510 = vmatprep.subr.mxu0 0.0
        %4511 = vmatpush1.msra.mxu0 0.0
        %4512 = vmatprep.subr.mxu0 0.0
        %4513 = vmatpush1.msra.mxu0 0.0
        %4514 = vmatprep.subr.mxu0 0.0
        %4515 = vmatpush1.msra.mxu0 0.0
        %4516 = vmatprep.subr.mxu0 0.0
        %4517 = vmatpush1.msra.mxu0 0.0
        %4518 = vmatprep.subr.mxu0 0.0
        %4519 = vmatpush1.msra.mxu0 0.0
        %4520 = vmatprep.mubr.f32.mxu0 0.0
        %v4521 = vand.u32 %v4450, 4294901760
        %v4522 = vsub.f32 %v4450, %v4521
        %v4523 = vand.u32 %v4522, 4294901760
        %v4524 = vsub.f32 %v4522, %v4523
        %v4525 = vand.u32 %v4524, 4294901760
        %4526 = vmatmul.mubr.f32.gmra.mrb[0].mxu0 %v4525
        %v4527 = vpop.f32.mrb[0].mxu0
        %v4528 = vadd.f32 0.0, %v4527
        %v4529 = vpop.f32.mrb[0].mxu0
        %4530 = vdwg.mxu0
        %4531 = vmatprep.subr.mxu0 0.0
        %v4532 = vand.u32 %v4445, 4294901760
        %v4533 = vsub.f32 %v4445, %v4532
        %v4534 = vand.u32 %v4533, 4294901760
        %v4535 = vsub.f32 %v4533, %v4534
        %v4536 = vand.u32 %v4535, 4294901760
        %4537 = vmatpush1.msra.mxu0 %v4536
        %4538 = vmatprep.subr.mxu0 0.0
        %v4539 = vand.u32 %v4446, 4294901760
        %v4540 = vsub.f32 %v4446, %v4539
        %v4541 = vand.u32 %v4540, 4294901760
        %v4542 = vsub.f32 %v4540, %v4541
        %v4543 = vand.u32 %v4542, 4294901760
        %4544 = vmatpush1.msra.mxu0 %v4543
        %4545 = vmatprep.subr.mxu0 0.0
        %v4546 = vand.u32 %v4447, 4294901760
        %v4547 = vsub.f32 %v4447, %v4546
        %v4548 = vand.u32 %v4547, 4294901760
        %v4549 = vsub.f32 %v4547, %v4548
        %v4550 = vand.u32 %v4549, 4294901760
        %4551 = vmatpush1.msra.mxu0 %v4550
        %4552 = vmatprep.subr.mxu0 0.0
        %v4553 = vand.u32 %v4448, 4294901760
        %v4554 = vsub.f32 %v4448, %v4553
        %v4555 = vand.u32 %v4554, 4294901760
        %v4556 = vsub.f32 %v4554, %v4555
        %v4557 = vand.u32 %v4556, 4294901760
        %4558 = vmatpush1.msra.mxu0 %v4557
        %4559 = vmatprep.subr.mxu0 0.0
        %4560 = vmatpush1.msra.mxu0 0.0
        %4561 = vmatprep.subr.mxu0 0.0
        %4562 = vmatpush1.msra.mxu0 0.0
        %4563 = vmatprep.subr.mxu0 0.0
        %4564 = vmatpush1.msra.mxu0 0.0
        %4565 = vmatprep.subr.mxu0 0.0
        %4566 = vmatpush1.msra.mxu0 0.0
        %4567 = vmatprep.subr.mxu0 0.0
        %4568 = vmatpush1.msra.mxu0 0.0
        %4569 = vmatprep.subr.mxu0 0.0
        %4570 = vmatpush1.msra.mxu0 0.0
        %4571 = vmatprep.subr.mxu0 0.0
        %4572 = vmatpush1.msra.mxu0 0.0
        %4573 = vmatprep.subr.mxu0 0.0
        %4574 = vmatpush1.msra.mxu0 0.0
        %4575 = vmatprep.subr.mxu0 0.0
        %4576 = vmatpush1.msra.mxu0 0.0
        %4577 = vmatprep.subr.mxu0 0.0
        %4578 = vmatpush1.msra.mxu0 0.0
        %4579 = vmatprep.subr.mxu0 0.0
        %4580 = vmatpush1.msra.mxu0 0.0
        %4581 = vmatprep.subr.mxu0 0.0
        %4582 = vmatpush1.msra.mxu0 0.0
        %4583 = vmatprep.subr.mxu0 0.0
        %4584 = vmatpush1.msra.mxu0 0.0
        %4585 = vmatprep.subr.mxu0 0.0
        %4586 = vmatpush1.msra.mxu0 0.0
        %4587 = vmatprep.subr.mxu0 0.0
        %4588 = vmatpush1.msra.mxu0 0.0
        %4589 = vmatprep.subr.mxu0 0.0
        %4590 = vmatpush1.msra.mxu0 0.0
        %4591 = vmatprep.subr.mxu0 0.0
        %4592 = vmatpush1.msra.mxu0 0.0
        %4593 = vmatprep.subr.mxu0 0.0
        %4594 = vmatpush1.msra.mxu0 0.0
        %4595 = vmatprep.subr.mxu0 0.0
        %4596 = vmatpush1.msra.mxu0 0.0
        %4597 = vmatprep.subr.mxu0 0.0
        %4598 = vmatpush1.msra.mxu0 0.0
        %4599 = vmatprep.subr.mxu0 0.0
        %4600 = vmatpush1.msra.mxu0 0.0
        %4601 = vmatprep.subr.mxu0 0.0
        %4602 = vmatpush1.msra.mxu0 0.0
        %4603 = vmatprep.subr.mxu0 0.0
        %4604 = vmatpush1.msra.mxu0 0.0
        %4605 = vmatprep.subr.mxu0 0.0
        %4606 = vmatpush1.msra.mxu0 0.0
        %4607 = vmatprep.subr.mxu0 0.0
        %4608 = vmatpush1.msra.mxu0 0.0
        %4609 = vmatprep.subr.mxu0 0.0
        %4610 = vmatpush1.msra.mxu0 0.0
        %4611 = vmatprep.subr.mxu0 0.0
        %4612 = vmatpush1.msra.mxu0 0.0
        %4613 = vmatprep.subr.mxu0 0.0
        %4614 = vmatpush1.msra.mxu0 0.0
        %4615 = vmatprep.mubr.f32.mxu0 0.0
        %v4616 = vand.u32 %v4450, 4294901760
        %4617 = vmatmul.mubr.f32.gmra.mrb[0].mxu0 %v4616
        %v4618 = vpop.f32.mrb[0].mxu0
        %v4619 = vadd.f32 %v4528, %v4618
        %v4620 = vpop.f32.mrb[0].mxu0
        %4621 = vdwg.mxu0
        %4622 = vmatprep.subr.mxu0 0.0
        %v4623 = vand.u32 %v4445, 4294901760
        %v4624 = vsub.f32 %v4445, %v4623
        %4625 = vmatpush1.msra.mxu0 %v4624
        %4626 = vmatprep.subr.mxu0 0.0
        %v4627 = vand.u32 %v4446, 4294901760
        %v4628 = vsub.f32 %v4446, %v4627
        %4629 = vmatpush1.msra.mxu0 %v4628
        %4630 = vmatprep.subr.mxu0 0.0
        %v4631 = vand.u32 %v4447, 4294901760
        %v4632 = vsub.f32 %v4447, %v4631
        %4633 = vmatpush1.msra.mxu0 %v4632
        %4634 = vmatprep.subr.mxu0 0.0
        %v4635 = vand.u32 %v4448, 4294901760
        %v4636 = vsub.f32 %v4448, %v4635
        %4637 = vmatpush1.msra.mxu0 %v4636
        %4638 = vmatprep.subr.mxu0 0.0
        %4639 = vmatpush1.msra.mxu0 0.0
        %4640 = vmatprep.subr.mxu0 0.0
        %4641 = vmatpush1.msra.mxu0 0.0
        %4642 = vmatprep.subr.mxu0 0.0
        %4643 = vmatpush1.msra.mxu0 0.0
        %4644 = vmatprep.subr.mxu0 0.0
        %4645 = vmatpush1.msra.mxu0 0.0
        %4646 = vmatprep.subr.mxu0 0.0
        %4647 = vmatpush1.msra.mxu0 0.0
        %4648 = vmatprep.subr.mxu0 0.0
        %4649 = vmatpush1.msra.mxu0 0.0
        %4650 = vmatprep.subr.mxu0 0.0
        %4651 = vmatpush1.msra.mxu0 0.0
        %4652 = vmatprep.subr.mxu0 0.0
        %4653 = vmatpush1.msra.mxu0 0.0
        %4654 = vmatprep.subr.mxu0 0.0
        %4655 = vmatpush1.msra.mxu0 0.0
        %4656 = vmatprep.subr.mxu0 0.0
        %4657 = vmatpush1.msra.mxu0 0.0
        %4658 = vmatprep.subr.mxu0 0.0
        %4659 = vmatpush1.msra.mxu0 0.0
        %4660 = vmatprep.subr.mxu0 0.0
        %4661 = vmatpush1.msra.mxu0 0.0
        %4662 = vmatprep.subr.mxu0 0.0
        %4663 = vmatpush1.msra.mxu0 0.0
        %4664 = vmatprep.subr.mxu0 0.0
        %4665 = vmatpush1.msra.mxu0 0.0
        %4666 = vmatprep.subr.mxu0 0.0
        %4667 = vmatpush1.msra.mxu0 0.0
        %4668 = vmatprep.subr.mxu0 0.0
        %4669 = vmatpush1.msra.mxu0 0.0
        %4670 = vmatprep.subr.mxu0 0.0
        %4671 = vmatpush1.msra.mxu0 0.0
        %4672 = vmatprep.subr.mxu0 0.0
        %4673 = vmatpush1.msra.mxu0 0.0
        %4674 = vmatprep.subr.mxu0 0.0
        %4675 = vmatpush1.msra.mxu0 0.0
        %4676 = vmatprep.subr.mxu0 0.0
        %4677 = vmatpush1.msra.mxu0 0.0
        %4678 = vmatprep.subr.mxu0 0.0
        %4679 = vmatpush1.msra.mxu0 0.0
        %4680 = vmatprep.subr.mxu0 0.0
        %4681 = vmatpush1.msra.mxu0 0.0
        %4682 = vmatprep.subr.mxu0 0.0
        %4683 = vmatpush1.msra.mxu0 0.0
        %4684 = vmatprep.subr.mxu0 0.0
        %4685 = vmatpush1.msra.mxu0 0.0
        %4686 = vmatprep.subr.mxu0 0.0
        %4687 = vmatpush1.msra.mxu0 0.0
        %4688 = vmatprep.subr.mxu0 0.0
        %4689 = vmatpush1.msra.mxu0 0.0
        %4690 = vmatprep.subr.mxu0 0.0
        %4691 = vmatpush1.msra.mxu0 0.0
        %4692 = vmatprep.subr.mxu0 0.0
        %4693 = vmatpush1.msra.mxu0 0.0
        %4694 = vmatprep.mubr.f32.mxu0 0.0
        %v4695 = vand.u32 %v4450, 4294901760
        %v4696 = vsub.f32 %v4450, %v4695
        %4697 = vmatmul.mubr.f32.gmra.mrb[0].mxu0 %v4696
        %v4698 = vpop.f32.mrb[0].mxu0
        %v4699 = vadd.f32 %v4619, %v4698
        %v4700 = vpop.f32.mrb[0].mxu0
        %4701 = vdwg.mxu0
        %4702 = vmatprep.subr.mxu0 0.0
        %v4703 = vand.u32 %v4445, 4294901760
        %4704 = vmatpush1.msra.mxu0 %v4703
        %4705 = vmatprep.subr.mxu0 0.0
        %v4706 = vand.u32 %v4446, 4294901760
        %4707 = vmatpush1.msra.mxu0 %v4706
        %4708 = vmatprep.subr.mxu0 0.0
        %v4709 = vand.u32 %v4447, 4294901760
        %4710 = vmatpush1.msra.mxu0 %v4709
        %4711 = vmatprep.subr.mxu0 0.0
        %v4712 = vand.u32 %v4448, 4294901760
        %4713 = vmatpush1.msra.mxu0 %v4712
        %4714 = vmatprep.subr.mxu0 0.0
        %4715 = vmatpush1.msra.mxu0 0.0
        %4716 = vmatprep.subr.mxu0 0.0
        %4717 = vmatpush1.msra.mxu0 0.0
        %4718 = vmatprep.subr.mxu0 0.0
        %4719 = vmatpush1.msra.mxu0 0.0
        %4720 = vmatprep.subr.mxu0 0.0
        %4721 = vmatpush1.msra.mxu0 0.0
        %4722 = vmatprep.subr.mxu0 0.0
        %4723 = vmatpush1.msra.mxu0 0.0
        %4724 = vmatprep.subr.mxu0 0.0
        %4725 = vmatpush1.msra.mxu0 0.0
        %4726 = vmatprep.subr.mxu0 0.0
        %4727 = vmatpush1.msra.mxu0 0.0
        %4728 = vmatprep.subr.mxu0 0.0
        %4729 = vmatpush1.msra.mxu0 0.0
        %4730 = vmatprep.subr.mxu0 0.0
        %4731 = vmatpush1.msra.mxu0 0.0
        %4732 = vmatprep.subr.mxu0 0.0
        %4733 = vmatpush1.msra.mxu0 0.0
        %4734 = vmatprep.subr.mxu0 0.0
        %4735 = vmatpush1.msra.mxu0 0.0
        %4736 = vmatprep.subr.mxu0 0.0
        %4737 = vmatpush1.msra.mxu0 0.0
        %4738 = vmatprep.subr.mxu0 0.0
        %4739 = vmatpush1.msra.mxu0 0.0
        %4740 = vmatprep.subr.mxu0 0.0
        %4741 = vmatpush1.msra.mxu0 0.0
        %4742 = vmatprep.subr.mxu0 0.0
        %4743 = vmatpush1.msra.mxu0 0.0
        %4744 = vmatprep.subr.mxu0 0.0
        %4745 = vmatpush1.msra.mxu0 0.0
        %4746 = vmatprep.subr.mxu0 0.0
        %4747 = vmatpush1.msra.mxu0 0.0
        %4748 = vmatprep.subr.mxu0 0.0
        %4749 = vmatpush1.msra.mxu0 0.0
        %4750 = vmatprep.subr.mxu0 0.0
        %4751 = vmatpush1.msra.mxu0 0.0
        %4752 = vmatprep.subr.mxu0 0.0
        %4753 = vmatpush1.msra.mxu0 0.0
        %4754 = vmatprep.subr.mxu0 0.0
        %4755 = vmatpush1.msra.mxu0 0.0
        %4756 = vmatprep.subr.mxu0 0.0
        %4757 = vmatpush1.msra.mxu0 0.0
        %4758 = vmatprep.subr.mxu0 0.0
        %4759 = vmatpush1.msra.mxu0 0.0
        %4760 = vmatprep.subr.mxu0 0.0
        %4761 = vmatpush1.msra.mxu0 0.0
        %4762 = vmatprep.subr.mxu0 0.0
        %4763 = vmatpush1.msra.mxu0 0.0
        %4764 = vmatprep.subr.mxu0 0.0
        %4765 = vmatpush1.msra.mxu0 0.0
        %4766 = vmatprep.subr.mxu0 0.0
        %4767 = vmatpush1.msra.mxu0 0.0
        %4768 = vmatprep.subr.mxu0 0.0
        %4769 = vmatpush1.msra.mxu0 0.0
        %4770 = vmatprep.mubr.f32.mxu0 0.0
        %v4771 = vand.u32 %v4450, 4294901760
        %v4772 = vsub.f32 %v4450, %v4771
        %v4773 = vand.u32 %v4772, 4294901760
        %4774 = vmatmul.mubr.f32.gmra.mrb[0].mxu0 %v4773
        %v4775 = vpop.f32.mrb[0].mxu0
        %v4776 = vadd.f32 %v4699, %v4775
        %v4777 = vpop.f32.mrb[0].mxu0
        %4778 = vdwg.mxu0
        %4779 = vmatprep.subr.mxu0 0.0
        %v4780 = vand.u32 %v4445, 4294901760
        %v4781 = vsub.f32 %v4445, %v4780
        %v4782 = vand.u32 %v4781, 4294901760
        %4783 = vmatpush1.msra.mxu0 %v4782
        %4784 = vmatprep.subr.mxu0 0.0
        %v4785 = vand.u32 %v4446, 4294901760
        %v4786 = vsub.f32 %v4446, %v4785
        %v4787 = vand.u32 %v4786, 4294901760
        %4788 = vmatpush1.msra.mxu0 %v4787
        %4789 = vmatprep.subr.mxu0 0.0
        %v4790 = vand.u32 %v4447, 4294901760
        %v4791 = vsub.f32 %v4447, %v4790
        %v4792 = vand.u32 %v4791, 4294901760
        %4793 = vmatpush1.msra.mxu0 %v4792
        %4794 = vmatprep.subr.mxu0 0.0
        %v4795 = vand.u32 %v4448, 4294901760
        %v4796 = vsub.f32 %v4448, %v4795
        %v4797 = vand.u32 %v4796, 4294901760
        %4798 = vmatpush1.msra.mxu0 %v4797
        %4799 = vmatprep.subr.mxu0 0.0
        %4800 = vmatpush1.msra.mxu0 0.0
        %4801 = vmatprep.subr.mxu0 0.0
        %4802 = vmatpush1.msra.mxu0 0.0
        %4803 = vmatprep.subr.mxu0 0.0
        %4804 = vmatpush1.msra.mxu0 0.0
        %4805 = vmatprep.subr.mxu0 0.0
        %4806 = vmatpush1.msra.mxu0 0.0
        %4807 = vmatprep.subr.mxu0 0.0
        %4808 = vmatpush1.msra.mxu0 0.0
        %4809 = vmatprep.subr.mxu0 0.0
        %4810 = vmatpush1.msra.mxu0 0.0
        %4811 = vmatprep.subr.mxu0 0.0
        %4812 = vmatpush1.msra.mxu0 0.0
        %4813 = vmatprep.subr.mxu0 0.0
        %4814 = vmatpush1.msra.mxu0 0.0
        %4815 = vmatprep.subr.mxu0 0.0
        %4816 = vmatpush1.msra.mxu0 0.0
        %4817 = vmatprep.subr.mxu0 0.0
        %4818 = vmatpush1.msra.mxu0 0.0
        %4819 = vmatprep.subr.mxu0 0.0
        %4820 = vmatpush1.msra.mxu0 0.0
        %4821 = vmatprep.subr.mxu0 0.0
        %4822 = vmatpush1.msra.mxu0 0.0
        %4823 = vmatprep.subr.mxu0 0.0
        %4824 = vmatpush1.msra.mxu0 0.0
        %4825 = vmatprep.subr.mxu0 0.0
        %4826 = vmatpush1.msra.mxu0 0.0
        %4827 = vmatprep.subr.mxu0 0.0
        %4828 = vmatpush1.msra.mxu0 0.0
        %4829 = vmatprep.subr.mxu0 0.0
        %4830 = vmatpush1.msra.mxu0 0.0
        %4831 = vmatprep.subr.mxu0 0.0
        %4832 = vmatpush1.msra.mxu0 0.0
        %4833 = vmatprep.subr.mxu0 0.0
        %4834 = vmatpush1.msra.mxu0 0.0
        %4835 = vmatprep.subr.mxu0 0.0
        %4836 = vmatpush1.msra.mxu0 0.0
        %4837 = vmatprep.subr.mxu0 0.0
        %4838 = vmatpush1.msra.mxu0 0.0
        %4839 = vmatprep.subr.mxu0 0.0
        %4840 = vmatpush1.msra.mxu0 0.0
        %4841 = vmatprep.subr.mxu0 0.0
        %4842 = vmatpush1.msra.mxu0 0.0
        %4843 = vmatprep.subr.mxu0 0.0
        %4844 = vmatpush1.msra.mxu0 0.0
        %4845 = vmatprep.subr.mxu0 0.0
        %4846 = vmatpush1.msra.mxu0 0.0
        %4847 = vmatprep.subr.mxu0 0.0
        %4848 = vmatpush1.msra.mxu0 0.0
        %4849 = vmatprep.subr.mxu0 0.0
        %4850 = vmatpush1.msra.mxu0 0.0
        %4851 = vmatprep.subr.mxu0 0.0
        %4852 = vmatpush1.msra.mxu0 0.0
        %4853 = vmatprep.subr.mxu0 0.0
        %4854 = vmatpush1.msra.mxu0 0.0
        %4855 = vmatprep.mubr.f32.mxu0 0.0
        %v4856 = vand.u32 %v4450, 4294901760
        %4857 = vmatmul.mubr.f32.gmra.mrb[0].mxu0 %v4856
        %v4858 = vpop.f32.mrb[0].mxu0
        %v4859 = vadd.f32 %v4776, %v4858
        %v4860 = vpop.f32.mrb[0].mxu0
        %4861 = vdwg.mxu0
        %4862 = vmatprep.subr.mxu0 0.0
        %v4863 = vand.u32 %v4445, 4294901760
        %4864 = vmatpush1.msra.mxu0 %v4863
        %4865 = vmatprep.subr.mxu0 0.0
        %v4866 = vand.u32 %v4446, 4294901760
        %4867 = vmatpush1.msra.mxu0 %v4866
        %4868 = vmatprep.subr.mxu0 0.0
        %v4869 = vand.u32 %v4447, 4294901760
        %4870 = vmatpush1.msra.mxu0 %v4869
        %4871 = vmatprep.subr.mxu0 0.0
        %v4872 = vand.u32 %v4448, 4294901760
        %4873 = vmatpush1.msra.mxu0 %v4872
        %4874 = vmatprep.subr.mxu0 0.0
        %4875 = vmatpush1.msra.mxu0 0.0
        %4876 = vmatprep.subr.mxu0 0.0
        %4877 = vmatpush1.msra.mxu0 0.0
        %4878 = vmatprep.subr.mxu0 0.0
        %4879 = vmatpush1.msra.mxu0 0.0
        %4880 = vmatprep.subr.mxu0 0.0
        %4881 = vmatpush1.msra.mxu0 0.0
        %4882 = vmatprep.subr.mxu0 0.0
        %4883 = vmatpush1.msra.mxu0 0.0
        %4884 = vmatprep.subr.mxu0 0.0
        %4885 = vmatpush1.msra.mxu0 0.0
        %4886 = vmatprep.subr.mxu0 0.0
        %4887 = vmatpush1.msra.mxu0 0.0
        %4888 = vmatprep.subr.mxu0 0.0
        %4889 = vmatpush1.msra.mxu0 0.0
        %4890 = vmatprep.subr.mxu0 0.0
        %4891 = vmatpush1.msra.mxu0 0.0
        %4892 = vmatprep.subr.mxu0 0.0
        %4893 = vmatpush1.msra.mxu0 0.0
        %4894 = vmatprep.subr.mxu0 0.0
        %4895 = vmatpush1.msra.mxu0 0.0
        %4896 = vmatprep.subr.mxu0 0.0
        %4897 = vmatpush1.msra.mxu0 0.0
        %4898 = vmatprep.subr.mxu0 0.0
        %4899 = vmatpush1.msra.mxu0 0.0
        %4900 = vmatprep.subr.mxu0 0.0
        %4901 = vmatpush1.msra.mxu0 0.0
        %4902 = vmatprep.subr.mxu0 0.0
        %4903 = vmatpush1.msra.mxu0 0.0
        %4904 = vmatprep.subr.mxu0 0.0
        %4905 = vmatpush1.msra.mxu0 0.0
        %4906 = vmatprep.subr.mxu0 0.0
        %4907 = vmatpush1.msra.mxu0 0.0
        %4908 = vmatprep.subr.mxu0 0.0
        %4909 = vmatpush1.msra.mxu0 0.0
        %4910 = vmatprep.subr.mxu0 0.0
        %4911 = vmatpush1.msra.mxu0 0.0
        %4912 = vmatprep.subr.mxu0 0.0
        %4913 = vmatpush1.msra.mxu0 0.0
        %4914 = vmatprep.subr.mxu0 0.0
        %4915 = vmatpush1.msra.mxu0 0.0
        %4916 = vmatprep.subr.mxu0 0.0
        %4917 = vmatpush1.msra.mxu0 0.0
        %4918 = vmatprep.subr.mxu0 0.0
        %4919 = vmatpush1.msra.mxu0 0.0
        %4920 = vmatprep.subr.mxu0 0.0
        %4921 = vmatpush1.msra.mxu0 0.0
        %4922 = vmatprep.subr.mxu0 0.0
        %4923 = vmatpush1.msra.mxu0 0.0
        %4924 = vmatprep.subr.mxu0 0.0
        %4925 = vmatpush1.msra.mxu0 0.0
        %4926 = vmatprep.subr.mxu0 0.0
        %4927 = vmatpush1.msra.mxu0 0.0
        %4928 = vmatprep.subr.mxu0 0.0
        %4929 = vmatpush1.msra.mxu0 0.0
        %4930 = vmatprep.mubr.f32.mxu0 0.0
        %v4931 = vand.u32 %v4450, 4294901760
        %4932 = vmatmul.mubr.f32.gmra.mrb[0].mxu0 %v4931
        %v4933 = vpop.f32.mrb[0].mxu0
        %v4934 = vadd.f32 %v4859, %v4933
        %v4935 = vpop.f32.mrb[0].mxu0
        %4936 = vdwg.mxu0
        %v4937 = vmul.f32 %v4934, %v1147
        %v4938 = vld [vmem:[#allocation15] sm:$0xff]
        %v4939 = vld [vmem:[#allocation15 + $0x8] sm:$0xff]
        %v4940 = vld [vmem:[#allocation15 + $0x10] sm:$0xff]
        %v4941 = vld [vmem:[#allocation15 + $0x18] sm:$0xff]
        %v4943 = vsel %vm619, %v4937, 0
        %4945 = vmatprep.subr.mxu0 0.0
        %v4946 = vand.u32 %v4938, 4294901760
        %4947 = vmatpush1.msra.mxu0 %v4946
        %4948 = vmatprep.subr.mxu0 0.0
        %v4949 = vand.u32 %v4939, 4294901760
        %4950 = vmatpush1.msra.mxu0 %v4949
        %4951 = vmatprep.subr.mxu0 0.0
        %v4952 = vand.u32 %v4940, 4294901760
        %4953 = vmatpush1.msra.mxu0 %v4952
        %4954 = vmatprep.subr.mxu0 0.0
        %v4955 = vand.u32 %v4941, 4294901760
        %4956 = vmatpush1.msra.mxu0 %v4955
        %4957 = vmatprep.subr.mxu0 0.0
        %4958 = vmatpush1.msra.mxu0 0.0
        %4959 = vmatprep.subr.mxu0 0.0
        %4960 = vmatpush1.msra.mxu0 0.0
        %4961 = vmatprep.subr.mxu0 0.0
        %4962 = vmatpush1.msra.mxu0 0.0
        %4963 = vmatprep.subr.mxu0 0.0
        %4964 = vmatpush1.msra.mxu0 0.0
        %4965 = vmatprep.subr.mxu0 0.0
        %4966 = vmatpush1.msra.mxu0 0.0
        %4967 = vmatprep.subr.mxu0 0.0
        %4968 = vmatpush1.msra.mxu0 0.0
        %4969 = vmatprep.subr.mxu0 0.0
        %4970 = vmatpush1.msra.mxu0 0.0
        %4971 = vmatprep.subr.mxu0 0.0
        %4972 = vmatpush1.msra.mxu0 0.0
        %4973 = vmatprep.subr.mxu0 0.0
        %4974 = vmatpush1.msra.mxu0 0.0
        %4975 = vmatprep.subr.mxu0 0.0
        %4976 = vmatpush1.msra.mxu0 0.0
        %4977 = vmatprep.subr.mxu0 0.0
        %4978 = vmatpush1.msra.mxu0 0.0
        %4979 = vmatprep.subr.mxu0 0.0
        %4980 = vmatpush1.msra.mxu0 0.0
        %4981 = vmatprep.subr.mxu0 0.0
        %4982 = vmatpush1.msra.mxu0 0.0
        %4983 = vmatprep.subr.mxu0 0.0
        %4984 = vmatpush1.msra.mxu0 0.0
        %4985 = vmatprep.subr.mxu0 0.0
        %4986 = vmatpush1.msra.mxu0 0.0
        %4987 = vmatprep.subr.mxu0 0.0
        %4988 = vmatpush1.msra.mxu0 0.0
        %4989 = vmatprep.subr.mxu0 0.0
        %4990 = vmatpush1.msra.mxu0 0.0
        %4991 = vmatprep.subr.mxu0 0.0
        %4992 = vmatpush1.msra.mxu0 0.0
        %4993 = vmatprep.subr.mxu0 0.0
        %4994 = vmatpush1.msra.mxu0 0.0
        %4995 = vmatprep.subr.mxu0 0.0
        %4996 = vmatpush1.msra.mxu0 0.0
        %4997 = vmatprep.subr.mxu0 0.0
        %4998 = vmatpush1.msra.mxu0 0.0
        %4999 = vmatprep.subr.mxu0 0.0
        %5000 = vmatpush1.msra.mxu0 0.0
        %5001 = vmatprep.subr.mxu0 0.0
        %5002 = vmatpush1.msra.mxu0 0.0
        %5003 = vmatprep.subr.mxu0 0.0
        %5004 = vmatpush1.msra.mxu0 0.0
        %5005 = vmatprep.subr.mxu0 0.0
        %5006 = vmatpush1.msra.mxu0 0.0
        %5007 = vmatprep.subr.mxu0 0.0
        %5008 = vmatpush1.msra.mxu0 0.0
        %5009 = vmatprep.subr.mxu0 0.0
        %5010 = vmatpush1.msra.mxu0 0.0
        %5011 = vmatprep.subr.mxu0 0.0
        %5012 = vmatpush1.msra.mxu0 0.0
        %5013 = vmatprep.mubr.f32.mxu0 0.0
        %v5014 = vand.u32 %v4943, 4294901760
        %v5015 = vsub.f32 %v4943, %v5014
        %v5016 = vand.u32 %v5015, 4294901760
        %v5017 = vsub.f32 %v5015, %v5016
        %v5018 = vand.u32 %v5017, 4294901760
        %5019 = vmatmul.mubr.f32.gmra.mrb[0].mxu0 %v5018
        %v5020 = vpop.f32.mrb[0].mxu0
        %v5021 = vadd.f32 0.0, %v5020
        %v5022 = vpop.f32.mrb[0].mxu0
        %5023 = vdwg.mxu0
        %5024 = vmatprep.subr.mxu0 0.0
        %v5025 = vand.u32 %v4938, 4294901760
        %v5026 = vsub.f32 %v4938, %v5025
        %v5027 = vand.u32 %v5026, 4294901760
        %v5028 = vsub.f32 %v5026, %v5027
        %v5029 = vand.u32 %v5028, 4294901760
        %5030 = vmatpush1.msra.mxu0 %v5029
        %5031 = vmatprep.subr.mxu0 0.0
        %v5032 = vand.u32 %v4939, 4294901760
        %v5033 = vsub.f32 %v4939, %v5032
        %v5034 = vand.u32 %v5033, 4294901760
        %v5035 = vsub.f32 %v5033, %v5034
        %v5036 = vand.u32 %v5035, 4294901760
        %5037 = vmatpush1.msra.mxu0 %v5036
        %5038 = vmatprep.subr.mxu0 0.0
        %v5039 = vand.u32 %v4940, 4294901760
        %v5040 = vsub.f32 %v4940, %v5039
        %v5041 = vand.u32 %v5040, 4294901760
        %v5042 = vsub.f32 %v5040, %v5041
        %v5043 = vand.u32 %v5042, 4294901760
        %5044 = vmatpush1.msra.mxu0 %v5043
        %5045 = vmatprep.subr.mxu0 0.0
        %v5046 = vand.u32 %v4941, 4294901760
        %v5047 = vsub.f32 %v4941, %v5046
        %v5048 = vand.u32 %v5047, 4294901760
        %v5049 = vsub.f32 %v5047, %v5048
        %v5050 = vand.u32 %v5049, 4294901760
        %5051 = vmatpush1.msra.mxu0 %v5050
        %5052 = vmatprep.subr.mxu0 0.0
        %5053 = vmatpush1.msra.mxu0 0.0
        %5054 = vmatprep.subr.mxu0 0.0
        %5055 = vmatpush1.msra.mxu0 0.0
        %5056 = vmatprep.subr.mxu0 0.0
        %5057 = vmatpush1.msra.mxu0 0.0
        %5058 = vmatprep.subr.mxu0 0.0
        %5059 = vmatpush1.msra.mxu0 0.0
        %5060 = vmatprep.subr.mxu0 0.0
        %5061 = vmatpush1.msra.mxu0 0.0
        %5062 = vmatprep.subr.mxu0 0.0
        %5063 = vmatpush1.msra.mxu0 0.0
        %5064 = vmatprep.subr.mxu0 0.0
        %5065 = vmatpush1.msra.mxu0 0.0
        %5066 = vmatprep.subr.mxu0 0.0
        %5067 = vmatpush1.msra.mxu0 0.0
        %5068 = vmatprep.subr.mxu0 0.0
        %5069 = vmatpush1.msra.mxu0 0.0
        %5070 = vmatprep.subr.mxu0 0.0
        %5071 = vmatpush1.msra.mxu0 0.0
        %5072 = vmatprep.subr.mxu0 0.0
        %5073 = vmatpush1.msra.mxu0 0.0
        %5074 = vmatprep.subr.mxu0 0.0
        %5075 = vmatpush1.msra.mxu0 0.0
        %5076 = vmatprep.subr.mxu0 0.0
        %5077 = vmatpush1.msra.mxu0 0.0
        %5078 = vmatprep.subr.mxu0 0.0
        %5079 = vmatpush1.msra.mxu0 0.0
        %5080 = vmatprep.subr.mxu0 0.0
        %5081 = vmatpush1.msra.mxu0 0.0
        %5082 = vmatprep.subr.mxu0 0.0
        %5083 = vmatpush1.msra.mxu0 0.0
        %5084 = vmatprep.subr.mxu0 0.0
        %5085 = vmatpush1.msra.mxu0 0.0
        %5086 = vmatprep.subr.mxu0 0.0
        %5087 = vmatpush1.msra.mxu0 0.0
        %5088 = vmatprep.subr.mxu0 0.0
        %5089 = vmatpush1.msra.mxu0 0.0
        %5090 = vmatprep.subr.mxu0 0.0
        %5091 = vmatpush1.msra.mxu0 0.0
        %5092 = vmatprep.subr.mxu0 0.0
        %5093 = vmatpush1.msra.mxu0 0.0
        %5094 = vmatprep.subr.mxu0 0.0
        %5095 = vmatpush1.msra.mxu0 0.0
        %5096 = vmatprep.subr.mxu0 0.0
        %5097 = vmatpush1.msra.mxu0 0.0
        %5098 = vmatprep.subr.mxu0 0.0
        %5099 = vmatpush1.msra.mxu0 0.0
        %5100 = vmatprep.subr.mxu0 0.0
        %5101 = vmatpush1.msra.mxu0 0.0
        %5102 = vmatprep.subr.mxu0 0.0
        %5103 = vmatpush1.msra.mxu0 0.0
        %5104 = vmatprep.subr.mxu0 0.0
        %5105 = vmatpush1.msra.mxu0 0.0
        %5106 = vmatprep.subr.mxu0 0.0
        %5107 = vmatpush1.msra.mxu0 0.0
        %5108 = vmatprep.mubr.f32.mxu0 0.0
        %v5109 = vand.u32 %v4943, 4294901760
        %5110 = vmatmul.mubr.f32.gmra.mrb[0].mxu0 %v5109
        %v5111 = vpop.f32.mrb[0].mxu0
        %v5112 = vadd.f32 %v5021, %v5111
        %v5113 = vpop.f32.mrb[0].mxu0
        %5114 = vdwg.mxu0
        %5115 = vmatprep.subr.mxu0 0.0
        %v5116 = vand.u32 %v4938, 4294901760
        %v5117 = vsub.f32 %v4938, %v5116
        %5118 = vmatpush1.msra.mxu0 %v5117
        %5119 = vmatprep.subr.mxu0 0.0
        %v5120 = vand.u32 %v4939, 4294901760
        %v5121 = vsub.f32 %v4939, %v5120
        %5122 = vmatpush1.msra.mxu0 %v5121
        %5123 = vmatprep.subr.mxu0 0.0
        %v5124 = vand.u32 %v4940, 4294901760
        %v5125 = vsub.f32 %v4940, %v5124
        %5126 = vmatpush1.msra.mxu0 %v5125
        %5127 = vmatprep.subr.mxu0 0.0
        %v5128 = vand.u32 %v4941, 4294901760
        %v5129 = vsub.f32 %v4941, %v5128
        %5130 = vmatpush1.msra.mxu0 %v5129
        %5131 = vmatprep.subr.mxu0 0.0
        %5132 = vmatpush1.msra.mxu0 0.0
        %5133 = vmatprep.subr.mxu0 0.0
        %5134 = vmatpush1.msra.mxu0 0.0
        %5135 = vmatprep.subr.mxu0 0.0
        %5136 = vmatpush1.msra.mxu0 0.0
        %5137 = vmatprep.subr.mxu0 0.0
        %5138 = vmatpush1.msra.mxu0 0.0
        %5139 = vmatprep.subr.mxu0 0.0
        %5140 = vmatpush1.msra.mxu0 0.0
        %5141 = vmatprep.subr.mxu0 0.0
        %5142 = vmatpush1.msra.mxu0 0.0
        %5143 = vmatprep.subr.mxu0 0.0
        %5144 = vmatpush1.msra.mxu0 0.0
        %5145 = vmatprep.subr.mxu0 0.0
        %5146 = vmatpush1.msra.mxu0 0.0
        %5147 = vmatprep.subr.mxu0 0.0
        %5148 = vmatpush1.msra.mxu0 0.0
        %5149 = vmatprep.subr.mxu0 0.0
        %5150 = vmatpush1.msra.mxu0 0.0
        %5151 = vmatprep.subr.mxu0 0.0
        %5152 = vmatpush1.msra.mxu0 0.0
        %5153 = vmatprep.subr.mxu0 0.0
        %5154 = vmatpush1.msra.mxu0 0.0
        %5155 = vmatprep.subr.mxu0 0.0
        %5156 = vmatpush1.msra.mxu0 0.0
        %5157 = vmatprep.subr.mxu0 0.0
        %5158 = vmatpush1.msra.mxu0 0.0
        %5159 = vmatprep.subr.mxu0 0.0
        %5160 = vmatpush1.msra.mxu0 0.0
        %5161 = vmatprep.subr.mxu0 0.0
        %5162 = vmatpush1.msra.mxu0 0.0
        %5163 = vmatprep.subr.mxu0 0.0
        %5164 = vmatpush1.msra.mxu0 0.0
        %5165 = vmatprep.subr.mxu0 0.0
        %5166 = vmatpush1.msra.mxu0 0.0
        %5167 = vmatprep.subr.mxu0 0.0
        %5168 = vmatpush1.msra.mxu0 0.0
        %5169 = vmatprep.subr.mxu0 0.0
        %5170 = vmatpush1.msra.mxu0 0.0
        %5171 = vmatprep.subr.mxu0 0.0
        %5172 = vmatpush1.msra.mxu0 0.0
        %5173 = vmatprep.subr.mxu0 0.0
        %5174 = vmatpush1.msra.mxu0 0.0
        %5175 = vmatprep.subr.mxu0 0.0
        %5176 = vmatpush1.msra.mxu0 0.0
        %5177 = vmatprep.subr.mxu0 0.0
        %5178 = vmatpush1.msra.mxu0 0.0
        %5179 = vmatprep.subr.mxu0 0.0
        %5180 = vmatpush1.msra.mxu0 0.0
        %5181 = vmatprep.subr.mxu0 0.0
        %5182 = vmatpush1.msra.mxu0 0.0
        %5183 = vmatprep.subr.mxu0 0.0
        %5184 = vmatpush1.msra.mxu0 0.0
        %5185 = vmatprep.subr.mxu0 0.0
        %5186 = vmatpush1.msra.mxu0 0.0
        %5187 = vmatprep.mubr.f32.mxu0 0.0
        %v5188 = vand.u32 %v4943, 4294901760
        %v5189 = vsub.f32 %v4943, %v5188
        %5190 = vmatmul.mubr.f32.gmra.mrb[0].mxu0 %v5189
        %v5191 = vpop.f32.mrb[0].mxu0
        %v5192 = vadd.f32 %v5112, %v5191
        %v5193 = vpop.f32.mrb[0].mxu0
        %5194 = vdwg.mxu0
        %5195 = vmatprep.subr.mxu0 0.0
        %v5196 = vand.u32 %v4938, 4294901760
        %5197 = vmatpush1.msra.mxu0 %v5196
        %5198 = vmatprep.subr.mxu0 0.0
        %v5199 = vand.u32 %v4939, 4294901760
        %5200 = vmatpush1.msra.mxu0 %v5199
        %5201 = vmatprep.subr.mxu0 0.0
        %v5202 = vand.u32 %v4940, 4294901760
        %5203 = vmatpush1.msra.mxu0 %v5202
        %5204 = vmatprep.subr.mxu0 0.0
        %v5205 = vand.u32 %v4941, 4294901760
        %5206 = vmatpush1.msra.mxu0 %v5205
        %5207 = vmatprep.subr.mxu0 0.0
        %5208 = vmatpush1.msra.mxu0 0.0
        %5209 = vmatprep.subr.mxu0 0.0
        %5210 = vmatpush1.msra.mxu0 0.0
        %5211 = vmatprep.subr.mxu0 0.0
        %5212 = vmatpush1.msra.mxu0 0.0
        %5213 = vmatprep.subr.mxu0 0.0
        %5214 = vmatpush1.msra.mxu0 0.0
        %5215 = vmatprep.subr.mxu0 0.0
        %5216 = vmatpush1.msra.mxu0 0.0
        %5217 = vmatprep.subr.mxu0 0.0
        %5218 = vmatpush1.msra.mxu0 0.0
        %5219 = vmatprep.subr.mxu0 0.0
        %5220 = vmatpush1.msra.mxu0 0.0
        %5221 = vmatprep.subr.mxu0 0.0
        %5222 = vmatpush1.msra.mxu0 0.0
        %5223 = vmatprep.subr.mxu0 0.0
        %5224 = vmatpush1.msra.mxu0 0.0
        %5225 = vmatprep.subr.mxu0 0.0
        %5226 = vmatpush1.msra.mxu0 0.0
        %5227 = vmatprep.subr.mxu0 0.0
        %5228 = vmatpush1.msra.mxu0 0.0
        %5229 = vmatprep.subr.mxu0 0.0
        %5230 = vmatpush1.msra.mxu0 0.0
        %5231 = vmatprep.subr.mxu0 0.0
        %5232 = vmatpush1.msra.mxu0 0.0
        %5233 = vmatprep.subr.mxu0 0.0
        %5234 = vmatpush1.msra.mxu0 0.0
        %5235 = vmatprep.subr.mxu0 0.0
        %5236 = vmatpush1.msra.mxu0 0.0
        %5237 = vmatprep.subr.mxu0 0.0
        %5238 = vmatpush1.msra.mxu0 0.0
        %5239 = vmatprep.subr.mxu0 0.0
        %5240 = vmatpush1.msra.mxu0 0.0
        %5241 = vmatprep.subr.mxu0 0.0
        %5242 = vmatpush1.msra.mxu0 0.0
        %5243 = vmatprep.subr.mxu0 0.0
        %5244 = vmatpush1.msra.mxu0 0.0
        %5245 = vmatprep.subr.mxu0 0.0
        %5246 = vmatpush1.msra.mxu0 0.0
        %5247 = vmatprep.subr.mxu0 0.0
        %5248 = vmatpush1.msra.mxu0 0.0
        %5249 = vmatprep.subr.mxu0 0.0
        %5250 = vmatpush1.msra.mxu0 0.0
        %5251 = vmatprep.subr.mxu0 0.0
        %5252 = vmatpush1.msra.mxu0 0.0
        %5253 = vmatprep.subr.mxu0 0.0
        %5254 = vmatpush1.msra.mxu0 0.0
        %5255 = vmatprep.subr.mxu0 0.0
        %5256 = vmatpush1.msra.mxu0 0.0
        %5257 = vmatprep.subr.mxu0 0.0
        %5258 = vmatpush1.msra.mxu0 0.0
        %5259 = vmatprep.subr.mxu0 0.0
        %5260 = vmatpush1.msra.mxu0 0.0
        %5261 = vmatprep.subr.mxu0 0.0
        %5262 = vmatpush1.msra.mxu0 0.0
        %5263 = vmatprep.mubr.f32.mxu0 0.0
        %v5264 = vand.u32 %v4943, 4294901760
        %v5265 = vsub.f32 %v4943, %v5264
        %v5266 = vand.u32 %v5265, 4294901760
        %5267 = vmatmul.mubr.f32.gmra.mrb[0].mxu0 %v5266
        %v5268 = vpop.f32.mrb[0].mxu0
        %v5269 = vadd.f32 %v5192, %v5268
        %v5270 = vpop.f32.mrb[0].mxu0
        %5271 = vdwg.mxu0
        %5272 = vmatprep.subr.mxu0 0.0
        %v5273 = vand.u32 %v4938, 4294901760
        %v5274 = vsub.f32 %v4938, %v5273
        %v5275 = vand.u32 %v5274, 4294901760
        %5276 = vmatpush1.msra.mxu0 %v5275
        %5277 = vmatprep.subr.mxu0 0.0
        %v5278 = vand.u32 %v4939, 4294901760
        %v5279 = vsub.f32 %v4939, %v5278
        %v5280 = vand.u32 %v5279, 4294901760
        %5281 = vmatpush1.msra.mxu0 %v5280
        %5282 = vmatprep.subr.mxu0 0.0
        %v5283 = vand.u32 %v4940, 4294901760
        %v5284 = vsub.f32 %v4940, %v5283
        %v5285 = vand.u32 %v5284, 4294901760
        %5286 = vmatpush1.msra.mxu0 %v5285
        %5287 = vmatprep.subr.mxu0 0.0
        %v5288 = vand.u32 %v4941, 4294901760
        %v5289 = vsub.f32 %v4941, %v5288
        %v5290 = vand.u32 %v5289, 4294901760
        %5291 = vmatpush1.msra.mxu0 %v5290
        %5292 = vmatprep.subr.mxu0 0.0
        %5293 = vmatpush1.msra.mxu0 0.0
        %5294 = vmatprep.subr.mxu0 0.0
        %5295 = vmatpush1.msra.mxu0 0.0
        %5296 = vmatprep.subr.mxu0 0.0
        %5297 = vmatpush1.msra.mxu0 0.0
        %5298 = vmatprep.subr.mxu0 0.0
        %5299 = vmatpush1.msra.mxu0 0.0
        %5300 = vmatprep.subr.mxu0 0.0
        %5301 = vmatpush1.msra.mxu0 0.0
        %5302 = vmatprep.subr.mxu0 0.0
        %5303 = vmatpush1.msra.mxu0 0.0
        %5304 = vmatprep.subr.mxu0 0.0
        %5305 = vmatpush1.msra.mxu0 0.0
        %5306 = vmatprep.subr.mxu0 0.0
        %5307 = vmatpush1.msra.mxu0 0.0
        %5308 = vmatprep.subr.mxu0 0.0
        %5309 = vmatpush1.msra.mxu0 0.0
        %5310 = vmatprep.subr.mxu0 0.0
        %5311 = vmatpush1.msra.mxu0 0.0
        %5312 = vmatprep.subr.mxu0 0.0
        %5313 = vmatpush1.msra.mxu0 0.0
        %5314 = vmatprep.subr.mxu0 0.0
        %5315 = vmatpush1.msra.mxu0 0.0
        %5316 = vmatprep.subr.mxu0 0.0
        %5317 = vmatpush1.msra.mxu0 0.0
        %5318 = vmatprep.subr.mxu0 0.0
        %5319 = vmatpush1.msra.mxu0 0.0
        %5320 = vmatprep.subr.mxu0 0.0
        %5321 = vmatpush1.msra.mxu0 0.0
        %5322 = vmatprep.subr.mxu0 0.0
        %5323 = vmatpush1.msra.mxu0 0.0
        %5324 = vmatprep.subr.mxu0 0.0
        %5325 = vmatpush1.msra.mxu0 0.0
        %5326 = vmatprep.subr.mxu0 0.0
        %5327 = vmatpush1.msra.mxu0 0.0
        %5328 = vmatprep.subr.mxu0 0.0
        %5329 = vmatpush1.msra.mxu0 0.0
        %5330 = vmatprep.subr.mxu0 0.0
        %5331 = vmatpush1.msra.mxu0 0.0
        %5332 = vmatprep.subr.mxu0 0.0
        %5333 = vmatpush1.msra.mxu0 0.0
        %5334 = vmatprep.subr.mxu0 0.0
        %5335 = vmatpush1.msra.mxu0 0.0
        %5336 = vmatprep.subr.mxu0 0.0
        %5337 = vmatpush1.msra.mxu0 0.0
        %5338 = vmatprep.subr.mxu0 0.0
        %5339 = vmatpush1.msra.mxu0 0.0
        %5340 = vmatprep.subr.mxu0 0.0
        %5341 = vmatpush1.msra.mxu0 0.0
        %5342 = vmatprep.subr.mxu0 0.0
        %5343 = vmatpush1.msra.mxu0 0.0
        %5344 = vmatprep.subr.mxu0 0.0
        %5345 = vmatpush1.msra.mxu0 0.0
        %5346 = vmatprep.subr.mxu0 0.0
        %5347 = vmatpush1.msra.mxu0 0.0
        %5348 = vmatprep.mubr.f32.mxu0 0.0
        %v5349 = vand.u32 %v4943, 4294901760
        %5350 = vmatmul.mubr.f32.gmra.mrb[0].mxu0 %v5349
        %v5351 = vpop.f32.mrb[0].mxu0
        %v5352 = vadd.f32 %v5269, %v5351
        %v5353 = vpop.f32.mrb[0].mxu0
        %5354 = vdwg.mxu0
        %5355 = vmatprep.subr.mxu0 0.0
        %v5356 = vand.u32 %v4938, 4294901760
        %5357 = vmatpush1.msra.mxu0 %v5356
        %5358 = vmatprep.subr.mxu0 0.0
        %v5359 = vand.u32 %v4939, 4294901760
        %5360 = vmatpush1.msra.mxu0 %v5359
        %5361 = vmatprep.subr.mxu0 0.0
        %v5362 = vand.u32 %v4940, 4294901760
        %5363 = vmatpush1.msra.mxu0 %v5362
        %5364 = vmatprep.subr.mxu0 0.0
        %v5365 = vand.u32 %v4941, 4294901760
        %5366 = vmatpush1.msra.mxu0 %v5365
        %5367 = vmatprep.subr.mxu0 0.0
        %5368 = vmatpush1.msra.mxu0 0.0
        %5369 = vmatprep.subr.mxu0 0.0
        %5370 = vmatpush1.msra.mxu0 0.0
        %5371 = vmatprep.subr.mxu0 0.0
        %5372 = vmatpush1.msra.mxu0 0.0
        %5373 = vmatprep.subr.mxu0 0.0
        %5374 = vmatpush1.msra.mxu0 0.0
        %5375 = vmatprep.subr.mxu0 0.0
        %5376 = vmatpush1.msra.mxu0 0.0
        %5377 = vmatprep.subr.mxu0 0.0
        %5378 = vmatpush1.msra.mxu0 0.0
        %5379 = vmatprep.subr.mxu0 0.0
        %5380 = vmatpush1.msra.mxu0 0.0
        %5381 = vmatprep.subr.mxu0 0.0
        %5382 = vmatpush1.msra.mxu0 0.0
        %5383 = vmatprep.subr.mxu0 0.0
        %5384 = vmatpush1.msra.mxu0 0.0
        %5385 = vmatprep.subr.mxu0 0.0
        %5386 = vmatpush1.msra.mxu0 0.0
        %5387 = vmatprep.subr.mxu0 0.0
        %5388 = vmatpush1.msra.mxu0 0.0
        %5389 = vmatprep.subr.mxu0 0.0
        %5390 = vmatpush1.msra.mxu0 0.0
        %5391 = vmatprep.subr.mxu0 0.0
        %5392 = vmatpush1.msra.mxu0 0.0
        %5393 = vmatprep.subr.mxu0 0.0
        %5394 = vmatpush1.msra.mxu0 0.0
        %5395 = vmatprep.subr.mxu0 0.0
        %5396 = vmatpush1.msra.mxu0 0.0
        %5397 = vmatprep.subr.mxu0 0.0
        %5398 = vmatpush1.msra.mxu0 0.0
        %5399 = vmatprep.subr.mxu0 0.0
        %5400 = vmatpush1.msra.mxu0 0.0
        %5401 = vmatprep.subr.mxu0 0.0
        %5402 = vmatpush1.msra.mxu0 0.0
        %5403 = vmatprep.subr.mxu0 0.0
        %5404 = vmatpush1.msra.mxu0 0.0
        %5405 = vmatprep.subr.mxu0 0.0
        %5406 = vmatpush1.msra.mxu0 0.0
        %5407 = vmatprep.subr.mxu0 0.0
        %5408 = vmatpush1.msra.mxu0 0.0
        %5409 = vmatprep.subr.mxu0 0.0
        %5410 = vmatpush1.msra.mxu0 0.0
        %5411 = vmatprep.subr.mxu0 0.0
        %5412 = vmatpush1.msra.mxu0 0.0
        %5413 = vmatprep.subr.mxu0 0.0
        %5414 = vmatpush1.msra.mxu0 0.0
        %5415 = vmatprep.subr.mxu0 0.0
        %5416 = vmatpush1.msra.mxu0 0.0
        %5417 = vmatprep.subr.mxu0 0.0
        %5418 = vmatpush1.msra.mxu0 0.0
        %5419 = vmatprep.subr.mxu0 0.0
        %5420 = vmatpush1.msra.mxu0 0.0
        %5421 = vmatprep.subr.mxu0 0.0
        %5422 = vmatpush1.msra.mxu0 0.0
        %5423 = vmatprep.mubr.f32.mxu0 0.0
        %v5424 = vand.u32 %v4943, 4294901760
        %5425 = vmatmul.mubr.f32.gmra.mrb[0].mxu0 %v5424
        %v5426 = vpop.f32.mrb[0].mxu0
        %v5427 = vadd.f32 %v5352, %v5426
        %v5428 = vpop.f32.mrb[0].mxu0
        %5429 = vdwg.mxu0
        %v5430 = vlaneseq
        %v5431 = vshrl.u32 %v5430, 7
        %v5432 = vsub.s32 0, %v5431
        %v5433 = vrot.slane %v5427, %v5432
        %v5434 = vsub.f32 %v4359, %v5433
        %v5435 = vsub.f32 %v4360, %v5433
        %v5436 = vsub.f32 %v4361, %v5433
        %v5437 = vsub.f32 %v4362, %v5433
        %v5438 = vsub.f32 %v4363, %v5433
        %v5439 = vsub.f32 %v4364, %v5433
        %v5440 = vsub.f32 %v4365, %v5433
        %v5441 = vsub.f32 %v4366, %v5433
        %v5442 = vsub.f32 %v4367, %v5433
        %v5443 = vmul.f32 %v5434, %v4371
        %v5444 = vmul.f32 %v5435, %v4376
        %v5445 = vmul.f32 %v5436, %v4381
        %v5446 = vmul.f32 %v5437, %v4386
        %v5447 = vmul.f32 %v5438, %v4391
        %v5448 = vmul.f32 %v5439, %v4396
        %v5449 = vmul.f32 %v5440, %v4401
        %v5450 = vmul.f32 %v5441, %v4406
        %v5451 = vmul.f32 %v5442, %v4411
        %v5452 = vmul.f32 %v5443, %v5443
        %v5453 = vmul.f32 %v5444, %v5444
        %v5454 = vmul.f32 %v5445, %v5445
        %v5455 = vmul.f32 %v5446, %v5446
        %v5456 = vmul.f32 %v5447, %v5447
        %v5457 = vmul.f32 %v5448, %v5448
        %v5458 = vmul.f32 %v5449, %v5449
        %v5459 = vmul.f32 %v5450, %v5450
        %v5460 = vmul.f32 %v5451, %v5451
        %v5461 = vsel %vm619, %v5452, 0.0
        %v5462 = vsel %vm619, %v5453, 0.0
        %v5463 = vadd.f32 %v5461, %v5462
        %v5464 = vsel %vm619, %v5454, 0.0
        %v5465 = vadd.f32 %v5463, %v5464
        %v5466 = vsel %vm619, %v5455, 0.0
        %v5467 = vadd.f32 %v5465, %v5466
        %v5468 = vsel %vm619, %v5456, 0.0
        %v5469 = vadd.f32 %v5467, %v5468
        %v5470 = vsel %vm619, %v5457, 0.0
        %v5471 = vadd.f32 %v5469, %v5470
        %v5472 = vsel %vm619, %v5458, 0.0
        %v5473 = vadd.f32 %v5471, %v5472
        %v5474 = vsel %vm619, %v5459, 0.0
        %v5475 = vadd.f32 %v5473, %v5474
        %v5476 = vsel %vm619, %v5460, 0.0
        %v5477 = vadd.f32 %v5475, %v5476
        %v5478 = vrot.slane %v5477, 4
        %v5479 = vadd.f32 %v5477, %v5478
        %v5480 = vrot.slane %v5479, 2
        %v5481 = vadd.f32 %v5479, %v5480
        %v5482 = vrot.slane %v5481, 1
        %v5483 = vadd.f32 %v5481, %v5482
        %v5485 = vsel %vm619, %v5483, 0
        %5487 = vmatprep.subr.mxu0 0.0
        %v5488 = vand.u32 %v4445, 4294901760
        %5489 = vmatpush1.msra.mxu0 %v5488
        %5490 = vmatprep.subr.mxu0 0.0
        %v5491 = vand.u32 %v4446, 4294901760
        %5492 = vmatpush1.msra.mxu0 %v5491
        %5493 = vmatprep.subr.mxu0 0.0
        %v5494 = vand.u32 %v4447, 4294901760
        %5495 = vmatpush1.msra.mxu0 %v5494
        %5496 = vmatprep.subr.mxu0 0.0
        %v5497 = vand.u32 %v4448, 4294901760
        %5498 = vmatpush1.msra.mxu0 %v5497
        %5499 = vmatprep.subr.mxu0 0.0
        %5500 = vmatpush1.msra.mxu0 0.0
        %5501 = vmatprep.subr.mxu0 0.0
        %5502 = vmatpush1.msra.mxu0 0.0
        %5503 = vmatprep.subr.mxu0 0.0
        %5504 = vmatpush1.msra.mxu0 0.0
        %5505 = vmatprep.subr.mxu0 0.0
        %5506 = vmatpush1.msra.mxu0 0.0
        %5507 = vmatprep.subr.mxu0 0.0
        %5508 = vmatpush1.msra.mxu0 0.0
        %5509 = vmatprep.subr.mxu0 0.0
        %5510 = vmatpush1.msra.mxu0 0.0
        %5511 = vmatprep.subr.mxu0 0.0
        %5512 = vmatpush1.msra.mxu0 0.0
        %5513 = vmatprep.subr.mxu0 0.0
        %5514 = vmatpush1.msra.mxu0 0.0
        %5515 = vmatprep.subr.mxu0 0.0
        %5516 = vmatpush1.msra.mxu0 0.0
        %5517 = vmatprep.subr.mxu0 0.0
        %5518 = vmatpush1.msra.mxu0 0.0
        %5519 = vmatprep.subr.mxu0 0.0
        %5520 = vmatpush1.msra.mxu0 0.0
        %5521 = vmatprep.subr.mxu0 0.0
        %5522 = vmatpush1.msra.mxu0 0.0
        %5523 = vmatprep.subr.mxu0 0.0
        %5524 = vmatpush1.msra.mxu0 0.0
        %5525 = vmatprep.subr.mxu0 0.0
        %5526 = vmatpush1.msra.mxu0 0.0
        %5527 = vmatprep.subr.mxu0 0.0
        %5528 = vmatpush1.msra.mxu0 0.0
        %5529 = vmatprep.subr.mxu0 0.0
        %5530 = vmatpush1.msra.mxu0 0.0
        %5531 = vmatprep.subr.mxu0 0.0
        %5532 = vmatpush1.msra.mxu0 0.0
        %5533 = vmatprep.subr.mxu0 0.0
        %5534 = vmatpush1.msra.mxu0 0.0
        %5535 = vmatprep.subr.mxu0 0.0
        %5536 = vmatpush1.msra.mxu0 0.0
        %5537 = vmatprep.subr.mxu0 0.0
        %5538 = vmatpush1.msra.mxu0 0.0
        %5539 = vmatprep.subr.mxu0 0.0
        %5540 = vmatpush1.msra.mxu0 0.0
        %5541 = vmatprep.subr.mxu0 0.0
        %5542 = vmatpush1.msra.mxu0 0.0
        %5543 = vmatprep.subr.mxu0 0.0
        %5544 = vmatpush1.msra.mxu0 0.0
        %5545 = vmatprep.subr.mxu0 0.0
        %5546 = vmatpush1.msra.mxu0 0.0
        %5547 = vmatprep.subr.mxu0 0.0
        %5548 = vmatpush1.msra.mxu0 0.0
        %5549 = vmatprep.subr.mxu0 0.0
        %5550 = vmatpush1.msra.mxu0 0.0
        %5551 = vmatprep.subr.mxu0 0.0
        %5552 = vmatpush1.msra.mxu0 0.0
        %5553 = vmatprep.subr.mxu0 0.0
        %5554 = vmatpush1.msra.mxu0 0.0
        %5555 = vmatprep.mubr.f32.mxu0 0.0
        %v5556 = vand.u32 %v5485, 4294901760
        %v5557 = vsub.f32 %v5485, %v5556
        %v5558 = vand.u32 %v5557, 4294901760
        %v5559 = vsub.f32 %v5557, %v5558
        %v5560 = vand.u32 %v5559, 4294901760
        %5561 = vmatmul.mubr.f32.gmra.mrb[0].mxu0 %v5560
        %v5562 = vpop.f32.mrb[0].mxu0
        %v5563 = vadd.f32 0.0, %v5562
        %v5564 = vpop.f32.mrb[0].mxu0
        %5565 = vdwg.mxu0
        %5566 = vmatprep.subr.mxu0 0.0
        %v5567 = vand.u32 %v4445, 4294901760
        %v5568 = vsub.f32 %v4445, %v5567
        %v5569 = vand.u32 %v5568, 4294901760
        %v5570 = vsub.f32 %v5568, %v5569
        %v5571 = vand.u32 %v5570, 4294901760
        %5572 = vmatpush1.msra.mxu0 %v5571
        %5573 = vmatprep.subr.mxu0 0.0
        %v5574 = vand.u32 %v4446, 4294901760
        %v5575 = vsub.f32 %v4446, %v5574
        %v5576 = vand.u32 %v5575, 4294901760
        %v5577 = vsub.f32 %v5575, %v5576
        %v5578 = vand.u32 %v5577, 4294901760
        %5579 = vmatpush1.msra.mxu0 %v5578
        %5580 = vmatprep.subr.mxu0 0.0
        %v5581 = vand.u32 %v4447, 4294901760
        %v5582 = vsub.f32 %v4447, %v5581
        %v5583 = vand.u32 %v5582, 4294901760
        %v5584 = vsub.f32 %v5582, %v5583
        %v5585 = vand.u32 %v5584, 4294901760
        %5586 = vmatpush1.msra.mxu0 %v5585
        %5587 = vmatprep.subr.mxu0 0.0
        %v5588 = vand.u32 %v4448, 4294901760
        %v5589 = vsub.f32 %v4448, %v5588
        %v5590 = vand.u32 %v5589, 4294901760
        %v5591 = vsub.f32 %v5589, %v5590
        %v5592 = vand.u32 %v5591, 4294901760
        %5593 = vmatpush1.msra.mxu0 %v5592
        %5594 = vmatprep.subr.mxu0 0.0
        %5595 = vmatpush1.msra.mxu0 0.0
        %5596 = vmatprep.subr.mxu0 0.0
        %5597 = vmatpush1.msra.mxu0 0.0
        %5598 = vmatprep.subr.mxu0 0.0
        %5599 = vmatpush1.msra.mxu0 0.0
        %5600 = vmatprep.subr.mxu0 0.0
        %5601 = vmatpush1.msra.mxu0 0.0
        %5602 = vmatprep.subr.mxu0 0.0
        %5603 = vmatpush1.msra.mxu0 0.0
        %5604 = vmatprep.subr.mxu0 0.0
        %5605 = vmatpush1.msra.mxu0 0.0
        %5606 = vmatprep.subr.mxu0 0.0
        %5607 = vmatpush1.msra.mxu0 0.0
        %5608 = vmatprep.subr.mxu0 0.0
        %5609 = vmatpush1.msra.mxu0 0.0
        %5610 = vmatprep.subr.mxu0 0.0
        %5611 = vmatpush1.msra.mxu0 0.0
        %5612 = vmatprep.subr.mxu0 0.0
        %5613 = vmatpush1.msra.mxu0 0.0
        %5614 = vmatprep.subr.mxu0 0.0
        %5615 = vmatpush1.msra.mxu0 0.0
        %5616 = vmatprep.subr.mxu0 0.0
        %5617 = vmatpush1.msra.mxu0 0.0
        %5618 = vmatprep.subr.mxu0 0.0
        %5619 = vmatpush1.msra.mxu0 0.0
        %5620 = vmatprep.subr.mxu0 0.0
        %5621 = vmatpush1.msra.mxu0 0.0
        %5622 = vmatprep.subr.mxu0 0.0
        %5623 = vmatpush1.msra.mxu0 0.0
        %5624 = vmatprep.subr.mxu0 0.0
        %5625 = vmatpush1.msra.mxu0 0.0
        %5626 = vmatprep.subr.mxu0 0.0
        %5627 = vmatpush1.msra.mxu0 0.0
        %5628 = vmatprep.subr.mxu0 0.0
        %5629 = vmatpush1.msra.mxu0 0.0
        %5630 = vmatprep.subr.mxu0 0.0
        %5631 = vmatpush1.msra.mxu0 0.0
        %5632 = vmatprep.subr.mxu0 0.0
        %5633 = vmatpush1.msra.mxu0 0.0
        %5634 = vmatprep.subr.mxu0 0.0
        %5635 = vmatpush1.msra.mxu0 0.0
        %5636 = vmatprep.subr.mxu0 0.0
        %5637 = vmatpush1.msra.mxu0 0.0
        %5638 = vmatprep.subr.mxu0 0.0
        %5639 = vmatpush1.msra.mxu0 0.0
        %5640 = vmatprep.subr.mxu0 0.0
        %5641 = vmatpush1.msra.mxu0 0.0
        %5642 = vmatprep.subr.mxu0 0.0
        %5643 = vmatpush1.msra.mxu0 0.0
        %5644 = vmatprep.subr.mxu0 0.0
        %5645 = vmatpush1.msra.mxu0 0.0
        %5646 = vmatprep.subr.mxu0 0.0
        %5647 = vmatpush1.msra.mxu0 0.0
        %5648 = vmatprep.subr.mxu0 0.0
        %5649 = vmatpush1.msra.mxu0 0.0
        %5650 = vmatprep.mubr.f32.mxu0 0.0
        %v5651 = vand.u32 %v5485, 4294901760
        %5652 = vmatmul.mubr.f32.gmra.mrb[0].mxu0 %v5651
        %v5653 = vpop.f32.mrb[0].mxu0
        %v5654 = vadd.f32 %v5563, %v5653
        %v5655 = vpop.f32.mrb[0].mxu0
        %5656 = vdwg.mxu0
        %5657 = vmatprep.subr.mxu0 0.0
        %v5658 = vand.u32 %v4445, 4294901760
        %v5659 = vsub.f32 %v4445, %v5658
        %5660 = vmatpush1.msra.mxu0 %v5659
        %5661 = vmatprep.subr.mxu0 0.0
        %v5662 = vand.u32 %v4446, 4294901760
        %v5663 = vsub.f32 %v4446, %v5662
        %5664 = vmatpush1.msra.mxu0 %v5663
        %5665 = vmatprep.subr.mxu0 0.0
        %v5666 = vand.u32 %v4447, 4294901760
        %v5667 = vsub.f32 %v4447, %v5666
        %5668 = vmatpush1.msra.mxu0 %v5667
        %5669 = vmatprep.subr.mxu0 0.0
        %v5670 = vand.u32 %v4448, 4294901760
        %v5671 = vsub.f32 %v4448, %v5670
        %5672 = vmatpush1.msra.mxu0 %v5671
        %5673 = vmatprep.subr.mxu0 0.0
        %5674 = vmatpush1.msra.mxu0 0.0
        %5675 = vmatprep.subr.mxu0 0.0
        %5676 = vmatpush1.msra.mxu0 0.0
        %5677 = vmatprep.subr.mxu0 0.0
        %5678 = vmatpush1.msra.mxu0 0.0
        %5679 = vmatprep.subr.mxu0 0.0
        %5680 = vmatpush1.msra.mxu0 0.0
        %5681 = vmatprep.subr.mxu0 0.0
        %5682 = vmatpush1.msra.mxu0 0.0
        %5683 = vmatprep.subr.mxu0 0.0
        %5684 = vmatpush1.msra.mxu0 0.0
        %5685 = vmatprep.subr.mxu0 0.0
        %5686 = vmatpush1.msra.mxu0 0.0
        %5687 = vmatprep.subr.mxu0 0.0
        %5688 = vmatpush1.msra.mxu0 0.0
        %5689 = vmatprep.subr.mxu0 0.0
        %5690 = vmatpush1.msra.mxu0 0.0
        %5691 = vmatprep.subr.mxu0 0.0
        %5692 = vmatpush1.msra.mxu0 0.0
        %5693 = vmatprep.subr.mxu0 0.0
        %5694 = vmatpush1.msra.mxu0 0.0
        %5695 = vmatprep.subr.mxu0 0.0
        %5696 = vmatpush1.msra.mxu0 0.0
        %5697 = vmatprep.subr.mxu0 0.0
        %5698 = vmatpush1.msra.mxu0 0.0
        %5699 = vmatprep.subr.mxu0 0.0
        %5700 = vmatpush1.msra.mxu0 0.0
        %5701 = vmatprep.subr.mxu0 0.0
        %5702 = vmatpush1.msra.mxu0 0.0
        %5703 = vmatprep.subr.mxu0 0.0
        %5704 = vmatpush1.msra.mxu0 0.0
        %5705 = vmatprep.subr.mxu0 0.0
        %5706 = vmatpush1.msra.mxu0 0.0
        %5707 = vmatprep.subr.mxu0 0.0
        %5708 = vmatpush1.msra.mxu0 0.0
        %5709 = vmatprep.subr.mxu0 0.0
        %5710 = vmatpush1.msra.mxu0 0.0
        %5711 = vmatprep.subr.mxu0 0.0
        %5712 = vmatpush1.msra.mxu0 0.0
        %5713 = vmatprep.subr.mxu0 0.0
        %5714 = vmatpush1.msra.mxu0 0.0
        %5715 = vmatprep.subr.mxu0 0.0
        %5716 = vmatpush1.msra.mxu0 0.0
        %5717 = vmatprep.subr.mxu0 0.0
        %5718 = vmatpush1.msra.mxu0 0.0
        %5719 = vmatprep.subr.mxu0 0.0
        %5720 = vmatpush1.msra.mxu0 0.0
        %5721 = vmatprep.subr.mxu0 0.0
        %5722 = vmatpush1.msra.mxu0 0.0
        %5723 = vmatprep.subr.mxu0 0.0
        %5724 = vmatpush1.msra.mxu0 0.0
        %5725 = vmatprep.subr.mxu0 0.0
        %5726 = vmatpush1.msra.mxu0 0.0
        %5727 = vmatprep.subr.mxu0 0.0
        %5728 = vmatpush1.msra.mxu0 0.0
        %5729 = vmatprep.mubr.f32.mxu0 0.0
        %v5730 = vand.u32 %v5485, 4294901760
        %v5731 = vsub.f32 %v5485, %v5730
        %5732 = vmatmul.mubr.f32.gmra.mrb[0].mxu0 %v5731
        %v5733 = vpop.f32.mrb[0].mxu0
        %v5734 = vadd.f32 %v5654, %v5733
        %v5735 = vpop.f32.mrb[0].mxu0
        %5736 = vdwg.mxu0
        %5737 = vmatprep.subr.mxu0 0.0
        %v5738 = vand.u32 %v4445, 4294901760
        %5739 = vmatpush1.msra.mxu0 %v5738
        %5740 = vmatprep.subr.mxu0 0.0
        %v5741 = vand.u32 %v4446, 4294901760
        %5742 = vmatpush1.msra.mxu0 %v5741
        %5743 = vmatprep.subr.mxu0 0.0
        %v5744 = vand.u32 %v4447, 4294901760
        %5745 = vmatpush1.msra.mxu0 %v5744
        %5746 = vmatprep.subr.mxu0 0.0
        %v5747 = vand.u32 %v4448, 4294901760
        %5748 = vmatpush1.msra.mxu0 %v5747
        %5749 = vmatprep.subr.mxu0 0.0
        %5750 = vmatpush1.msra.mxu0 0.0
        %5751 = vmatprep.subr.mxu0 0.0
        %5752 = vmatpush1.msra.mxu0 0.0
        %5753 = vmatprep.subr.mxu0 0.0
        %5754 = vmatpush1.msra.mxu0 0.0
        %5755 = vmatprep.subr.mxu0 0.0
        %5756 = vmatpush1.msra.mxu0 0.0
        %5757 = vmatprep.subr.mxu0 0.0
        %5758 = vmatpush1.msra.mxu0 0.0
        %5759 = vmatprep.subr.mxu0 0.0
        %5760 = vmatpush1.msra.mxu0 0.0
        %5761 = vmatprep.subr.mxu0 0.0
        %5762 = vmatpush1.msra.mxu0 0.0
        %5763 = vmatprep.subr.mxu0 0.0
        %5764 = vmatpush1.msra.mxu0 0.0
        %5765 = vmatprep.subr.mxu0 0.0
        %5766 = vmatpush1.msra.mxu0 0.0
        %5767 = vmatprep.subr.mxu0 0.0
        %5768 = vmatpush1.msra.mxu0 0.0
        %5769 = vmatprep.subr.mxu0 0.0
        %5770 = vmatpush1.msra.mxu0 0.0
        %5771 = vmatprep.subr.mxu0 0.0
        %5772 = vmatpush1.msra.mxu0 0.0
        %5773 = vmatprep.subr.mxu0 0.0
        %5774 = vmatpush1.msra.mxu0 0.0
        %5775 = vmatprep.subr.mxu0 0.0
        %5776 = vmatpush1.msra.mxu0 0.0
        %5777 = vmatprep.subr.mxu0 0.0
        %5778 = vmatpush1.msra.mxu0 0.0
        %5779 = vmatprep.subr.mxu0 0.0
        %5780 = vmatpush1.msra.mxu0 0.0
        %5781 = vmatprep.subr.mxu0 0.0
        %5782 = vmatpush1.msra.mxu0 0.0
        %5783 = vmatprep.subr.mxu0 0.0
        %5784 = vmatpush1.msra.mxu0 0.0
        %5785 = vmatprep.subr.mxu0 0.0
        %5786 = vmatpush1.msra.mxu0 0.0
        %5787 = vmatprep.subr.mxu0 0.0
        %5788 = vmatpush1.msra.mxu0 0.0
        %5789 = vmatprep.subr.mxu0 0.0
        %5790 = vmatpush1.msra.mxu0 0.0
        %5791 = vmatprep.subr.mxu0 0.0
        %5792 = vmatpush1.msra.mxu0 0.0
        %5793 = vmatprep.subr.mxu0 0.0
        %5794 = vmatpush1.msra.mxu0 0.0
        %5795 = vmatprep.subr.mxu0 0.0
        %5796 = vmatpush1.msra.mxu0 0.0
        %5797 = vmatprep.subr.mxu0 0.0
        %5798 = vmatpush1.msra.mxu0 0.0
        %5799 = vmatprep.subr.mxu0 0.0
        %5800 = vmatpush1.msra.mxu0 0.0
        %5801 = vmatprep.subr.mxu0 0.0
        %5802 = vmatpush1.msra.mxu0 0.0
        %5803 = vmatprep.subr.mxu0 0.0
        %5804 = vmatpush1.msra.mxu0 0.0
        %5805 = vmatprep.mubr.f32.mxu0 0.0
        %v5806 = vand.u32 %v5485, 4294901760
        %v5807 = vsub.f32 %v5485, %v5806
        %v5808 = vand.u32 %v5807, 4294901760
        %5809 = vmatmul.mubr.f32.gmra.mrb[0].mxu0 %v5808
        %v5810 = vpop.f32.mrb[0].mxu0
        %v5811 = vadd.f32 %v5734, %v5810
        %v5812 = vpop.f32.mrb[0].mxu0
        %5813 = vdwg.mxu0
        %5814 = vmatprep.subr.mxu0 0.0
        %v5815 = vand.u32 %v4445, 4294901760
        %v5816 = vsub.f32 %v4445, %v5815
        %v5817 = vand.u32 %v5816, 4294901760
        %5818 = vmatpush1.msra.mxu0 %v5817
        %5819 = vmatprep.subr.mxu0 0.0
        %v5820 = vand.u32 %v4446, 4294901760
        %v5821 = vsub.f32 %v4446, %v5820
        %v5822 = vand.u32 %v5821, 4294901760
        %5823 = vmatpush1.msra.mxu0 %v5822
        %5824 = vmatprep.subr.mxu0 0.0
        %v5825 = vand.u32 %v4447, 4294901760
        %v5826 = vsub.f32 %v4447, %v5825
        %v5827 = vand.u32 %v5826, 4294901760
        %5828 = vmatpush1.msra.mxu0 %v5827
        %5829 = vmatprep.subr.mxu0 0.0
        %v5830 = vand.u32 %v4448, 4294901760
        %v5831 = vsub.f32 %v4448, %v5830
        %v5832 = vand.u32 %v5831, 4294901760
        %5833 = vmatpush1.msra.mxu0 %v5832
        %5834 = vmatprep.subr.mxu0 0.0
        %5835 = vmatpush1.msra.mxu0 0.0
        %5836 = vmatprep.subr.mxu0 0.0
        %5837 = vmatpush1.msra.mxu0 0.0
        %5838 = vmatprep.subr.mxu0 0.0
        %5839 = vmatpush1.msra.mxu0 0.0
        %5840 = vmatprep.subr.mxu0 0.0
        %5841 = vmatpush1.msra.mxu0 0.0
        %5842 = vmatprep.subr.mxu0 0.0
        %5843 = vmatpush1.msra.mxu0 0.0
        %5844 = vmatprep.subr.mxu0 0.0
        %5845 = vmatpush1.msra.mxu0 0.0
        %5846 = vmatprep.subr.mxu0 0.0
        %5847 = vmatpush1.msra.mxu0 0.0
        %5848 = vmatprep.subr.mxu0 0.0
        %5849 = vmatpush1.msra.mxu0 0.0
        %5850 = vmatprep.subr.mxu0 0.0
        %5851 = vmatpush1.msra.mxu0 0.0
        %5852 = vmatprep.subr.mxu0 0.0
        %5853 = vmatpush1.msra.mxu0 0.0
        %5854 = vmatprep.subr.mxu0 0.0
        %5855 = vmatpush1.msra.mxu0 0.0
        %5856 = vmatprep.subr.mxu0 0.0
        %5857 = vmatpush1.msra.mxu0 0.0
        %5858 = vmatprep.subr.mxu0 0.0
        %5859 = vmatpush1.msra.mxu0 0.0
        %5860 = vmatprep.subr.mxu0 0.0
        %5861 = vmatpush1.msra.mxu0 0.0
        %5862 = vmatprep.subr.mxu0 0.0
        %5863 = vmatpush1.msra.mxu0 0.0
        %5864 = vmatprep.subr.mxu0 0.0
        %5865 = vmatpush1.msra.mxu0 0.0
        %5866 = vmatprep.subr.mxu0 0.0
        %5867 = vmatpush1.msra.mxu0 0.0
        %5868 = vmatprep.subr.mxu0 0.0
        %5869 = vmatpush1.msra.mxu0 0.0
        %5870 = vmatprep.subr.mxu0 0.0
        %5871 = vmatpush1.msra.mxu0 0.0
        %5872 = vmatprep.subr.mxu0 0.0
        %5873 = vmatpush1.msra.mxu0 0.0
        %5874 = vmatprep.subr.mxu0 0.0
        %5875 = vmatpush1.msra.mxu0 0.0
        %5876 = vmatprep.subr.mxu0 0.0
        %5877 = vmatpush1.msra.mxu0 0.0
        %5878 = vmatprep.subr.mxu0 0.0
        %5879 = vmatpush1.msra.mxu0 0.0
        %5880 = vmatprep.subr.mxu0 0.0
        %5881 = vmatpush1.msra.mxu0 0.0
        %5882 = vmatprep.subr.mxu0 0.0
        %5883 = vmatpush1.msra.mxu0 0.0
        %5884 = vmatprep.subr.mxu0 0.0
        %5885 = vmatpush1.msra.mxu0 0.0
        %5886 = vmatprep.subr.mxu0 0.0
        %5887 = vmatpush1.msra.mxu0 0.0
        %5888 = vmatprep.subr.mxu0 0.0
        %5889 = vmatpush1.msra.mxu0 0.0
        %5890 = vmatprep.mubr.f32.mxu0 0.0
        %v5891 = vand.u32 %v5485, 4294901760
        %5892 = vmatmul.mubr.f32.gmra.mrb[0].mxu0 %v5891
        %v5893 = vpop.f32.mrb[0].mxu0
        %v5894 = vadd.f32 %v5811, %v5893
        %v5895 = vpop.f32.mrb[0].mxu0
        %5896 = vdwg.mxu0
        %5897 = vmatprep.subr.mxu0 0.0
        %v5898 = vand.u32 %v4445, 4294901760
        %5899 = vmatpush1.msra.mxu0 %v5898
        %5900 = vmatprep.subr.mxu0 0.0
        %v5901 = vand.u32 %v4446, 4294901760
        %5902 = vmatpush1.msra.mxu0 %v5901
        %5903 = vmatprep.subr.mxu0 0.0
        %v5904 = vand.u32 %v4447, 4294901760
        %5905 = vmatpush1.msra.mxu0 %v5904
        %5906 = vmatprep.subr.mxu0 0.0
        %v5907 = vand.u32 %v4448, 4294901760
        %5908 = vmatpush1.msra.mxu0 %v5907
        %5909 = vmatprep.subr.mxu0 0.0
        %5910 = vmatpush1.msra.mxu0 0.0
        %5911 = vmatprep.subr.mxu0 0.0
        %5912 = vmatpush1.msra.mxu0 0.0
        %5913 = vmatprep.subr.mxu0 0.0
        %5914 = vmatpush1.msra.mxu0 0.0
        %5915 = vmatprep.subr.mxu0 0.0
        %5916 = vmatpush1.msra.mxu0 0.0
        %5917 = vmatprep.subr.mxu0 0.0
        %5918 = vmatpush1.msra.mxu0 0.0
        %5919 = vmatprep.subr.mxu0 0.0
        %5920 = vmatpush1.msra.mxu0 0.0
        %5921 = vmatprep.subr.mxu0 0.0
        %5922 = vmatpush1.msra.mxu0 0.0
        %5923 = vmatprep.subr.mxu0 0.0
        %5924 = vmatpush1.msra.mxu0 0.0
        %5925 = vmatprep.subr.mxu0 0.0
        %5926 = vmatpush1.msra.mxu0 0.0
        %5927 = vmatprep.subr.mxu0 0.0
        %5928 = vmatpush1.msra.mxu0 0.0
        %5929 = vmatprep.subr.mxu0 0.0
        %5930 = vmatpush1.msra.mxu0 0.0
        %5931 = vmatprep.subr.mxu0 0.0
        %5932 = vmatpush1.msra.mxu0 0.0
        %5933 = vmatprep.subr.mxu0 0.0
        %5934 = vmatpush1.msra.mxu0 0.0
        %5935 = vmatprep.subr.mxu0 0.0
        %5936 = vmatpush1.msra.mxu0 0.0
        %5937 = vmatprep.subr.mxu0 0.0
        %5938 = vmatpush1.msra.mxu0 0.0
        %5939 = vmatprep.subr.mxu0 0.0
        %5940 = vmatpush1.msra.mxu0 0.0
        %5941 = vmatprep.subr.mxu0 0.0
        %5942 = vmatpush1.msra.mxu0 0.0
        %5943 = vmatprep.subr.mxu0 0.0
        %5944 = vmatpush1.msra.mxu0 0.0
        %5945 = vmatprep.subr.mxu0 0.0
        %5946 = vmatpush1.msra.mxu0 0.0
        %5947 = vmatprep.subr.mxu0 0.0
        %5948 = vmatpush1.msra.mxu0 0.0
        %5949 = vmatprep.subr.mxu0 0.0
        %5950 = vmatpush1.msra.mxu0 0.0
        %5951 = vmatprep.subr.mxu0 0.0
        %5952 = vmatpush1.msra.mxu0 0.0
        %5953 = vmatprep.subr.mxu0 0.0
        %5954 = vmatpush1.msra.mxu0 0.0
        %5955 = vmatprep.subr.mxu0 0.0
        %5956 = vmatpush1.msra.mxu0 0.0
        %5957 = vmatprep.subr.mxu0 0.0
        %5958 = vmatpush1.msra.mxu0 0.0
        %5959 = vmatprep.subr.mxu0 0.0
        %5960 = vmatpush1.msra.mxu0 0.0
        %5961 = vmatprep.subr.mxu0 0.0
        %5962 = vmatpush1.msra.mxu0 0.0
        %5963 = vmatprep.subr.mxu0 0.0
        %5964 = vmatpush1.msra.mxu0 0.0
        %5965 = vmatprep.mubr.f32.mxu0 0.0
        %v5966 = vand.u32 %v5485, 4294901760
        %5967 = vmatmul.mubr.f32.gmra.mrb[0].mxu0 %v5966
        %v5968 = vpop.f32.mrb[0].mxu0
        %v5969 = vadd.f32 %v5894, %v5968
        %v5970 = vpop.f32.mrb[0].mxu0
        %5971 = vdwg.mxu0
        %v5972 = vmul.f32 %v5969, %v1147
        %v5974 = vsel %vm619, %v5972, 0
        %5976 = vmatprep.subr.mxu0 0.0
        %v5977 = vand.u32 %v4938, 4294901760
        %5978 = vmatpush1.msra.mxu0 %v5977
        %5979 = vmatprep.subr.mxu0 0.0
        %v5980 = vand.u32 %v4939, 4294901760
        %5981 = vmatpush1.msra.mxu0 %v5980
        %5982 = vmatprep.subr.mxu0 0.0
        %v5983 = vand.u32 %v4940, 4294901760
        %5984 = vmatpush1.msra.mxu0 %v5983
        %5985 = vmatprep.subr.mxu0 0.0
        %v5986 = vand.u32 %v4941, 4294901760
        %5987 = vmatpush1.msra.mxu0 %v5986
        %5988 = vmatprep.subr.mxu0 0.0
        %5989 = vmatpush1.msra.mxu0 0.0
        %5990 = vmatprep.subr.mxu0 0.0
        %5991 = vmatpush1.msra.mxu0 0.0
        %5992 = vmatprep.subr.mxu0 0.0
        %5993 = vmatpush1.msra.mxu0 0.0
        %5994 = vmatprep.subr.mxu0 0.0
        %5995 = vmatpush1.msra.mxu0 0.0
        %5996 = vmatprep.subr.mxu0 0.0
        %5997 = vmatpush1.msra.mxu0 0.0
        %5998 = vmatprep.subr.mxu0 0.0
        %5999 = vmatpush1.msra.mxu0 0.0
        %6000 = vmatprep.subr.mxu0 0.0
        %6001 = vmatpush1.msra.mxu0 0.0
        %6002 = vmatprep.subr.mxu0 0.0
        %6003 = vmatpush1.msra.mxu0 0.0
        %6004 = vmatprep.subr.mxu0 0.0
        %6005 = vmatpush1.msra.mxu0 0.0
        %6006 = vmatprep.subr.mxu0 0.0
        %6007 = vmatpush1.msra.mxu0 0.0
        %6008 = vmatprep.subr.mxu0 0.0
        %6009 = vmatpush1.msra.mxu0 0.0
        %6010 = vmatprep.subr.mxu0 0.0
        %6011 = vmatpush1.msra.mxu0 0.0
        %6012 = vmatprep.subr.mxu0 0.0
        %6013 = vmatpush1.msra.mxu0 0.0
        %6014 = vmatprep.subr.mxu0 0.0
        %6015 = vmatpush1.msra.mxu0 0.0
        %6016 = vmatprep.subr.mxu0 0.0
        %6017 = vmatpush1.msra.mxu0 0.0
        %6018 = vmatprep.subr.mxu0 0.0
        %6019 = vmatpush1.msra.mxu0 0.0
        %6020 = vmatprep.subr.mxu0 0.0
        %6021 = vmatpush1.msra.mxu0 0.0
        %6022 = vmatprep.subr.mxu0 0.0
        %6023 = vmatpush1.msra.mxu0 0.0
        %6024 = vmatprep.subr.mxu0 0.0
        %6025 = vmatpush1.msra.mxu0 0.0
        %6026 = vmatprep.subr.mxu0 0.0
        %6027 = vmatpush1.msra.mxu0 0.0
        %6028 = vmatprep.subr.mxu0 0.0
        %6029 = vmatpush1.msra.mxu0 0.0
        %6030 = vmatprep.subr.mxu0 0.0
        %6031 = vmatpush1.msra.mxu0 0.0
        %6032 = vmatprep.subr.mxu0 0.0
        %6033 = vmatpush1.msra.mxu0 0.0
        %6034 = vmatprep.subr.mxu0 0.0
        %6035 = vmatpush1.msra.mxu0 0.0
        %6036 = vmatprep.subr.mxu0 0.0
        %6037 = vmatpush1.msra.mxu0 0.0
        %6038 = vmatprep.subr.mxu0 0.0
        %6039 = vmatpush1.msra.mxu0 0.0
        %6040 = vmatprep.subr.mxu0 0.0
        %6041 = vmatpush1.msra.mxu0 0.0
        %6042 = vmatprep.subr.mxu0 0.0
        %6043 = vmatpush1.msra.mxu0 0.0
        %6044 = vmatprep.mubr.f32.mxu0 0.0
        %v6045 = vand.u32 %v5974, 4294901760
        %v6046 = vsub.f32 %v5974, %v6045
        %v6047 = vand.u32 %v6046, 4294901760
        %v6048 = vsub.f32 %v6046, %v6047
        %v6049 = vand.u32 %v6048, 4294901760
        %6050 = vmatmul.mubr.f32.gmra.mrb[0].mxu0 %v6049
        %v6051 = vpop.f32.mrb[0].mxu0
        %v6052 = vadd.f32 1e-06, %v6051
        %v6053 = vpop.f32.mrb[0].mxu0
        %6054 = vdwg.mxu0
        %6055 = vmatprep.subr.mxu0 0.0
        %v6056 = vand.u32 %v4938, 4294901760
        %v6057 = vsub.f32 %v4938, %v6056
        %v6058 = vand.u32 %v6057, 4294901760
        %v6059 = vsub.f32 %v6057, %v6058
        %v6060 = vand.u32 %v6059, 4294901760
        %6061 = vmatpush1.msra.mxu0 %v6060
        %6062 = vmatprep.subr.mxu0 0.0
        %v6063 = vand.u32 %v4939, 4294901760
        %v6064 = vsub.f32 %v4939, %v6063
        %v6065 = vand.u32 %v6064, 4294901760
        %v6066 = vsub.f32 %v6064, %v6065
        %v6067 = vand.u32 %v6066, 4294901760
        %6068 = vmatpush1.msra.mxu0 %v6067
        %6069 = vmatprep.subr.mxu0 0.0
        %v6070 = vand.u32 %v4940, 4294901760
        %v6071 = vsub.f32 %v4940, %v6070
        %v6072 = vand.u32 %v6071, 4294901760
        %v6073 = vsub.f32 %v6071, %v6072
        %v6074 = vand.u32 %v6073, 4294901760
        %6075 = vmatpush1.msra.mxu0 %v6074
        %6076 = vmatprep.subr.mxu0 0.0
        %v6077 = vand.u32 %v4941, 4294901760
        %v6078 = vsub.f32 %v4941, %v6077
        %v6079 = vand.u32 %v6078, 4294901760
        %v6080 = vsub.f32 %v6078, %v6079
        %v6081 = vand.u32 %v6080, 4294901760
        %6082 = vmatpush1.msra.mxu0 %v6081
        %6083 = vmatprep.subr.mxu0 0.0
        %6084 = vmatpush1.msra.mxu0 0.0
        %6085 = vmatprep.subr.mxu0 0.0
        %6086 = vmatpush1.msra.mxu0 0.0
        %6087 = vmatprep.subr.mxu0 0.0
        %6088 = vmatpush1.msra.mxu0 0.0
        %6089 = vmatprep.subr.mxu0 0.0
        %6090 = vmatpush1.msra.mxu0 0.0
        %6091 = vmatprep.subr.mxu0 0.0
        %6092 = vmatpush1.msra.mxu0 0.0
        %6093 = vmatprep.subr.mxu0 0.0
        %6094 = vmatpush1.msra.mxu0 0.0
        %6095 = vmatprep.subr.mxu0 0.0
        %6096 = vmatpush1.msra.mxu0 0.0
        %6097 = vmatprep.subr.mxu0 0.0
        %6098 = vmatpush1.msra.mxu0 0.0
        %6099 = vmatprep.subr.mxu0 0.0
        %6100 = vmatpush1.msra.mxu0 0.0
        %6101 = vmatprep.subr.mxu0 0.0
        %6102 = vmatpush1.msra.mxu0 0.0
        %6103 = vmatprep.subr.mxu0 0.0
        %6104 = vmatpush1.msra.mxu0 0.0
        %6105 = vmatprep.subr.mxu0 0.0
        %6106 = vmatpush1.msra.mxu0 0.0
        %6107 = vmatprep.subr.mxu0 0.0
        %6108 = vmatpush1.msra.mxu0 0.0
        %6109 = vmatprep.subr.mxu0 0.0
        %6110 = vmatpush1.msra.mxu0 0.0
        %6111 = vmatprep.subr.mxu0 0.0
        %6112 = vmatpush1.msra.mxu0 0.0
        %6113 = vmatprep.subr.mxu0 0.0
        %6114 = vmatpush1.msra.mxu0 0.0
        %6115 = vmatprep.subr.mxu0 0.0
        %6116 = vmatpush1.msra.mxu0 0.0
        %6117 = vmatprep.subr.mxu0 0.0
        %6118 = vmatpush1.msra.mxu0 0.0
        %6119 = vmatprep.subr.mxu0 0.0
        %6120 = vmatpush1.msra.mxu0 0.0
        %6121 = vmatprep.subr.mxu0 0.0
        %6122 = vmatpush1.msra.mxu0 0.0
        %6123 = vmatprep.subr.mxu0 0.0
        %6124 = vmatpush1.msra.mxu0 0.0
        %6125 = vmatprep.subr.mxu0 0.0
        %6126 = vmatpush1.msra.mxu0 0.0
        %6127 = vmatprep.subr.mxu0 0.0
        %6128 = vmatpush1.msra.mxu0 0.0
        %6129 = vmatprep.subr.mxu0 0.0
        %6130 = vmatpush1.msra.mxu0 0.0
        %6131 = vmatprep.subr.mxu0 0.0
        %6132 = vmatpush1.msra.mxu0 0.0
        %6133 = vmatprep.subr.mxu0 0.0
        %6134 = vmatpush1.msra.mxu0 0.0
        %6135 = vmatprep.subr.mxu0 0.0
        %6136 = vmatpush1.msra.mxu0 0.0
        %6137 = vmatprep.subr.mxu0 0.0
        %6138 = vmatpush1.msra.mxu0 0.0
        %6139 = vmatprep.mubr.f32.mxu0 0.0
        %v6140 = vand.u32 %v5974, 4294901760
        %6141 = vmatmul.mubr.f32.gmra.mrb[0].mxu0 %v6140
        %v6142 = vpop.f32.mrb[0].mxu0
        %v6143 = vadd.f32 %v6052, %v6142
        %v6144 = vpop.f32.mrb[0].mxu0
        %6145 = vdwg.mxu0
        %6146 = vmatprep.subr.mxu0 0.0
        %v6147 = vand.u32 %v4938, 4294901760
        %v6148 = vsub.f32 %v4938, %v6147
        %6149 = vmatpush1.msra.mxu0 %v6148
        %6150 = vmatprep.subr.mxu0 0.0
        %v6151 = vand.u32 %v4939, 4294901760
        %v6152 = vsub.f32 %v4939, %v6151
        %6153 = vmatpush1.msra.mxu0 %v6152
        %6154 = vmatprep.subr.mxu0 0.0
        %v6155 = vand.u32 %v4940, 4294901760
        %v6156 = vsub.f32 %v4940, %v6155
        %6157 = vmatpush1.msra.mxu0 %v6156
        %6158 = vmatprep.subr.mxu0 0.0
        %v6159 = vand.u32 %v4941, 4294901760
        %v6160 = vsub.f32 %v4941, %v6159
        %6161 = vmatpush1.msra.mxu0 %v6160
        %6162 = vmatprep.subr.mxu0 0.0
        %6163 = vmatpush1.msra.mxu0 0.0
        %6164 = vmatprep.subr.mxu0 0.0
        %6165 = vmatpush1.msra.mxu0 0.0
        %6166 = vmatprep.subr.mxu0 0.0
        %6167 = vmatpush1.msra.mxu0 0.0
        %6168 = vmatprep.subr.mxu0 0.0
        %6169 = vmatpush1.msra.mxu0 0.0
        %6170 = vmatprep.subr.mxu0 0.0
        %6171 = vmatpush1.msra.mxu0 0.0
        %6172 = vmatprep.subr.mxu0 0.0
        %6173 = vmatpush1.msra.mxu0 0.0
        %6174 = vmatprep.subr.mxu0 0.0
        %6175 = vmatpush1.msra.mxu0 0.0
        %6176 = vmatprep.subr.mxu0 0.0
        %6177 = vmatpush1.msra.mxu0 0.0
        %6178 = vmatprep.subr.mxu0 0.0
        %6179 = vmatpush1.msra.mxu0 0.0
        %6180 = vmatprep.subr.mxu0 0.0
        %6181 = vmatpush1.msra.mxu0 0.0
        %6182 = vmatprep.subr.mxu0 0.0
        %6183 = vmatpush1.msra.mxu0 0.0
        %6184 = vmatprep.subr.mxu0 0.0
        %6185 = vmatpush1.msra.mxu0 0.0
        %6186 = vmatprep.subr.mxu0 0.0
        %6187 = vmatpush1.msra.mxu0 0.0
        %6188 = vmatprep.subr.mxu0 0.0
        %6189 = vmatpush1.msra.mxu0 0.0
        %6190 = vmatprep.subr.mxu0 0.0
        %6191 = vmatpush1.msra.mxu0 0.0
        %6192 = vmatprep.subr.mxu0 0.0
        %6193 = vmatpush1.msra.mxu0 0.0
        %6194 = vmatprep.subr.mxu0 0.0
        %6195 = vmatpush1.msra.mxu0 0.0
        %6196 = vmatprep.subr.mxu0 0.0
        %6197 = vmatpush1.msra.mxu0 0.0
        %6198 = vmatprep.subr.mxu0 0.0
        %6199 = vmatpush1.msra.mxu0 0.0
        %6200 = vmatprep.subr.mxu0 0.0
        %6201 = vmatpush1.msra.mxu0 0.0
        %6202 = vmatprep.subr.mxu0 0.0
        %6203 = vmatpush1.msra.mxu0 0.0
        %6204 = vmatprep.subr.mxu0 0.0
        %6205 = vmatpush1.msra.mxu0 0.0
        %6206 = vmatprep.subr.mxu0 0.0
        %6207 = vmatpush1.msra.mxu0 0.0
        %6208 = vmatprep.subr.mxu0 0.0
        %6209 = vmatpush1.msra.mxu0 0.0
        %6210 = vmatprep.subr.mxu0 0.0
        %6211 = vmatpush1.msra.mxu0 0.0
        %6212 = vmatprep.subr.mxu0 0.0
        %6213 = vmatpush1.msra.mxu0 0.0
        %6214 = vmatprep.subr.mxu0 0.0
        %6215 = vmatpush1.msra.mxu0 0.0
        %6216 = vmatprep.subr.mxu0 0.0
        %6217 = vmatpush1.msra.mxu0 0.0
        %6218 = vmatprep.mubr.f32.mxu0 0.0
        %v6219 = vand.u32 %v5974, 4294901760
        %v6220 = vsub.f32 %v5974, %v6219
        %6221 = vmatmul.mubr.f32.gmra.mrb[0].mxu0 %v6220
        %v6222 = vpop.f32.mrb[0].mxu0
        %v6223 = vadd.f32 %v6143, %v6222
        %v6224 = vpop.f32.mrb[0].mxu0
        %6225 = vdwg.mxu0
        %6226 = vmatprep.subr.mxu0 0.0
        %v6227 = vand.u32 %v4938, 4294901760
        %6228 = vmatpush1.msra.mxu0 %v6227
        %6229 = vmatprep.subr.mxu0 0.0
        %v6230 = vand.u32 %v4939, 4294901760
        %6231 = vmatpush1.msra.mxu0 %v6230
        %6232 = vmatprep.subr.mxu0 0.0
        %v6233 = vand.u32 %v4940, 4294901760
        %6234 = vmatpush1.msra.mxu0 %v6233
        %6235 = vmatprep.subr.mxu0 0.0
        %v6236 = vand.u32 %v4941, 4294901760
        %6237 = vmatpush1.msra.mxu0 %v6236
        %6238 = vmatprep.subr.mxu0 0.0
        %6239 = vmatpush1.msra.mxu0 0.0
        %6240 = vmatprep.subr.mxu0 0.0
        %6241 = vmatpush1.msra.mxu0 0.0
        %6242 = vmatprep.subr.mxu0 0.0
        %6243 = vmatpush1.msra.mxu0 0.0
        %6244 = vmatprep.subr.mxu0 0.0
        %6245 = vmatpush1.msra.mxu0 0.0
        %6246 = vmatprep.subr.mxu0 0.0
        %6247 = vmatpush1.msra.mxu0 0.0
        %6248 = vmatprep.subr.mxu0 0.0
        %6249 = vmatpush1.msra.mxu0 0.0
        %6250 = vmatprep.subr.mxu0 0.0
        %6251 = vmatpush1.msra.mxu0 0.0
        %6252 = vmatprep.subr.mxu0 0.0
        %6253 = vmatpush1.msra.mxu0 0.0
        %6254 = vmatprep.subr.mxu0 0.0
        %6255 = vmatpush1.msra.mxu0 0.0
        %6256 = vmatprep.subr.mxu0 0.0
        %6257 = vmatpush1.msra.mxu0 0.0
        %6258 = vmatprep.subr.mxu0 0.0
        %6259 = vmatpush1.msra.mxu0 0.0
        %6260 = vmatprep.subr.mxu0 0.0
        %6261 = vmatpush1.msra.mxu0 0.0
        %6262 = vmatprep.subr.mxu0 0.0
        %6263 = vmatpush1.msra.mxu0 0.0
        %6264 = vmatprep.subr.mxu0 0.0
        %6265 = vmatpush1.msra.mxu0 0.0
        %6266 = vmatprep.subr.mxu0 0.0
        %6267 = vmatpush1.msra.mxu0 0.0
        %6268 = vmatprep.subr.mxu0 0.0
        %6269 = vmatpush1.msra.mxu0 0.0
        %6270 = vmatprep.subr.mxu0 0.0
        %6271 = vmatpush1.msra.mxu0 0.0
        %6272 = vmatprep.subr.mxu0 0.0
        %6273 = vmatpush1.msra.mxu0 0.0
        %6274 = vmatprep.subr.mxu0 0.0
        %6275 = vmatpush1.msra.mxu0 0.0
        %6276 = vmatprep.subr.mxu0 0.0
        %6277 = vmatpush1.msra.mxu0 0.0
        %6278 = vmatprep.subr.mxu0 0.0
        %6279 = vmatpush1.msra.mxu0 0.0
        %6280 = vmatprep.subr.mxu0 0.0
        %6281 = vmatpush1.msra.mxu0 0.0
        %6282 = vmatprep.subr.mxu0 0.0
        %6283 = vmatpush1.msra.mxu0 0.0
        %6284 = vmatprep.subr.mxu0 0.0
        %6285 = vmatpush1.msra.mxu0 0.0
        %6286 = vmatprep.subr.mxu0 0.0
        %6287 = vmatpush1.msra.mxu0 0.0
        %6288 = vmatprep.subr.mxu0 0.0
        %6289 = vmatpush1.msra.mxu0 0.0
        %6290 = vmatprep.subr.mxu0 0.0
        %6291 = vmatpush1.msra.mxu0 0.0
        %6292 = vmatprep.subr.mxu0 0.0
        %6293 = vmatpush1.msra.mxu0 0.0
        %6294 = vmatprep.mubr.f32.mxu0 0.0
        %v6295 = vand.u32 %v5974, 4294901760
        %v6296 = vsub.f32 %v5974, %v6295
        %v6297 = vand.u32 %v6296, 4294901760
        %6298 = vmatmul.mubr.f32.gmra.mrb[0].mxu0 %v6297
        %v6299 = vpop.f32.mrb[0].mxu0
        %v6300 = vadd.f32 %v6223, %v6299
        %v6301 = vpop.f32.mrb[0].mxu0
        %6302 = vdwg.mxu0
        %6303 = vmatprep.subr.mxu0 0.0
        %v6304 = vand.u32 %v4938, 4294901760
        %v6305 = vsub.f32 %v4938, %v6304
        %v6306 = vand.u32 %v6305, 4294901760
        %6307 = vmatpush1.msra.mxu0 %v6306
        %6308 = vmatprep.subr.mxu0 0.0
        %v6309 = vand.u32 %v4939, 4294901760
        %v6310 = vsub.f32 %v4939, %v6309
        %v6311 = vand.u32 %v6310, 4294901760
        %6312 = vmatpush1.msra.mxu0 %v6311
        %6313 = vmatprep.subr.mxu0 0.0
        %v6314 = vand.u32 %v4940, 4294901760
        %v6315 = vsub.f32 %v4940, %v6314
        %v6316 = vand.u32 %v6315, 4294901760
        %6317 = vmatpush1.msra.mxu0 %v6316
        %6318 = vmatprep.subr.mxu0 0.0
        %v6319 = vand.u32 %v4941, 4294901760
        %v6320 = vsub.f32 %v4941, %v6319
        %v6321 = vand.u32 %v6320, 4294901760
        %6322 = vmatpush1.msra.mxu0 %v6321
        %6323 = vmatprep.subr.mxu0 0.0
        %6324 = vmatpush1.msra.mxu0 0.0
        %6325 = vmatprep.subr.mxu0 0.0
        %6326 = vmatpush1.msra.mxu0 0.0
        %6327 = vmatprep.subr.mxu0 0.0
        %6328 = vmatpush1.msra.mxu0 0.0
        %6329 = vmatprep.subr.mxu0 0.0
        %6330 = vmatpush1.msra.mxu0 0.0
        %6331 = vmatprep.subr.mxu0 0.0
        %6332 = vmatpush1.msra.mxu0 0.0
        %6333 = vmatprep.subr.mxu0 0.0
        %6334 = vmatpush1.msra.mxu0 0.0
        %6335 = vmatprep.subr.mxu0 0.0
        %6336 = vmatpush1.msra.mxu0 0.0
        %6337 = vmatprep.subr.mxu0 0.0
        %6338 = vmatpush1.msra.mxu0 0.0
        %6339 = vmatprep.subr.mxu0 0.0
        %6340 = vmatpush1.msra.mxu0 0.0
        %6341 = vmatprep.subr.mxu0 0.0
        %6342 = vmatpush1.msra.mxu0 0.0
        %6343 = vmatprep.subr.mxu0 0.0
        %6344 = vmatpush1.msra.mxu0 0.0
        %6345 = vmatprep.subr.mxu0 0.0
        %6346 = vmatpush1.msra.mxu0 0.0
        %6347 = vmatprep.subr.mxu0 0.0
        %6348 = vmatpush1.msra.mxu0 0.0
        %6349 = vmatprep.subr.mxu0 0.0
        %6350 = vmatpush1.msra.mxu0 0.0
        %6351 = vmatprep.subr.mxu0 0.0
        %6352 = vmatpush1.msra.mxu0 0.0
        %6353 = vmatprep.subr.mxu0 0.0
        %6354 = vmatpush1.msra.mxu0 0.0
        %6355 = vmatprep.subr.mxu0 0.0
        %6356 = vmatpush1.msra.mxu0 0.0
        %6357 = vmatprep.subr.mxu0 0.0
        %6358 = vmatpush1.msra.mxu0 0.0
        %6359 = vmatprep.subr.mxu0 0.0
        %6360 = vmatpush1.msra.mxu0 0.0
        %6361 = vmatprep.subr.mxu0 0.0
        %6362 = vmatpush1.msra.mxu0 0.0
        %6363 = vmatprep.subr.mxu0 0.0
        %6364 = vmatpush1.msra.mxu0 0.0
        %6365 = vmatprep.subr.mxu0 0.0
        %6366 = vmatpush1.msra.mxu0 0.0
        %6367 = vmatprep.subr.mxu0 0.0
        %6368 = vmatpush1.msra.mxu0 0.0
        %6369 = vmatprep.subr.mxu0 0.0
        %6370 = vmatpush1.msra.mxu0 0.0
        %6371 = vmatprep.subr.mxu0 0.0
        %6372 = vmatpush1.msra.mxu0 0.0
        %6373 = vmatprep.subr.mxu0 0.0
        %6374 = vmatpush1.msra.mxu0 0.0
        %6375 = vmatprep.subr.mxu0 0.0
        %6376 = vmatpush1.msra.mxu0 0.0
        %6377 = vmatprep.subr.mxu0 0.0
        %6378 = vmatpush1.msra.mxu0 0.0
        %6379 = vmatprep.mubr.f32.mxu0 0.0
        %v6380 = vand.u32 %v5974, 4294901760
        %6381 = vmatmul.mubr.f32.gmra.mrb[0].mxu0 %v6380
        %v6382 = vpop.f32.mrb[0].mxu0
        %v6383 = vadd.f32 %v6300, %v6382
        %v6384 = vpop.f32.mrb[0].mxu0
        %6385 = vdwg.mxu0
        %6386 = vmatprep.subr.mxu0 0.0
        %v6387 = vand.u32 %v4938, 4294901760
        %6388 = vmatpush1.msra.mxu0 %v6387
        %6389 = vmatprep.subr.mxu0 0.0
        %v6390 = vand.u32 %v4939, 4294901760
        %6391 = vmatpush1.msra.mxu0 %v6390
        %6392 = vmatprep.subr.mxu0 0.0
        %v6393 = vand.u32 %v4940, 4294901760
        %6394 = vmatpush1.msra.mxu0 %v6393
        %6395 = vmatprep.subr.mxu0 0.0
        %v6396 = vand.u32 %v4941, 4294901760
        %6397 = vmatpush1.msra.mxu0 %v6396
        %6398 = vmatprep.subr.mxu0 0.0
        %6399 = vmatpush1.msra.mxu0 0.0
        %6400 = vmatprep.subr.mxu0 0.0
        %6401 = vmatpush1.msra.mxu0 0.0
        %6402 = vmatprep.subr.mxu0 0.0
        %6403 = vmatpush1.msra.mxu0 0.0
        %6404 = vmatprep.subr.mxu0 0.0
        %6405 = vmatpush1.msra.mxu0 0.0
        %6406 = vmatprep.subr.mxu0 0.0
        %6407 = vmatpush1.msra.mxu0 0.0
        %6408 = vmatprep.subr.mxu0 0.0
        %6409 = vmatpush1.msra.mxu0 0.0
        %6410 = vmatprep.subr.mxu0 0.0
        %6411 = vmatpush1.msra.mxu0 0.0
        %6412 = vmatprep.subr.mxu0 0.0
        %6413 = vmatpush1.msra.mxu0 0.0
        %6414 = vmatprep.subr.mxu0 0.0
        %6415 = vmatpush1.msra.mxu0 0.0
        %6416 = vmatprep.subr.mxu0 0.0
        %6417 = vmatpush1.msra.mxu0 0.0
        %6418 = vmatprep.subr.mxu0 0.0
        %6419 = vmatpush1.msra.mxu0 0.0
        %6420 = vmatprep.subr.mxu0 0.0
        %6421 = vmatpush1.msra.mxu0 0.0
        %6422 = vmatprep.subr.mxu0 0.0
        %6423 = vmatpush1.msra.mxu0 0.0
        %6424 = vmatprep.subr.mxu0 0.0
        %6425 = vmatpush1.msra.mxu0 0.0
        %6426 = vmatprep.subr.mxu0 0.0
        %6427 = vmatpush1.msra.mxu0 0.0
        %6428 = vmatprep.subr.mxu0 0.0
        %6429 = vmatpush1.msra.mxu0 0.0
        %6430 = vmatprep.subr.mxu0 0.0
        %6431 = vmatpush1.msra.mxu0 0.0
        %6432 = vmatprep.subr.mxu0 0.0
        %6433 = vmatpush1.msra.mxu0 0.0
        %6434 = vmatprep.subr.mxu0 0.0
        %6435 = vmatpush1.msra.mxu0 0.0
        %6436 = vmatprep.subr.mxu0 0.0
        %6437 = vmatpush1.msra.mxu0 0.0
        %6438 = vmatprep.subr.mxu0 0.0
        %6439 = vmatpush1.msra.mxu0 0.0
        %6440 = vmatprep.subr.mxu0 0.0
        %6441 = vmatpush1.msra.mxu0 0.0
        %6442 = vmatprep.subr.mxu0 0.0
        %6443 = vmatpush1.msra.mxu0 0.0
        %6444 = vmatprep.subr.mxu0 0.0
        %6445 = vmatpush1.msra.mxu0 0.0
        %6446 = vmatprep.subr.mxu0 0.0
        %6447 = vmatpush1.msra.mxu0 0.0
        %6448 = vmatprep.subr.mxu0 0.0
        %6449 = vmatpush1.msra.mxu0 0.0
        %6450 = vmatprep.subr.mxu0 0.0
        %6451 = vmatpush1.msra.mxu0 0.0
        %6452 = vmatprep.subr.mxu0 0.0
        %6453 = vmatpush1.msra.mxu0 0.0
        %6454 = vmatprep.mubr.f32.mxu0 0.0
        %v6455 = vand.u32 %v5974, 4294901760
        %6456 = vmatmul.mubr.f32.gmra.mrb[0].mxu0 %v6455
        %v6457 = vpop.f32.mrb[0].mxu0
        %v6458 = vadd.f32 %v6383, %v6457
        %v6459 = vpop.f32.mrb[0].mxu0
        %6460 = vdwg.mxu0
        %v6461 = vrsqrt.pop %v6458
        %v6462 = vld [vmem:[#allocation8] sm:$0x1]
        %v6463 = vmul.f32 %v6462, %v6461
        %v6464 = vld [vmem:[#allocation9] sm:$0x1]
        %v6465 = vmul.f32 %v5427, %v6463
        %v6466 = vsub.f32 %v6464, %v6465
        %v6467 = vld [vmem:[#allocation3] sm:$0xff]
        %v6469 = vlaneseq
        %v6470 = vshrl.u32 %v6469, 7
        %v6471 = vsub.s32 0, %v6470
        %v6472 = vrot.slane %v6463, %v6471
        %v6474 = vmul.f32 %v6467, %v6472
        %v6476 = vlaneseq
        %v6477 = vshrl.u32 %v6476, 7
        %v6478 = vsub.s32 0, %v6477
        %v6479 = vrot.slane %v6466, %v6478
        %v6481 = vadd.f32 %v6474, %v6479
        %v6482 = vxor.u32 %v6481, 2147483648
        %v6483 = vmul.f32 %v6482, 1.442695
        %v6484 = vpow.pop %v6483
        %v6485 = vadd.f32 %v6484, 1.0
        %v6486 = vrcp.pop %v6485
        %v6487 = vmul.f32 1.0, %v6486
        %v6488 = vmul.f32 %v6481, %v6487
        %v6489 = vpack.c.bf16 %v6488, %v6488
        %v6491 = vrot.slane %v6489, 3
        %6493 = vst.msk [vmem:[#allocation2] sm:$0xe0] %vm2691, %v6491
        %6494 = vst.msk [vmem:[#allocation2 + $0x8] sm:$0x1] %vm2693, %v6491
        %v6495 = vld [vmem:[#allocation3 + $0x9] sm:$0xff]
        %v6496 = vmul.f32 %v6495, %v6472
        %v6497 = vadd.f32 %v6496, %v6479
        %v6498 = vxor.u32 %v6497, 2147483648
        %v6499 = vmul.f32 %v6498, 1.442695
        %v6500 = vpow.pop %v6499
        %v6501 = vadd.f32 %v6500, 1.0
        %v6502 = vrcp.pop %v6501
        %v6503 = vmul.f32 1.0, %v6502
        %v6504 = vmul.f32 %v6497, %v6503
        %v6505 = vpack.c.bf16 %v6504, %v6504
        %v6507 = vshrl.u32 %v6505, 16
        %v6509 = vrot.slane %v6507, 6
        %v6510 = vshll.u32 %v6505, 16
        %v6512 = vrot.slane %v6510, 7
        %v6513 = vor.u32 %v6509, %v6512
        %v6515 = vld [vmem:[#allocation2 + $0x8] sm:$0x3e]
        %v6516 = vsel %vm2717, %v6513, %v6515
        %6517 = vst [vmem:[#allocation2 + $0x8] sm:$0x3e] %v6516
        %v6518 = vld [vmem:[#allocation3 + $0x12] sm:$0xff]
        %v6519 = vmul.f32 %v6518, %v6472
        %v6520 = vadd.f32 %v6519, %v6479
        %v6521 = vxor.u32 %v6520, 2147483648
        %v6522 = vmul.f32 %v6521, 1.442695
        %v6523 = vpow.pop %v6522
        %v6524 = vadd.f32 %v6523, 1.0
        %v6525 = vrcp.pop %v6524
        %v6526 = vmul.f32 1.0, %v6525
        %v6527 = vmul.f32 %v6520, %v6526
        %v6528 = vpack.c.bf16 %v6527, %v6527
        %v6530 = vrot.slane %v6528, 2
        %6532 = vst.msk [vmem:[#allocation2 + $0x8] sm:$0xc0] %vm2735, %v6530
        %6533 = vst.msk [vmem:[#allocation2 + $0x10] sm:$0x3] %vm2737, %v6530
        %v6534 = vld [vmem:[#allocation3 + $0x1b] sm:$0xff]
        %v6535 = vmul.f32 %v6534, %v6472
        %v6536 = vadd.f32 %v6535, %v6479
        %v6537 = vxor.u32 %v6536, 2147483648
        %v6538 = vmul.f32 %v6537, 1.442695
        %v6539 = vpow.pop %v6538
        %v6540 = vadd.f32 %v6539, 1.0
        %v6541 = vrcp.pop %v6540
        %v6542 = vmul.f32 1.0, %v6541
        %v6543 = vmul.f32 %v6536, %v6542
        %v6544 = vpack.c.bf16 %v6543, %v6543
        %v6546 = vshrl.u32 %v6544, 16
        %v6548 = vrot.slane %v6546, 5
        %v6549 = vshll.u32 %v6544, 16
        %v6551 = vrot.slane %v6549, 6
        %v6552 = vor.u32 %v6548, %v6551
        %v6554 = vld [vmem:[#allocation2 + $0x10] sm:$0x7c]
        %v6555 = vsel %vm2761, %v6552, %v6554
        %6556 = vst [vmem:[#allocation2 + $0x10] sm:$0x7c] %v6555
        %v6557 = vld [vmem:[#allocation3 + $0x24] sm:$0xff]
        %v6558 = vmul.f32 %v6557, %v6472
        %v6559 = vadd.f32 %v6558, %v6479
        %v6560 = vxor.u32 %v6559, 2147483648
        %v6561 = vmul.f32 %v6560, 1.442695
        %v6562 = vpow.pop %v6561
        %v6563 = vadd.f32 %v6562, 1.0
        %v6564 = vrcp.pop %v6563
        %v6565 = vmul.f32 1.0, %v6564
        %v6566 = vmul.f32 %v6559, %v6565
        %v6567 = vpack.c.bf16 %v6566, %v6566
        %v6569 = vrot.slane %v6567, 1
        %6571 = vst.msk [vmem:[#allocation2 + $0x10] sm:$0x80] %vm2779, %v6569
        %6572 = vst.msk [vmem:[#allocation2 + $0x18] sm:$0x7] %vm2781, %v6569
        %v6573 = vld [vmem:[#allocation3 + $0x2d] sm:$0xff]
        %v6574 = vmul.f32 %v6573, %v6472
        %v6575 = vadd.f32 %v6574, %v6479
        %v6576 = vxor.u32 %v6575, 2147483648
        %v6577 = vmul.f32 %v6576, 1.442695
        %v6578 = vpow.pop %v6577
        %v6579 = vadd.f32 %v6578, 1.0
        %v6580 = vrcp.pop %v6579
        %v6581 = vmul.f32 1.0, %v6580
        %v6582 = vmul.f32 %v6575, %v6581
        %v6583 = vpack.c.bf16 %v6582, %v6582
        %v6585 = vshrl.u32 %v6583, 16
        %v6587 = vrot.slane %v6585, 4
        %v6588 = vshll.u32 %v6583, 16
        %v6590 = vrot.slane %v6588, 5
        %v6591 = vor.u32 %v6587, %v6590
        %v6593 = vld [vmem:[#allocation2 + $0x18] sm:$0xf8]
        %v6594 = vsel %vm2805, %v6591, %v6593
        %6595 = vst [vmem:[#allocation2 + $0x18] sm:$0xf8] %v6594
        %v6596 = vld [vmem:[#allocation3 + $0x36] sm:$0xff]
        %v6597 = vmul.f32 %v6596, %v6472
        %v6598 = vadd.f32 %v6597, %v6479
        %v6599 = vxor.u32 %v6598, 2147483648
        %v6600 = vmul.f32 %v6599, 1.442695
        %v6601 = vpow.pop %v6600
        %v6602 = vadd.f32 %v6601, 1.0
        %v6603 = vrcp.pop %v6602
        %v6604 = vmul.f32 1.0, %v6603
        %v6605 = vmul.f32 %v6598, %v6604
        %v6606 = vpack.c.bf16 %v6605, %v6605
        %6607 = vst.msk [vmem:[#allocation2 + $0x20] sm:$0xf] %vm2820, %v6606
        %v6608 = vld [vmem:[#allocation3 + $0x3f] sm:$0xff]
        %v6609 = vmul.f32 %v6608, %v6472
        %v6610 = vadd.f32 %v6609, %v6479
        %v6611 = vxor.u32 %v6610, 2147483648
        %v6612 = vmul.f32 %v6611, 1.442695
        %v6613 = vpow.pop %v6612
        %v6614 = vadd.f32 %v6613, 1.0
        %v6615 = vrcp.pop %v6614
        %v6616 = vmul.f32 1.0, %v6615
        %v6617 = vmul.f32 %v6610, %v6616
        %v6618 = vpack.c.bf16 %v6617, %v6617
        %v6620 = vshrl.u32 %v6618, 16
        %v6622 = vrot.slane %v6620, 3
        %v6623 = vshll.u32 %v6618, 16
        %v6625 = vrot.slane %v6623, 4
        %v6626 = vor.u32 %v6622, %v6625
        %v6629 = vld [vmem:[#allocation2 + $0x20] sm:$0xf0]
        %v6630 = vsel %vm2845, %v6626, %v6629
        %6631 = vst [vmem:[#allocation2 + $0x20] sm:$0xf0] %v6630
        %v6632 = vld [vmem:[#allocation2 + $0x28] sm:$0x1]
        %v6633 = vsel %vm2851, %v6622, %v6632
        %6634 = vst [vmem:[#allocation2 + $0x28] sm:$0x1] %v6633
        %v6635 = vld [vmem:[%s9] sm:$0x1]
        %v6637 = vlaneseq
        %v6638 = vshrl.u32 %v6637, 7
        %v6639 = vsub.s32 0, %v6638
        %v6640 = vrot.slane %v6635, %v6639
        %6642 = vst.msk [vmem:[#allocation3] sm:$0xff] %vm619, %v6640
        %6643 = vst.msk [vmem:[#allocation3 + $0x8] sm:$0xff] %vm619, %v6640
        %6644 = vst.msk [vmem:[#allocation3 + $0x10] sm:$0xff] %vm619, %v6640
        %6645 = vst.msk [vmem:[#allocation3 + $0x18] sm:$0xff] %vm619, %v6640
        %6646 = vst.msk [vmem:[#allocation3 + $0x20] sm:$0xff] %vm619, %v6640
        %6647 = vst.msk [vmem:[#allocation3 + $0x28] sm:$0xff] %vm619, %v6640
        %6648 = vst.msk [vmem:[#allocation3 + $0x30] sm:$0xff] %vm619, %v6640
        %6649 = vst.msk [vmem:[#allocation3 + $0x38] sm:$0xff] %vm619, %v6640
        %6650 = vst.msk [vmem:[#allocation3 + $0x40] sm:$0xff] %vm619, %v6640
        %v6651 = vld [vmem:[#allocation3] sm:$0xff]
        %v6652 = vld [vmem:[#allocation3 + $0x8] sm:$0xff]
        %v6653 = vld [vmem:[#allocation3 + $0x10] sm:$0xff]
        %v6654 = vld [vmem:[#allocation3 + $0x18] sm:$0xff]
        %v6655 = vld [vmem:[#allocation3 + $0x20] sm:$0xff]
        %v6656 = vld [vmem:[#allocation3 + $0x28] sm:$0xff]
        %v6657 = vld [vmem:[#allocation3 + $0x30] sm:$0xff]
        %v6658 = vld [vmem:[#allocation3 + $0x38] sm:$0xff]
        %v6659 = vld [vmem:[#allocation3 + $0x40] sm:$0xff]
        %v6660 = vld [vmem:[#allocation2] sm:$0xff]
        %v6661 = vld [vmem:[#allocation2 + $0x8] sm:$0xff]
        %v6662 = vld [vmem:[#allocation2 + $0x10] sm:$0xff]
        %v6663 = vld [vmem:[#allocation2 + $0x18] sm:$0xff]
        %v6664 = vld [vmem:[#allocation2 + $0x20] sm:$0xf]
        %v6665 = vld [vmem:[%s8] sm:$0xf]
        %v6666 = vld [vmem:[%s8 + $0x4] sm:$0xf]
        %v6667 = vld [vmem:[%s8 + $0x8] sm:$0xf]
        %v6668 = vld [vmem:[%s8 + $0xc] sm:$0xf]
        %v6673 = vunpack.c.l.b16 %v6665
        %v6674 = vunpack.c.l.b16 %v6666
        %v6675 = vunpack.c.l.b16 %v6667
        %v6676 = vunpack.c.l.b16 %v6668
        %v6677 = vpack.c.b16 %v6674, %v6673
        %v6678 = vpack.c.b16 %v6676, %v6675
        %v6682 = vsel %vm619, %v6660, 0
        %v6685 = vsel %vm619, %v6661, 0
        %v6688 = vsel %vm619, %v6662, 0
        %v6691 = vsel %vm619, %v6663, 0
        %v6694 = vsel %vm619, %v6664, 0
        %6696 = vmatprep.subr.bf16.mxu0 0
        %6697 = vmatpush1.bf16.msra.mxu0 %v6677
        %6698 = vmatprep.subr.bf16.mxu0 0
        %6699 = vmatpush1.bf16.msra.mxu0 %v6678
        %6700 = vmatprep.subr.bf16.mxu0 0
        %6701 = vmatpush1.bf16.msra.mxu0 0
        %6702 = vmatprep.subr.bf16.mxu0 0
        %6703 = vmatpush1.bf16.msra.mxu0 0
        %6704 = vmatprep.subr.bf16.mxu0 0
        %6705 = vmatpush1.bf16.msra.mxu0 0
        %6706 = vmatprep.subr.bf16.mxu0 0
        %6707 = vmatpush1.bf16.msra.mxu0 0
        %6708 = vmatprep.subr.bf16.mxu0 0
        %6709 = vmatpush1.bf16.msra.mxu0 0
        %6710 = vmatprep.subr.bf16.mxu0 0
        %6711 = vmatpush1.bf16.msra.mxu0 0
        %6712 = vmatprep.subr.bf16.mxu0 0
        %6713 = vmatpush1.bf16.msra.mxu0 0
        %6714 = vmatprep.subr.bf16.mxu0 0
        %6715 = vmatpush1.bf16.msra.mxu0 0
        %6716 = vmatprep.subr.bf16.mxu0 0
        %6717 = vmatpush1.bf16.msra.mxu0 0
        %6718 = vmatprep.subr.bf16.mxu0 0
        %6719 = vmatpush1.bf16.msra.mxu0 0
        %6720 = vmatprep.subr.bf16.mxu0 0
        %6721 = vmatpush1.bf16.msra.mxu0 0
        %6722 = vmatprep.subr.bf16.mxu0 0
        %6723 = vmatpush1.bf16.msra.mxu0 0
        %6724 = vmatprep.subr.bf16.mxu0 0
        %6725 = vmatpush1.bf16.msra.mxu0 0
        %6726 = vmatprep.subr.bf16.mxu0 0
        %6727 = vmatpush1.bf16.msra.mxu0 0
        %6728 = vmatprep.mubr.bf16.mxu0 0
        %6729 = vmatmul.mubr.bf16.gmra.mrb[0].mxu0 %v6682
        %v6730 = vpop.f32.mrb[0].mxu0
        %v6731 = vadd.f32 0.0, %v6730
        %v6732 = vpop.f32.mrb[0].mxu0
        %v6733 = vpop.f32.mrb[0].mxu0
        %v6734 = vadd.f32 0.0, %v6733
        %v6735 = vpop.f32.mrb[0].mxu0
        %6736 = vmatprep.mubr.bf16.mxu0 0
        %6737 = vmatmul.mubr.bf16.gmra.mrb[0].mxu0 %v6685
        %v6738 = vpop.f32.mrb[0].mxu0
        %v6739 = vadd.f32 0.0, %v6738
        %v6740 = vpop.f32.mrb[0].mxu0
        %v6741 = vpop.f32.mrb[0].mxu0
        %v6742 = vadd.f32 0.0, %v6741
        %v6743 = vpop.f32.mrb[0].mxu0
        %6744 = vmatprep.mubr.bf16.mxu0 0
        %6745 = vmatmul.mubr.bf16.gmra.mrb[0].mxu0 %v6688
        %v6746 = vpop.f32.mrb[0].mxu0
        %v6747 = vadd.f32 0.0, %v6746
        %v6748 = vpop.f32.mrb[0].mxu0
        %v6749 = vpop.f32.mrb[0].mxu0
        %v6750 = vadd.f32 0.0, %v6749
        %v6751 = vpop.f32.mrb[0].mxu0
        %6752 = vmatprep.mubr.bf16.mxu0 0
        %6753 = vmatmul.mubr.bf16.gmra.mrb[0].mxu0 %v6691
        %v6754 = vpop.f32.mrb[0].mxu0
        %v6755 = vadd.f32 0.0, %v6754
        %v6756 = vpop.f32.mrb[0].mxu0
        %v6757 = vpop.f32.mrb[0].mxu0
        %v6758 = vadd.f32 0.0, %v6757
        %v6759 = vpop.f32.mrb[0].mxu0
        %6760 = vmatprep.mubr.bf16.mxu0 0
        %6761 = vmatmul.mubr.bf16.gmra.mrb[0].mxu0 %v6694
        %v6762 = vpop.f32.mrb[0].mxu0
        %v6763 = vadd.f32 0.0, %v6762
        %v6764 = vpop.f32.mrb[0].mxu0
        %v6765 = vpop.f32.mrb[0].mxu0
        %v6766 = vpop.f32.mrb[0].mxu0
        %6767 = vdwg.mxu0
        %v6768 = vadd.f32 %v6651, %v6731
        %v6769 = vadd.f32 %v6652, %v6734
        %v6770 = vadd.f32 %v6653, %v6739
        %v6771 = vadd.f32 %v6654, %v6742
        %v6772 = vadd.f32 %v6655, %v6747
        %v6773 = vadd.f32 %v6656, %v6750
        %v6774 = vadd.f32 %v6657, %v6755
        %v6775 = vadd.f32 %v6658, %v6758
        %v6776 = vadd.f32 %v6659, %v6763
        %6777 = vst.msk [vmem:[#allocation3] sm:$0xff] %vm619, %v6768
        %6778 = vst.msk [vmem:[#allocation3 + $0x8] sm:$0xff] %vm619, %v6769
        %6779 = vst.msk [vmem:[#allocation3 + $0x10] sm:$0xff] %vm619, %v6770
        %6780 = vst.msk [vmem:[#allocation3 + $0x18] sm:$0xff] %vm619, %v6771
        %6781 = vst.msk [vmem:[#allocation3 + $0x20] sm:$0xff] %vm619, %v6772
        %6782 = vst.msk [vmem:[#allocation3 + $0x28] sm:$0xff] %vm619, %v6773
        %6783 = vst.msk [vmem:[#allocation3 + $0x30] sm:$0xff] %vm619, %v6774
        %6784 = vst.msk [vmem:[#allocation3 + $0x38] sm:$0xff] %vm619, %v6775
        %6785 = vst.msk [vmem:[#allocation3 + $0x40] sm:$0xff] %vm619, %v6776
        %v6786 = vld [vmem:[#allocation3] sm:$0xff]
        %v6787 = vld [vmem:[#allocation3 + $0x8] sm:$0xff]
        %v6788 = vld [vmem:[#allocation3 + $0x10] sm:$0xff]
        %v6789 = vld [vmem:[#allocation3 + $0x18] sm:$0xff]
        %v6790 = vld [vmem:[#allocation3 + $0x20] sm:$0xff]
        %v6791 = vld [vmem:[#allocation3 + $0x28] sm:$0xff]
        %v6792 = vld [vmem:[#allocation3 + $0x30] sm:$0xff]
        %v6793 = vld [vmem:[#allocation3 + $0x38] sm:$0xff]
        %v6794 = vld [vmem:[#allocation3 + $0x40] sm:$0xff]
        %v6795 = vld [vmem:[#allocation2] sm:$0xff]
        %v6796 = vld [vmem:[#allocation2 + $0x8] sm:$0xff]
        %v6797 = vld [vmem:[#allocation2 + $0x10] sm:$0xff]
        %v6798 = vld [vmem:[#allocation2 + $0x18] sm:$0xff]
        %v6799 = vld [vmem:[#allocation2 + $0x20] sm:$0x1f]
        %s6800 = scalar_lea.vmem %s8, 16
        %v6801 = vld [vmem:[%s6800] sm:$0xf]
        %v6802 = vld [vmem:[%s6800 + $0x4] sm:$0xf]
        %v6803 = vld [vmem:[%s6800 + $0x8] sm:$0xf]
        %v6804 = vld [vmem:[%s6800 + $0xc] sm:$0xf]
        %v6806 = vshrl.u32 %v6795, 16
        %v6808 = vshll.u32 %v6795, 16
        %v6810 = vrot.slane %v6808, 1
        %v6811 = vor.u32 %v6806, %v6810
        %v6813 = vshll.u32 %v6796, 16
        %v6815 = vrot.slane %v6813, 1
        %v6816 = vsel %vm3027, %v6811, %v6815
        %v6817 = vshrl.u32 %v6796, 16
        %v6819 = vor.u32 %v6817, %v6815
        %v6821 = vshll.u32 %v6797, 16
        %v6823 = vrot.slane %v6821, 1
        %v6824 = vsel %vm3027, %v6819, %v6823
        %v6825 = vshrl.u32 %v6797, 16
        %v6827 = vor.u32 %v6825, %v6823
        %v6829 = vshll.u32 %v6798, 16
        %v6831 = vrot.slane %v6829, 1
        %v6832 = vsel %vm3027, %v6827, %v6831
        %v6833 = vshrl.u32 %v6798, 16
        %v6835 = vor.u32 %v6833, %v6831
        %v6837 = vshll.u32 %v6799, 16
        %v6839 = vrot.slane %v6837, 1
        %v6840 = vsel %vm3027, %v6835, %v6839
        %v6841 = vshrl.u32 %v6799, 16
        %v6843 = vor.u32 %v6841, %v6839
        %v6848 = vunpack.c.l.b16 %v6801
        %v6849 = vunpack.c.l.b16 %v6802
        %v6850 = vunpack.c.l.b16 %v6803
        %v6851 = vunpack.c.l.b16 %v6804
        %v6852 = vpack.c.b16 %v6849, %v6848
        %v6853 = vpack.c.b16 %v6851, %v6850
        %v6857 = vsel %vm619, %v6816, 0
        %v6860 = vsel %vm619, %v6824, 0
        %v6863 = vsel %vm619, %v6832, 0
        %v6866 = vsel %vm619, %v6840, 0
        %v6869 = vsel %vm619, %v6843, 0
        %6871 = vmatprep.subr.bf16.mxu0 0
        %6872 = vmatpush1.bf16.msra.mxu0 %v6852
        %6873 = vmatprep.subr.bf16.mxu0 0
        %6874 = vmatpush1.bf16.msra.mxu0 %v6853
        %6875 = vmatprep.subr.bf16.mxu0 0
        %6876 = vmatpush1.bf16.msra.mxu0 0
        %6877 = vmatprep.subr.bf16.mxu0 0
        %6878 = vmatpush1.bf16.msra.mxu0 0
        %6879 = vmatprep.subr.bf16.mxu0 0
        %6880 = vmatpush1.bf16.msra.mxu0 0
        %6881 = vmatprep.subr.bf16.mxu0 0
        %6882 = vmatpush1.bf16.msra.mxu0 0
        %6883 = vmatprep.subr.bf16.mxu0 0
        %6884 = vmatpush1.bf16.msra.mxu0 0
        %6885 = vmatprep.subr.bf16.mxu0 0
        %6886 = vmatpush1.bf16.msra.mxu0 0
        %6887 = vmatprep.subr.bf16.mxu0 0
        %6888 = vmatpush1.bf16.msra.mxu0 0
        %6889 = vmatprep.subr.bf16.mxu0 0
        %6890 = vmatpush1.bf16.msra.mxu0 0
        %6891 = vmatprep.subr.bf16.mxu0 0
        %6892 = vmatpush1.bf16.msra.mxu0 0
        %6893 = vmatprep.subr.bf16.mxu0 0
        %6894 = vmatpush1.bf16.msra.mxu0 0
        %6895 = vmatprep.subr.bf16.mxu0 0
        %6896 = vmatpush1.bf16.msra.mxu0 0
        %6897 = vmatprep.subr.bf16.mxu0 0
        %6898 = vmatpush1.bf16.msra.mxu0 0
        %6899 = vmatprep.subr.bf16.mxu0 0
        %6900 = vmatpush1.bf16.msra.mxu0 0
        %6901 = vmatprep.subr.bf16.mxu0 0
        %6902 = vmatpush1.bf16.msra.mxu0 0
        %6903 = vmatprep.mubr.bf16.mxu0 0
        %6904 = vmatmul.mubr.bf16.gmra.mrb[0].mxu0 %v6857
        %v6905 = vpop.f32.mrb[0].mxu0
        %v6906 = vadd.f32 0.0, %v6905
        %v6907 = vpop.f32.mrb[0].mxu0
        %v6908 = vpop.f32.mrb[0].mxu0
        %v6909 = vadd.f32 0.0, %v6908
        %v6910 = vpop.f32.mrb[0].mxu0
        %6911 = vmatprep.mubr.bf16.mxu0 0
        %6912 = vmatmul.mubr.bf16.gmra.mrb[0].mxu0 %v6860
        %v6913 = vpop.f32.mrb[0].mxu0
        %v6914 = vadd.f32 0.0, %v6913
        %v6915 = vpop.f32.mrb[0].mxu0
        %v6916 = vpop.f32.mrb[0].mxu0
        %v6917 = vadd.f32 0.0, %v6916
        %v6918 = vpop.f32.mrb[0].mxu0
        %6919 = vmatprep.mubr.bf16.mxu0 0
        %6920 = vmatmul.mubr.bf16.gmra.mrb[0].mxu0 %v6863
        %v6921 = vpop.f32.mrb[0].mxu0
        %v6922 = vadd.f32 0.0, %v6921
        %v6923 = vpop.f32.mrb[0].mxu0
        %v6924 = vpop.f32.mrb[0].mxu0
        %v6925 = vadd.f32 0.0, %v6924
        %v6926 = vpop.f32.mrb[0].mxu0
        %6927 = vmatprep.mubr.bf16.mxu0 0
        %6928 = vmatmul.mubr.bf16.gmra.mrb[0].mxu0 %v6866
        %v6929 = vpop.f32.mrb[0].mxu0
        %v6930 = vadd.f32 0.0, %v6929
        %v6931 = vpop.f32.mrb[0].mxu0
        %v6932 = vpop.f32.mrb[0].mxu0
        %v6933 = vadd.f32 0.0, %v6932
        %v6934 = vpop.f32.mrb[0].mxu0
        %6935 = vmatprep.mubr.bf16.mxu0 0
        %6936 = vmatmul.mubr.bf16.gmra.mrb[0].mxu0 %v6869
        %v6937 = vpop.f32.mrb[0].mxu0
        %v6938 = vadd.f32 0.0, %v6937
        %v6939 = vpop.f32.mrb[0].mxu0
        %v6940 = vpop.f32.mrb[0].mxu0
        %v6941 = vpop.f32.mrb[0].mxu0
        %6942 = vdwg.mxu0
        %v6943 = vadd.f32 %v6786, %v6906
        %v6944 = vadd.f32 %v6787, %v6909
        %v6945 = vadd.f32 %v6788, %v6914
        %v6946 = vadd.f32 %v6789, %v6917
        %v6947 = vadd.f32 %v6790, %v6922
        %v6948 = vadd.f32 %v6791, %v6925
        %v6949 = vadd.f32 %v6792, %v6930
        %v6950 = vadd.f32 %v6793, %v6933
        %v6951 = vadd.f32 %v6794, %v6938
        %6952 = vst.msk [vmem:[#allocation3] sm:$0xff] %vm619, %v6943
        %6953 = vst.msk [vmem:[#allocation3 + $0x8] sm:$0xff] %vm619, %v6944
        %6954 = vst.msk [vmem:[#allocation3 + $0x10] sm:$0xff] %vm619, %v6945
        %6955 = vst.msk [vmem:[#allocation3 + $0x18] sm:$0xff] %vm619, %v6946
        %6956 = vst.msk [vmem:[#allocation3 + $0x20] sm:$0xff] %vm619, %v6947
        %6957 = vst.msk [vmem:[#allocation3 + $0x28] sm:$0xff] %vm619, %v6948
        %6958 = vst.msk [vmem:[#allocation3 + $0x30] sm:$0xff] %vm619, %v6949
        %6959 = vst.msk [vmem:[#allocation3 + $0x38] sm:$0xff] %vm619, %v6950
        %6960 = vst.msk [vmem:[#allocation3 + $0x40] sm:$0xff] %vm619, %v6951
        %v6961 = vld [vmem:[#allocation3] sm:$0xff]
        %v6962 = vld [vmem:[#allocation3 + $0x8] sm:$0xff]
        %v6963 = vld [vmem:[#allocation3 + $0x10] sm:$0xff]
        %v6964 = vld [vmem:[#allocation3 + $0x18] sm:$0xff]
        %v6965 = vld [vmem:[#allocation3 + $0x20] sm:$0xff]
        %v6966 = vld [vmem:[#allocation3 + $0x28] sm:$0xff]
        %v6967 = vld [vmem:[#allocation3 + $0x30] sm:$0xff]
        %v6968 = vld [vmem:[#allocation3 + $0x38] sm:$0xff]
        %v6969 = vld [vmem:[#allocation3 + $0x40] sm:$0xff]
        %v6970 = vld [vmem:[#allocation2] sm:$0xfe]
        %v6971 = vld [vmem:[#allocation2 + $0x8] sm:$0xff]
        %v6972 = vld [vmem:[#allocation2 + $0x10] sm:$0xff]
        %v6973 = vld [vmem:[#allocation2 + $0x18] sm:$0xff]
        %v6974 = vld [vmem:[#allocation2 + $0x20] sm:$0x1f]
        %s6975 = scalar_lea.vmem %s8, 32
        %v6976 = vld [vmem:[%s6975] sm:$0xf]
        %v6977 = vld [vmem:[%s6975 + $0x4] sm:$0xf]
        %v6978 = vld [vmem:[%s6975 + $0x8] sm:$0xf]
        %v6979 = vld [vmem:[%s6975 + $0xc] sm:$0xf]
        %v6985 = vrot.slane %v6970, 1
        %v6986 = vrot.slane %v6971, 1
        %v6987 = vsel %vm3208, %v6985, %v6986
        %v6988 = vrot.slane %v6972, 1
        %v6989 = vsel %vm3208, %v6986, %v6988
        %v6990 = vrot.slane %v6973, 1
        %v6991 = vsel %vm3208, %v6988, %v6990
        %v6992 = vrot.slane %v6974, 1
        %v6993 = vsel %vm3208, %v6990, %v6992
        %v6998 = vunpack.c.l.b16 %v6976
        %v6999 = vunpack.c.l.b16 %v6977
        %v7000 = vunpack.c.l.b16 %v6978
        %v7001 = vunpack.c.l.b16 %v6979
        %v7002 = vpack.c.b16 %v6999, %v6998
        %v7003 = vpack.c.b16 %v7001, %v7000
        %v7007 = vsel %vm619, %v6987, 0
        %v7010 = vsel %vm619, %v6989, 0
        %v7013 = vsel %vm619, %v6991, 0
        %v7016 = vsel %vm619, %v6993, 0
        %v7019 = vsel %vm619, %v6992, 0
        %7021 = vmatprep.subr.bf16.mxu0 0
        %7022 = vmatpush1.bf16.msra.mxu0 %v7002
        %7023 = vmatprep.subr.bf16.mxu0 0
        %7024 = vmatpush1.bf16.msra.mxu0 %v7003
        %7025 = vmatprep.subr.bf16.mxu0 0
        %7026 = vmatpush1.bf16.msra.mxu0 0
        %7027 = vmatprep.subr.bf16.mxu0 0
        %7028 = vmatpush1.bf16.msra.mxu0 0
        %7029 = vmatprep.subr.bf16.mxu0 0
        %7030 = vmatpush1.bf16.msra.mxu0 0
        %7031 = vmatprep.subr.bf16.mxu0 0
        %7032 = vmatpush1.bf16.msra.mxu0 0
        %7033 = vmatprep.subr.bf16.mxu0 0
        %7034 = vmatpush1.bf16.msra.mxu0 0
        %7035 = vmatprep.subr.bf16.mxu0 0
        %7036 = vmatpush1.bf16.msra.mxu0 0
        %7037 = vmatprep.subr.bf16.mxu0 0
        %7038 = vmatpush1.bf16.msra.mxu0 0
        %7039 = vmatprep.subr.bf16.mxu0 0
        %7040 = vmatpush1.bf16.msra.mxu0 0
        %7041 = vmatprep.subr.bf16.mxu0 0
        %7042 = vmatpush1.bf16.msra.mxu0 0
        %7043 = vmatprep.subr.bf16.mxu0 0
        %7044 = vmatpush1.bf16.msra.mxu0 0
        %7045 = vmatprep.subr.bf16.mxu0 0
        %7046 = vmatpush1.bf16.msra.mxu0 0
        %7047 = vmatprep.subr.bf16.mxu0 0
        %7048 = vmatpush1.bf16.msra.mxu0 0
        %7049 = vmatprep.subr.bf16.mxu0 0
        %7050 = vmatpush1.bf16.msra.mxu0 0
        %7051 = vmatprep.subr.bf16.mxu0 0
        %7052 = vmatpush1.bf16.msra.mxu0 0
        %7053 = vmatprep.mubr.bf16.mxu0 0
        %7054 = vmatmul.mubr.bf16.gmra.mrb[0].mxu0 %v7007
        %v7055 = vpop.f32.mrb[0].mxu0
        %v7056 = vadd.f32 0.0, %v7055
        %v7057 = vpop.f32.mrb[0].mxu0
        %v7058 = vpop.f32.mrb[0].mxu0
        %v7059 = vadd.f32 0.0, %v7058
        %v7060 = vpop.f32.mrb[0].mxu0
        %7061 = vmatprep.mubr.bf16.mxu0 0
        %7062 = vmatmul.mubr.bf16.gmra.mrb[0].mxu0 %v7010
        %v7063 = vpop.f32.mrb[0].mxu0
        %v7064 = vadd.f32 0.0, %v7063
        %v7065 = vpop.f32.mrb[0].mxu0
        %v7066 = vpop.f32.mrb[0].mxu0
        %v7067 = vadd.f32 0.0, %v7066
        %v7068 = vpop.f32.mrb[0].mxu0
        %7069 = vmatprep.mubr.bf16.mxu0 0
        %7070 = vmatmul.mubr.bf16.gmra.mrb[0].mxu0 %v7013
        %v7071 = vpop.f32.mrb[0].mxu0
        %v7072 = vadd.f32 0.0, %v7071
        %v7073 = vpop.f32.mrb[0].mxu0
        %v7074 = vpop.f32.mrb[0].mxu0
        %v7075 = vadd.f32 0.0, %v7074
        %v7076 = vpop.f32.mrb[0].mxu0
        %7077 = vmatprep.mubr.bf16.mxu0 0
        %7078 = vmatmul.mubr.bf16.gmra.mrb[0].mxu0 %v7016
        %v7079 = vpop.f32.mrb[0].mxu0
        %v7080 = vadd.f32 0.0, %v7079
        %v7081 = vpop.f32.mrb[0].mxu0
        %v7082 = vpop.f32.mrb[0].mxu0
        %v7083 = vadd.f32 0.0, %v7082
        %v7084 = vpop.f32.mrb[0].mxu0
        %7085 = vmatprep.mubr.bf16.mxu0 0
        %7086 = vmatmul.mubr.bf16.gmra.mrb[0].mxu0 %v7019
        %v7087 = vpop.f32.mrb[0].mxu0
        %v7088 = vadd.f32 0.0, %v7087
        %v7089 = vpop.f32.mrb[0].mxu0
        %v7090 = vpop.f32.mrb[0].mxu0
        %v7091 = vpop.f32.mrb[0].mxu0
        %7092 = vdwg.mxu0
        %v7093 = vadd.f32 %v6961, %v7056
        %v7094 = vadd.f32 %v6962, %v7059
        %v7095 = vadd.f32 %v6963, %v7064
        %v7096 = vadd.f32 %v6964, %v7067
        %v7097 = vadd.f32 %v6965, %v7072
        %v7098 = vadd.f32 %v6966, %v7075
        %v7099 = vadd.f32 %v6967, %v7080
        %v7100 = vadd.f32 %v6968, %v7083
        %v7101 = vadd.f32 %v6969, %v7088
        %7102 = vst.msk [vmem:[#allocation3] sm:$0xff] %vm619, %v7093
        %7103 = vst.msk [vmem:[#allocation3 + $0x8] sm:$0xff] %vm619, %v7094
        %7104 = vst.msk [vmem:[#allocation3 + $0x10] sm:$0xff] %vm619, %v7095
        %7105 = vst.msk [vmem:[#allocation3 + $0x18] sm:$0xff] %vm619, %v7096
        %7106 = vst.msk [vmem:[#allocation3 + $0x20] sm:$0xff] %vm619, %v7097
        %7107 = vst.msk [vmem:[#allocation3 + $0x28] sm:$0xff] %vm619, %v7098
        %7108 = vst.msk [vmem:[#allocation3 + $0x30] sm:$0xff] %vm619, %v7099
        %7109 = vst.msk [vmem:[#allocation3 + $0x38] sm:$0xff] %vm619, %v7100
        %7110 = vst.msk [vmem:[#allocation3 + $0x40] sm:$0xff] %vm619, %v7101
        %v7111 = vld [vmem:[#allocation3] sm:$0xff]
        %v7112 = vld [vmem:[#allocation3 + $0x8] sm:$0xff]
        %v7113 = vld [vmem:[#allocation3 + $0x10] sm:$0xff]
        %v7114 = vld [vmem:[#allocation3 + $0x18] sm:$0xff]
        %v7115 = vld [vmem:[#allocation3 + $0x20] sm:$0xff]
        %v7116 = vld [vmem:[#allocation3 + $0x28] sm:$0xff]
        %v7117 = vld [vmem:[#allocation3 + $0x30] sm:$0xff]
        %v7118 = vld [vmem:[#allocation3 + $0x38] sm:$0xff]
        %v7119 = vld [vmem:[#allocation3 + $0x40] sm:$0xff]
        %v7120 = vld [vmem:[#allocation2] sm:$0xf0]
        %v7121 = vld [vmem:[#allocation2 + $0x8] sm:$0xff]
        %v7122 = vld [vmem:[#allocation2 + $0x10] sm:$0xff]
        %v7123 = vld [vmem:[#allocation2 + $0x18] sm:$0xff]
        %v7124 = vld [vmem:[#allocation2 + $0x20] sm:$0xff]
        %v7125 = vld [vmem:[#allocation2 + $0x28] sm:$0x1]
        %s7126 = scalar_lea.vmem %s8, 48
        %v7127 = vld [vmem:[%s7126] sm:$0xf]
        %v7128 = vld [vmem:[%s7126 + $0x4] sm:$0xf]
        %v7129 = vld [vmem:[%s7126 + $0x8] sm:$0xf]
        %v7130 = vld [vmem:[%s7126 + $0xc] sm:$0xf]
        %v7132 = vshrl.u32 %v7120, 16
        %v7134 = vrot.slane %v7132, 4
        %v7135 = vshll.u32 %v7120, 16
        %v7137 = vrot.slane %v7135, 5
        %v7138 = vor.u32 %v7134, %v7137
        %v7140 = vshrl.u32 %v7121, 16
        %v7142 = vrot.slane %v7140, 4
        %v7143 = vshll.u32 %v7121, 16
        %v7145 = vrot.slane %v7143, 5
        %v7146 = vor.u32 %v7142, %v7145
        %v7147 = vsel %vm3355, %v7138, %v7146
        %v7149 = vshrl.u32 %v7122, 16
        %v7151 = vrot.slane %v7149, 4
        %v7152 = vshll.u32 %v7122, 16
        %v7154 = vrot.slane %v7152, 5
        %v7155 = vor.u32 %v7151, %v7154
        %v7156 = vsel %vm3355, %v7146, %v7155
        %v7158 = vshrl.u32 %v7123, 16
        %v7160 = vrot.slane %v7158, 4
        %v7161 = vshll.u32 %v7123, 16
        %v7163 = vrot.slane %v7161, 5
        %v7164 = vor.u32 %v7160, %v7163
        %v7165 = vsel %vm3355, %v7155, %v7164
        %v7167 = vshrl.u32 %v7124, 16
        %v7169 = vrot.slane %v7167, 4
        %v7170 = vshll.u32 %v7124, 16
        %v7172 = vrot.slane %v7170, 5
        %v7173 = vor.u32 %v7169, %v7172
        %v7174 = vsel %vm3355, %v7164, %v7173
        %v7176 = vshll.u32 %v7125, 16
        %v7178 = vrot.slane %v7176, 5
        %v7179 = vsel %vm3355, %v7173, %v7178
        %v7184 = vunpack.c.l.b16 %v7127
        %v7185 = vunpack.c.l.b16 %v7128
        %v7186 = vunpack.c.l.b16 %v7129
        %v7187 = vunpack.c.l.b16 %v7130
        %v7188 = vpack.c.b16 %v7185, %v7184
        %v7189 = vpack.c.b16 %v7187, %v7186
        %v7193 = vsel %vm619, %v7147, 0
        %v7196 = vsel %vm619, %v7156, 0
        %v7199 = vsel %vm619, %v7165, 0
        %v7202 = vsel %vm619, %v7174, 0
        %v7205 = vsel %vm619, %v7179, 0
        %7207 = vmatprep.subr.bf16.mxu0 0
        %7208 = vmatpush1.bf16.msra.mxu0 %v7188
        %7209 = vmatprep.subr.bf16.mxu0 0
        %7210 = vmatpush1.bf16.msra.mxu0 %v7189
        %7211 = vmatprep.subr.bf16.mxu0 0
        %7212 = vmatpush1.bf16.msra.mxu0 0
        %7213 = vmatprep.subr.bf16.mxu0 0
        %7214 = vmatpush1.bf16.msra.mxu0 0
        %7215 = vmatprep.subr.bf16.mxu0 0
        %7216 = vmatpush1.bf16.msra.mxu0 0
        %7217 = vmatprep.subr.bf16.mxu0 0
        %7218 = vmatpush1.bf16.msra.mxu0 0
        %7219 = vmatprep.subr.bf16.mxu0 0
        %7220 = vmatpush1.bf16.msra.mxu0 0
        %7221 = vmatprep.subr.bf16.mxu0 0
        %7222 = vmatpush1.bf16.msra.mxu0 0
        %7223 = vmatprep.subr.bf16.mxu0 0
        %7224 = vmatpush1.bf16.msra.mxu0 0
        %7225 = vmatprep.subr.bf16.mxu0 0
        %7226 = vmatpush1.bf16.msra.mxu0 0
        %7227 = vmatprep.subr.bf16.mxu0 0
        %7228 = vmatpush1.bf16.msra.mxu0 0
        %7229 = vmatprep.subr.bf16.mxu0 0
        %7230 = vmatpush1.bf16.msra.mxu0 0
        %7231 = vmatprep.subr.bf16.mxu0 0
        %7232 = vmatpush1.bf16.msra.mxu0 0
        %7233 = vmatprep.subr.bf16.mxu0 0
        %7234 = vmatpush1.bf16.msra.mxu0 0
        %7235 = vmatprep.subr.bf16.mxu0 0
        %7236 = vmatpush1.bf16.msra.mxu0 0
        %7237 = vmatprep.subr.bf16.mxu0 0
        %7238 = vmatpush1.bf16.msra.mxu0 0
        %7239 = vmatprep.mubr.bf16.mxu0 0
        %7240 = vmatmul.mubr.bf16.gmra.mrb[0].mxu0 %v7193
        %v7241 = vpop.f32.mrb[0].mxu0
        %v7242 = vadd.f32 0.0, %v7241
        %v7243 = vpop.f32.mrb[0].mxu0
        %v7244 = vpop.f32.mrb[0].mxu0
        %v7245 = vadd.f32 0.0, %v7244
        %v7246 = vpop.f32.mrb[0].mxu0
        %7247 = vmatprep.mubr.bf16.mxu0 0
        %7248 = vmatmul.mubr.bf16.gmra.mrb[0].mxu0 %v7196
        %v7249 = vpop.f32.mrb[0].mxu0
        %v7250 = vadd.f32 0.0, %v7249
        %v7251 = vpop.f32.mrb[0].mxu0
        %v7252 = vpop.f32.mrb[0].mxu0
        %v7253 = vadd.f32 0.0, %v7252
        %v7254 = vpop.f32.mrb[0].mxu0
        %7255 = vmatprep.mubr.bf16.mxu0 0
        %7256 = vmatmul.mubr.bf16.gmra.mrb[0].mxu0 %v7199
        %v7257 = vpop.f32.mrb[0].mxu0
        %v7258 = vadd.f32 0.0, %v7257
        %v7259 = vpop.f32.mrb[0].mxu0
        %v7260 = vpop.f32.mrb[0].mxu0
        %v7261 = vadd.f32 0.0, %v7260
        %v7262 = vpop.f32.mrb[0].mxu0
        %7263 = vmatprep.mubr.bf16.mxu0 0
        %7264 = vmatmul.mubr.bf16.gmra.mrb[0].mxu0 %v7202
        %v7265 = vpop.f32.mrb[0].mxu0
        %v7266 = vadd.f32 0.0, %v7265
        %v7267 = vpop.f32.mrb[0].mxu0
        %v7268 = vpop.f32.mrb[0].mxu0
        %v7269 = vadd.f32 0.0, %v7268
        %v7270 = vpop.f32.mrb[0].mxu0
        %7271 = vmatprep.mubr.bf16.mxu0 0
        %7272 = vmatmul.mubr.bf16.gmra.mrb[0].mxu0 %v7205
        %v7273 = vpop.f32.mrb[0].mxu0
        %v7274 = vadd.f32 0.0, %v7273
        %v7275 = vpop.f32.mrb[0].mxu0
        %v7276 = vpop.f32.mrb[0].mxu0
        %v7277 = vpop.f32.mrb[0].mxu0
        %7278 = vdwg.mxu0
        %v7279 = vadd.f32 %v7111, %v7242
        %v7280 = vadd.f32 %v7112, %v7245
        %v7281 = vadd.f32 %v7113, %v7250
        %v7282 = vadd.f32 %v7114, %v7253
        %v7283 = vadd.f32 %v7115, %v7258
        %v7284 = vadd.f32 %v7116, %v7261
        %v7285 = vadd.f32 %v7117, %v7266
        %v7286 = vadd.f32 %v7118, %v7269
        %v7287 = vadd.f32 %v7119, %v7274
        %7288 = vst.msk [vmem:[#allocation3] sm:$0xff] %vm619, %v7279
        %7289 = vst.msk [vmem:[#allocation3 + $0x8] sm:$0xff] %vm619, %v7280
        %7290 = vst.msk [vmem:[#allocation3 + $0x10] sm:$0xff] %vm619, %v7281
        %7291 = vst.msk [vmem:[#allocation3 + $0x18] sm:$0xff] %vm619, %v7282
        %7292 = vst.msk [vmem:[#allocation3 + $0x20] sm:$0xff] %vm619, %v7283
        %7293 = vst.msk [vmem:[#allocation3 + $0x28] sm:$0xff] %vm619, %v7284
        %7294 = vst.msk [vmem:[#allocation3 + $0x30] sm:$0xff] %vm619, %v7285
        %7295 = vst.msk [vmem:[#allocation3 + $0x38] sm:$0xff] %vm619, %v7286
        %7296 = vst.msk [vmem:[#allocation3 + $0x40] sm:$0xff] %vm619, %v7287
        %v7297 = vld [vmem:[#allocation3] sm:$0xff]
        %v7298 = vld [vmem:[#allocation3 + $0x8] sm:$0xff]
        %v7299 = vld [vmem:[#allocation3 + $0x10] sm:$0xff]
        %v7300 = vld [vmem:[#allocation3 + $0x18] sm:$0xff]
        %v7301 = vld [vmem:[#allocation3 + $0x20] sm:$0xff]
        %v7302 = vld [vmem:[#allocation3 + $0x28] sm:$0xff]
        %v7303 = vld [vmem:[#allocation3 + $0x30] sm:$0xff]
        %v7304 = vld [vmem:[#allocation3 + $0x38] sm:$0xff]
        %v7305 = vld [vmem:[#allocation3 + $0x40] sm:$0xff]
        %v7306 = vld [vmem:[#allocation2] sm:$0xe0]
        %v7307 = vld [vmem:[#allocation2 + $0x8] sm:$0xff]
        %v7308 = vld [vmem:[#allocation2 + $0x10] sm:$0xff]
        %v7309 = vld [vmem:[#allocation2 + $0x18] sm:$0xff]
        %v7310 = vld [vmem:[#allocation2 + $0x20] sm:$0xff]
        %v7311 = vld [vmem:[#allocation2 + $0x28] sm:$0x1]
        %s7312 = scalar_lea.vmem %s8, 64
        %v7313 = vld [vmem:[%s7312] sm:$0xf]
        %v7314 = vld [vmem:[%s7312 + $0x4] sm:$0xf]
        %v7315 = vld [vmem:[%s7312 + $0x8] sm:$0xf]
        %v7316 = vld [vmem:[%s7312 + $0xc] sm:$0xf]
        %v7323 = vrot.slane %v7306, 5
        %v7324 = vrot.slane %v7307, 5
        %v7325 = vsel %vm3548, %v7323, %v7324
        %v7326 = vrot.slane %v7308, 5
        %v7327 = vsel %vm3548, %v7324, %v7326
        %v7328 = vrot.slane %v7309, 5
        %v7329 = vsel %vm3548, %v7326, %v7328
        %v7330 = vrot.slane %v7310, 5
        %v7331 = vsel %vm3548, %v7328, %v7330
        %v7332 = vrot.slane %v7311, 5
        %v7333 = vsel %vm3548, %v7330, %v7332
        %v7338 = vunpack.c.l.b16 %v7313
        %v7339 = vunpack.c.l.b16 %v7314
        %v7340 = vunpack.c.l.b16 %v7315
        %v7341 = vunpack.c.l.b16 %v7316
        %v7342 = vpack.c.b16 %v7339, %v7338
        %v7343 = vpack.c.b16 %v7341, %v7340
        %v7347 = vsel %vm619, %v7325, 0
        %v7350 = vsel %vm619, %v7327, 0
        %v7353 = vsel %vm619, %v7329, 0
        %v7356 = vsel %vm619, %v7331, 0
        %v7359 = vsel %vm619, %v7333, 0
        %7361 = vmatprep.subr.bf16.mxu0 0
        %7362 = vmatpush1.bf16.msra.mxu0 %v7342
        %7363 = vmatprep.subr.bf16.mxu0 0
        %7364 = vmatpush1.bf16.msra.mxu0 %v7343
        %7365 = vmatprep.subr.bf16.mxu0 0
        %7366 = vmatpush1.bf16.msra.mxu0 0
        %7367 = vmatprep.subr.bf16.mxu0 0
        %7368 = vmatpush1.bf16.msra.mxu0 0
        %7369 = vmatprep.subr.bf16.mxu0 0
        %7370 = vmatpush1.bf16.msra.mxu0 0
        %7371 = vmatprep.subr.bf16.mxu0 0
        %7372 = vmatpush1.bf16.msra.mxu0 0
        %7373 = vmatprep.subr.bf16.mxu0 0
        %7374 = vmatpush1.bf16.msra.mxu0 0
        %7375 = vmatprep.subr.bf16.mxu0 0
        %7376 = vmatpush1.bf16.msra.mxu0 0
        %7377 = vmatprep.subr.bf16.mxu0 0
        %7378 = vmatpush1.bf16.msra.mxu0 0
        %7379 = vmatprep.subr.bf16.mxu0 0
        %7380 = vmatpush1.bf16.msra.mxu0 0
        %7381 = vmatprep.subr.bf16.mxu0 0
        %7382 = vmatpush1.bf16.msra.mxu0 0
        %7383 = vmatprep.subr.bf16.mxu0 0
        %7384 = vmatpush1.bf16.msra.mxu0 0
        %7385 = vmatprep.subr.bf16.mxu0 0
        %7386 = vmatpush1.bf16.msra.mxu0 0
        %7387 = vmatprep.subr.bf16.mxu0 0
        %7388 = vmatpush1.bf16.msra.mxu0 0
        %7389 = vmatprep.subr.bf16.mxu0 0
        %7390 = vmatpush1.bf16.msra.mxu0 0
        %7391 = vmatprep.subr.bf16.mxu0 0
        %7392 = vmatpush1.bf16.msra.mxu0 0
        %7393 = vmatprep.mubr.bf16.mxu0 0
        %7394 = vmatmul.mubr.bf16.gmra.mrb[0].mxu0 %v7347
        %v7395 = vpop.f32.mrb[0].mxu0
        %v7396 = vadd.f32 0.0, %v7395
        %v7397 = vpop.f32.mrb[0].mxu0
        %v7398 = vpop.f32.mrb[0].mxu0
        %v7399 = vadd.f32 0.0, %v7398
        %v7400 = vpop.f32.mrb[0].mxu0
        %7401 = vmatprep.mubr.bf16.mxu0 0
        %7402 = vmatmul.mubr.bf16.gmra.mrb[0].mxu0 %v7350
        %v7403 = vpop.f32.mrb[0].mxu0
        %v7404 = vadd.f32 0.0, %v7403
        %v7405 = vpop.f32.mrb[0].mxu0
        %v7406 = vpop.f32.mrb[0].mxu0
        %v7407 = vadd.f32 0.0, %v7406
        %v7408 = vpop.f32.mrb[0].mxu0
        %7409 = vmatprep.mubr.bf16.mxu0 0
        %7410 = vmatmul.mubr.bf16.gmra.mrb[0].mxu0 %v7353
        %v7411 = vpop.f32.mrb[0].mxu0
        %v7412 = vadd.f32 0.0, %v7411
        %v7413 = vpop.f32.mrb[0].mxu0
        %v7414 = vpop.f32.mrb[0].mxu0
        %v7415 = vadd.f32 0.0, %v7414
        %v7416 = vpop.f32.mrb[0].mxu0
        %7417 = vmatprep.mubr.bf16.mxu0 0
        %7418 = vmatmul.mubr.bf16.gmra.mrb[0].mxu0 %v7356
        %v7419 = vpop.f32.mrb[0].mxu0
        %v7420 = vadd.f32 0.0, %v7419
        %v7421 = vpop.f32.mrb[0].mxu0
        %v7422 = vpop.f32.mrb[0].mxu0
        %v7423 = vadd.f32 0.0, %v7422
        %v7424 = vpop.f32.mrb[0].mxu0
        %7425 = vmatprep.mubr.bf16.mxu0 0
        %7426 = vmatmul.mubr.bf16.gmra.mrb[0].mxu0 %v7359
        %v7427 = vpop.f32.mrb[0].mxu0
        %v7428 = vadd.f32 0.0, %v7427
        %v7429 = vpop.f32.mrb[0].mxu0
        %v7430 = vpop.f32.mrb[0].mxu0
        %v7431 = vpop.f32.mrb[0].mxu0
        %7432 = vdwg.mxu0
        %v7433 = vadd.f32 %v7297, %v7396
        %v7434 = vadd.f32 %v7298, %v7399
        %v7435 = vadd.f32 %v7299, %v7404
        %v7436 = vadd.f32 %v7300, %v7407
        %v7437 = vadd.f32 %v7301, %v7412
        %v7438 = vadd.f32 %v7302, %v7415
        %v7439 = vadd.f32 %v7303, %v7420
        %v7440 = vadd.f32 %v7304, %v7423
        %v7441 = vadd.f32 %v7305, %v7428
        %7442 = vst.msk [vmem:[#allocation3] sm:$0xff] %vm619, %v7433
        %7443 = vst.msk [vmem:[#allocation3 + $0x8] sm:$0xff] %vm619, %v7434
        %7444 = vst.msk [vmem:[#allocation3 + $0x10] sm:$0xff] %vm619, %v7435
        %7445 = vst.msk [vmem:[#allocation3 + $0x18] sm:$0xff] %vm619, %v7436
        %7446 = vst.msk [vmem:[#allocation3 + $0x20] sm:$0xff] %vm619, %v7437
        %7447 = vst.msk [vmem:[#allocation3 + $0x28] sm:$0xff] %vm619, %v7438
        %7448 = vst.msk [vmem:[#allocation3 + $0x30] sm:$0xff] %vm619, %v7439
        %7449 = vst.msk [vmem:[#allocation3 + $0x38] sm:$0xff] %vm619, %v7440
        %7450 = vst.msk [vmem:[#allocation3 + $0x40] sm:$0xff] %vm619, %v7441
        %v7451 = vld [vmem:[#allocation3] sm:$0xff]
        %v7452 = vld [vmem:[#allocation3 + $0x8] sm:$0xff]
        %v7453 = vld [vmem:[#allocation3 + $0x10] sm:$0xff]
        %v7454 = vld [vmem:[#allocation3 + $0x18] sm:$0xff]
        %v7455 = vld [vmem:[#allocation3 + $0x20] sm:$0xff]
        %v7456 = vld [vmem:[#allocation3 + $0x28] sm:$0xff]
        %v7457 = vld [vmem:[#allocation3 + $0x30] sm:$0xff]
        %v7458 = vld [vmem:[#allocation3 + $0x38] sm:$0xff]
        %v7459 = vld [vmem:[#allocation3 + $0x40] sm:$0xff]
        %v7460 = vld [vmem:[#allocation2] sm:$0xe0]
        %v7461 = vld [vmem:[#allocation2 + $0x8] sm:$0xff]
        %v7462 = vld [vmem:[#allocation2 + $0x10] sm:$0xff]
        %v7463 = vld [vmem:[#allocation2 + $0x18] sm:$0xff]
        %v7464 = vld [vmem:[#allocation2 + $0x20] sm:$0xff]
        %v7465 = vld [vmem:[#allocation2 + $0x28] sm:$0x3]
        %s7466 = scalar_lea.vmem %s8, 80
        %v7467 = vld [vmem:[%s7466] sm:$0xf]
        %v7468 = vld [vmem:[%s7466 + $0x4] sm:$0xf]
        %v7469 = vld [vmem:[%s7466 + $0x8] sm:$0xf]
        %v7470 = vld [vmem:[%s7466 + $0xc] sm:$0xf]
        %v7472 = vshrl.u32 %v7460, 16
        %v7474 = vrot.slane %v7472, 5
        %v7475 = vshll.u32 %v7460, 16
        %v7477 = vrot.slane %v7475, 6
        %v7478 = vor.u32 %v7474, %v7477
        %v7480 = vshrl.u32 %v7461, 16
        %v7482 = vrot.slane %v7480, 5
        %v7483 = vshll.u32 %v7461, 16
        %v7485 = vrot.slane %v7483, 6
        %v7486 = vor.u32 %v7482, %v7485
        %v7487 = vsel %vm3697, %v7478, %v7486
        %v7489 = vshrl.u32 %v7462, 16
        %v7491 = vrot.slane %v7489, 5
        %v7492 = vshll.u32 %v7462, 16
        %v7494 = vrot.slane %v7492, 6
        %v7495 = vor.u32 %v7491, %v7494
        %v7496 = vsel %vm3697, %v7486, %v7495
        %v7498 = vshrl.u32 %v7463, 16
        %v7500 = vrot.slane %v7498, 5
        %v7501 = vshll.u32 %v7463, 16
        %v7503 = vrot.slane %v7501, 6
        %v7504 = vor.u32 %v7500, %v7503
        %v7505 = vsel %vm3697, %v7495, %v7504
        %v7507 = vshrl.u32 %v7464, 16
        %v7509 = vrot.slane %v7507, 5
        %v7510 = vshll.u32 %v7464, 16
        %v7512 = vrot.slane %v7510, 6
        %v7513 = vor.u32 %v7509, %v7512
        %v7514 = vsel %vm3697, %v7504, %v7513
        %v7516 = vshrl.u32 %v7465, 16
        %v7518 = vrot.slane %v7516, 5
        %v7519 = vshll.u32 %v7465, 16
        %v7521 = vrot.slane %v7519, 6
        %v7522 = vor.u32 %v7518, %v7521
        %v7523 = vsel %vm3697, %v7513, %v7522
        %v7528 = vunpack.c.l.b16 %v7467
        %v7529 = vunpack.c.l.b16 %v7468
        %v7530 = vunpack.c.l.b16 %v7469
        %v7531 = vunpack.c.l.b16 %v7470
        %v7532 = vpack.c.b16 %v7529, %v7528
        %v7533 = vpack.c.b16 %v7531, %v7530
        %v7537 = vsel %vm619, %v7487, 0
        %v7540 = vsel %vm619, %v7496, 0
        %v7543 = vsel %vm619, %v7505, 0
        %v7546 = vsel %vm619, %v7514, 0
        %v7549 = vsel %vm619, %v7523, 0
        %7551 = vmatprep.subr.bf16.mxu0 0
        %7552 = vmatpush1.bf16.msra.mxu0 %v7532
        %7553 = vmatprep.subr.bf16.mxu0 0
        %7554 = vmatpush1.bf16.msra.mxu0 %v7533
        %7555 = vmatprep.subr.bf16.mxu0 0
        %7556 = vmatpush1.bf16.msra.mxu0 0
        %7557 = vmatprep.subr.bf16.mxu0 0
        %7558 = vmatpush1.bf16.msra.mxu0 0
        %7559 = vmatprep.subr.bf16.mxu0 0
        %7560 = vmatpush1.bf16.msra.mxu0 0
        %7561 = vmatprep.subr.bf16.mxu0 0
        %7562 = vmatpush1.bf16.msra.mxu0 0
        %7563 = vmatprep.subr.bf16.mxu0 0
        %7564 = vmatpush1.bf16.msra.mxu0 0
        %7565 = vmatprep.subr.bf16.mxu0 0
        %7566 = vmatpush1.bf16.msra.mxu0 0
        %7567 = vmatprep.subr.bf16.mxu0 0
        %7568 = vmatpush1.bf16.msra.mxu0 0
        %7569 = vmatprep.subr.bf16.mxu0 0
        %7570 = vmatpush1.bf16.msra.mxu0 0
        %7571 = vmatprep.subr.bf16.mxu0 0
        %7572 = vmatpush1.bf16.msra.mxu0 0
        %7573 = vmatprep.subr.bf16.mxu0 0
        %7574 = vmatpush1.bf16.msra.mxu0 0
        %7575 = vmatprep.subr.bf16.mxu0 0
        %7576 = vmatpush1.bf16.msra.mxu0 0
        %7577 = vmatprep.subr.bf16.mxu0 0
        %7578 = vmatpush1.bf16.msra.mxu0 0
        %7579 = vmatprep.subr.bf16.mxu0 0
        %7580 = vmatpush1.bf16.msra.mxu0 0
        %7581 = vmatprep.subr.bf16.mxu0 0
        %7582 = vmatpush1.bf16.msra.mxu0 0
        %7583 = vmatprep.mubr.bf16.mxu0 0
        %7584 = vmatmul.mubr.bf16.gmra.mrb[0].mxu0 %v7537
        %v7585 = vpop.f32.mrb[0].mxu0
        %v7586 = vadd.f32 0.0, %v7585
        %v7587 = vpop.f32.mrb[0].mxu0
        %v7588 = vpop.f32.mrb[0].mxu0
        %v7589 = vadd.f32 0.0, %v7588
        %v7590 = vpop.f32.mrb[0].mxu0
        %7591 = vmatprep.mubr.bf16.mxu0 0
        %7592 = vmatmul.mubr.bf16.gmra.mrb[0].mxu0 %v7540
        %v7593 = vpop.f32.mrb[0].mxu0
        %v7594 = vadd.f32 0.0, %v7593
        %v7595 = vpop.f32.mrb[0].mxu0
        %v7596 = vpop.f32.mrb[0].mxu0
        %v7597 = vadd.f32 0.0, %v7596
        %v7598 = vpop.f32.mrb[0].mxu0
        %7599 = vmatprep.mubr.bf16.mxu0 0
        %7600 = vmatmul.mubr.bf16.gmra.mrb[0].mxu0 %v7543
        %v7601 = vpop.f32.mrb[0].mxu0
        %v7602 = vadd.f32 0.0, %v7601
        %v7603 = vpop.f32.mrb[0].mxu0
        %v7604 = vpop.f32.mrb[0].mxu0
        %v7605 = vadd.f32 0.0, %v7604
        %v7606 = vpop.f32.mrb[0].mxu0
        %7607 = vmatprep.mubr.bf16.mxu0 0
        %7608 = vmatmul.mubr.bf16.gmra.mrb[0].mxu0 %v7546
        %v7609 = vpop.f32.mrb[0].mxu0
        %v7610 = vadd.f32 0.0, %v7609
        %v7611 = vpop.f32.mrb[0].mxu0
        %v7612 = vpop.f32.mrb[0].mxu0
        %v7613 = vadd.f32 0.0, %v7612
        %v7614 = vpop.f32.mrb[0].mxu0
        %7615 = vmatprep.mubr.bf16.mxu0 0
        %7616 = vmatmul.mubr.bf16.gmra.mrb[0].mxu0 %v7549
        %v7617 = vpop.f32.mrb[0].mxu0
        %v7618 = vadd.f32 0.0, %v7617
        %v7619 = vpop.f32.mrb[0].mxu0
        %v7620 = vpop.f32.mrb[0].mxu0
        %v7621 = vpop.f32.mrb[0].mxu0
        %7622 = vdwg.mxu0
        %v7623 = vadd.f32 %v7451, %v7586
        %v7624 = vadd.f32 %v7452, %v7589
        %v7625 = vadd.f32 %v7453, %v7594
        %v7626 = vadd.f32 %v7454, %v7597
        %v7627 = vadd.f32 %v7455, %v7602
        %v7628 = vadd.f32 %v7456, %v7605
        %v7629 = vadd.f32 %v7457, %v7610
        %v7630 = vadd.f32 %v7458, %v7613
        %v7631 = vadd.f32 %v7459, %v7618
        %7632 = vst.msk [vmem:[#allocation3] sm:$0xff] %vm619, %v7623
        %7633 = vst.msk [vmem:[#allocation3 + $0x8] sm:$0xff] %vm619, %v7624
        %7634 = vst.msk [vmem:[#allocation3 + $0x10] sm:$0xff] %vm619, %v7625
        %7635 = vst.msk [vmem:[#allocation3 + $0x18] sm:$0xff] %vm619, %v7626
        %7636 = vst.msk [vmem:[#allocation3 + $0x20] sm:$0xff] %vm619, %v7627
        %7637 = vst.msk [vmem:[#allocation3 + $0x28] sm:$0xff] %vm619, %v7628
        %7638 = vst.msk [vmem:[#allocation3 + $0x30] sm:$0xff] %vm619, %v7629
        %7639 = vst.msk [vmem:[#allocation3 + $0x38] sm:$0xff] %vm619, %v7630
        %7640 = vst.msk [vmem:[#allocation3 + $0x40] sm:$0xff] %vm619, %v7631
        %v7641 = vld [vmem:[#allocation3] sm:$0xff]
        %v7642 = vld [vmem:[#allocation3 + $0x8] sm:$0xff]
        %v7643 = vld [vmem:[#allocation3 + $0x10] sm:$0xff]
        %v7644 = vld [vmem:[#allocation3 + $0x18] sm:$0xff]
        %v7645 = vld [vmem:[#allocation3 + $0x20] sm:$0xff]
        %v7646 = vld [vmem:[#allocation3 + $0x28] sm:$0xff]
        %v7647 = vld [vmem:[#allocation3 + $0x30] sm:$0xff]
        %v7648 = vld [vmem:[#allocation3 + $0x38] sm:$0xff]
        %v7649 = vld [vmem:[#allocation3 + $0x40] sm:$0xff]
        %v7650 = vld [vmem:[#allocation2 + $0x8] sm:$0xfe]
        %v7651 = vld [vmem:[#allocation2 + $0x10] sm:$0xff]
        %v7652 = vld [vmem:[#allocation2 + $0x18] sm:$0xff]
        %v7653 = vld [vmem:[#allocation2 + $0x20] sm:$0xff]
        %v7654 = vld [vmem:[#allocation2 + $0x28] sm:$0x1f]
        %s7655 = scalar_lea.vmem %s8, 96
        %v7656 = vld [vmem:[%s7655] sm:$0xf]
        %v7657 = vld [vmem:[%s7655 + $0x4] sm:$0xf]
        %v7658 = vld [vmem:[%s7655 + $0x8] sm:$0xf]
        %v7659 = vld [vmem:[%s7655 + $0xc] sm:$0xf]
        %v7665 = vrot.slane %v7650, 1
        %v7666 = vrot.slane %v7651, 1
        %v7667 = vsel %vm3208, %v7665, %v7666
        %v7668 = vrot.slane %v7652, 1
        %v7669 = vsel %vm3208, %v7666, %v7668
        %v7670 = vrot.slane %v7653, 1
        %v7671 = vsel %vm3208, %v7668, %v7670
        %v7672 = vrot.slane %v7654, 1
        %v7673 = vsel %vm3208, %v7670, %v7672
        %v7678 = vunpack.c.l.b16 %v7656
        %v7679 = vunpack.c.l.b16 %v7657
        %v7680 = vunpack.c.l.b16 %v7658
        %v7681 = vunpack.c.l.b16 %v7659
        %v7682 = vpack.c.b16 %v7679, %v7678
        %v7683 = vpack.c.b16 %v7681, %v7680
        %v7687 = vsel %vm619, %v7667, 0
        %v7690 = vsel %vm619, %v7669, 0
        %v7693 = vsel %vm619, %v7671, 0
        %v7696 = vsel %vm619, %v7673, 0
        %v7699 = vsel %vm619, %v7672, 0
        %7701 = vmatprep.subr.bf16.mxu0 0
        %7702 = vmatpush1.bf16.msra.mxu0 %v7682
        %7703 = vmatprep.subr.bf16.mxu0 0
        %7704 = vmatpush1.bf16.msra.mxu0 %v7683
        %7705 = vmatprep.subr.bf16.mxu0 0
        %7706 = vmatpush1.bf16.msra.mxu0 0
        %7707 = vmatprep.subr.bf16.mxu0 0
        %7708 = vmatpush1.bf16.msra.mxu0 0
        %7709 = vmatprep.subr.bf16.mxu0 0
        %7710 = vmatpush1.bf16.msra.mxu0 0
        %7711 = vmatprep.subr.bf16.mxu0 0
        %7712 = vmatpush1.bf16.msra.mxu0 0
        %7713 = vmatprep.subr.bf16.mxu0 0
        %7714 = vmatpush1.bf16.msra.mxu0 0
        %7715 = vmatprep.subr.bf16.mxu0 0
        %7716 = vmatpush1.bf16.msra.mxu0 0
        %7717 = vmatprep.subr.bf16.mxu0 0
        %7718 = vmatpush1.bf16.msra.mxu0 0
        %7719 = vmatprep.subr.bf16.mxu0 0
        %7720 = vmatpush1.bf16.msra.mxu0 0
        %7721 = vmatprep.subr.bf16.mxu0 0
        %7722 = vmatpush1.bf16.msra.mxu0 0
        %7723 = vmatprep.subr.bf16.mxu0 0
        %7724 = vmatpush1.bf16.msra.mxu0 0
        %7725 = vmatprep.subr.bf16.mxu0 0
        %7726 = vmatpush1.bf16.msra.mxu0 0
        %7727 = vmatprep.subr.bf16.mxu0 0
        %7728 = vmatpush1.bf16.msra.mxu0 0
        %7729 = vmatprep.subr.bf16.mxu0 0
        %7730 = vmatpush1.bf16.msra.mxu0 0
        %7731 = vmatprep.subr.bf16.mxu0 0
        %7732 = vmatpush1.bf16.msra.mxu0 0
        %7733 = vmatprep.mubr.bf16.mxu0 0
        %7734 = vmatmul.mubr.bf16.gmra.mrb[0].mxu0 %v7687
        %v7735 = vpop.f32.mrb[0].mxu0
        %v7736 = vadd.f32 0.0, %v7735
        %v7737 = vpop.f32.mrb[0].mxu0
        %v7738 = vpop.f32.mrb[0].mxu0
        %v7739 = vadd.f32 0.0, %v7738
        %v7740 = vpop.f32.mrb[0].mxu0
        %7741 = vmatprep.mubr.bf16.mxu0 0
        %7742 = vmatmul.mubr.bf16.gmra.mrb[0].mxu0 %v7690
        %v7743 = vpop.f32.mrb[0].mxu0
        %v7744 = vadd.f32 0.0, %v7743
        %v7745 = vpop.f32.mrb[0].mxu0
        %v7746 = vpop.f32.mrb[0].mxu0
        %v7747 = vadd.f32 0.0, %v7746
        %v7748 = vpop.f32.mrb[0].mxu0
        %7749 = vmatprep.mubr.bf16.mxu0 0
        %7750 = vmatmul.mubr.bf16.gmra.mrb[0].mxu0 %v7693
        %v7751 = vpop.f32.mrb[0].mxu0
        %v7752 = vadd.f32 0.0, %v7751
        %v7753 = vpop.f32.mrb[0].mxu0
        %v7754 = vpop.f32.mrb[0].mxu0
        %v7755 = vadd.f32 0.0, %v7754
        %v7756 = vpop.f32.mrb[0].mxu0
        %7757 = vmatprep.mubr.bf16.mxu0 0
        %7758 = vmatmul.mubr.bf16.gmra.mrb[0].mxu0 %v7696
        %v7759 = vpop.f32.mrb[0].mxu0
        %v7760 = vadd.f32 0.0, %v7759
        %v7761 = vpop.f32.mrb[0].mxu0
        %v7762 = vpop.f32.mrb[0].mxu0
        %v7763 = vadd.f32 0.0, %v7762
        %v7764 = vpop.f32.mrb[0].mxu0
        %7765 = vmatprep.mubr.bf16.mxu0 0
        %7766 = vmatmul.mubr.bf16.gmra.mrb[0].mxu0 %v7699
        %v7767 = vpop.f32.mrb[0].mxu0
        %v7768 = vadd.f32 0.0, %v7767
        %v7769 = vpop.f32.mrb[0].mxu0
        %v7770 = vpop.f32.mrb[0].mxu0
        %v7771 = vpop.f32.mrb[0].mxu0
        %7772 = vdwg.mxu0
        %v7773 = vadd.f32 %v7641, %v7736
        %v7774 = vadd.f32 %v7642, %v7739
        %v7775 = vadd.f32 %v7643, %v7744
        %v7776 = vadd.f32 %v7644, %v7747
        %v7777 = vadd.f32 %v7645, %v7752
        %v7778 = vadd.f32 %v7646, %v7755
        %v7779 = vadd.f32 %v7647, %v7760
        %v7780 = vadd.f32 %v7648, %v7763
        %v7781 = vadd.f32 %v7649, %v7768
        %7782 = vst.msk [vmem:[#allocation3] sm:$0xff] %vm619, %v7773
        %7783 = vst.msk [vmem:[#allocation3 + $0x8] sm:$0xff] %vm619, %v7774
        %7784 = vst.msk [vmem:[#allocation3 + $0x10] sm:$0xff] %vm619, %v7775
        %7785 = vst.msk [vmem:[#allocation3 + $0x18] sm:$0xff] %vm619, %v7776
        %7786 = vst.msk [vmem:[#allocation3 + $0x20] sm:$0xff] %vm619, %v7777
        %7787 = vst.msk [vmem:[#allocation3 + $0x28] sm:$0xff] %vm619, %v7778
        %7788 = vst.msk [vmem:[#allocation3 + $0x30] sm:$0xff] %vm619, %v7779
        %7789 = vst.msk [vmem:[#allocation3 + $0x38] sm:$0xff] %vm619, %v7780
        %7790 = vst.msk [vmem:[#allocation3 + $0x40] sm:$0xff] %vm619, %v7781
        %v7791 = vld [vmem:[#allocation3] sm:$0xff]
        %v7792 = vld [vmem:[#allocation3 + $0x8] sm:$0xff]
        %v7793 = vld [vmem:[#allocation3 + $0x10] sm:$0xff]
        %v7794 = vld [vmem:[#allocation3 + $0x18] sm:$0xff]
        %v7795 = vld [vmem:[#allocation3 + $0x20] sm:$0xff]
        %v7796 = vld [vmem:[#allocation3 + $0x28] sm:$0xff]
        %v7797 = vld [vmem:[#allocation3 + $0x30] sm:$0xff]
        %v7798 = vld [vmem:[#allocation3 + $0x38] sm:$0xff]
        %v7799 = vld [vmem:[#allocation3 + $0x40] sm:$0xff]
        %v7800 = vld [vmem:[#allocation2 + $0x8] sm:$0xfe]
        %v7801 = vld [vmem:[#allocation2 + $0x10] sm:$0xff]
        %v7802 = vld [vmem:[#allocation2 + $0x18] sm:$0xff]
        %v7803 = vld [vmem:[#allocation2 + $0x20] sm:$0xff]
        %v7804 = vld [vmem:[#allocation2 + $0x28] sm:$0x3f]
        %s7805 = scalar_lea.vmem %s8, 112
        %v7806 = vld [vmem:[%s7805] sm:$0xf]
        %v7807 = vld [vmem:[%s7805 + $0x4] sm:$0xf]
        %v7808 = vld [vmem:[%s7805 + $0x8] sm:$0xf]
        %v7809 = vld [vmem:[%s7805 + $0xc] sm:$0xf]
        %v7811 = vshrl.u32 %v7800, 16
        %v7813 = vrot.slane %v7811, 1
        %v7814 = vshll.u32 %v7800, 16
        %v7816 = vrot.slane %v7814, 2
        %v7817 = vor.u32 %v7813, %v7816
        %v7819 = vshrl.u32 %v7801, 16
        %v7821 = vrot.slane %v7819, 1
        %v7822 = vshll.u32 %v7801, 16
        %v7824 = vrot.slane %v7822, 2
        %v7825 = vor.u32 %v7821, %v7824
        %v7826 = vsel %vm4037, %v7817, %v7825
        %v7828 = vshrl.u32 %v7802, 16
        %v7830 = vrot.slane %v7828, 1
        %v7831 = vshll.u32 %v7802, 16
        %v7833 = vrot.slane %v7831, 2
        %v7834 = vor.u32 %v7830, %v7833
        %v7835 = vsel %vm4037, %v7825, %v7834
        %v7837 = vshrl.u32 %v7803, 16
        %v7839 = vrot.slane %v7837, 1
        %v7840 = vshll.u32 %v7803, 16
        %v7842 = vrot.slane %v7840, 2
        %v7843 = vor.u32 %v7839, %v7842
        %v7844 = vsel %vm4037, %v7834, %v7843
        %v7846 = vshrl.u32 %v7804, 16
        %v7848 = vrot.slane %v7846, 1
        %v7849 = vshll.u32 %v7804, 16
        %v7851 = vrot.slane %v7849, 2
        %v7852 = vor.u32 %v7848, %v7851
        %v7853 = vsel %vm4037, %v7843, %v7852
        %v7858 = vunpack.c.l.b16 %v7806
        %v7859 = vunpack.c.l.b16 %v7807
        %v7860 = vunpack.c.l.b16 %v7808
        %v7861 = vunpack.c.l.b16 %v7809
        %v7862 = vpack.c.b16 %v7859, %v7858
        %v7863 = vpack.c.b16 %v7861, %v7860
        %v7867 = vsel %vm619, %v7826, 0
        %v7870 = vsel %vm619, %v7835, 0
        %v7873 = vsel %vm619, %v7844, 0
        %v7876 = vsel %vm619, %v7853, 0
        %v7879 = vsel %vm619, %v7852, 0
        %7881 = vmatprep.subr.bf16.mxu0 0
        %7882 = vmatpush1.bf16.msra.mxu0 %v7862
        %7883 = vmatprep.subr.bf16.mxu0 0
        %7884 = vmatpush1.bf16.msra.mxu0 %v7863
        %7885 = vmatprep.subr.bf16.mxu0 0
        %7886 = vmatpush1.bf16.msra.mxu0 0
        %7887 = vmatprep.subr.bf16.mxu0 0
        %7888 = vmatpush1.bf16.msra.mxu0 0
        %7889 = vmatprep.subr.bf16.mxu0 0
        %7890 = vmatpush1.bf16.msra.mxu0 0
        %7891 = vmatprep.subr.bf16.mxu0 0
        %7892 = vmatpush1.bf16.msra.mxu0 0
        %7893 = vmatprep.subr.bf16.mxu0 0
        %7894 = vmatpush1.bf16.msra.mxu0 0
        %7895 = vmatprep.subr.bf16.mxu0 0
        %7896 = vmatpush1.bf16.msra.mxu0 0
        %7897 = vmatprep.subr.bf16.mxu0 0
        %7898 = vmatpush1.bf16.msra.mxu0 0
        %7899 = vmatprep.subr.bf16.mxu0 0
        %7900 = vmatpush1.bf16.msra.mxu0 0
        %7901 = vmatprep.subr.bf16.mxu0 0
        %7902 = vmatpush1.bf16.msra.mxu0 0
        %7903 = vmatprep.subr.bf16.mxu0 0
        %7904 = vmatpush1.bf16.msra.mxu0 0
        %7905 = vmatprep.subr.bf16.mxu0 0
        %7906 = vmatpush1.bf16.msra.mxu0 0
        %7907 = vmatprep.subr.bf16.mxu0 0
        %7908 = vmatpush1.bf16.msra.mxu0 0
        %7909 = vmatprep.subr.bf16.mxu0 0
        %7910 = vmatpush1.bf16.msra.mxu0 0
        %7911 = vmatprep.subr.bf16.mxu0 0
        %7912 = vmatpush1.bf16.msra.mxu0 0
        %7913 = vmatprep.mubr.bf16.mxu0 0
        %7914 = vmatmul.mubr.bf16.gmra.mrb[0].mxu0 %v7867
        %v7915 = vpop.f32.mrb[0].mxu0
        %v7916 = vadd.f32 0.0, %v7915
        %v7917 = vpop.f32.mrb[0].mxu0
        %v7918 = vpop.f32.mrb[0].mxu0
        %v7919 = vadd.f32 0.0, %v7918
        %v7920 = vpop.f32.mrb[0].mxu0
        %7921 = vmatprep.mubr.bf16.mxu0 0
        %7922 = vmatmul.mubr.bf16.gmra.mrb[0].mxu0 %v7870
        %v7923 = vpop.f32.mrb[0].mxu0
        %v7924 = vadd.f32 0.0, %v7923
        %v7925 = vpop.f32.mrb[0].mxu0
        %v7926 = vpop.f32.mrb[0].mxu0
        %v7927 = vadd.f32 0.0, %v7926
        %v7928 = vpop.f32.mrb[0].mxu0
        %7929 = vmatprep.mubr.bf16.mxu0 0
        %7930 = vmatmul.mubr.bf16.gmra.mrb[0].mxu0 %v7873
        %v7931 = vpop.f32.mrb[0].mxu0
        %v7932 = vadd.f32 0.0, %v7931
        %v7933 = vpop.f32.mrb[0].mxu0
        %v7934 = vpop.f32.mrb[0].mxu0
        %v7935 = vadd.f32 0.0, %v7934
        %v7936 = vpop.f32.mrb[0].mxu0
        %7937 = vmatprep.mubr.bf16.mxu0 0
        %7938 = vmatmul.mubr.bf16.gmra.mrb[0].mxu0 %v7876
        %v7939 = vpop.f32.mrb[0].mxu0
        %v7940 = vadd.f32 0.0, %v7939
        %v7941 = vpop.f32.mrb[0].mxu0
        %v7942 = vpop.f32.mrb[0].mxu0
        %v7943 = vadd.f32 0.0, %v7942
        %v7944 = vpop.f32.mrb[0].mxu0
        %7945 = vmatprep.mubr.bf16.mxu0 0
        %7946 = vmatmul.mubr.bf16.gmra.mrb[0].mxu0 %v7879
        %v7947 = vpop.f32.mrb[0].mxu0
        %v7948 = vadd.f32 0.0, %v7947
        %v7949 = vpop.f32.mrb[0].mxu0
        %v7950 = vpop.f32.mrb[0].mxu0
        %v7951 = vpop.f32.mrb[0].mxu0
        %7952 = vdwg.mxu0
        %v7953 = vadd.f32 %v7791, %v7916
        %v7954 = vadd.f32 %v7792, %v7919
        %v7955 = vadd.f32 %v7793, %v7924
        %v7956 = vadd.f32 %v7794, %v7927
        %v7957 = vadd.f32 %v7795, %v7932
        %v7958 = vadd.f32 %v7796, %v7935
        %v7959 = vadd.f32 %v7797, %v7940
        %v7960 = vadd.f32 %v7798, %v7943
        %v7961 = vadd.f32 %v7799, %v7948
        %7962 = vst.msk [vmem:[#allocation3] sm:$0xff] %vm619, %v7953
        %7963 = vst.msk [vmem:[#allocation3 + $0x8] sm:$0xff] %vm619, %v7954
        %7964 = vst.msk [vmem:[#allocation3 + $0x10] sm:$0xff] %vm619, %v7955
        %7965 = vst.msk [vmem:[#allocation3 + $0x18] sm:$0xff] %vm619, %v7956
        %7966 = vst.msk [vmem:[#allocation3 + $0x20] sm:$0xff] %vm619, %v7957
        %7967 = vst.msk [vmem:[#allocation3 + $0x28] sm:$0xff] %vm619, %v7958
        %7968 = vst.msk [vmem:[#allocation3 + $0x30] sm:$0xff] %vm619, %v7959
        %7969 = vst.msk [vmem:[#allocation3 + $0x38] sm:$0xff] %vm619, %v7960
        %7970 = vst.msk [vmem:[#allocation3 + $0x40] sm:$0xff] %vm619, %v7961
        %v7971 = vld [vmem:[#allocation3] sm:$0xff]
        %v7972 = vld [vmem:[#allocation3 + $0x8] sm:$0xff]
        %v7973 = vld [vmem:[#allocation3 + $0x10] sm:$0xff]
        %v7974 = vld [vmem:[#allocation3 + $0x18] sm:$0xff]
        %v7975 = vld [vmem:[#allocation3 + $0x20] sm:$0xff]
        %v7976 = vld [vmem:[#allocation3 + $0x28] sm:$0xff]
        %v7977 = vld [vmem:[#allocation3 + $0x30] sm:$0xff]
        %v7978 = vld [vmem:[#allocation3 + $0x38] sm:$0xff]
        %v7979 = vld [vmem:[#allocation3 + $0x40] sm:$0xff]
        %v7980 = vld [vmem:[#allocation2 + $0x8] sm:$0xfc]
        %v7981 = vld [vmem:[#allocation2 + $0x10] sm:$0xff]
        %v7982 = vld [vmem:[#allocation2 + $0x18] sm:$0xff]
        %v7983 = vld [vmem:[#allocation2 + $0x20] sm:$0xff]
        %v7984 = vld [vmem:[#allocation2 + $0x28] sm:$0x3f]
        %s7985 = scalar_lea.vmem %s8, 128
        %v7986 = vld [vmem:[%s7985] sm:$0xf]
        %v7987 = vld [vmem:[%s7985 + $0x4] sm:$0xf]
        %v7988 = vld [vmem:[%s7985 + $0x8] sm:$0xf]
        %v7989 = vld [vmem:[%s7985 + $0xc] sm:$0xf]
        %v7995 = vrot.slane %v7980, 2
        %v7996 = vrot.slane %v7981, 2
        %v7997 = vsel %vm4223, %v7995, %v7996
        %v7998 = vrot.slane %v7982, 2
        %v7999 = vsel %vm4223, %v7996, %v7998
        %v8000 = vrot.slane %v7983, 2
        %v8001 = vsel %vm4223, %v7998, %v8000
        %v8002 = vrot.slane %v7984, 2
        %v8003 = vsel %vm4223, %v8000, %v8002
        %v8008 = vunpack.c.l.b16 %v7986
        %v8009 = vunpack.c.l.b16 %v7987
        %v8010 = vunpack.c.l.b16 %v7988
        %v8011 = vunpack.c.l.b16 %v7989
        %v8012 = vpack.c.b16 %v8009, %v8008
        %v8013 = vpack.c.b16 %v8011, %v8010
        %v8017 = vsel %vm619, %v7997, 0
        %v8020 = vsel %vm619, %v7999, 0
        %v8023 = vsel %vm619, %v8001, 0
        %v8026 = vsel %vm619, %v8003, 0
        %v8029 = vsel %vm619, %v8002, 0
        %8031 = vmatprep.subr.bf16.mxu0 0
        %8032 = vmatpush1.bf16.msra.mxu0 %v8012
        %8033 = vmatprep.subr.bf16.mxu0 0
        %8034 = vmatpush1.bf16.msra.mxu0 %v8013
        %8035 = vmatprep.subr.bf16.mxu0 0
        %8036 = vmatpush1.bf16.msra.mxu0 0
        %8037 = vmatprep.subr.bf16.mxu0 0
        %8038 = vmatpush1.bf16.msra.mxu0 0
        %8039 = vmatprep.subr.bf16.mxu0 0
        %8040 = vmatpush1.bf16.msra.mxu0 0
        %8041 = vmatprep.subr.bf16.mxu0 0
        %8042 = vmatpush1.bf16.msra.mxu0 0
        %8043 = vmatprep.subr.bf16.mxu0 0
        %8044 = vmatpush1.bf16.msra.mxu0 0
        %8045 = vmatprep.subr.bf16.mxu0 0
        %8046 = vmatpush1.bf16.msra.mxu0 0
        %8047 = vmatprep.subr.bf16.mxu0 0
        %8048 = vmatpush1.bf16.msra.mxu0 0
        %8049 = vmatprep.subr.bf16.mxu0 0
        %8050 = vmatpush1.bf16.msra.mxu0 0
        %8051 = vmatprep.subr.bf16.mxu0 0
        %8052 = vmatpush1.bf16.msra.mxu0 0
        %8053 = vmatprep.subr.bf16.mxu0 0
        %8054 = vmatpush1.bf16.msra.mxu0 0
        %8055 = vmatprep.subr.bf16.mxu0 0
        %8056 = vmatpush1.bf16.msra.mxu0 0
        %8057 = vmatprep.subr.bf16.mxu0 0
        %8058 = vmatpush1.bf16.msra.mxu0 0
        %8059 = vmatprep.subr.bf16.mxu0 0
        %8060 = vmatpush1.bf16.msra.mxu0 0
        %8061 = vmatprep.subr.bf16.mxu0 0
        %8062 = vmatpush1.bf16.msra.mxu0 0
        %8063 = vmatprep.mubr.bf16.mxu0 0
        %8064 = vmatmul.mubr.bf16.gmra.mrb[0].mxu0 %v8017
        %v8065 = vpop.f32.mrb[0].mxu0
        %v8066 = vadd.f32 0.0, %v8065
        %v8067 = vpop.f32.mrb[0].mxu0
        %v8068 = vpop.f32.mrb[0].mxu0
        %v8069 = vadd.f32 0.0, %v8068
        %v8070 = vpop.f32.mrb[0].mxu0
        %8071 = vmatprep.mubr.bf16.mxu0 0
        %8072 = vmatmul.mubr.bf16.gmra.mrb[0].mxu0 %v8020
        %v8073 = vpop.f32.mrb[0].mxu0
        %v8074 = vadd.f32 0.0, %v8073
        %v8075 = vpop.f32.mrb[0].mxu0
        %v8076 = vpop.f32.mrb[0].mxu0
        %v8077 = vadd.f32 0.0, %v8076
        %v8078 = vpop.f32.mrb[0].mxu0
        %8079 = vmatprep.mubr.bf16.mxu0 0
        %8080 = vmatmul.mubr.bf16.gmra.mrb[0].mxu0 %v8023
        %v8081 = vpop.f32.mrb[0].mxu0
        %v8082 = vadd.f32 0.0, %v8081
        %v8083 = vpop.f32.mrb[0].mxu0
        %v8084 = vpop.f32.mrb[0].mxu0
        %v8085 = vadd.f32 0.0, %v8084
        %v8086 = vpop.f32.mrb[0].mxu0
        %8087 = vmatprep.mubr.bf16.mxu0 0
        %8088 = vmatmul.mubr.bf16.gmra.mrb[0].mxu0 %v8026
        %v8089 = vpop.f32.mrb[0].mxu0
        %v8090 = vadd.f32 0.0, %v8089
        %v8091 = vpop.f32.mrb[0].mxu0
        %v8092 = vpop.f32.mrb[0].mxu0
        %v8093 = vadd.f32 0.0, %v8092
        %v8094 = vpop.f32.mrb[0].mxu0
        %8095 = vmatprep.mubr.bf16.mxu0 0
        %8096 = vmatmul.mubr.bf16.gmra.mrb[0].mxu0 %v8029
        %v8097 = vpop.f32.mrb[0].mxu0
        %v8098 = vadd.f32 0.0, %v8097
        %v8099 = vpop.f32.mrb[0].mxu0
        %v8100 = vpop.f32.mrb[0].mxu0
        %v8101 = vpop.f32.mrb[0].mxu0
        %8102 = vdwg.mxu0
        %v8103 = vadd.f32 %v7971, %v8066
        %v8104 = vadd.f32 %v7972, %v8069
        %v8105 = vadd.f32 %v7973, %v8074
        %v8106 = vadd.f32 %v7974, %v8077
        %v8107 = vadd.f32 %v7975, %v8082
        %v8108 = vadd.f32 %v7976, %v8085
        %v8109 = vadd.f32 %v7977, %v8090
        %v8110 = vadd.f32 %v7978, %v8093
        %v8111 = vadd.f32 %v7979, %v8098
        %8112 = vst.msk [vmem:[#allocation3] sm:$0xff] %vm619, %v8103
        %8113 = vst.msk [vmem:[#allocation3 + $0x8] sm:$0xff] %vm619, %v8104
        %8114 = vst.msk [vmem:[#allocation3 + $0x10] sm:$0xff] %vm619, %v8105
        %8115 = vst.msk [vmem:[#allocation3 + $0x18] sm:$0xff] %vm619, %v8106
        %8116 = vst.msk [vmem:[#allocation3 + $0x20] sm:$0xff] %vm619, %v8107
        %8117 = vst.msk [vmem:[#allocation3 + $0x28] sm:$0xff] %vm619, %v8108
        %8118 = vst.msk [vmem:[#allocation3 + $0x30] sm:$0xff] %vm619, %v8109
        %8119 = vst.msk [vmem:[#allocation3 + $0x38] sm:$0xff] %vm619, %v8110
        %8120 = vst.msk [vmem:[#allocation3 + $0x40] sm:$0xff] %vm619, %v8111
        %v8121 = vld [vmem:[#allocation3] sm:$0xff]
        %v8122 = vld [vmem:[%s609] sm:$0xff]
        %v8123 = vadd.f32 %v8121, %v8122
        %8124 = vst.msk [vmem:[%s617] sm:$0xff] %vm619, %v8123
        %v8125 = vld [vmem:[#allocation3 + $0x9] sm:$0xff]
        %v8126 = vld [vmem:[%s609 + $0x8] sm:$0xff]
        %v8127 = vadd.f32 %v8125, %v8126
        %8128 = vst.msk [vmem:[%s617 + $0x8] sm:$0xff] %vm619, %v8127
        %v8129 = vld [vmem:[#allocation3 + $0x12] sm:$0xff]
        %v8130 = vld [vmem:[%s609 + $0x10] sm:$0xff]
        %v8131 = vadd.f32 %v8129, %v8130
        %8132 = vst.msk [vmem:[%s617 + $0x10] sm:$0xff] %vm619, %v8131
        %v8133 = vld [vmem:[#allocation3 + $0x1b] sm:$0xff]
        %v8134 = vld [vmem:[%s609 + $0x18] sm:$0xff]
        %v8135 = vadd.f32 %v8133, %v8134
        %8136 = vst.msk [vmem:[%s617 + $0x18] sm:$0xff] %vm619, %v8135
        %v8137 = vld [vmem:[#allocation3 + $0x24] sm:$0xff]
        %v8138 = vld [vmem:[%s609 + $0x20] sm:$0xff]
        %v8139 = vadd.f32 %v8137, %v8138
        %8140 = vst.msk [vmem:[%s617 + $0x20] sm:$0xff] %vm619, %v8139
        %v8141 = vld [vmem:[#allocation3 + $0x2d] sm:$0xff]
        %v8142 = vld [vmem:[%s609 + $0x28] sm:$0xff]
        %v8143 = vadd.f32 %v8141, %v8142
        %8144 = vst.msk [vmem:[%s617 + $0x28] sm:$0xff] %vm619, %v8143
        %v8145 = vld [vmem:[#allocation3 + $0x36] sm:$0xff]
        %v8146 = vld [vmem:[%s609 + $0x30] sm:$0xff]
        %v8147 = vadd.f32 %v8145, %v8146
        %8148 = vst.msk [vmem:[%s617 + $0x30] sm:$0xff] %vm619, %v8147
        %v8149 = vld [vmem:[#allocation3 + $0x3f] sm:$0xff]
        %v8150 = vld [vmem:[%s609 + $0x38] sm:$0xff]
        %v8151 = vadd.f32 %v8149, %v8150
        %8152 = vst.msk [vmem:[%s617 + $0x38] sm:$0xff] %vm619, %v8151
        %p8153 = scmp.lt.s32.totalorder %s31, 1
        %s8154 = scalar_select %p8153, %s31, 1
        %s8155 = smul.addr %s8154, 8
        %s8156 = smul.addr %s8155, 8
        %s8157 = scalar_lea.vmem %s15, %s8156
        // Predicated region
        $region113: #{tpu_custom_call.1} parent=79 // pred_check
          %p8158 = pneg %p374
        $region114: #{tpu_custom_call.1} parent=79 // pred_check_branch
          %8160 = sbr.rel (%p8158) target = $region116
        $region115: #{tpu_custom_call.1} parent=79 // pred_region
          _
        $region116: #{tpu_custom_call.1} parent=79 // pred_fallthru
          _
      $region80: #{tpu_custom_call.1} parent=5 // pred_fallthru
        _
      %p8161 = scmp.le.s32.totalorder 2, %s26
      // Predicated region
      $region117: #{tpu_custom_call.1} parent=5 // pred_check
        %p8162 = pneg %p8161
      $region118: #{tpu_custom_call.1} parent=5 // pred_check_branch
        %8164 = sbr.rel (%p8162) target = $region120
      $region119: #{tpu_custom_call.1} parent=5 // pred_region
        %s8165 = ssub.s32 %s26, 2
        // Predicated region
        $region121: #{tpu_custom_call.1} parent=119 // pred_check
          %p8166 = pneg %p380
        $region122: #{tpu_custom_call.1} parent=119 // pred_check_branch
          %8168 = sbr.rel (%p8166) target = $region124
        $region123: #{tpu_custom_call.1} parent=119 // pred_region
          %p8169 = scmp.lt.s32.totalorder %s32, 1
          %s8170 = scalar_select %p8169, %s32, 1
          %s8171 = smul.addr %s8170, 8
          %s8172 = smul.addr %s8171, 8
          %s8173 = scalar_lea.vmem %s15, %s8172
        $region124: #{tpu_custom_call.1} parent=119 // pred_fallthru
          _
      $region120: #{tpu_custom_call.1} parent=5 // pred_fallthru
        _
    $region6: #{tpu_custom_call.1} parent=1 // loop_footer
      %s30 = sadd.s32 1, %s26
    $region7: #{tpu_custom_call.1} parent=1 // loop_footer_branch
      %25 = sbr.rel target = $region3
    $region8: #{tpu_custom_call.1} parent=1 // loop_exit
      _
    %8174 = vsyncpa [#allocation5], 1
    %s8175 = scalar_lea.sflag [#allocation5], 1
    %8176 = vsyncpa %s8175, 1
    %8177 = vsyncpa [#allocation7], 1
    %8178 = vsyncpa [#allocation10], 1
    %8179 = vsyncpa [#allocation13], 1
    %8180 = vsyncpa [#allocation16], 1

</llo_original>
